<compile_context>
chip_gen: v5e
topology: v5e:2x2
jax: 0.10.0
libtpu: 0.0.40
codegen_flags: <defaults>
</compile_context>

<pallas_src>
import functools
import math

import jax
import jax.numpy as jnp
from jax.experimental import pallas as pl
from jax.experimental.pallas import tpu as pltpu

LANE = 128
BN_EPS = 1e-5  # PyTorch BatchNorm2d default


def _round_up(v, m):
    return (v + m - 1) // m * m


def _pad_last(a, target):
    pad = target - a.shape[-1]
    if pad == 0:
        return a
    return jnp.pad(a, [(0, 0)] * (a.ndim - 1) + [(0, pad)])


def _fold_bn(gamma, beta, mean, var, eps=BN_EPS):
    scale = gamma / jnp.sqrt(var + eps)
    shift = beta - mean * scale
    return scale, shift


def _pick_toh(ho, wo, target_m=256):
    """Smallest divisor of ho whose row tile gives an MXU M dim >= target_m."""
    for d in range(1, ho + 1):
        if ho % d == 0 and d * wo >= target_m:
            return d
    return ho  # small images: one tile covering all rows (never degrades to 1)


def _vmem_limit(block_bytes):
    """Generation-aware VMEM limit from the real (double-buffered) footprint."""
    try:
        cap = int(pltpu.get_tpu_info().vmem_capacity_bytes)
    except Exception:
        cap = 64 * 1024 * 1024
    want = block_bytes + (6 << 20)          # headroom for spills / metadata
    hi = max(32 << 20, int(cap * 0.85))
    return int(min(max(want, 32 << 20), hi))


# -----------------------------------------------------------------------------
# Generic fused kernel:
#   y = sum_{kh,kw} x[n, oh+kh, ow+kw, :] @ W[kh,kw]   (BN scale pre-folded in W)
#   y = y + shift ; optional per-channel PReLU
#   y = y + shortcut   (identity tile add, or in-kernel 1x1 conv + BN shift)
# Accumulation is carried in registers; o_ref written once per Cout chunk.
# -----------------------------------------------------------------------------
def _conv_kernel(*refs, ksize, toh, wo, cout_p, cchunk, activate, shortcut):
    it = iter(refs)
    x_ref = next(it)        # (1, Hp, Wp8, Cin_p)  bf16 : full padded image of batch n
    w_ref = next(it)        # (ksize*ksize, Cin_p, Cout_p) bf16
    shift_ref = next(it)    # (1, Cout_p) f32
    alpha_ref = next(it) if activate else None       # (1, Cout_p) f32
    sc_ref = wsc_ref = shsc_ref = None
    if shortcut is not None:
        sc_ref = next(it)                            # (1, toh, Wo, C_sc) bf16
        if shortcut == "conv":
            wsc_ref = next(it)                       # (C_sc, Cout_p) bf16
            shsc_ref = next(it)                      # (1, Cout_p) f32
    o_ref = next(it)        # (1, toh, Wo, Cout_p)

    t = pl.program_id(1)
    oh0 = pl.multiple_of(t * toh, toh)   # first output row handled by this tile

    for c0 in range(0, cout_p, cchunk):
        acc = None
        for i in range(ksize):
            for j in range(ksize):
                slab = x_ref[0, pl.ds(oh0 + i, toh), pl.ds(j, wo), :]
                slab = slab.reshape(toh * wo, slab.shape[-1])
                wt = w_ref[i * ksize + j, :, c0:c0 + cchunk]
                contrib = jnp.dot(slab, wt, preferred_element_type=jnp.float32)
                acc = contrib if acc is None else acc + contrib

        y = acc + shift_ref[:, c0:c0 + cchunk]
        if activate:
            a = alpha_ref[:, c0:c0 + cchunk]
            y = jnp.where(y > 0.0, y, y * a)
        if shortcut == "identity":
            sc = sc_ref[0, :, :, c0:c0 + cchunk].reshape(toh * wo, cchunk)
            y = y + sc.astype(jnp.float32)
        elif shortcut == "conv":
            sc = sc_ref[0].reshape(toh * wo, sc_ref.shape[-1])
            y = y + jnp.dot(sc, wsc_ref[:, c0:c0 + cchunk],
                            preferred_element_type=jnp.float32)
            y = y + shsc_ref[:, c0:c0 + cchunk]

        o_ref[0, :, :, c0:c0 + cchunk] = (
            y.reshape(toh, wo, cchunk).astype(o_ref.dtype))


def _fused_conv(x_pad, w_folded, shift, *, wo, alpha=None, shortcut=None,
                sc_x=None, sc_w=None, sc_shift=None, ksize, out_dtype):
    """x_pad: (N, Hp, Wp8, Cin_p) bf16 (spatially + channel padded).
    w_folded: (ksize*ksize, Cin_p, Cout_p) bf16 with BN scale folded in.
    Returns (N, Ho, wo, Cout_p) in out_dtype."""
    n, hp, wp, cin_p = x_pad.shape
    k2, _, cout_p = w_folded.shape
    assert k2 == ksize * ksize
    ho = hp - ksize + 1
    assert wo <= wp - ksize + 1

    toh = _pick_toh(ho, wo)
    n_t = ho // toh
    if cout_p <= 256:
        cchunk = cout_p
    else:
        cchunk = 256 if cout_p % 256 == 0 else 128

    kernel = functools.partial(
        _conv_kernel, ksize=ksize, toh=toh, wo=wo, cout_p=cout_p,
        cchunk=cchunk, activate=alpha is not None, shortcut=shortcut)

    in_specs = [
        # full padded image per batch element (resident across the row-tile axis)
        pl.BlockSpec((1, hp, wp, cin_p), lambda nn, tt: (nn, 0, 0, 0)),
        pl.BlockSpec((k2, cin_p, cout_p), lambda nn, tt: (0, 0, 0)),
        pl.BlockSpec((1, cout_p), lambda nn, tt: (0, 0)),
    ]
    args = [x_pad, w_folded, shift]
    blocks = [((1, hp, wp, cin_p), x_pad.dtype),
              ((k2, cin_p, cout_p), w_folded.dtype),
              ((1, cout_p), shift.dtype)]

    if alpha is not None:
        in_specs.append(pl.BlockSpec((1, cout_p), lambda nn, tt: (0, 0)))
        args.append(alpha)
        blocks.append(((1, cout_p), alpha.dtype))
    if shortcut is not None:
        c_sc = sc_x.shape[-1]
        in_specs.append(pl.BlockSpec((1, toh, wo, c_sc),
                                     lambda nn, tt: (nn, tt, 0, 0)))
        args.append(sc_x)
        blocks.append(((1, toh, wo, c_sc), sc_x.dtype))
        if shortcut == "conv":
            in_specs.append(pl.BlockSpec((c_sc, cout_p), lambda nn, tt: (0, 0)))
            args.append(sc_w)
            blocks.append(((c_sc, cout_p), sc_w.dtype))
            in_specs.append(pl.BlockSpec((1, cout_p), lambda nn, tt: (0, 0)))
            args.append(sc_shift)
            blocks.append(((1, cout_p), sc_shift.dtype))

    blocks.append(((1, toh, wo, cout_p), out_dtype))
    foot = sum(2 * math.prod(s) * jnp.dtype(d).itemsize for s, d in blocks)

    return pl.pallas_call(
        kernel,
        out_shape=jax.ShapeDtypeStruct((n, ho, wo, cout_p), out_dtype),
        grid_spec=pltpu.PrefetchScalarGridSpec(
            num_scalar_prefetch=0,
            grid=(n, n_t),
            in_specs=in_specs,
            out_specs=pl.BlockSpec((1, toh, wo, cout_p),
                                   lambda nn, tt: (nn, tt, 0, 0)),
        ),
        compiler_params=pltpu.CompilerParams(
            dimension_semantics=("parallel", "parallel"),
            vmem_limit_bytes=_vmem_limit(foot),
        ),
    )(*args)


# -----------------------------------------------------------------------------
# BasicBlockIR forward (inference BN stats, stride=1)
# -----------------------------------------------------------------------------
@jax.jit
def basic_block_ir_forward(x, params):
    n, cin, h, w = x.shape
    w1 = params["conv1_w"]                  # (depth, cin, k, k)
    depth, _, ksize, _ = w1.shape
    pad = ksize // 2
    cin_p = _round_up(cin, LANE)
    d_p = _round_up(depth, LANE)
    wp_true = w + 2 * pad
    wpad_r = pad + (_round_up(wp_true, 8) - wp_true)   # keep Wp a multiple of 8

    x_nhwc = jnp.transpose(x, (0, 2, 3, 1)).astype(jnp.float32)     # (N,H,W,Cin)

    # ---- res_layer_1: BN1 -> conv3x3 (BN2 folded into W) -> per-channel PReLU ----
    s1, b1 = _fold_bn(*params["bn1"])
    x1 = _pad_last(x_nhwc * s1 + b1, cin_p).astype(jnp.bfloat16)
    x1 = jnp.pad(x1, ((0, 0), (pad, pad), (pad, wpad_r), (0, 0)))

    s2, b2 = _fold_bn(*params["bn2"])
    w1m = jnp.transpose(w1, (2, 3, 1, 0)) * s2[None, None, None, :]   # (k,k,cin,depth)
    w1m = w1m.reshape(ksize * ksize, cin, depth)
    w1m = _pad_last(jnp.pad(w1m, ((0, 0), (0, cin_p - cin), (0, 0))), d_p)
    shift2 = _pad_last(b2.reshape(1, depth), d_p).astype(jnp.float32)
    alpha = _pad_last(params["prelu_alpha"].reshape(1, depth), d_p).astype(jnp.float32)

    r1 = _fused_conv(x1, w1m.astype(jnp.bfloat16), shift2, wo=w, alpha=alpha,
                     ksize=ksize, out_dtype=jnp.bfloat16)             # (N,H,W,d_p)

    # TODO(synk): emit r1 already spatially padded from kernel 1; for now one
    #             bf16 pad pass in XLA.
    r1p = jnp.pad(r1, ((0, 0), (pad, pad), (pad, wpad_r), (0, 0)))

    # ---- res_layer_2: conv3x3 (BN3 folded in) + fused shortcut add ----
    s3, b3 = _fold_bn(*params["bn3"])
    w2m = jnp.transpose(params["conv2_w"], (2, 3, 1, 0)) * s3[None, None, None, :]
    w2m = w2m.reshape(ksize * ksize, depth, depth)
    w2m = _pad_last(jnp.pad(w2m, ((0, 0), (0, d_p - depth), (0, 0))), d_p)
    shift3 = _pad_last(b3.reshape(1, depth), d_p).astype(jnp.float32)

    if "conv_sc_w" in params:                 # Conv2d(cin, depth, 1x1) + BN shortcut
        s_sc, b_sc = _fold_bn(*params["bn_sc"])
        wsc = jnp.transpose(params["conv_sc_w"], (2, 3, 1, 0)).reshape(cin, depth)
        wsc = wsc * s_sc[None, :]
        wsc = _pad_last(jnp.pad(wsc, ((0, cin_p - cin), (0, 0))), d_p)
        shift_sc = _pad_last(b_sc.reshape(1, depth), d_p).astype(jnp.float32)
        x_sc = _pad_last(x_nhwc, cin_p).astype(jnp.bfloat16)
        out = _fused_conv(r1p, w2m.astype(jnp.bfloat16), shift3, wo=w,
                          shortcut="conv", sc_x=x_sc,
                          sc_w=wsc.astype(jnp.bfloat16), sc_shift=shift_sc,
                          ksize=ksize, out_dtype=jnp.bfloat16)
    else:                                     # cin == depth: MaxPool2d(1,1) = identity
        x_sc = _pad_last(x_nhwc, d_p).astype(jnp.bfloat16)
        out = _fused_conv(r1p, w2m.astype(jnp.bfloat16), shift3, wo=w,
                          shortcut="identity", sc_x=x_sc,
                          ksize=ksize, out_dtype=jnp.bfloat16)

    # Back to the module's NCHW layout; slice/transpose on bf16, cast last.
    return jnp.transpose(out[..., :depth], (0, 3, 1, 2)).astype(jnp.float32)


# -----------------------------------------------------------------------------
# Pure-JAX reference mirroring the PyTorch module (silent check)
# -----------------------------------------------------------------------------
def _reference(x, params):
    def bn(y, p):
        g, b, m, v = p
        s = g / jnp.sqrt(v + BN_EPS)
        return y * s[None, :, None, None] + (b - m * s)[None, :, None, None]

    def conv(y, wgt, pad):
        return jax.lax.conv_general_dilated(
            y, wgt, window_strides=(1, 1), padding=[(pad, pad), (pad, pad)],
            dimension_numbers=("NCHW", "OIHW", "NCHW"))

    ksize = params["conv1_w"].shape[-1]
    pad = ksize // 2
    r = bn(x, params["bn1"])
    r = conv(r, params["conv1_w"], pad)
    r = bn(r, params["bn2"])
    a = params["prelu_alpha"][None, :, None, None]
    r = jnp.where(r > 0, r, a * r)
    r = conv(r, params["conv2_w"], pad)
    r = bn(r, params["bn3"])
    if "conv_sc_w" in params:
        sc = bn(conv(x, params["conv_sc_w"], 0), params["bn_sc"])
    else:
        sc = x                                  # MaxPool2d(1, 1) == identity
    return r + sc


if __name__ == "__main__":
    def bn_params(k, c):
        k1, k2, k3, k4 = jax.random.split(k, 4)
        return (1.0 + 0.1 * jax.random.normal(k1, (c,), jnp.float32),
                0.1 * jax.random.normal(k2, (c,), jnp.float32),
                0.1 * jax.random.normal(k3, (c,), jnp.float32),
                jnp.abs(jax.random.normal(k4, (c,), jnp.float32)) + 0.5)

    def make_params(k, cin, depth, ksize=3, conv_shortcut=False):
        ks = jax.random.split(k, 8)
        p = {
            "bn1": bn_params(ks[0], cin),
            "conv1_w": 0.1 * jax.random.normal(ks[1], (depth, cin, ksize, ksize), jnp.float32),
            "bn2": bn_params(ks[2], depth),
            "prelu_alpha": 0.25 + 0.05 * jax.random.normal(ks[3], (depth,), jnp.float32),
            "conv2_w": 0.1 * jax.random.normal(ks[4], (depth, depth, ksize, ksize), jnp.float32),
            "bn3": bn_params(ks[5], depth),
        }
        if conv_shortcut:
            p["conv_sc_w"] = 0.1 * jax.random.normal(ks[6], (depth, cin, 1, 1), jnp.float32)
            p["bn_sc"] = bn_params(ks[7], depth)
        return p

    key = jax.random.PRNGKey(0)
    k_a, k_b, k_xa, k_xb = jax.random.split(key, 4)

    # Config A: in_channel == depth  -> identity (MaxPool2d(1,1)) shortcut.
    xa = jax.random.normal(k_xa, (2, 8, 16, 16), jnp.float32)
    pa = make_params(k_a, cin=8, depth=8, conv_shortcut=False)

    # Config B: in_channel != depth  -> Conv1x1 + BN shortcut.
    xb = jax.random.normal(k_xb, (2, 4, 16, 16), jnp.float32)
    pb = make_params(k_b, cin=4, depth=8, conv_shortcut=True)

    for x, p in ((xa, pa), (xb, pb)):
        out = jax.block_until_ready(basic_block_ir_forward(x, p))
        ref = _reference(x, p)
        assert out.shape == ref.shape
        # bf16 MXU operands + bf16 intermediates/output => bf16-level tolerance
        assert bool(jnp.allclose(out, ref, atol=5e-2, rtol=5e-2)), \
            float(jnp.max(jnp.abs(out - ref)))

    print("KERNEL_OK")
</pallas_src>

<mosaic_0001>
module attributes {stable_mosaic.version = 11 : i64} {
  func.func @_conv_kernel(%arg0: i32, %arg1: i32, %arg2: memref<1x18x24x128xbf16, #tpu.memory_space<vmem>>, %arg3: memref<9x128x128xbf16, #tpu.memory_space<vmem>>, %arg4: memref<1x128xf32, #tpu.memory_space<vmem>>, %arg5: memref<1x128xf32, #tpu.memory_space<vmem>>, %arg6: memref<1x16x16x128xbf16, #tpu.memory_space<vmem>>) attributes {dimension_semantics = [#tpu.dimension_semantics<parallel>, #tpu.dimension_semantics<parallel>], iteration_bounds = array<i64: 2, 1>, scalar_prefetch = 0 : i64, scratch_operands = 0 : i64, tpu.core_type = #tpu.core_type<tc>, window_params = [{transform_indices = @transform_0, window_bounds = array<i64: 1, 18, 24, 128>}, {pipeline_mode = #tpu.pipeline_mode<synchronous>, transform_indices = @transform_1, window_bounds = array<i64: 9, 128, 128>}, {pipeline_mode = #tpu.pipeline_mode<synchronous>, transform_indices = @transform_2, window_bounds = array<i64: 1, 128>}, {pipeline_mode = #tpu.pipeline_mode<synchronous>, transform_indices = @transform_3, window_bounds = array<i64: 1, 128>}, {transform_indices = @transform_4, window_bounds = array<i64: 1, 16, 16, 128>}]} {
    %c16_i32 = arith.constant 16 : i32
    %0 = arith.muli %arg1, %c16_i32 : i32
    %1 = tpu.assume_multiple %0, 16 : i32
    %c0_i32 = arith.constant 0 : i32
    %2 = arith.addi %1, %c0_i32 : i32
    %c0 = arith.constant 0 : index
    %3 = arith.index_cast %2 : i32 to index
    %c0_0 = arith.constant 0 : index
    %c0_1 = arith.constant 0 : index
    %4 = vector.load %arg2[%c0, %3, %c0_0, %c0_1] : memref<1x18x24x128xbf16, #tpu.memory_space<vmem>>, vector<1x16x16x128xbf16>
    %5 = vector.shape_cast %4 : vector<1x16x16x128xbf16> to vector<16x16x128xbf16>
    %6 = vector.shape_cast %5 : vector<16x16x128xbf16> to vector<256x128xbf16>
    %c0_2 = arith.constant 0 : index
    %c0_3 = arith.constant 0 : index
    %c0_4 = arith.constant 0 : index
    %7 = vector.load %arg3[%c0_2, %c0_3, %c0_4] : memref<9x128x128xbf16, #tpu.memory_space<vmem>>, vector<1x128x128xbf16>
    %8 = vector.shape_cast %7 : vector<1x128x128xbf16> to vector<128x128xbf16>
    %cst = arith.constant dense<0.000000e+00> : vector<256x128xf32>
    %9 = tpu.matmul %6, %8, %cst {dimension_numbers = #tpu.dot_dimension_numbers<[1], [0], [0], [1], [0, 0, 1, 1], [], []>} : vector<256x128xbf16>, vector<128x128xbf16>, vector<256x128xf32> -> vector<256x128xf32>
    %c0_i32_5 = arith.constant 0 : i32
    %10 = arith.addi %1, %c0_i32_5 : i32
    %c0_6 = arith.constant 0 : index
    %11 = arith.index_cast %10 : i32 to index
    %c1 = arith.constant 1 : index
    %c0_7 = arith.constant 0 : index
    %12 = vector.load %arg2[%c0_6, %11, %c1, %c0_7] : memref<1x18x24x128xbf16, #tpu.memory_space<vmem>>, vector<1x16x16x128xbf16>
    %13 = vector.shape_cast %12 : vector<1x16x16x128xbf16> to vector<16x16x128xbf16>
    %14 = vector.shape_cast %13 : vector<16x16x128xbf16> to vector<256x128xbf16>
    %c1_8 = arith.constant 1 : index
    %c0_9 = arith.constant 0 : index
    %c0_10 = arith.constant 0 : index
    %15 = vector.load %arg3[%c1_8, %c0_9, %c0_10] : memref<9x128x128xbf16, #tpu.memory_space<vmem>>, vector<1x128x128xbf16>
    %16 = vector.shape_cast %15 : vector<1x128x128xbf16> to vector<128x128xbf16>
    %cst_11 = arith.constant dense<0.000000e+00> : vector<256x128xf32>
    %17 = tpu.matmul %14, %16, %cst_11 {dimension_numbers = #tpu.dot_dimension_numbers<[1], [0], [0], [1], [0, 0, 1, 1], [], []>} : vector<256x128xbf16>, vector<128x128xbf16>, vector<256x128xf32> -> vector<256x128xf32>
    %18 = arith.addf %9, %17 : vector<256x128xf32>
    %c0_i32_12 = arith.constant 0 : i32
    %19 = arith.addi %1, %c0_i32_12 : i32
    %c0_13 = arith.constant 0 : index
    %20 = arith.index_cast %19 : i32 to index
    %c2 = arith.constant 2 : index
    %c0_14 = arith.constant 0 : index
    %21 = vector.load %arg2[%c0_13, %20, %c2, %c0_14] : memref<1x18x24x128xbf16, #tpu.memory_space<vmem>>, vector<1x16x16x128xbf16>
    %22 = vector.shape_cast %21 : vector<1x16x16x128xbf16> to vector<16x16x128xbf16>
    %23 = vector.shape_cast %22 : vector<16x16x128xbf16> to vector<256x128xbf16>
    %c2_15 = arith.constant 2 : index
    %c0_16 = arith.constant 0 : index
    %c0_17 = arith.constant 0 : index
    %24 = vector.load %arg3[%c2_15, %c0_16, %c0_17] : memref<9x128x128xbf16, #tpu.memory_space<vmem>>, vector<1x128x128xbf16>
    %25 = vector.shape_cast %24 : vector<1x128x128xbf16> to vector<128x128xbf16>
    %cst_18 = arith.constant dense<0.000000e+00> : vector<256x128xf32>
    %26 = tpu.matmul %23, %25, %cst_18 {dimension_numbers = #tpu.dot_dimension_numbers<[1], [0], [0], [1], [0, 0, 1, 1], [], []>} : vector<256x128xbf16>, vector<128x128xbf16>, vector<256x128xf32> -> vector<256x128xf32>
    %27 = arith.addf %18, %26 : vector<256x128xf32>
    %c1_i32 = arith.constant 1 : i32
    %28 = arith.addi %1, %c1_i32 : i32
    %c0_19 = arith.constant 0 : index
    %29 = arith.index_cast %28 : i32 to index
    %c0_20 = arith.constant 0 : index
    %c0_21 = arith.constant 0 : index
    %30 = vector.load %arg2[%c0_19, %29, %c0_20, %c0_21] : memref<1x18x24x128xbf16, #tpu.memory_space<vmem>>, vector<1x16x16x128xbf16>
    %31 = vector.shape_cast %30 : vector<1x16x16x128xbf16> to vector<16x16x128xbf16>
    %32 = vector.shape_cast %31 : vector<16x16x128xbf16> to vector<256x128xbf16>
    %c3 = arith.constant 3 : index
    %c0_22 = arith.constant 0 : index
    %c0_23 = arith.constant 0 : index
    %33 = vector.load %arg3[%c3, %c0_22, %c0_23] : memref<9x128x128xbf16, #tpu.memory_space<vmem>>, vector<1x128x128xbf16>
    %34 = vector.shape_cast %33 : vector<1x128x128xbf16> to vector<128x128xbf16>
    %cst_24 = arith.constant dense<0.000000e+00> : vector<256x128xf32>
    %35 = tpu.matmul %32, %34, %cst_24 {dimension_numbers = #tpu.dot_dimension_numbers<[1], [0], [0], [1], [0, 0, 1, 1], [], []>} : vector<256x128xbf16>, vector<128x128xbf16>, vector<256x128xf32> -> vector<256x128xf32>
    %36 = arith.addf %27, %35 : vector<256x128xf32>
    %c1_i32_25 = arith.constant 1 : i32
    %37 = arith.addi %1, %c1_i32_25 : i32
    %c0_26 = arith.constant 0 : index
    %38 = arith.index_cast %37 : i32 to index
    %c1_27 = arith.constant 1 : index
    %c0_28 = arith.constant 0 : index
    %39 = vector.load %arg2[%c0_26, %38, %c1_27, %c0_28] : memref<1x18x24x128xbf16, #tpu.memory_space<vmem>>, vector<1x16x16x128xbf16>
    %40 = vector.shape_cast %39 : vector<1x16x16x128xbf16> to vector<16x16x128xbf16>
    %41 = vector.shape_cast %40 : vector<16x16x128xbf16> to vector<256x128xbf16>
    %c4 = arith.constant 4 : index
    %c0_29 = arith.constant 0 : index
    %c0_30 = arith.constant 0 : index
    %42 = vector.load %arg3[%c4, %c0_29, %c0_30] : memref<9x128x128xbf16, #tpu.memory_space<vmem>>, vector<1x128x128xbf16>
    %43 = vector.shape_cast %42 : vector<1x128x128xbf16> to vector<128x128xbf16>
    %cst_31 = arith.constant dense<0.000000e+00> : vector<256x128xf32>
    %44 = tpu.matmul %41, %43, %cst_31 {dimension_numbers = #tpu.dot_dimension_numbers<[1], [0], [0], [1], [0, 0, 1, 1], [], []>} : vector<256x128xbf16>, vector<128x128xbf16>, vector<256x128xf32> -> vector<256x128xf32>
    %45 = arith.addf %36, %44 : vector<256x128xf32>
    %c1_i32_32 = arith.constant 1 : i32
    %46 = arith.addi %1, %c1_i32_32 : i32
    %c0_33 = arith.constant 0 : index
    %47 = arith.index_cast %46 : i32 to index
    %c2_34 = arith.constant 2 : index
    %c0_35 = arith.constant 0 : index
    %48 = vector.load %arg2[%c0_33, %47, %c2_34, %c0_35] : memref<1x18x24x128xbf16, #tpu.memory_space<vmem>>, vector<1x16x16x128xbf16>
    %49 = vector.shape_cast %48 : vector<1x16x16x128xbf16> to vector<16x16x128xbf16>
    %50 = vector.shape_cast %49 : vector<16x16x128xbf16> to vector<256x128xbf16>
    %c5 = arith.constant 5 : index
    %c0_36 = arith.constant 0 : index
    %c0_37 = arith.constant 0 : index
    %51 = vector.load %arg3[%c5, %c0_36, %c0_37] : memref<9x128x128xbf16, #tpu.memory_space<vmem>>, vector<1x128x128xbf16>
    %52 = vector.shape_cast %51 : vector<1x128x128xbf16> to vector<128x128xbf16>
    %cst_38 = arith.constant dense<0.000000e+00> : vector<256x128xf32>
    %53 = tpu.matmul %50, %52, %cst_38 {dimension_numbers = #tpu.dot_dimension_numbers<[1], [0], [0], [1], [0, 0, 1, 1], [], []>} : vector<256x128xbf16>, vector<128x128xbf16>, vector<256x128xf32> -> vector<256x128xf32>
    %54 = arith.addf %45, %53 : vector<256x128xf32>
    %c2_i32 = arith.constant 2 : i32
    %55 = arith.addi %1, %c2_i32 : i32
    %c0_39 = arith.constant 0 : index
    %56 = arith.index_cast %55 : i32 to index
    %c0_40 = arith.constant 0 : index
    %c0_41 = arith.constant 0 : index
    %57 = vector.load %arg2[%c0_39, %56, %c0_40, %c0_41] : memref<1x18x24x128xbf16, #tpu.memory_space<vmem>>, vector<1x16x16x128xbf16>
    %58 = vector.shape_cast %57 : vector<1x16x16x128xbf16> to vector<16x16x128xbf16>
    %59 = vector.shape_cast %58 : vector<16x16x128xbf16> to vector<256x128xbf16>
    %c6 = arith.constant 6 : index
    %c0_42 = arith.constant 0 : index
    %c0_43 = arith.constant 0 : index
    %60 = vector.load %arg3[%c6, %c0_42, %c0_43] : memref<9x128x128xbf16, #tpu.memory_space<vmem>>, vector<1x128x128xbf16>
    %61 = vector.shape_cast %60 : vector<1x128x128xbf16> to vector<128x128xbf16>
    %cst_44 = arith.constant dense<0.000000e+00> : vector<256x128xf32>
    %62 = tpu.matmul %59, %61, %cst_44 {dimension_numbers = #tpu.dot_dimension_numbers<[1], [0], [0], [1], [0, 0, 1, 1], [], []>} : vector<256x128xbf16>, vector<128x128xbf16>, vector<256x128xf32> -> vector<256x128xf32>
    %63 = arith.addf %54, %62 : vector<256x128xf32>
    %c2_i32_45 = arith.constant 2 : i32
    %64 = arith.addi %1, %c2_i32_45 : i32
    %c0_46 = arith.constant 0 : index
    %65 = arith.index_cast %64 : i32 to index
    %c1_47 = arith.constant 1 : index
    %c0_48 = arith.constant 0 : index
    %66 = vector.load %arg2[%c0_46, %65, %c1_47, %c0_48] : memref<1x18x24x128xbf16, #tpu.memory_space<vmem>>, vector<1x16x16x128xbf16>
    %67 = vector.shape_cast %66 : vector<1x16x16x128xbf16> to vector<16x16x128xbf16>
    %68 = vector.shape_cast %67 : vector<16x16x128xbf16> to vector<256x128xbf16>
    %c7 = arith.constant 7 : index
    %c0_49 = arith.constant 0 : index
    %c0_50 = arith.constant 0 : index
    %69 = vector.load %arg3[%c7, %c0_49, %c0_50] : memref<9x128x128xbf16, #tpu.memory_space<vmem>>, vector<1x128x128xbf16>
    %70 = vector.shape_cast %69 : vector<1x128x128xbf16> to vector<128x128xbf16>
    %cst_51 = arith.constant dense<0.000000e+00> : vector<256x128xf32>
    %71 = tpu.matmul %68, %70, %cst_51 {dimension_numbers = #tpu.dot_dimension_numbers<[1], [0], [0], [1], [0, 0, 1, 1], [], []>} : vector<256x128xbf16>, vector<128x128xbf16>, vector<256x128xf32> -> vector<256x128xf32>
    %72 = arith.addf %63, %71 : vector<256x128xf32>
    %c2_i32_52 = arith.constant 2 : i32
    %73 = arith.addi %1, %c2_i32_52 : i32
    %c0_53 = arith.constant 0 : index
    %74 = arith.index_cast %73 : i32 to index
    %c2_54 = arith.constant 2 : index
    %c0_55 = arith.constant 0 : index
    %75 = vector.load %arg2[%c0_53, %74, %c2_54, %c0_55] : memref<1x18x24x128xbf16, #tpu.memory_space<vmem>>, vector<1x16x16x128xbf16>
    %76 = vector.shape_cast %75 : vector<1x16x16x128xbf16> to vector<16x16x128xbf16>
    %77 = vector.shape_cast %76 : vector<16x16x128xbf16> to vector<256x128xbf16>
    %c8 = arith.constant 8 : index
    %c0_56 = arith.constant 0 : index
    %c0_57 = arith.constant 0 : index
    %78 = vector.load %arg3[%c8, %c0_56, %c0_57] : memref<9x128x128xbf16, #tpu.memory_space<vmem>>, vector<1x128x128xbf16>
    %79 = vector.shape_cast %78 : vector<1x128x128xbf16> to vector<128x128xbf16>
    %cst_58 = arith.constant dense<0.000000e+00> : vector<256x128xf32>
    %80 = tpu.matmul %77, %79, %cst_58 {dimension_numbers = #tpu.dot_dimension_numbers<[1], [0], [0], [1], [0, 0, 1, 1], [], []>} : vector<256x128xbf16>, vector<128x128xbf16>, vector<256x128xf32> -> vector<256x128xf32>
    %81 = arith.addf %72, %80 : vector<256x128xf32>
    %c0_59 = arith.constant 0 : index
    %c0_60 = arith.constant 0 : index
    %82 = vector.load %arg4[%c0_59, %c0_60] : memref<1x128xf32, #tpu.memory_space<vmem>>, vector<1x128xf32>
    %83 = vector.broadcast %82 : vector<1x128xf32> to vector<256x128xf32>
    %84 = arith.addf %81, %83 : vector<256x128xf32>
    %c0_61 = arith.constant 0 : index
    %c0_62 = arith.constant 0 : index
    %85 = vector.load %arg5[%c0_61, %c0_62] : memref<1x128xf32, #tpu.memory_space<vmem>>, vector<1x128xf32>
    %cst_63 = arith.constant 0.000000e+00 : f32
    %86 = vector.broadcast %cst_63 : f32 to vector<256x128xf32>
    %87 = arith.cmpf ogt, %84, %86 : vector<256x128xf32>
    %88 = vector.broadcast %85 : vector<1x128xf32> to vector<256x128xf32>
    %89 = arith.mulf %84, %88 : vector<256x128xf32>
    %90 = arith.select %87, %84, %89 : vector<256x128xi1>, vector<256x128xf32>
    %91 = vector.shape_cast %90 : vector<256x128xf32> to vector<16x16x128xf32>
    %92 = arith.truncf %91 : vector<16x16x128xf32> to vector<16x16x128xbf16>
    %c0_64 = arith.constant 0 : index
    %c0_65 = arith.constant 0 : index
    %c0_66 = arith.constant 0 : index
    %c0_67 = arith.constant 0 : index
    %93 = vector.load %arg6[%c0_64, %c0_65, %c0_66, %c0_67] : memref<1x16x16x128xbf16, #tpu.memory_space<vmem>>, vector<1x16x16x128xbf16>
    %94 = vector.shape_cast %93 : vector<1x16x16x128xbf16> to vector<16x16x128xbf16>
    %95 = vector.shape_cast %92 : vector<16x16x128xbf16> to vector<1x16x16x128xbf16>
    tpu.vector_store %arg6[%c0_64, %c0_65, %c0_66, %c0_67], %95 {strides = array<i32>} : memref<1x16x16x128xbf16, #tpu.memory_space<vmem>>, vector<1x16x16x128xbf16>,
    return
  }
  func.func @transform_0(%arg0: i32, %arg1: i32) -> (i32, i32, i32, i32) {
    %c0_i32 = arith.constant 0 : i32
    %c0_i32_0 = arith.constant 0 : i32
    %c0_i32_1 = arith.constant 0 : i32
    %c0_i32_2 = arith.constant 0 : i32
    return %arg0, %c0_i32, %c0_i32_0, %c0_i32_1 : i32, i32, i32, i32
  }
  func.func @transform_1(%arg0: i32, %arg1: i32) -> (i32, i32, i32) {
    %c0_i32 = arith.constant 0 : i32
    %c0_i32_0 = arith.constant 0 : i32
    %c0_i32_1 = arith.constant 0 : i32
    %c0_i32_2 = arith.constant 0 : i32
    return %c0_i32, %c0_i32_0, %c0_i32_1 : i32, i32, i32
  }
  func.func @transform_2(%arg0: i32, %arg1: i32) -> (i32, i32) {
    %c0_i32 = arith.constant 0 : i32
    %c0_i32_0 = arith.constant 0 : i32
    %c0_i32_1 = arith.constant 0 : i32
    return %c0_i32, %c0_i32_0 : i32, i32
  }
  func.func @transform_3(%arg0: i32, %arg1: i32) -> (i32, i32) {
    %c0_i32 = arith.constant 0 : i32
    %c0_i32_0 = arith.constant 0 : i32
    %c0_i32_1 = arith.constant 0 : i32
    return %c0_i32, %c0_i32_0 : i32, i32
  }
  func.func @transform_4(%arg0: i32, %arg1: i32) -> (i32, i32, i32, i32) {
    %c0_i32 = arith.constant 0 : i32
    %c0_i32_0 = arith.constant 0 : i32
    %c0_i32_1 = arith.constant 0 : i32
    return %arg0, %arg1, %c0_i32, %c0_i32_0 : i32, i32, i32, i32
  }
}

module attributes {stable_mosaic.version = 11 : i64} {
  func.func @_conv_kernel(%arg0: i32, %arg1: i32, %arg2: memref<1x18x24x128xbf16, #tpu.memory_space<vmem>>, %arg3: memref<9x128x128xbf16, #tpu.memory_space<vmem>>, %arg4: memref<1x128xf32, #tpu.memory_space<vmem>>, %arg5: memref<1x16x16x128xbf16, #tpu.memory_space<vmem>>, %arg6: memref<1x16x16x128xbf16, #tpu.memory_space<vmem>>) attributes {dimension_semantics = [#tpu.dimension_semantics<parallel>, #tpu.dimension_semantics<parallel>], iteration_bounds = array<i64: 2, 1>, scalar_prefetch = 0 : i64, scratch_operands = 0 : i64, tpu.core_type = #tpu.core_type<tc>, window_params = [{transform_indices = @transform_0, window_bounds = array<i64: 1, 18, 24, 128>}, {pipeline_mode = #tpu.pipeline_mode<synchronous>, transform_indices = @transform_1, window_bounds = array<i64: 9, 128, 128>}, {pipeline_mode = #tpu.pipeline_mode<synchronous>, transform_indices = @transform_2, window_bounds = array<i64: 1, 128>}, {transform_indices = @transform_3, window_bounds = array<i64: 1, 16, 16, 128>}, {transform_indices = @transform_4, window_bounds = array<i64: 1, 16, 16, 128>}]} {
    %c16_i32 = arith.constant 16 : i32
    %0 = arith.muli %arg1, %c16_i32 : i32
    %1 = tpu.assume_multiple %0, 16 : i32
    %c0_i32 = arith.constant 0 : i32
    %2 = arith.addi %1, %c0_i32 : i32
    %c0 = arith.constant 0 : index
    %3 = arith.index_cast %2 : i32 to index
    %c0_0 = arith.constant 0 : index
    %c0_1 = arith.constant 0 : index
    %4 = vector.load %arg2[%c0, %3, %c0_0, %c0_1] : memref<1x18x24x128xbf16, #tpu.memory_space<vmem>>, vector<1x16x16x128xbf16>
    %5 = vector.shape_cast %4 : vector<1x16x16x128xbf16> to vector<16x16x128xbf16>
    %6 = vector.shape_cast %5 : vector<16x16x128xbf16> to vector<256x128xbf16>
    %c0_2 = arith.constant 0 : index
    %c0_3 = arith.constant 0 : index
    %c0_4 = arith.constant 0 : index
    %7 = vector.load %arg3[%c0_2, %c0_3, %c0_4] : memref<9x128x128xbf16, #tpu.memory_space<vmem>>, vector<1x128x128xbf16>
    %8 = vector.shape_cast %7 : vector<1x128x128xbf16> to vector<128x128xbf16>
    %cst = arith.constant dense<0.000000e+00> : vector<256x128xf32>
    %9 = tpu.matmul %6, %8, %cst {dimension_numbers = #tpu.dot_dimension_numbers<[1], [0], [0], [1], [0, 0, 1, 1], [], []>} : vector<256x128xbf16>, vector<128x128xbf16>, vector<256x128xf32> -> vector<256x128xf32>
    %c0_i32_5 = arith.constant 0 : i32
    %10 = arith.addi %1, %c0_i32_5 : i32
    %c0_6 = arith.constant 0 : index
    %11 = arith.index_cast %10 : i32 to index
    %c1 = arith.constant 1 : index
    %c0_7 = arith.constant 0 : index
    %12 = vector.load %arg2[%c0_6, %11, %c1, %c0_7] : memref<1x18x24x128xbf16, #tpu.memory_space<vmem>>, vector<1x16x16x128xbf16>
    %13 = vector.shape_cast %12 : vector<1x16x16x128xbf16> to vector<16x16x128xbf16>
    %14 = vector.shape_cast %13 : vector<16x16x128xbf16> to vector<256x128xbf16>
    %c1_8 = arith.constant 1 : index
    %c0_9 = arith.constant 0 : index
    %c0_10 = arith.constant 0 : index
    %15 = vector.load %arg3[%c1_8, %c0_9, %c0_10] : memref<9x128x128xbf16, #tpu.memory_space<vmem>>, vector<1x128x128xbf16>
    %16 = vector.shape_cast %15 : vector<1x128x128xbf16> to vector<128x128xbf16>
    %cst_11 = arith.constant dense<0.000000e+00> : vector<256x128xf32>
    %17 = tpu.matmul %14, %16, %cst_11 {dimension_numbers = #tpu.dot_dimension_numbers<[1], [0], [0], [1], [0, 0, 1, 1], [], []>} : vector<256x128xbf16>, vector<128x128xbf16>, vector<256x128xf32> -> vector<256x128xf32>
    %18 = arith.addf %9, %17 : vector<256x128xf32>
    %c0_i32_12 = arith.constant 0 : i32
    %19 = arith.addi %1, %c0_i32_12 : i32
    %c0_13 = arith.constant 0 : index
    %20 = arith.index_cast %19 : i32 to index
    %c2 = arith.constant 2 : index
    %c0_14 = arith.constant 0 : index
    %21 = vector.load %arg2[%c0_13, %20, %c2, %c0_14] : memref<1x18x24x128xbf16, #tpu.memory_space<vmem>>, vector<1x16x16x128xbf16>
    %22 = vector.shape_cast %21 : vector<1x16x16x128xbf16> to vector<16x16x128xbf16>
    %23 = vector.shape_cast %22 : vector<16x16x128xbf16> to vector<256x128xbf16>
    %c2_15 = arith.constant 2 : index
    %c0_16 = arith.constant 0 : index
    %c0_17 = arith.constant 0 : index
    %24 = vector.load %arg3[%c2_15, %c0_16, %c0_17] : memref<9x128x128xbf16, #tpu.memory_space<vmem>>, vector<1x128x128xbf16>
    %25 = vector.shape_cast %24 : vector<1x128x128xbf16> to vector<128x128xbf16>
    %cst_18 = arith.constant dense<0.000000e+00> : vector<256x128xf32>
    %26 = tpu.matmul %23, %25, %cst_18 {dimension_numbers = #tpu.dot_dimension_numbers<[1], [0], [0], [1], [0, 0, 1, 1], [], []>} : vector<256x128xbf16>, vector<128x128xbf16>, vector<256x128xf32> -> vector<256x128xf32>
    %27 = arith.addf %18, %26 : vector<256x128xf32>
    %c1_i32 = arith.constant 1 : i32
    %28 = arith.addi %1, %c1_i32 : i32
    %c0_19 = arith.constant 0 : index
    %29 = arith.index_cast %28 : i32 to index
    %c0_20 = arith.constant 0 : index
    %c0_21 = arith.constant 0 : index
    %30 = vector.load %arg2[%c0_19, %29, %c0_20, %c0_21] : memref<1x18x24x128xbf16, #tpu.memory_space<vmem>>, vector<1x16x16x128xbf16>
    %31 = vector.shape_cast %30 : vector<1x16x16x128xbf16> to vector<16x16x128xbf16>
    %32 = vector.shape_cast %31 : vector<16x16x128xbf16> to vector<256x128xbf16>
    %c3 = arith.constant 3 : index
    %c0_22 = arith.constant 0 : index
    %c0_23 = arith.constant 0 : index
    %33 = vector.load %arg3[%c3, %c0_22, %c0_23] : memref<9x128x128xbf16, #tpu.memory_space<vmem>>, vector<1x128x128xbf16>
    %34 = vector.shape_cast %33 : vector<1x128x128xbf16> to vector<128x128xbf16>
    %cst_24 = arith.constant dense<0.000000e+00> : vector<256x128xf32>
    %35 = tpu.matmul %32, %34, %cst_24 {dimension_numbers = #tpu.dot_dimension_numbers<[1], [0], [0], [1], [0, 0, 1, 1], [], []>} : vector<256x128xbf16>, vector<128x128xbf16>, vector<256x128xf32> -> vector<256x128xf32>
    %36 = arith.addf %27, %35 : vector<256x128xf32>
    %c1_i32_25 = arith.constant 1 : i32
    %37 = arith.addi %1, %c1_i32_25 : i32
    %c0_26 = arith.constant 0 : index
    %38 = arith.index_cast %37 : i32 to index
    %c1_27 = arith.constant 1 : index
    %c0_28 = arith.constant 0 : index
    %39 = vector.load %arg2[%c0_26, %38, %c1_27, %c0_28] : memref<1x18x24x128xbf16, #tpu.memory_space<vmem>>, vector<1x16x16x128xbf16>
    %40 = vector.shape_cast %39 : vector<1x16x16x128xbf16> to vector<16x16x128xbf16>
    %41 = vector.shape_cast %40 : vector<16x16x128xbf16> to vector<256x128xbf16>
    %c4 = arith.constant 4 : index
    %c0_29 = arith.constant 0 : index
    %c0_30 = arith.constant 0 : index
    %42 = vector.load %arg3[%c4, %c0_29, %c0_30] : memref<9x128x128xbf16, #tpu.memory_space<vmem>>, vector<1x128x128xbf16>
    %43 = vector.shape_cast %42 : vector<1x128x128xbf16> to vector<128x128xbf16>
    %cst_31 = arith.constant dense<0.000000e+00> : vector<256x128xf32>
    %44 = tpu.matmul %41, %43, %cst_31 {dimension_numbers = #tpu.dot_dimension_numbers<[1], [0], [0], [1], [0, 0, 1, 1], [], []>} : vector<256x128xbf16>, vector<128x128xbf16>, vector<256x128xf32> -> vector<256x128xf32>
    %45 = arith.addf %36, %44 : vector<256x128xf32>
    %c1_i32_32 = arith.constant 1 : i32
    %46 = arith.addi %1, %c1_i32_32 : i32
    %c0_33 = arith.constant 0 : index
    %47 = arith.index_cast %46 : i32 to index
    %c2_34 = arith.constant 2 : index
    %c0_35 = arith.constant 0 : index
    %48 = vector.load %arg2[%c0_33, %47, %c2_34, %c0_35] : memref<1x18x24x128xbf16, #tpu.memory_space<vmem>>, vector<1x16x16x128xbf16>
    %49 = vector.shape_cast %48 : vector<1x16x16x128xbf16> to vector<16x16x128xbf16>
    %50 = vector.shape_cast %49 : vector<16x16x128xbf16> to vector<256x128xbf16>
    %c5 = arith.constant 5 : index
    %c0_36 = arith.constant 0 : index
    %c0_37 = arith.constant 0 : index
    %51 = vector.load %arg3[%c5, %c0_36, %c0_37] : memref<9x128x128xbf16, #tpu.memory_space<vmem>>, vector<1x128x128xbf16>
    %52 = vector.shape_cast %51 : vector<1x128x128xbf16> to vector<128x128xbf16>
    %cst_38 = arith.constant dense<0.000000e+00> : vector<256x128xf32>
    %53 = tpu.matmul %50, %52, %cst_38 {dimension_numbers = #tpu.dot_dimension_numbers<[1], [0], [0], [1], [0, 0, 1, 1], [], []>} : vector<256x128xbf16>, vector<128x128xbf16>, vector<256x128xf32> -> vector<256x128xf32>
    %54 = arith.addf %45, %53 : vector<256x128xf32>
    %c2_i32 = arith.constant 2 : i32
    %55 = arith.addi %1, %c2_i32 : i32
    %c0_39 = arith.constant 0 : index
    %56 = arith.index_cast %55 : i32 to index
    %c0_40 = arith.constant 0 : index
    %c0_41 = arith.constant 0 : index
    %57 = vector.load %arg2[%c0_39, %56, %c0_40, %c0_41] : memref<1x18x24x128xbf16, #tpu.memory_space<vmem>>, vector<1x16x16x128xbf16>
    %58 = vector.shape_cast %57 : vector<1x16x16x128xbf16> to vector<16x16x128xbf16>
    %59 = vector.shape_cast %58 : vector<16x16x128xbf16> to vector<256x128xbf16>
    %c6 = arith.constant 6 : index
    %c0_42 = arith.constant 0 : index
    %c0_43 = arith.constant 0 : index
    %60 = vector.load %arg3[%c6, %c0_42, %c0_43] : memref<9x128x128xbf16, #tpu.memory_space<vmem>>, vector<1x128x128xbf16>
    %61 = vector.shape_cast %60 : vector<1x128x128xbf16> to vector<128x128xbf16>
    %cst_44 = arith.constant dense<0.000000e+00> : vector<256x128xf32>
    %62 = tpu.matmul %59, %61, %cst_44 {dimension_numbers = #tpu.dot_dimension_numbers<[1], [0], [0], [1], [0, 0, 1, 1], [], []>} : vector<256x128xbf16>, vector<128x128xbf16>, vector<256x128xf32> -> vector<256x128xf32>
    %63 = arith.addf %54, %62 : vector<256x128xf32>
    %c2_i32_45 = arith.constant 2 : i32
    %64 = arith.addi %1, %c2_i32_45 : i32
    %c0_46 = arith.constant 0 : index
    %65 = arith.index_cast %64 : i32 to index
    %c1_47 = arith.constant 1 : index
    %c0_48 = arith.constant 0 : index
    %66 = vector.load %arg2[%c0_46, %65, %c1_47, %c0_48] : memref<1x18x24x128xbf16, #tpu.memory_space<vmem>>, vector<1x16x16x128xbf16>
    %67 = vector.shape_cast %66 : vector<1x16x16x128xbf16> to vector<16x16x128xbf16>
    %68 = vector.shape_cast %67 : vector<16x16x128xbf16> to vector<256x128xbf16>
    %c7 = arith.constant 7 : index
    %c0_49 = arith.constant 0 : index
    %c0_50 = arith.constant 0 : index
    %69 = vector.load %arg3[%c7, %c0_49, %c0_50] : memref<9x128x128xbf16, #tpu.memory_space<vmem>>, vector<1x128x128xbf16>
    %70 = vector.shape_cast %69 : vector<1x128x128xbf16> to vector<128x128xbf16>
    %cst_51 = arith.constant dense<0.000000e+00> : vector<256x128xf32>
    %71 = tpu.matmul %68, %70, %cst_51 {dimension_numbers = #tpu.dot_dimension_numbers<[1], [0], [0], [1], [0, 0, 1, 1], [], []>} : vector<256x128xbf16>, vector<128x128xbf16>, vector<256x128xf32> -> vector<256x128xf32>
    %72 = arith.addf %63, %71 : vector<256x128xf32>
    %c2_i32_52 = arith.constant 2 : i32
    %73 = arith.addi %1, %c2_i32_52 : i32
    %c0_53 = arith.constant 0 : index
    %74 = arith.index_cast %73 : i32 to index
    %c2_54 = arith.constant 2 : index
    %c0_55 = arith.constant 0 : index
    %75 = vector.load %arg2[%c0_53, %74, %c2_54, %c0_55] : memref<1x18x24x128xbf16, #tpu.memory_space<vmem>>, vector<1x16x16x128xbf16>
    %76 = vector.shape_cast %75 : vector<1x16x16x128xbf16> to vector<16x16x128xbf16>
    %77 = vector.shape_cast %76 : vector<16x16x128xbf16> to vector<256x128xbf16>
    %c8 = arith.constant 8 : index
    %c0_56 = arith.constant 0 : index
    %c0_57 = arith.constant 0 : index
    %78 = vector.load %arg3[%c8, %c0_56, %c0_57] : memref<9x128x128xbf16, #tpu.memory_space<vmem>>, vector<1x128x128xbf16>
    %79 = vector.shape_cast %78 : vector<1x128x128xbf16> to vector<128x128xbf16>
    %cst_58 = arith.constant dense<0.000000e+00> : vector<256x128xf32>
    %80 = tpu.matmul %77, %79, %cst_58 {dimension_numbers = #tpu.dot_dimension_numbers<[1], [0], [0], [1], [0, 0, 1, 1], [], []>} : vector<256x128xbf16>, vector<128x128xbf16>, vector<256x128xf32> -> vector<256x128xf32>
    %81 = arith.addf %72, %80 : vector<256x128xf32>
    %c0_59 = arith.constant 0 : index
    %c0_60 = arith.constant 0 : index
    %82 = vector.load %arg4[%c0_59, %c0_60] : memref<1x128xf32, #tpu.memory_space<vmem>>, vector<1x128xf32>
    %83 = vector.broadcast %82 : vector<1x128xf32> to vector<256x128xf32>
    %84 = arith.addf %81, %83 : vector<256x128xf32>
    %c0_61 = arith.constant 0 : index
    %c0_62 = arith.constant 0 : index
    %c0_63 = arith.constant 0 : index
    %c0_64 = arith.constant 0 : index
    %85 = vector.load %arg5[%c0_61, %c0_62, %c0_63, %c0_64] : memref<1x16x16x128xbf16, #tpu.memory_space<vmem>>, vector<1x16x16x128xbf16>
    %86 = vector.shape_cast %85 : vector<1x16x16x128xbf16> to vector<16x16x128xbf16>
    %87 = vector.shape_cast %86 : vector<16x16x128xbf16> to vector<256x128xbf16>
    %88 = arith.extf %87 : vector<256x128xbf16> to vector<256x128xf32>
    %89 = arith.addf %84, %88 : vector<256x128xf32>
    %90 = vector.shape_cast %89 : vector<256x128xf32> to vector<16x16x128xf32>
    %91 = arith.truncf %90 : vector<16x16x128xf32> to vector<16x16x128xbf16>
    %c0_65 = arith.constant 0 : index
    %c0_66 = arith.constant 0 : index
    %c0_67 = arith.constant 0 : index
    %c0_68 = arith.constant 0 : index
    %92 = vector.load %arg6[%c0_65, %c0_66, %c0_67, %c0_68] : memref<1x16x16x128xbf16, #tpu.memory_space<vmem>>, vector<1x16x16x128xbf16>
    %93 = vector.shape_cast %92 : vector<1x16x16x128xbf16> to vector<16x16x128xbf16>
    %94 = vector.shape_cast %91 : vector<16x16x128xbf16> to vector<1x16x16x128xbf16>
    tpu.vector_store %arg6[%c0_65, %c0_66, %c0_67, %c0_68], %94 {strides = array<i32>} : memref<1x16x16x128xbf16, #tpu.memory_space<vmem>>, vector<1x16x16x128xbf16>,
    return
  }
  func.func @transform_0(%arg0: i32, %arg1: i32) -> (i32, i32, i32, i32) {
    %c0_i32 = arith.constant 0 : i32
    %c0_i32_0 = arith.constant 0 : i32
    %c0_i32_1 = arith.constant 0 : i32
    %c0_i32_2 = arith.constant 0 : i32
    return %arg0, %c0_i32, %c0_i32_0, %c0_i32_1 : i32, i32, i32, i32
  }
  func.func @transform_1(%arg0: i32, %arg1: i32) -> (i32, i32, i32) {
    %c0_i32 = arith.constant 0 : i32
    %c0_i32_0 = arith.constant 0 : i32
    %c0_i32_1 = arith.constant 0 : i32
    %c0_i32_2 = arith.constant 0 : i32
    return %c0_i32, %c0_i32_0, %c0_i32_1 : i32, i32, i32
  }
  func.func @transform_2(%arg0: i32, %arg1: i32) -> (i32, i32) {
    %c0_i32 = arith.constant 0 : i32
    %c0_i32_0 = arith.constant 0 : i32
    %c0_i32_1 = arith.constant 0 : i32
    return %c0_i32, %c0_i32_0 : i32, i32
  }
  func.func @transform_3(%arg0: i32, %arg1: i32) -> (i32, i32, i32, i32) {
    %c0_i32 = arith.constant 0 : i32
    %c0_i32_0 = arith.constant 0 : i32
    %c0_i32_1 = arith.constant 0 : i32
    return %arg0, %arg1, %c0_i32, %c0_i32_0 : i32, i32, i32, i32
  }
  func.func @transform_4(%arg0: i32, %arg1: i32) -> (i32, i32, i32, i32) {
    %c0_i32 = arith.constant 0 : i32
    %c0_i32_0 = arith.constant 0 : i32
    %c0_i32_1 = arith.constant 0 : i32
    return %arg0, %arg1, %c0_i32, %c0_i32_0 : i32, i32, i32, i32
  }
}

</mosaic_0001>

<llo_original>
// kernel: basic_block_ir_forward.2
$region0: #{basic_block_ir_forward.2}
  #allocation0 [shape = 'u32[]', space=smem, size = 0x4, offset = 0x4, fixed_abs, tag = 'smem constant byte address 0x4 - core index']
  #allocation1 [shape = 'u32[72,128]{1,0:T(1,128)}', space=vmem, size = 0x9000, scoped, tag = 'internal scratch']
  %s0 = inlined_call_operand.vmem [shape: bf16[2,18,24,128], index: 0, kind: input, shape index: {}]
  %s1 = inlined_call_operand.vmem [shape: bf16[9,128,128], index: 1, kind: input, shape index: {}]
  %s2 = inlined_call_operand.vmem [shape: f32[1,128], index: 2, kind: input, shape index: {}]
  %s3 = inlined_call_operand.vmem [shape: f32[1,128], index: 3, kind: input, shape index: {}]
  %s4 = inlined_call_operand.vmem [shape: bf16[2,16,16,128], index: 4, kind: output, shape index: {}]
  %s5 = sld [smem:[#allocation0]]
  $region49: #{basic_block_ir_forward.2} parent=0
    _
  %s7 = ssub.s32 1, %s5
  %s8 = scalar_select 0, %s7, %s5
  loop: start=0, step=1, limit=4
  $region2: #{basic_block_ir_forward.2} parent=0 // loop_pre_header
    _
  $region3: #{basic_block_ir_forward.2} parent=0 // loop_header
    %s10 = sphi 0, %s14
    %p11 = scmp.ge.s32.totalorder %s10, 4
    %s17 = sphi 0, %s29
    %s18 = sphi 0, %s25
    %s19 = sphi 0, %s17
    %s20 = sphi 0, %s18
    %s21 = sphi 0, %s19
    %s22 = sphi 0, %s20
    %s32 = sphi 0, %s34
    %s35 = sphi 0, %s32
    %s36 = sphi 0, %s35
    %s52 = sphi 0, %s36
    %s56 = sphi 0, %s56
    %s58 = sphi 0, %s56
    %s59 = sphi 0, %s58
    %s73 = sphi 0, %s59
    %s77 = sphi 0, %s77
    %s79 = sphi 0, %s77
    %s80 = sphi 0, %s79
    %s94 = sphi 0, %s80
    %s98 = sphi 0, %s98
    %s100 = sphi 0, %s98
    %s101 = sphi 0, %s100
    %s115 = sphi 0, %s101
    %s123 = sphi 0, %s125
    %s126 = sphi 0, %s123
    %s127 = sphi 0, %s126
    %s143 = sphi 0, %s127
  $region4: #{basic_block_ir_forward.2} parent=0 // loop_header_branch
    %13 = sbr.rel (%p11) target = $region8
  $region5: #{basic_block_ir_forward.2} parent=0 // loop_body
    %s15 = ssub.s32 %s10, 1
    %s16 = ssub.s32 %s10, 2
    %s23 = sadd.s32 1, %s18
    %p24 = scmp.ge.s32.totalorder %s23, 1
    %s25 = scalar_select %p24, 0, %s23
    %s26 = sadd.s32 1, %s17
    %s27 = scalar_select %p24, %s26, %s17
    %p28 = scmp.ge.s32.totalorder %s27, 2
    %s29 = scalar_select %p28, 0, %s27
    %s30 = ssub.s32 %s17, %s29
    %p31 = scmp.eq.s32.totalorder %s30, 0
    %s33 = sadd.s32 %s32, 1
    %s34 = scalar_select %p31, %s32, %s33
    %p37 = pneg %p31
    %p38 = scmp.eq.s32.totalorder %s10, 1
    %p39 = por %p37, %p38
    %p40 = scmp.ne.s32.totalorder %s32, %s35
    %p41 = scmp.eq.s32.totalorder %s10, 0
    %p42 = por %p40, %p41
    %p43 = scmp.ne.s32.totalorder %s32, %s35
    %p44 = scmp.eq.s32.totalorder %s15, 1
    %p45 = por %p43, %p44
    %p46 = scmp.ne.s32.totalorder %s35, %s36
    %p47 = scmp.eq.s32.totalorder %s15, 0
    %p48 = por %p46, %p47
    %p49 = scmp.ne.s32.totalorder %s35, %s36
    %p50 = scmp.eq.s32.totalorder %s16, 1
    %p51 = por %p49, %p50
    %p53 = scmp.ne.s32.totalorder %s36, %s52
    %p54 = scmp.eq.s32.totalorder %s16, 0
    %p55 = por %p53, %p54
    %s57 = sadd.s32 %s56, 1
    %p60 = scmp.eq.s32.totalorder %s10, 1
    %p61 = scmp.ne.s32.totalorder %s56, %s58
    %p62 = scmp.eq.s32.totalorder %s10, 0
    %p63 = por %p61, %p62
    %p64 = scmp.ne.s32.totalorder %s56, %s58
    %p65 = scmp.eq.s32.totalorder %s15, 1
    %p66 = por %p64, %p65
    %p67 = scmp.ne.s32.totalorder %s58, %s59
    %p68 = scmp.eq.s32.totalorder %s15, 0
    %p69 = por %p67, %p68
    %p70 = scmp.ne.s32.totalorder %s58, %s59
    %p71 = scmp.eq.s32.totalorder %s16, 1
    %p72 = por %p70, %p71
    %p74 = scmp.ne.s32.totalorder %s59, %s73
    %p75 = scmp.eq.s32.totalorder %s16, 0
    %p76 = por %p74, %p75
    %s78 = sadd.s32 %s77, 1
    %p81 = scmp.eq.s32.totalorder %s10, 1
    %p82 = scmp.ne.s32.totalorder %s77, %s79
    %p83 = scmp.eq.s32.totalorder %s10, 0
    %p84 = por %p82, %p83
    %p85 = scmp.ne.s32.totalorder %s77, %s79
    %p86 = scmp.eq.s32.totalorder %s15, 1
    %p87 = por %p85, %p86
    %p88 = scmp.ne.s32.totalorder %s79, %s80
    %p89 = scmp.eq.s32.totalorder %s15, 0
    %p90 = por %p88, %p89
    %p91 = scmp.ne.s32.totalorder %s79, %s80
    %p92 = scmp.eq.s32.totalorder %s16, 1
    %p93 = por %p91, %p92
    %p95 = scmp.ne.s32.totalorder %s80, %s94
    %p96 = scmp.eq.s32.totalorder %s16, 0
    %p97 = por %p95, %p96
    %s99 = sadd.s32 %s98, 1
    %p102 = scmp.eq.s32.totalorder %s10, 1
    %p103 = scmp.ne.s32.totalorder %s98, %s100
    %p104 = scmp.eq.s32.totalorder %s10, 0
    %p105 = por %p103, %p104
    %p106 = scmp.ne.s32.totalorder %s98, %s100
    %p107 = scmp.eq.s32.totalorder %s15, 1
    %p108 = por %p106, %p107
    %p109 = scmp.ne.s32.totalorder %s100, %s101
    %p110 = scmp.eq.s32.totalorder %s15, 0
    %p111 = por %p109, %p110
    %p112 = scmp.ne.s32.totalorder %s100, %s101
    %p113 = scmp.eq.s32.totalorder %s16, 1
    %p114 = por %p112, %p113
    %p116 = scmp.ne.s32.totalorder %s101, %s115
    %p117 = scmp.eq.s32.totalorder %s16, 0
    %p118 = por %p116, %p117
    %s119 = ssub.s32 %s17, %s29
    %s120 = ssub.s32 %s18, %s25
    %s121 = sor.u32 %s119, %s120
    %p122 = scmp.eq.s32.totalorder %s121, 0
    %s124 = sadd.s32 %s123, 1
    %s125 = scalar_select %p122, %s123, %s124
    %p128 = pneg %p122
    %p129 = scmp.eq.s32.totalorder %s10, 1
    %p130 = por %p128, %p129
    %p131 = scmp.ne.s32.totalorder %s123, %s126
    %p132 = scmp.eq.s32.totalorder %s10, 0
    %p133 = por %p131, %p132
    %p134 = scmp.ne.s32.totalorder %s123, %s126
    %p135 = scmp.eq.s32.totalorder %s15, 1
    %p136 = por %p134, %p135
    %p137 = scmp.ne.s32.totalorder %s126, %s127
    %p138 = scmp.eq.s32.totalorder %s15, 0
    %p139 = por %p137, %p138
    %p140 = scmp.ne.s32.totalorder %s126, %s127
    %p141 = scmp.eq.s32.totalorder %s16, 1
    %p142 = por %p140, %p141
    %p144 = scmp.ne.s32.totalorder %s127, %s143
    %p145 = scmp.eq.s32.totalorder %s16, 0
    %p146 = por %p144, %p145
    %p147 = scmp.le.s32.totalorder 1, %s10
    %p148 = scmp.lt.s32.totalorder %s10, 3
    %p149 = pnand %p147, %p148
    %p150 = pneg %p149
    // Predicated region
    $region9: #{basic_block_ir_forward.2} parent=5 // pred_check
      _
    $region10: #{basic_block_ir_forward.2} parent=5 // pred_check_branch
      %152 = sbr.rel (%p149) target = $region12
    $region11: #{basic_block_ir_forward.2} parent=5 // pred_region
      %s153 = ssub.s32 %s10, 1
      // Predicated region
      $region13: #{basic_block_ir_forward.2} parent=11 // pred_check
        %p154 = pneg %p69
      $region14: #{basic_block_ir_forward.2} parent=11 // pred_check_branch
        %156 = sbr.rel (%p154) target = $region16
      $region15: #{basic_block_ir_forward.2} parent=11 // pred_region
        _
      $region16: #{basic_block_ir_forward.2} parent=11 // pred_fallthru
        _
      // Predicated region
      $region17: #{basic_block_ir_forward.2} parent=11 // pred_check
        %p157 = pneg %p90
      $region18: #{basic_block_ir_forward.2} parent=11 // pred_check_branch
        %159 = sbr.rel (%p157) target = $region20
      $region19: #{basic_block_ir_forward.2} parent=11 // pred_region
        _
      $region20: #{basic_block_ir_forward.2} parent=11 // pred_fallthru
        _
      // Predicated region
      $region21: #{basic_block_ir_forward.2} parent=11 // pred_check
        %p160 = pneg %p111
      $region22: #{basic_block_ir_forward.2} parent=11 // pred_check_branch
        %162 = sbr.rel (%p160) target = $region24
      $region23: #{basic_block_ir_forward.2} parent=11 // pred_region
        _
      $region24: #{basic_block_ir_forward.2} parent=11 // pred_fallthru
        _
    $region12: #{basic_block_ir_forward.2} parent=5 // pred_fallthru
      _
    %p163 = scmp.lt.s32.totalorder %s10, 2
    // Predicated region
    $region25: #{basic_block_ir_forward.2} parent=5 // pred_check
      %p164 = pneg %p163
    $region26: #{basic_block_ir_forward.2} parent=5 // pred_check_branch
      %166 = sbr.rel (%p164) target = $region28
    $region27: #{basic_block_ir_forward.2} parent=5 // pred_region
      // Predicated region
      $region29: #{basic_block_ir_forward.2} parent=27 // pred_check
        %p167 = pneg %p42
      $region30: #{basic_block_ir_forward.2} parent=27 // pred_check_branch
        %169 = sbr.rel (%p167) target = $region32
      $region31: #{basic_block_ir_forward.2} parent=27 // pred_region
        %p170 = scmp.lt.s32.totalorder %s17, 1
        %s171 = scalar_select %p170, %s17, 1
        %s172 = smul.addr %s171, 54
        %s173 = smul.addr %s172, 4
        %s174 = scalar_lea.vmem %s0, %s173
      $region32: #{basic_block_ir_forward.2} parent=27 // pred_fallthru
        _
    $region28: #{basic_block_ir_forward.2} parent=5 // pred_fallthru
      _
    %p175 = scmp.le.s32.totalorder 1, %s10
    %p176 = scmp.lt.s32.totalorder %s10, 3
    %p177 = pnand %p175, %p176
    %p178 = pneg %p177
    // Predicated region
    $region33: #{basic_block_ir_forward.2} parent=5 // pred_check
      _
    $region34: #{basic_block_ir_forward.2} parent=5 // pred_check_branch
      %180 = sbr.rel (%p177) target = $region36
    $region35: #{basic_block_ir_forward.2} parent=5 // pred_region
      %s181 = ssub.s32 %s10, 1
      %p182 = scmp.lt.s32.totalorder %s19, 1
      %s183 = scalar_select %p182, %s19, 1
      %s184 = smul.addr %s183, 54
      %s185 = smul.addr %s184, 4
      %s186 = scalar_lea.vmem %s0, %s185
      %p187 = pneg %p48
      %p188 = pneg %p45
      %p189 = pneg %p69
      %p190 = pneg %p66
      %p191 = pneg %p90
      %p192 = pneg %p87
      %p193 = pneg %p111
      %p194 = pneg %p108
      %p195 = pneg %p139
      %p196 = pneg %p136
      %s197 = smul.u32 16, %s20
      %p198 = scmp.lt.s32.totalorder %s19, 1
      %s199 = scalar_select %p198, %s19, 1
      %p200 = scmp.lt.s32.totalorder %s197, 15
      %s201 = scalar_select %p200, %s197, 15
      %s202 = smul.addr %s201, 2
      %s203 = smul.addr %s199, 32
      %s204 = sadd.s32 %s202, %s203
      %s205 = smul.addr %s204, 4
      %s206 = scalar_lea.vmem %s4, %s205
      %p207 = scmp.lt.s32.totalorder %s19, 1
      %s208 = scalar_select %p207, %s19, 1
      %s209 = smul.addr %s208, 54
      %s210 = smul.addr %s209, 4
      %s211 = scalar_lea.vmem %s0, %s210
      %s212 = smul.u32 16, %s20
      %p213 = scmp.lt.s32.totalorder %s19, 1
      %s214 = scalar_select %p213, %s19, 1
      %p215 = scmp.lt.s32.totalorder %s212, 15
      %s216 = scalar_select %p215, %s212, 15
      %s217 = smul.addr %s216, 2
      %s218 = smul.addr %s214, 32
      %s219 = sadd.s32 %s217, %s218
      %s220 = smul.addr %s219, 4
      %s221 = scalar_lea.vmem %s4, %s220
      %s222 = smul.u32 16, %s20
      %s223 = smul.u32 %s20, 16
      %s224 = smul.u32 %s223, 3
      %s225 = smul.addr %s224, 4
      %s226 = scalar_lea.vmem %s211, %s225
      %v227 = vld [vmem:[%s226] sm:$0xf]
      %v228 = vld [vmem:[%s226 + $0x4] sm:$0xf]
      %v229 = vld [vmem:[%s226 + $0xc] sm:$0xf]
      %v230 = vld [vmem:[%s226 + $0x10] sm:$0xf]
      %v231 = vld [vmem:[%s226 + $0x18] sm:$0xf]
      %v232 = vld [vmem:[%s226 + $0x1c] sm:$0xf]
      %v233 = vld [vmem:[%s226 + $0x24] sm:$0xf]
      %v234 = vld [vmem:[%s226 + $0x28] sm:$0xf]
      %v235 = vld [vmem:[%s226 + $0x30] sm:$0xf]
      %v236 = vld [vmem:[%s226 + $0x34] sm:$0xf]
      %v237 = vld [vmem:[%s226 + $0x3c] sm:$0xf]
      %v238 = vld [vmem:[%s226 + $0x40] sm:$0xf]
      %v239 = vld [vmem:[%s226 + $0x48] sm:$0xf]
      %v240 = vld [vmem:[%s226 + $0x4c] sm:$0xf]
      %v241 = vld [vmem:[%s226 + $0x54] sm:$0xf]
      %v242 = vld [vmem:[%s226 + $0x58] sm:$0xf]
      %v243 = vld [vmem:[%s226 + $0x60] sm:$0xf]
      %v244 = vld [vmem:[%s226 + $0x64] sm:$0xf]
      %v245 = vld [vmem:[%s226 + $0x6c] sm:$0xf]
      %v246 = vld [vmem:[%s226 + $0x70] sm:$0xf]
      %v247 = vld [vmem:[%s226 + $0x78] sm:$0xf]
      %v248 = vld [vmem:[%s226 + $0x7c] sm:$0xf]
      %v249 = vld [vmem:[%s226 + $0x84] sm:$0xf]
      %v250 = vld [vmem:[%s226 + $0x88] sm:$0xf]
      %v251 = vld [vmem:[%s226 + $0x90] sm:$0xf]
      %v252 = vld [vmem:[%s226 + $0x94] sm:$0xf]
      %v253 = vld [vmem:[%s226 + $0x9c] sm:$0xf]
      %v254 = vld [vmem:[%s226 + $0xa0] sm:$0xf]
      %v255 = vld [vmem:[%s226 + $0xa8] sm:$0xf]
      %v256 = vld [vmem:[%s226 + $0xac] sm:$0xf]
      %v257 = vld [vmem:[%s226 + $0xb4] sm:$0xf]
      %v258 = vld [vmem:[%s226 + $0xb8] sm:$0xf]
      %v259 = vld [vmem:[%s1] sm:$0xf]
      %v260 = vld [vmem:[%s1 + $0x4] sm:$0xf]
      %v261 = vld [vmem:[%s1 + $0x8] sm:$0xf]
      %v262 = vld [vmem:[%s1 + $0xc] sm:$0xf]
      %v263 = vld [vmem:[%s1 + $0x10] sm:$0xf]
      %v264 = vld [vmem:[%s1 + $0x14] sm:$0xf]
      %v265 = vld [vmem:[%s1 + $0x18] sm:$0xf]
      %v266 = vld [vmem:[%s1 + $0x1c] sm:$0xf]
      %v267 = vld [vmem:[%s1 + $0x20] sm:$0xf]
      %v268 = vld [vmem:[%s1 + $0x24] sm:$0xf]
      %v269 = vld [vmem:[%s1 + $0x28] sm:$0xf]
      %v270 = vld [vmem:[%s1 + $0x2c] sm:$0xf]
      %v271 = vld [vmem:[%s1 + $0x30] sm:$0xf]
      %v272 = vld [vmem:[%s1 + $0x34] sm:$0xf]
      %v273 = vld [vmem:[%s1 + $0x38] sm:$0xf]
      %v274 = vld [vmem:[%s1 + $0x3c] sm:$0xf]
      %v275 = vld [vmem:[%s226 + $0x8] sm:$0x1]
      %v276 = vld [vmem:[%s226 + $0x14] sm:$0x1]
      %v277 = vld [vmem:[%s226 + $0x20] sm:$0x1]
      %v278 = vld [vmem:[%s226 + $0x2c] sm:$0x1]
      %v279 = vld [vmem:[%s226 + $0x38] sm:$0x1]
      %v280 = vld [vmem:[%s226 + $0x44] sm:$0x1]
      %v281 = vld [vmem:[%s226 + $0x50] sm:$0x1]
      %v282 = vld [vmem:[%s226 + $0x5c] sm:$0x1]
      %v283 = vld [vmem:[%s226 + $0x68] sm:$0x1]
      %v284 = vld [vmem:[%s226 + $0x74] sm:$0x1]
      %v285 = vld [vmem:[%s226 + $0x80] sm:$0x1]
      %v286 = vld [vmem:[%s226 + $0x8c] sm:$0x1]
      %v287 = vld [vmem:[%s226 + $0x98] sm:$0x1]
      %v288 = vld [vmem:[%s226 + $0xa4] sm:$0x1]
      %v289 = vld [vmem:[%s226 + $0xb0] sm:$0x1]
      %v290 = vld [vmem:[%s226 + $0xbc] sm:$0x1]
      %vm291 = vsmask.f32 3328
      %vm292 = vsmask.f32 7440
      %vm293 = vmor %vm291, %vm292
      %v295 = vshrl.u32 %v227, 16
      %v297 = vrot.slane %v295, 4
      %v298 = vshll.u32 %v227, 16
      %v300 = vrot.slane %v298, 5
      %v301 = vor.u32 %v297, %v300
      %v302 = vrot.slane %v301, 4
      %v304 = vshll.u32 %v228, 16
      %v306 = vrot.slane %v304, 5
      %v307 = vsel %vm293, %v302, %v306
      %v308 = vshrl.u32 %v228, 16
      %v310 = vrot.slane %v308, 4
      %v311 = vor.u32 %v310, %v306
      %v312 = vrot.slane %v311, 4
      %v314 = vshll.u32 %v275, 16
      %v316 = vrot.slane %v314, 5
      %v317 = vsel %vm293, %v312, %v316
      %v319 = vshrl.u32 %v229, 16
      %v321 = vrot.slane %v319, 4
      %v322 = vshll.u32 %v229, 16
      %v324 = vrot.slane %v322, 5
      %v325 = vor.u32 %v321, %v324
      %v326 = vrot.slane %v325, 4
      %v328 = vshll.u32 %v230, 16
      %v330 = vrot.slane %v328, 5
      %v331 = vsel %vm293, %v326, %v330
      %v332 = vshrl.u32 %v230, 16
      %v334 = vrot.slane %v332, 4
      %v335 = vor.u32 %v334, %v330
      %v336 = vrot.slane %v335, 4
      %v338 = vshll.u32 %v276, 16
      %v340 = vrot.slane %v338, 5
      %v341 = vsel %vm293, %v336, %v340
      %v343 = vshrl.u32 %v231, 16
      %v345 = vrot.slane %v343, 4
      %v346 = vshll.u32 %v231, 16
      %v348 = vrot.slane %v346, 5
      %v349 = vor.u32 %v345, %v348
      %v350 = vrot.slane %v349, 4
      %v352 = vshll.u32 %v232, 16
      %v354 = vrot.slane %v352, 5
      %v355 = vsel %vm293, %v350, %v354
      %v356 = vshrl.u32 %v232, 16
      %v358 = vrot.slane %v356, 4
      %v359 = vor.u32 %v358, %v354
      %v360 = vrot.slane %v359, 4
      %v362 = vshll.u32 %v277, 16
      %v364 = vrot.slane %v362, 5
      %v365 = vsel %vm293, %v360, %v364
      %v367 = vshrl.u32 %v233, 16
      %v369 = vrot.slane %v367, 4
      %v370 = vshll.u32 %v233, 16
      %v372 = vrot.slane %v370, 5
      %v373 = vor.u32 %v369, %v372
      %v374 = vrot.slane %v373, 4
      %v376 = vshll.u32 %v234, 16
      %v378 = vrot.slane %v376, 5
      %v379 = vsel %vm293, %v374, %v378
      %v380 = vshrl.u32 %v234, 16
      %v382 = vrot.slane %v380, 4
      %v383 = vor.u32 %v382, %v378
      %v384 = vrot.slane %v383, 4
      %v386 = vshll.u32 %v278, 16
      %v388 = vrot.slane %v386, 5
      %v389 = vsel %vm293, %v384, %v388
      %v391 = vshrl.u32 %v235, 16
      %v393 = vrot.slane %v391, 4
      %v394 = vshll.u32 %v235, 16
      %v396 = vrot.slane %v394, 5
      %v397 = vor.u32 %v393, %v396
      %v398 = vrot.slane %v397, 4
      %v400 = vshll.u32 %v236, 16
      %v402 = vrot.slane %v400, 5
      %v403 = vsel %vm293, %v398, %v402
      %v404 = vshrl.u32 %v236, 16
      %v406 = vrot.slane %v404, 4
      %v407 = vor.u32 %v406, %v402
      %v408 = vrot.slane %v407, 4
      %v410 = vshll.u32 %v279, 16
      %v412 = vrot.slane %v410, 5
      %v413 = vsel %vm293, %v408, %v412
      %v415 = vshrl.u32 %v237, 16
      %v417 = vrot.slane %v415, 4
      %v418 = vshll.u32 %v237, 16
      %v420 = vrot.slane %v418, 5
      %v421 = vor.u32 %v417, %v420
      %v422 = vrot.slane %v421, 4
      %v424 = vshll.u32 %v238, 16
      %v426 = vrot.slane %v424, 5
      %v427 = vsel %vm293, %v422, %v426
      %v428 = vshrl.u32 %v238, 16
      %v430 = vrot.slane %v428, 4
      %v431 = vor.u32 %v430, %v426
      %v432 = vrot.slane %v431, 4
      %v434 = vshll.u32 %v280, 16
      %v436 = vrot.slane %v434, 5
      %v437 = vsel %vm293, %v432, %v436
      %v439 = vshrl.u32 %v239, 16
      %v441 = vrot.slane %v439, 4
      %v442 = vshll.u32 %v239, 16
      %v444 = vrot.slane %v442, 5
      %v445 = vor.u32 %v441, %v444
      %v446 = vrot.slane %v445, 4
      %v448 = vshll.u32 %v240, 16
      %v450 = vrot.slane %v448, 5
      %v451 = vsel %vm293, %v446, %v450
      %v452 = vshrl.u32 %v240, 16
      %v454 = vrot.slane %v452, 4
      %v455 = vor.u32 %v454, %v450
      %v456 = vrot.slane %v455, 4
      %v458 = vshll.u32 %v281, 16
      %v460 = vrot.slane %v458, 5
      %v461 = vsel %vm293, %v456, %v460
      %v463 = vshrl.u32 %v241, 16
      %v465 = vrot.slane %v463, 4
      %v466 = vshll.u32 %v241, 16
      %v468 = vrot.slane %v466, 5
      %v469 = vor.u32 %v465, %v468
      %v470 = vrot.slane %v469, 4
      %v472 = vshll.u32 %v242, 16
      %v474 = vrot.slane %v472, 5
      %v475 = vsel %vm293, %v470, %v474
      %v476 = vshrl.u32 %v242, 16
      %v478 = vrot.slane %v476, 4
      %v479 = vor.u32 %v478, %v474
      %v480 = vrot.slane %v479, 4
      %v482 = vshll.u32 %v282, 16
      %v484 = vrot.slane %v482, 5
      %v485 = vsel %vm293, %v480, %v484
      %v487 = vshrl.u32 %v243, 16
      %v489 = vrot.slane %v487, 4
      %v490 = vshll.u32 %v243, 16
      %v492 = vrot.slane %v490, 5
      %v493 = vor.u32 %v489, %v492
      %v494 = vrot.slane %v493, 4
      %v496 = vshll.u32 %v244, 16
      %v498 = vrot.slane %v496, 5
      %v499 = vsel %vm293, %v494, %v498
      %v500 = vshrl.u32 %v244, 16
      %v502 = vrot.slane %v500, 4
      %v503 = vor.u32 %v502, %v498
      %v504 = vrot.slane %v503, 4
      %v506 = vshll.u32 %v283, 16
      %v508 = vrot.slane %v506, 5
      %v509 = vsel %vm293, %v504, %v508
      %v511 = vshrl.u32 %v245, 16
      %v513 = vrot.slane %v511, 4
      %v514 = vshll.u32 %v245, 16
      %v516 = vrot.slane %v514, 5
      %v517 = vor.u32 %v513, %v516
      %v518 = vrot.slane %v517, 4
      %v520 = vshll.u32 %v246, 16
      %v522 = vrot.slane %v520, 5
      %v523 = vsel %vm293, %v518, %v522
      %v524 = vshrl.u32 %v246, 16
      %v526 = vrot.slane %v524, 4
      %v527 = vor.u32 %v526, %v522
      %v528 = vrot.slane %v527, 4
      %v530 = vshll.u32 %v284, 16
      %v532 = vrot.slane %v530, 5
      %v533 = vsel %vm293, %v528, %v532
      %v535 = vshrl.u32 %v247, 16
      %v537 = vrot.slane %v535, 4
      %v538 = vshll.u32 %v247, 16
      %v540 = vrot.slane %v538, 5
      %v541 = vor.u32 %v537, %v540
      %v542 = vrot.slane %v541, 4
      %v544 = vshll.u32 %v248, 16
      %v546 = vrot.slane %v544, 5
      %v547 = vsel %vm293, %v542, %v546
      %v548 = vshrl.u32 %v248, 16
      %v550 = vrot.slane %v548, 4
      %v551 = vor.u32 %v550, %v546
      %v552 = vrot.slane %v551, 4
      %v554 = vshll.u32 %v285, 16
      %v556 = vrot.slane %v554, 5
      %v557 = vsel %vm293, %v552, %v556
      %v559 = vshrl.u32 %v249, 16
      %v561 = vrot.slane %v559, 4
      %v562 = vshll.u32 %v249, 16
      %v564 = vrot.slane %v562, 5
      %v565 = vor.u32 %v561, %v564
      %v566 = vrot.slane %v565, 4
      %v568 = vshll.u32 %v250, 16
      %v570 = vrot.slane %v568, 5
      %v571 = vsel %vm293, %v566, %v570
      %v572 = vshrl.u32 %v250, 16
      %v574 = vrot.slane %v572, 4
      %v575 = vor.u32 %v574, %v570
      %v576 = vrot.slane %v575, 4
      %v578 = vshll.u32 %v286, 16
      %v580 = vrot.slane %v578, 5
      %v581 = vsel %vm293, %v576, %v580
      %v583 = vshrl.u32 %v251, 16
      %v585 = vrot.slane %v583, 4
      %v586 = vshll.u32 %v251, 16
      %v588 = vrot.slane %v586, 5
      %v589 = vor.u32 %v585, %v588
      %v590 = vrot.slane %v589, 4
      %v592 = vshll.u32 %v252, 16
      %v594 = vrot.slane %v592, 5
      %v595 = vsel %vm293, %v590, %v594
      %v596 = vshrl.u32 %v252, 16
      %v598 = vrot.slane %v596, 4
      %v599 = vor.u32 %v598, %v594
      %v600 = vrot.slane %v599, 4
      %v602 = vshll.u32 %v287, 16
      %v604 = vrot.slane %v602, 5
      %v605 = vsel %vm293, %v600, %v604
      %v607 = vshrl.u32 %v253, 16
      %v609 = vrot.slane %v607, 4
      %v610 = vshll.u32 %v253, 16
      %v612 = vrot.slane %v610, 5
      %v613 = vor.u32 %v609, %v612
      %v614 = vrot.slane %v613, 4
      %v616 = vshll.u32 %v254, 16
      %v618 = vrot.slane %v616, 5
      %v619 = vsel %vm293, %v614, %v618
      %v620 = vshrl.u32 %v254, 16
      %v622 = vrot.slane %v620, 4
      %v623 = vor.u32 %v622, %v618
      %v624 = vrot.slane %v623, 4
      %v626 = vshll.u32 %v288, 16
      %v628 = vrot.slane %v626, 5
      %v629 = vsel %vm293, %v624, %v628
      %v631 = vshrl.u32 %v255, 16
      %v633 = vrot.slane %v631, 4
      %v634 = vshll.u32 %v255, 16
      %v636 = vrot.slane %v634, 5
      %v637 = vor.u32 %v633, %v636
      %v638 = vrot.slane %v637, 4
      %v640 = vshll.u32 %v256, 16
      %v642 = vrot.slane %v640, 5
      %v643 = vsel %vm293, %v638, %v642
      %v644 = vshrl.u32 %v256, 16
      %v646 = vrot.slane %v644, 4
      %v647 = vor.u32 %v646, %v642
      %v648 = vrot.slane %v647, 4
      %v650 = vshll.u32 %v289, 16
      %v652 = vrot.slane %v650, 5
      %v653 = vsel %vm293, %v648, %v652
      %v655 = vshrl.u32 %v257, 16
      %v657 = vrot.slane %v655, 4
      %v658 = vshll.u32 %v257, 16
      %v660 = vrot.slane %v658, 5
      %v661 = vor.u32 %v657, %v660
      %v662 = vrot.slane %v661, 4
      %v664 = vshll.u32 %v258, 16
      %v666 = vrot.slane %v664, 5
      %v667 = vsel %vm293, %v662, %v666
      %v668 = vshrl.u32 %v258, 16
      %v670 = vrot.slane %v668, 4
      %v671 = vor.u32 %v670, %v666
      %v672 = vrot.slane %v671, 4
      %v674 = vshll.u32 %v290, 16
      %v676 = vrot.slane %v674, 5
      %v677 = vsel %vm293, %v672, %v676
      %s678 = scalar_lea.vmem %s1, 64
      %v679 = vld [vmem:[%s678] sm:$0xf]
      %v680 = vld [vmem:[%s678 + $0x4] sm:$0xf]
      %v681 = vld [vmem:[%s678 + $0x8] sm:$0xf]
      %v682 = vld [vmem:[%s678 + $0xc] sm:$0xf]
      %v683 = vld [vmem:[%s678 + $0x10] sm:$0xf]
      %v684 = vld [vmem:[%s678 + $0x14] sm:$0xf]
      %v685 = vld [vmem:[%s678 + $0x18] sm:$0xf]
      %v686 = vld [vmem:[%s678 + $0x1c] sm:$0xf]
      %v687 = vld [vmem:[%s678 + $0x20] sm:$0xf]
      %v688 = vld [vmem:[%s678 + $0x24] sm:$0xf]
      %v689 = vld [vmem:[%s678 + $0x28] sm:$0xf]
      %v690 = vld [vmem:[%s678 + $0x2c] sm:$0xf]
      %v691 = vld [vmem:[%s678 + $0x30] sm:$0xf]
      %v692 = vld [vmem:[%s678 + $0x34] sm:$0xf]
      %v693 = vld [vmem:[%s678 + $0x38] sm:$0xf]
      %v694 = vld [vmem:[%s678 + $0x3c] sm:$0xf]
      %v695 = vunpack.c.l.b16 %v307
      %v696 = vunpack.c.l.b16 %v317
      %v697 = vunpack.c.l.b16 %v331
      %v698 = vunpack.c.l.b16 %v341
      %v699 = vunpack.c.l.b16 %v355
      %v700 = vunpack.c.l.b16 %v365
      %v701 = vunpack.c.l.b16 %v379
      %v702 = vunpack.c.l.b16 %v389
      %v703 = vunpack.c.l.b16 %v403
      %v704 = vunpack.c.l.b16 %v413
      %v705 = vunpack.c.l.b16 %v427
      %v706 = vunpack.c.l.b16 %v437
      %v707 = vunpack.c.l.b16 %v451
      %v708 = vunpack.c.l.b16 %v461
      %v709 = vunpack.c.l.b16 %v475
      %v710 = vunpack.c.l.b16 %v485
      %v711 = vunpack.c.l.b16 %v499
      %v712 = vunpack.c.l.b16 %v509
      %v713 = vunpack.c.l.b16 %v523
      %v714 = vunpack.c.l.b16 %v533
      %v715 = vunpack.c.l.b16 %v547
      %v716 = vunpack.c.l.b16 %v557
      %v717 = vunpack.c.l.b16 %v571
      %v718 = vunpack.c.l.b16 %v581
      %v719 = vunpack.c.l.b16 %v595
      %v720 = vunpack.c.l.b16 %v605
      %v721 = vunpack.c.l.b16 %v619
      %v722 = vunpack.c.l.b16 %v629
      %v723 = vunpack.c.l.b16 %v643
      %v724 = vunpack.c.l.b16 %v653
      %v725 = vunpack.c.l.b16 %v667
      %v726 = vunpack.c.l.b16 %v677
      %v727 = vpack.c.b16 %v696, %v695
      %v728 = vpack.c.b16 %v698, %v697
      %v729 = vpack.c.b16 %v700, %v699
      %v730 = vpack.c.b16 %v702, %v701
      %v731 = vpack.c.b16 %v704, %v703
      %v732 = vpack.c.b16 %v706, %v705
      %v733 = vpack.c.b16 %v708, %v707
      %v734 = vpack.c.b16 %v710, %v709
      %v735 = vpack.c.b16 %v712, %v711
      %v736 = vpack.c.b16 %v714, %v713
      %v737 = vpack.c.b16 %v716, %v715
      %v738 = vpack.c.b16 %v718, %v717
      %v739 = vpack.c.b16 %v720, %v719
      %v740 = vpack.c.b16 %v722, %v721
      %v741 = vpack.c.b16 %v724, %v723
      %v742 = vpack.c.b16 %v726, %v725
      %v775 = vunpack.c.l.b16 %v679
      %v776 = vunpack.c.l.b16 %v680
      %v777 = vunpack.c.l.b16 %v681
      %v778 = vunpack.c.l.b16 %v682
      %v779 = vunpack.c.l.b16 %v683
      %v780 = vunpack.c.l.b16 %v684
      %v781 = vunpack.c.l.b16 %v685
      %v782 = vunpack.c.l.b16 %v686
      %v783 = vunpack.c.l.b16 %v687
      %v784 = vunpack.c.l.b16 %v688
      %v785 = vunpack.c.l.b16 %v689
      %v786 = vunpack.c.l.b16 %v690
      %v787 = vunpack.c.l.b16 %v691
      %v788 = vunpack.c.l.b16 %v692
      %v789 = vunpack.c.l.b16 %v693
      %v790 = vunpack.c.l.b16 %v694
      %v791 = vpack.c.b16 %v776, %v775
      %v792 = vpack.c.b16 %v778, %v777
      %v793 = vpack.c.b16 %v780, %v779
      %v794 = vpack.c.b16 %v782, %v781
      %v795 = vpack.c.b16 %v784, %v783
      %v796 = vpack.c.b16 %v786, %v785
      %v797 = vpack.c.b16 %v788, %v787
      %v798 = vpack.c.b16 %v790, %v789
      %807 = vmatpush.bf16.msra.mxu0 %v798
      %808 = vmatpush.bf16.msra.mxu0 %v797
      %809 = vmatpush.bf16.msra.mxu0 %v796
      %810 = vmatpush.bf16.msra.mxu0 %v795
      %811 = vmatpush.bf16.msra.mxu0 %v794
      %812 = vmatpush.bf16.msra.mxu0 %v793
      %813 = vmatpush.bf16.msra.mxu0 %v792
      %814 = vmatpush.bf16.msra.mxu0 %v791
      %815 = vmatmul.bf16.gmra.mxu0 %v727
      %v816 = vpop.f32.mrf.mxu0
      %v817 = vadd.f32 0.0, %v816
      %v818 = vpop.f32.mrf.mxu0
      %v819 = vadd.f32 0.0, %v818
      %820 = vmatmul.bf16.gmra.mxu0 %v728
      %v821 = vpop.f32.mrf.mxu0
      %v822 = vadd.f32 0.0, %v821
      %v823 = vpop.f32.mrf.mxu0
      %v824 = vadd.f32 0.0, %v823
      %825 = vmatmul.bf16.gmra.mxu0 %v729
      %v826 = vpop.f32.mrf.mxu0
      %v827 = vadd.f32 0.0, %v826
      %v828 = vpop.f32.mrf.mxu0
      %v829 = vadd.f32 0.0, %v828
      %830 = vmatmul.bf16.gmra.mxu0 %v730
      %v831 = vpop.f32.mrf.mxu0
      %v832 = vadd.f32 0.0, %v831
      %v833 = vpop.f32.mrf.mxu0
      %v834 = vadd.f32 0.0, %v833
      %835 = vmatmul.bf16.gmra.mxu0 %v731
      %v836 = vpop.f32.mrf.mxu0
      %v837 = vadd.f32 0.0, %v836
      %v838 = vpop.f32.mrf.mxu0
      %v839 = vadd.f32 0.0, %v838
      %840 = vmatmul.bf16.gmra.mxu0 %v732
      %v841 = vpop.f32.mrf.mxu0
      %v842 = vadd.f32 0.0, %v841
      %v843 = vpop.f32.mrf.mxu0
      %v844 = vadd.f32 0.0, %v843
      %845 = vmatmul.bf16.gmra.mxu0 %v733
      %v846 = vpop.f32.mrf.mxu0
      %v847 = vadd.f32 0.0, %v846
      %v848 = vpop.f32.mrf.mxu0
      %v849 = vadd.f32 0.0, %v848
      %850 = vmatmul.bf16.gmra.mxu0 %v734
      %v851 = vpop.f32.mrf.mxu0
      %v852 = vadd.f32 0.0, %v851
      %v853 = vpop.f32.mrf.mxu0
      %v854 = vadd.f32 0.0, %v853
      %855 = vmatmul.bf16.gmra.mxu0 %v735
      %v856 = vpop.f32.mrf.mxu0
      %v857 = vadd.f32 0.0, %v856
      %v858 = vpop.f32.mrf.mxu0
      %v859 = vadd.f32 0.0, %v858
      %860 = vmatmul.bf16.gmra.mxu0 %v736
      %v861 = vpop.f32.mrf.mxu0
      %v862 = vadd.f32 0.0, %v861
      %v863 = vpop.f32.mrf.mxu0
      %v864 = vadd.f32 0.0, %v863
      %865 = vmatmul.bf16.gmra.mxu0 %v737
      %v866 = vpop.f32.mrf.mxu0
      %v867 = vadd.f32 0.0, %v866
      %v868 = vpop.f32.mrf.mxu0
      %v869 = vadd.f32 0.0, %v868
      %870 = vmatmul.bf16.gmra.mxu0 %v738
      %v871 = vpop.f32.mrf.mxu0
      %v872 = vadd.f32 0.0, %v871
      %v873 = vpop.f32.mrf.mxu0
      %v874 = vadd.f32 0.0, %v873
      %875 = vmatmul.bf16.gmra.mxu0 %v739
      %v876 = vpop.f32.mrf.mxu0
      %v877 = vadd.f32 0.0, %v876
      %v878 = vpop.f32.mrf.mxu0
      %v879 = vadd.f32 0.0, %v878
      %880 = vmatmul.bf16.gmra.mxu0 %v740
      %v881 = vpop.f32.mrf.mxu0
      %v882 = vadd.f32 0.0, %v881
      %v883 = vpop.f32.mrf.mxu0
      %v884 = vadd.f32 0.0, %v883
      %885 = vmatmul.bf16.gmra.mxu0 %v741
      %v886 = vpop.f32.mrf.mxu0
      %v887 = vadd.f32 0.0, %v886
      %v888 = vpop.f32.mrf.mxu0
      %v889 = vadd.f32 0.0, %v888
      %890 = vmatmul.bf16.gmra.mxu0 %v742
      %v891 = vpop.f32.mrf.mxu0
      %v892 = vadd.f32 0.0, %v891
      %v893 = vpop.f32.mrf.mxu0
      %v894 = vadd.f32 0.0, %v893
      %895 = vdwg.mxu0
      %v928 = vunpack.c.l.b16 %v227
      %v929 = vunpack.c.l.b16 %v228
      %v930 = vunpack.c.l.b16 %v229
      %v931 = vunpack.c.l.b16 %v230
      %v932 = vunpack.c.l.b16 %v231
      %v933 = vunpack.c.l.b16 %v232
      %v934 = vunpack.c.l.b16 %v233
      %v935 = vunpack.c.l.b16 %v234
      %v936 = vunpack.c.l.b16 %v235
      %v937 = vunpack.c.l.b16 %v236
      %v938 = vunpack.c.l.b16 %v237
      %v939 = vunpack.c.l.b16 %v238
      %v940 = vunpack.c.l.b16 %v239
      %v941 = vunpack.c.l.b16 %v240
      %v942 = vunpack.c.l.b16 %v241
      %v943 = vunpack.c.l.b16 %v242
      %v944 = vunpack.c.l.b16 %v243
      %v945 = vunpack.c.l.b16 %v244
      %v946 = vunpack.c.l.b16 %v245
      %v947 = vunpack.c.l.b16 %v246
      %v948 = vunpack.c.l.b16 %v247
      %v949 = vunpack.c.l.b16 %v248
      %v950 = vunpack.c.l.b16 %v249
      %v951 = vunpack.c.l.b16 %v250
      %v952 = vunpack.c.l.b16 %v251
      %v953 = vunpack.c.l.b16 %v252
      %v954 = vunpack.c.l.b16 %v253
      %v955 = vunpack.c.l.b16 %v254
      %v956 = vunpack.c.l.b16 %v255
      %v957 = vunpack.c.l.b16 %v256
      %v958 = vunpack.c.l.b16 %v257
      %v959 = vunpack.c.l.b16 %v258
      %v960 = vpack.c.b16 %v929, %v928
      %v961 = vpack.c.b16 %v931, %v930
      %v962 = vpack.c.b16 %v933, %v932
      %v963 = vpack.c.b16 %v935, %v934
      %v964 = vpack.c.b16 %v937, %v936
      %v965 = vpack.c.b16 %v939, %v938
      %v966 = vpack.c.b16 %v941, %v940
      %v967 = vpack.c.b16 %v943, %v942
      %v968 = vpack.c.b16 %v945, %v944
      %v969 = vpack.c.b16 %v947, %v946
      %v970 = vpack.c.b16 %v949, %v948
      %v971 = vpack.c.b16 %v951, %v950
      %v972 = vpack.c.b16 %v953, %v952
      %v973 = vpack.c.b16 %v955, %v954
      %v974 = vpack.c.b16 %v957, %v956
      %v975 = vpack.c.b16 %v959, %v958
      %v1008 = vunpack.c.l.b16 %v259
      %v1009 = vunpack.c.l.b16 %v260
      %v1010 = vunpack.c.l.b16 %v261
      %v1011 = vunpack.c.l.b16 %v262
      %v1012 = vunpack.c.l.b16 %v263
      %v1013 = vunpack.c.l.b16 %v264
      %v1014 = vunpack.c.l.b16 %v265
      %v1015 = vunpack.c.l.b16 %v266
      %v1016 = vunpack.c.l.b16 %v267
      %v1017 = vunpack.c.l.b16 %v268
      %v1018 = vunpack.c.l.b16 %v269
      %v1019 = vunpack.c.l.b16 %v270
      %v1020 = vunpack.c.l.b16 %v271
      %v1021 = vunpack.c.l.b16 %v272
      %v1022 = vunpack.c.l.b16 %v273
      %v1023 = vunpack.c.l.b16 %v274
      %v1024 = vpack.c.b16 %v1009, %v1008
      %v1025 = vpack.c.b16 %v1011, %v1010
      %v1026 = vpack.c.b16 %v1013, %v1012
      %v1027 = vpack.c.b16 %v1015, %v1014
      %v1028 = vpack.c.b16 %v1017, %v1016
      %v1029 = vpack.c.b16 %v1019, %v1018
      %v1030 = vpack.c.b16 %v1021, %v1020
      %v1031 = vpack.c.b16 %v1023, %v1022
      %1040 = vmatpush.bf16.msra.mxu0 %v1031
      %1041 = vmatpush.bf16.msra.mxu0 %v1030
      %1042 = vmatpush.bf16.msra.mxu0 %v1029
      %1043 = vmatpush.bf16.msra.mxu0 %v1028
      %1044 = vmatpush.bf16.msra.mxu0 %v1027
      %1045 = vmatpush.bf16.msra.mxu0 %v1026
      %1046 = vmatpush.bf16.msra.mxu0 %v1025
      %1047 = vmatpush.bf16.msra.mxu0 %v1024
      %1048 = vmatmul.bf16.gmra.mxu0 %v960
      %v1049 = vpop.f32.mrf.mxu0
      %v1050 = vadd.f32 %v817, %v1049
      %v1051 = vpop.f32.mrf.mxu0
      %v1052 = vadd.f32 %v819, %v1051
      %1053 = vmatmul.bf16.gmra.mxu0 %v961
      %v1054 = vpop.f32.mrf.mxu0
      %v1055 = vadd.f32 %v822, %v1054
      %v1056 = vpop.f32.mrf.mxu0
      %v1057 = vadd.f32 %v824, %v1056
      %1058 = vmatmul.bf16.gmra.mxu0 %v962
      %v1059 = vpop.f32.mrf.mxu0
      %v1060 = vadd.f32 %v827, %v1059
      %v1061 = vpop.f32.mrf.mxu0
      %v1062 = vadd.f32 %v829, %v1061
      %1063 = vmatmul.bf16.gmra.mxu0 %v963
      %v1064 = vpop.f32.mrf.mxu0
      %v1065 = vadd.f32 %v832, %v1064
      %v1066 = vpop.f32.mrf.mxu0
      %v1067 = vadd.f32 %v834, %v1066
      %1068 = vmatmul.bf16.gmra.mxu0 %v964
      %v1069 = vpop.f32.mrf.mxu0
      %v1070 = vadd.f32 %v837, %v1069
      %v1071 = vpop.f32.mrf.mxu0
      %v1072 = vadd.f32 %v839, %v1071
      %1073 = vmatmul.bf16.gmra.mxu0 %v965
      %v1074 = vpop.f32.mrf.mxu0
      %v1075 = vadd.f32 %v842, %v1074
      %v1076 = vpop.f32.mrf.mxu0
      %v1077 = vadd.f32 %v844, %v1076
      %1078 = vmatmul.bf16.gmra.mxu0 %v966
      %v1079 = vpop.f32.mrf.mxu0
      %v1080 = vadd.f32 %v847, %v1079
      %v1081 = vpop.f32.mrf.mxu0
      %v1082 = vadd.f32 %v849, %v1081
      %1083 = vmatmul.bf16.gmra.mxu0 %v967
      %v1084 = vpop.f32.mrf.mxu0
      %v1085 = vadd.f32 %v852, %v1084
      %v1086 = vpop.f32.mrf.mxu0
      %v1087 = vadd.f32 %v854, %v1086
      %1088 = vmatmul.bf16.gmra.mxu0 %v968
      %v1089 = vpop.f32.mrf.mxu0
      %v1090 = vadd.f32 %v857, %v1089
      %v1091 = vpop.f32.mrf.mxu0
      %v1092 = vadd.f32 %v859, %v1091
      %1093 = vmatmul.bf16.gmra.mxu0 %v969
      %v1094 = vpop.f32.mrf.mxu0
      %v1095 = vadd.f32 %v862, %v1094
      %v1096 = vpop.f32.mrf.mxu0
      %v1097 = vadd.f32 %v864, %v1096
      %1098 = vmatmul.bf16.gmra.mxu0 %v970
      %v1099 = vpop.f32.mrf.mxu0
      %v1100 = vadd.f32 %v867, %v1099
      %v1101 = vpop.f32.mrf.mxu0
      %v1102 = vadd.f32 %v869, %v1101
      %1103 = vmatmul.bf16.gmra.mxu0 %v971
      %v1104 = vpop.f32.mrf.mxu0
      %v1105 = vadd.f32 %v872, %v1104
      %v1106 = vpop.f32.mrf.mxu0
      %v1107 = vadd.f32 %v874, %v1106
      %1108 = vmatmul.bf16.gmra.mxu0 %v972
      %v1109 = vpop.f32.mrf.mxu0
      %v1110 = vadd.f32 %v877, %v1109
      %v1111 = vpop.f32.mrf.mxu0
      %v1112 = vadd.f32 %v879, %v1111
      %1113 = vmatmul.bf16.gmra.mxu0 %v973
      %v1114 = vpop.f32.mrf.mxu0
      %v1115 = vadd.f32 %v882, %v1114
      %v1116 = vpop.f32.mrf.mxu0
      %v1117 = vadd.f32 %v884, %v1116
      %1118 = vmatmul.bf16.gmra.mxu0 %v974
      %v1119 = vpop.f32.mrf.mxu0
      %v1120 = vadd.f32 %v887, %v1119
      %v1121 = vpop.f32.mrf.mxu0
      %v1122 = vadd.f32 %v889, %v1121
      %1123 = vmatmul.bf16.gmra.mxu0 %v975
      %v1124 = vpop.f32.mrf.mxu0
      %v1125 = vadd.f32 %v892, %v1124
      %v1126 = vpop.f32.mrf.mxu0
      %v1127 = vadd.f32 %v894, %v1126
      %1128 = vdwg.mxu0
      %v1129 = vld [vmem:[%s226] sm:$0xe]
      %v1130 = vld [vmem:[%s226 + $0xc] sm:$0xe]
      %v1131 = vld [vmem:[%s226 + $0x18] sm:$0xe]
      %v1132 = vld [vmem:[%s226 + $0x24] sm:$0xe]
      %v1133 = vld [vmem:[%s226 + $0x30] sm:$0xe]
      %v1134 = vld [vmem:[%s226 + $0x3c] sm:$0xe]
      %v1135 = vld [vmem:[%s226 + $0x48] sm:$0xe]
      %v1136 = vld [vmem:[%s226 + $0x54] sm:$0xe]
      %v1137 = vld [vmem:[%s226 + $0x60] sm:$0xe]
      %v1138 = vld [vmem:[%s226 + $0x6c] sm:$0xe]
      %v1139 = vld [vmem:[%s226 + $0x78] sm:$0xe]
      %v1140 = vld [vmem:[%s226 + $0x84] sm:$0xe]
      %v1141 = vld [vmem:[%s226 + $0x90] sm:$0xe]
      %v1142 = vld [vmem:[%s226 + $0x9c] sm:$0xe]
      %v1143 = vld [vmem:[%s226 + $0xa8] sm:$0xe]
      %v1144 = vld [vmem:[%s226 + $0xb4] sm:$0xe]
      %vm1177 = vcmask 1042432
      %vm1178 = vcmask 1046532
      %vm1179 = vmor %vm1177, %vm1178
      %v1180 = vrot.slane %v1129, 5
      %v1181 = vrot.slane %v1180, 4
      %v1182 = vrot.slane %v228, 5
      %v1183 = vsel %vm1179, %v1181, %v1182
      %v1184 = vrot.slane %v1182, 4
      %v1185 = vrot.slane %v275, 5
      %v1186 = vsel %vm1179, %v1184, %v1185
      %v1187 = vrot.slane %v1130, 5
      %v1188 = vrot.slane %v1187, 4
      %v1189 = vrot.slane %v230, 5
      %v1190 = vsel %vm1179, %v1188, %v1189
      %v1191 = vrot.slane %v1189, 4
      %v1192 = vrot.slane %v276, 5
      %v1193 = vsel %vm1179, %v1191, %v1192
      %v1194 = vrot.slane %v1131, 5
      %v1195 = vrot.slane %v1194, 4
      %v1196 = vrot.slane %v232, 5
      %v1197 = vsel %vm1179, %v1195, %v1196
      %v1198 = vrot.slane %v1196, 4
      %v1199 = vrot.slane %v277, 5
      %v1200 = vsel %vm1179, %v1198, %v1199
      %v1201 = vrot.slane %v1132, 5
      %v1202 = vrot.slane %v1201, 4
      %v1203 = vrot.slane %v234, 5
      %v1204 = vsel %vm1179, %v1202, %v1203
      %v1205 = vrot.slane %v1203, 4
      %v1206 = vrot.slane %v278, 5
      %v1207 = vsel %vm1179, %v1205, %v1206
      %v1208 = vrot.slane %v1133, 5
      %v1209 = vrot.slane %v1208, 4
      %v1210 = vrot.slane %v236, 5
      %v1211 = vsel %vm1179, %v1209, %v1210
      %v1212 = vrot.slane %v1210, 4
      %v1213 = vrot.slane %v279, 5
      %v1214 = vsel %vm1179, %v1212, %v1213
      %v1215 = vrot.slane %v1134, 5
      %v1216 = vrot.slane %v1215, 4
      %v1217 = vrot.slane %v238, 5
      %v1218 = vsel %vm1179, %v1216, %v1217
      %v1219 = vrot.slane %v1217, 4
      %v1220 = vrot.slane %v280, 5
      %v1221 = vsel %vm1179, %v1219, %v1220
      %v1222 = vrot.slane %v1135, 5
      %v1223 = vrot.slane %v1222, 4
      %v1224 = vrot.slane %v240, 5
      %v1225 = vsel %vm1179, %v1223, %v1224
      %v1226 = vrot.slane %v1224, 4
      %v1227 = vrot.slane %v281, 5
      %v1228 = vsel %vm1179, %v1226, %v1227
      %v1229 = vrot.slane %v1136, 5
      %v1230 = vrot.slane %v1229, 4
      %v1231 = vrot.slane %v242, 5
      %v1232 = vsel %vm1179, %v1230, %v1231
      %v1233 = vrot.slane %v1231, 4
      %v1234 = vrot.slane %v282, 5
      %v1235 = vsel %vm1179, %v1233, %v1234
      %v1236 = vrot.slane %v1137, 5
      %v1237 = vrot.slane %v1236, 4
      %v1238 = vrot.slane %v244, 5
      %v1239 = vsel %vm1179, %v1237, %v1238
      %v1240 = vrot.slane %v1238, 4
      %v1241 = vrot.slane %v283, 5
      %v1242 = vsel %vm1179, %v1240, %v1241
      %v1243 = vrot.slane %v1138, 5
      %v1244 = vrot.slane %v1243, 4
      %v1245 = vrot.slane %v246, 5
      %v1246 = vsel %vm1179, %v1244, %v1245
      %v1247 = vrot.slane %v1245, 4
      %v1248 = vrot.slane %v284, 5
      %v1249 = vsel %vm1179, %v1247, %v1248
      %v1250 = vrot.slane %v1139, 5
      %v1251 = vrot.slane %v1250, 4
      %v1252 = vrot.slane %v248, 5
      %v1253 = vsel %vm1179, %v1251, %v1252
      %v1254 = vrot.slane %v1252, 4
      %v1255 = vrot.slane %v285, 5
      %v1256 = vsel %vm1179, %v1254, %v1255
      %v1257 = vrot.slane %v1140, 5
      %v1258 = vrot.slane %v1257, 4
      %v1259 = vrot.slane %v250, 5
      %v1260 = vsel %vm1179, %v1258, %v1259
      %v1261 = vrot.slane %v1259, 4
      %v1262 = vrot.slane %v286, 5
      %v1263 = vsel %vm1179, %v1261, %v1262
      %v1264 = vrot.slane %v1141, 5
      %v1265 = vrot.slane %v1264, 4
      %v1266 = vrot.slane %v252, 5
      %v1267 = vsel %vm1179, %v1265, %v1266
      %v1268 = vrot.slane %v1266, 4
      %v1269 = vrot.slane %v287, 5
      %v1270 = vsel %vm1179, %v1268, %v1269
      %v1271 = vrot.slane %v1142, 5
      %v1272 = vrot.slane %v1271, 4
      %v1273 = vrot.slane %v254, 5
      %v1274 = vsel %vm1179, %v1272, %v1273
      %v1275 = vrot.slane %v1273, 4
      %v1276 = vrot.slane %v288, 5
      %v1277 = vsel %vm1179, %v1275, %v1276
      %v1278 = vrot.slane %v1143, 5
      %v1279 = vrot.slane %v1278, 4
      %v1280 = vrot.slane %v256, 5
      %v1281 = vsel %vm1179, %v1279, %v1280
      %v1282 = vrot.slane %v1280, 4
      %v1283 = vrot.slane %v289, 5
      %v1284 = vsel %vm1179, %v1282, %v1283
      %v1285 = vrot.slane %v1144, 5
      %v1286 = vrot.slane %v1285, 4
      %v1287 = vrot.slane %v258, 5
      %v1288 = vsel %vm1179, %v1286, %v1287
      %v1289 = vrot.slane %v1287, 4
      %v1290 = vrot.slane %v290, 5
      %v1291 = vsel %vm1179, %v1289, %v1290
      %s1292 = scalar_lea.vmem %s1, 128
      %v1293 = vld [vmem:[%s1292] sm:$0xf]
      %v1294 = vld [vmem:[%s1292 + $0x4] sm:$0xf]
      %v1295 = vld [vmem:[%s1292 + $0x8] sm:$0xf]
      %v1296 = vld [vmem:[%s1292 + $0xc] sm:$0xf]
      %v1297 = vld [vmem:[%s1292 + $0x10] sm:$0xf]
      %v1298 = vld [vmem:[%s1292 + $0x14] sm:$0xf]
      %v1299 = vld [vmem:[%s1292 + $0x18] sm:$0xf]
      %v1300 = vld [vmem:[%s1292 + $0x1c] sm:$0xf]
      %v1301 = vld [vmem:[%s1292 + $0x20] sm:$0xf]
      %v1302 = vld [vmem:[%s1292 + $0x24] sm:$0xf]
      %v1303 = vld [vmem:[%s1292 + $0x28] sm:$0xf]
      %v1304 = vld [vmem:[%s1292 + $0x2c] sm:$0xf]
      %v1305 = vld [vmem:[%s1292 + $0x30] sm:$0xf]
      %v1306 = vld [vmem:[%s1292 + $0x34] sm:$0xf]
      %v1307 = vld [vmem:[%s1292 + $0x38] sm:$0xf]
      %v1308 = vld [vmem:[%s1292 + $0x3c] sm:$0xf]
      %v1309 = vunpack.c.l.b16 %v1183
      %v1310 = vunpack.c.l.b16 %v1186
      %v1311 = vunpack.c.l.b16 %v1190
      %v1312 = vunpack.c.l.b16 %v1193
      %v1313 = vunpack.c.l.b16 %v1197
      %v1314 = vunpack.c.l.b16 %v1200
      %v1315 = vunpack.c.l.b16 %v1204
      %v1316 = vunpack.c.l.b16 %v1207
      %v1317 = vunpack.c.l.b16 %v1211
      %v1318 = vunpack.c.l.b16 %v1214
      %v1319 = vunpack.c.l.b16 %v1218
      %v1320 = vunpack.c.l.b16 %v1221
      %v1321 = vunpack.c.l.b16 %v1225
      %v1322 = vunpack.c.l.b16 %v1228
      %v1323 = vunpack.c.l.b16 %v1232
      %v1324 = vunpack.c.l.b16 %v1235
      %v1325 = vunpack.c.l.b16 %v1239
      %v1326 = vunpack.c.l.b16 %v1242
      %v1327 = vunpack.c.l.b16 %v1246
      %v1328 = vunpack.c.l.b16 %v1249
      %v1329 = vunpack.c.l.b16 %v1253
      %v1330 = vunpack.c.l.b16 %v1256
      %v1331 = vunpack.c.l.b16 %v1260
      %v1332 = vunpack.c.l.b16 %v1263
      %v1333 = vunpack.c.l.b16 %v1267
      %v1334 = vunpack.c.l.b16 %v1270
      %v1335 = vunpack.c.l.b16 %v1274
      %v1336 = vunpack.c.l.b16 %v1277
      %v1337 = vunpack.c.l.b16 %v1281
      %v1338 = vunpack.c.l.b16 %v1284
      %v1339 = vunpack.c.l.b16 %v1288
      %v1340 = vunpack.c.l.b16 %v1291
      %v1341 = vpack.c.b16 %v1310, %v1309
      %v1342 = vpack.c.b16 %v1312, %v1311
      %v1343 = vpack.c.b16 %v1314, %v1313
      %v1344 = vpack.c.b16 %v1316, %v1315
      %v1345 = vpack.c.b16 %v1318, %v1317
      %v1346 = vpack.c.b16 %v1320, %v1319
      %v1347 = vpack.c.b16 %v1322, %v1321
      %v1348 = vpack.c.b16 %v1324, %v1323
      %v1349 = vpack.c.b16 %v1326, %v1325
      %v1350 = vpack.c.b16 %v1328, %v1327
      %v1351 = vpack.c.b16 %v1330, %v1329
      %v1352 = vpack.c.b16 %v1332, %v1331
      %v1353 = vpack.c.b16 %v1334, %v1333
      %v1354 = vpack.c.b16 %v1336, %v1335
      %v1355 = vpack.c.b16 %v1338, %v1337
      %v1356 = vpack.c.b16 %v1340, %v1339
      %v1389 = vunpack.c.l.b16 %v1293
      %v1390 = vunpack.c.l.b16 %v1294
      %v1391 = vunpack.c.l.b16 %v1295
      %v1392 = vunpack.c.l.b16 %v1296
      %v1393 = vunpack.c.l.b16 %v1297
      %v1394 = vunpack.c.l.b16 %v1298
      %v1395 = vunpack.c.l.b16 %v1299
      %v1396 = vunpack.c.l.b16 %v1300
      %v1397 = vunpack.c.l.b16 %v1301
      %v1398 = vunpack.c.l.b16 %v1302
      %v1399 = vunpack.c.l.b16 %v1303
      %v1400 = vunpack.c.l.b16 %v1304
      %v1401 = vunpack.c.l.b16 %v1305
      %v1402 = vunpack.c.l.b16 %v1306
      %v1403 = vunpack.c.l.b16 %v1307
      %v1404 = vunpack.c.l.b16 %v1308
      %v1405 = vpack.c.b16 %v1390, %v1389
      %v1406 = vpack.c.b16 %v1392, %v1391
      %v1407 = vpack.c.b16 %v1394, %v1393
      %v1408 = vpack.c.b16 %v1396, %v1395
      %v1409 = vpack.c.b16 %v1398, %v1397
      %v1410 = vpack.c.b16 %v1400, %v1399
      %v1411 = vpack.c.b16 %v1402, %v1401
      %v1412 = vpack.c.b16 %v1404, %v1403
      %1421 = vmatpush.bf16.msra.mxu0 %v1412
      %1422 = vmatpush.bf16.msra.mxu0 %v1411
      %1423 = vmatpush.bf16.msra.mxu0 %v1410
      %1424 = vmatpush.bf16.msra.mxu0 %v1409
      %1425 = vmatpush.bf16.msra.mxu0 %v1408
      %1426 = vmatpush.bf16.msra.mxu0 %v1407
      %1427 = vmatpush.bf16.msra.mxu0 %v1406
      %1428 = vmatpush.bf16.msra.mxu0 %v1405
      %1429 = vmatmul.bf16.gmra.mxu0 %v1341
      %v1430 = vpop.f32.mrf.mxu0
      %v1431 = vadd.f32 0.0, %v1430
      %v1432 = vpop.f32.mrf.mxu0
      %v1433 = vadd.f32 0.0, %v1432
      %1434 = vmatmul.bf16.gmra.mxu0 %v1342
      %v1435 = vpop.f32.mrf.mxu0
      %v1436 = vadd.f32 0.0, %v1435
      %v1437 = vpop.f32.mrf.mxu0
      %v1438 = vadd.f32 0.0, %v1437
      %1439 = vmatmul.bf16.gmra.mxu0 %v1343
      %v1440 = vpop.f32.mrf.mxu0
      %v1441 = vadd.f32 0.0, %v1440
      %v1442 = vpop.f32.mrf.mxu0
      %v1443 = vadd.f32 0.0, %v1442
      %1444 = vmatmul.bf16.gmra.mxu0 %v1344
      %v1445 = vpop.f32.mrf.mxu0
      %v1446 = vadd.f32 0.0, %v1445
      %v1447 = vpop.f32.mrf.mxu0
      %v1448 = vadd.f32 0.0, %v1447
      %1449 = vmatmul.bf16.gmra.mxu0 %v1345
      %v1450 = vpop.f32.mrf.mxu0
      %v1451 = vadd.f32 0.0, %v1450
      %v1452 = vpop.f32.mrf.mxu0
      %v1453 = vadd.f32 0.0, %v1452
      %1454 = vmatmul.bf16.gmra.mxu0 %v1346
      %v1455 = vpop.f32.mrf.mxu0
      %v1456 = vadd.f32 0.0, %v1455
      %v1457 = vpop.f32.mrf.mxu0
      %v1458 = vadd.f32 0.0, %v1457
      %1459 = vmatmul.bf16.gmra.mxu0 %v1347
      %v1460 = vpop.f32.mrf.mxu0
      %v1461 = vadd.f32 0.0, %v1460
      %v1462 = vpop.f32.mrf.mxu0
      %v1463 = vadd.f32 0.0, %v1462
      %1464 = vmatmul.bf16.gmra.mxu0 %v1348
      %v1465 = vpop.f32.mrf.mxu0
      %v1466 = vadd.f32 0.0, %v1465
      %v1467 = vpop.f32.mrf.mxu0
      %v1468 = vadd.f32 0.0, %v1467
      %1469 = vmatmul.bf16.gmra.mxu0 %v1349
      %v1470 = vpop.f32.mrf.mxu0
      %v1471 = vadd.f32 0.0, %v1470
      %v1472 = vpop.f32.mrf.mxu0
      %v1473 = vadd.f32 0.0, %v1472
      %1474 = vmatmul.bf16.gmra.mxu0 %v1350
      %v1475 = vpop.f32.mrf.mxu0
      %v1476 = vadd.f32 0.0, %v1475
      %v1477 = vpop.f32.mrf.mxu0
      %v1478 = vadd.f32 0.0, %v1477
      %1479 = vmatmul.bf16.gmra.mxu0 %v1351
      %v1480 = vpop.f32.mrf.mxu0
      %v1481 = vadd.f32 0.0, %v1480
      %v1482 = vpop.f32.mrf.mxu0
      %v1483 = vadd.f32 0.0, %v1482
      %1484 = vmatmul.bf16.gmra.mxu0 %v1352
      %v1485 = vpop.f32.mrf.mxu0
      %v1486 = vadd.f32 0.0, %v1485
      %v1487 = vpop.f32.mrf.mxu0
      %v1488 = vadd.f32 0.0, %v1487
      %1489 = vmatmul.bf16.gmra.mxu0 %v1353
      %v1490 = vpop.f32.mrf.mxu0
      %v1491 = vadd.f32 0.0, %v1490
      %v1492 = vpop.f32.mrf.mxu0
      %v1493 = vadd.f32 0.0, %v1492
      %1494 = vmatmul.bf16.gmra.mxu0 %v1354
      %v1495 = vpop.f32.mrf.mxu0
      %v1496 = vadd.f32 0.0, %v1495
      %v1497 = vpop.f32.mrf.mxu0
      %v1498 = vadd.f32 0.0, %v1497
      %1499 = vmatmul.bf16.gmra.mxu0 %v1355
      %v1500 = vpop.f32.mrf.mxu0
      %v1501 = vadd.f32 0.0, %v1500
      %v1502 = vpop.f32.mrf.mxu0
      %v1503 = vadd.f32 0.0, %v1502
      %1504 = vmatmul.bf16.gmra.mxu0 %v1356
      %v1505 = vpop.f32.mrf.mxu0
      %v1506 = vadd.f32 0.0, %v1505
      %v1507 = vpop.f32.mrf.mxu0
      %v1508 = vadd.f32 0.0, %v1507
      %1509 = vdwg.mxu0
      %v1510 = vadd.f32 %v1050, %v1431
      %v1511 = vadd.f32 %v1052, %v1433
      %v1512 = vadd.f32 %v1055, %v1436
      %v1513 = vadd.f32 %v1057, %v1438
      %v1514 = vadd.f32 %v1060, %v1441
      %v1515 = vadd.f32 %v1062, %v1443
      %v1516 = vadd.f32 %v1065, %v1446
      %v1517 = vadd.f32 %v1067, %v1448
      %v1518 = vadd.f32 %v1070, %v1451
      %v1519 = vadd.f32 %v1072, %v1453
      %v1520 = vadd.f32 %v1075, %v1456
      %v1521 = vadd.f32 %v1077, %v1458
      %v1522 = vadd.f32 %v1080, %v1461
      %v1523 = vadd.f32 %v1082, %v1463
      %v1524 = vadd.f32 %v1085, %v1466
      %v1525 = vadd.f32 %v1087, %v1468
      %v1526 = vadd.f32 %v1090, %v1471
      %v1527 = vadd.f32 %v1092, %v1473
      %v1528 = vadd.f32 %v1095, %v1476
      %v1529 = vadd.f32 %v1097, %v1478
      %v1530 = vadd.f32 %v1100, %v1481
      %v1531 = vadd.f32 %v1102, %v1483
      %v1532 = vadd.f32 %v1105, %v1486
      %v1533 = vadd.f32 %v1107, %v1488
      %v1534 = vadd.f32 %v1110, %v1491
      %v1535 = vadd.f32 %v1112, %v1493
      %v1536 = vadd.f32 %v1115, %v1496
      %v1537 = vadd.f32 %v1117, %v1498
      %v1538 = vadd.f32 %v1120, %v1501
      %v1539 = vadd.f32 %v1122, %v1503
      %v1540 = vadd.f32 %v1125, %v1506
      %v1541 = vadd.f32 %v1127, %v1508
      %s1542 = sadd.s32 %s223, 1
      %s1543 = smul.u32 %s1542, 3
      %s1544 = smul.addr %s1543, 4
      %s1545 = scalar_lea.vmem %s211, %s1544
      %v1546 = vld [vmem:[%s1545] sm:$0xf]
      %v1547 = vld [vmem:[%s1545 + $0x4] sm:$0xf]
      %v1548 = vld [vmem:[%s1545 + $0xc] sm:$0xf]
      %v1549 = vld [vmem:[%s1545 + $0x10] sm:$0xf]
      %v1550 = vld [vmem:[%s1545 + $0x18] sm:$0xf]
      %v1551 = vld [vmem:[%s1545 + $0x1c] sm:$0xf]
      %v1552 = vld [vmem:[%s1545 + $0x24] sm:$0xf]
      %v1553 = vld [vmem:[%s1545 + $0x28] sm:$0xf]
      %v1554 = vld [vmem:[%s1545 + $0x30] sm:$0xf]
      %v1555 = vld [vmem:[%s1545 + $0x34] sm:$0xf]
      %v1556 = vld [vmem:[%s1545 + $0x3c] sm:$0xf]
      %v1557 = vld [vmem:[%s1545 + $0x40] sm:$0xf]
      %v1558 = vld [vmem:[%s1545 + $0x48] sm:$0xf]
      %v1559 = vld [vmem:[%s1545 + $0x4c] sm:$0xf]
      %v1560 = vld [vmem:[%s1545 + $0x54] sm:$0xf]
      %v1561 = vld [vmem:[%s1545 + $0x58] sm:$0xf]
      %v1562 = vld [vmem:[%s1545 + $0x60] sm:$0xf]
      %v1563 = vld [vmem:[%s1545 + $0x64] sm:$0xf]
      %v1564 = vld [vmem:[%s1545 + $0x6c] sm:$0xf]
      %v1565 = vld [vmem:[%s1545 + $0x70] sm:$0xf]
      %v1566 = vld [vmem:[%s1545 + $0x78] sm:$0xf]
      %v1567 = vld [vmem:[%s1545 + $0x7c] sm:$0xf]
      %v1568 = vld [vmem:[%s1545 + $0x84] sm:$0xf]
      %v1569 = vld [vmem:[%s1545 + $0x88] sm:$0xf]
      %v1570 = vld [vmem:[%s1545 + $0x90] sm:$0xf]
      %v1571 = vld [vmem:[%s1545 + $0x94] sm:$0xf]
      %v1572 = vld [vmem:[%s1545 + $0x9c] sm:$0xf]
      %v1573 = vld [vmem:[%s1545 + $0xa0] sm:$0xf]
      %v1574 = vld [vmem:[%s1545 + $0xa8] sm:$0xf]
      %v1575 = vld [vmem:[%s1545 + $0xac] sm:$0xf]
      %v1576 = vld [vmem:[%s1545 + $0xb4] sm:$0xf]
      %v1577 = vld [vmem:[%s1545 + $0xb8] sm:$0xf]
      %s1578 = scalar_lea.vmem %s1, 192
      %v1579 = vld [vmem:[%s1578] sm:$0xf]
      %v1580 = vld [vmem:[%s1578 + $0x4] sm:$0xf]
      %v1581 = vld [vmem:[%s1578 + $0x8] sm:$0xf]
      %v1582 = vld [vmem:[%s1578 + $0xc] sm:$0xf]
      %v1583 = vld [vmem:[%s1578 + $0x10] sm:$0xf]
      %v1584 = vld [vmem:[%s1578 + $0x14] sm:$0xf]
      %v1585 = vld [vmem:[%s1578 + $0x18] sm:$0xf]
      %v1586 = vld [vmem:[%s1578 + $0x1c] sm:$0xf]
      %v1587 = vld [vmem:[%s1578 + $0x20] sm:$0xf]
      %v1588 = vld [vmem:[%s1578 + $0x24] sm:$0xf]
      %v1589 = vld [vmem:[%s1578 + $0x28] sm:$0xf]
      %v1590 = vld [vmem:[%s1578 + $0x2c] sm:$0xf]
      %v1591 = vld [vmem:[%s1578 + $0x30] sm:$0xf]
      %v1592 = vld [vmem:[%s1578 + $0x34] sm:$0xf]
      %v1593 = vld [vmem:[%s1578 + $0x38] sm:$0xf]
      %v1594 = vld [vmem:[%s1578 + $0x3c] sm:$0xf]
      %v1627 = vunpack.c.l.b16 %v1546
      %v1628 = vunpack.c.l.b16 %v1547
      %v1629 = vunpack.c.l.b16 %v1548
      %v1630 = vunpack.c.l.b16 %v1549
      %v1631 = vunpack.c.l.b16 %v1550
      %v1632 = vunpack.c.l.b16 %v1551
      %v1633 = vunpack.c.l.b16 %v1552
      %v1634 = vunpack.c.l.b16 %v1553
      %v1635 = vunpack.c.l.b16 %v1554
      %v1636 = vunpack.c.l.b16 %v1555
      %v1637 = vunpack.c.l.b16 %v1556
      %v1638 = vunpack.c.l.b16 %v1557
      %v1639 = vunpack.c.l.b16 %v1558
      %v1640 = vunpack.c.l.b16 %v1559
      %v1641 = vunpack.c.l.b16 %v1560
      %v1642 = vunpack.c.l.b16 %v1561
      %v1643 = vunpack.c.l.b16 %v1562
      %v1644 = vunpack.c.l.b16 %v1563
      %v1645 = vunpack.c.l.b16 %v1564
      %v1646 = vunpack.c.l.b16 %v1565
      %v1647 = vunpack.c.l.b16 %v1566
      %v1648 = vunpack.c.l.b16 %v1567
      %v1649 = vunpack.c.l.b16 %v1568
      %v1650 = vunpack.c.l.b16 %v1569
      %v1651 = vunpack.c.l.b16 %v1570
      %v1652 = vunpack.c.l.b16 %v1571
      %v1653 = vunpack.c.l.b16 %v1572
      %v1654 = vunpack.c.l.b16 %v1573
      %v1655 = vunpack.c.l.b16 %v1574
      %v1656 = vunpack.c.l.b16 %v1575
      %v1657 = vunpack.c.l.b16 %v1576
      %v1658 = vunpack.c.l.b16 %v1577
      %v1659 = vpack.c.b16 %v1628, %v1627
      %v1660 = vpack.c.b16 %v1630, %v1629
      %v1661 = vpack.c.b16 %v1632, %v1631
      %v1662 = vpack.c.b16 %v1634, %v1633
      %v1663 = vpack.c.b16 %v1636, %v1635
      %v1664 = vpack.c.b16 %v1638, %v1637
      %v1665 = vpack.c.b16 %v1640, %v1639
      %v1666 = vpack.c.b16 %v1642, %v1641
      %v1667 = vpack.c.b16 %v1644, %v1643
      %v1668 = vpack.c.b16 %v1646, %v1645
      %v1669 = vpack.c.b16 %v1648, %v1647
      %v1670 = vpack.c.b16 %v1650, %v1649
      %v1671 = vpack.c.b16 %v1652, %v1651
      %v1672 = vpack.c.b16 %v1654, %v1653
      %v1673 = vpack.c.b16 %v1656, %v1655
      %v1674 = vpack.c.b16 %v1658, %v1657
      %v1707 = vunpack.c.l.b16 %v1579
      %v1708 = vunpack.c.l.b16 %v1580
      %v1709 = vunpack.c.l.b16 %v1581
      %v1710 = vunpack.c.l.b16 %v1582
      %v1711 = vunpack.c.l.b16 %v1583
      %v1712 = vunpack.c.l.b16 %v1584
      %v1713 = vunpack.c.l.b16 %v1585
      %v1714 = vunpack.c.l.b16 %v1586
      %v1715 = vunpack.c.l.b16 %v1587
      %v1716 = vunpack.c.l.b16 %v1588
      %v1717 = vunpack.c.l.b16 %v1589
      %v1718 = vunpack.c.l.b16 %v1590
      %v1719 = vunpack.c.l.b16 %v1591
      %v1720 = vunpack.c.l.b16 %v1592
      %v1721 = vunpack.c.l.b16 %v1593
      %v1722 = vunpack.c.l.b16 %v1594
      %v1723 = vpack.c.b16 %v1708, %v1707
      %v1724 = vpack.c.b16 %v1710, %v1709
      %v1725 = vpack.c.b16 %v1712, %v1711
      %v1726 = vpack.c.b16 %v1714, %v1713
      %v1727 = vpack.c.b16 %v1716, %v1715
      %v1728 = vpack.c.b16 %v1718, %v1717
      %v1729 = vpack.c.b16 %v1720, %v1719
      %v1730 = vpack.c.b16 %v1722, %v1721
      %1739 = vmatpush.bf16.msra.mxu0 %v1730
      %1740 = vmatpush.bf16.msra.mxu0 %v1729
      %1741 = vmatpush.bf16.msra.mxu0 %v1728
      %1742 = vmatpush.bf16.msra.mxu0 %v1727
      %1743 = vmatpush.bf16.msra.mxu0 %v1726
      %1744 = vmatpush.bf16.msra.mxu0 %v1725
      %1745 = vmatpush.bf16.msra.mxu0 %v1724
      %1746 = vmatpush.bf16.msra.mxu0 %v1723
      %1747 = vmatmul.bf16.gmra.mxu0 %v1659
      %v1748 = vpop.f32.mrf.mxu0
      %v1749 = vadd.f32 0.0, %v1748
      %v1750 = vpop.f32.mrf.mxu0
      %v1751 = vadd.f32 0.0, %v1750
      %1752 = vmatmul.bf16.gmra.mxu0 %v1660
      %v1753 = vpop.f32.mrf.mxu0
      %v1754 = vadd.f32 0.0, %v1753
      %v1755 = vpop.f32.mrf.mxu0
      %v1756 = vadd.f32 0.0, %v1755
      %1757 = vmatmul.bf16.gmra.mxu0 %v1661
      %v1758 = vpop.f32.mrf.mxu0
      %v1759 = vadd.f32 0.0, %v1758
      %v1760 = vpop.f32.mrf.mxu0
      %v1761 = vadd.f32 0.0, %v1760
      %1762 = vmatmul.bf16.gmra.mxu0 %v1662
      %v1763 = vpop.f32.mrf.mxu0
      %v1764 = vadd.f32 0.0, %v1763
      %v1765 = vpop.f32.mrf.mxu0
      %v1766 = vadd.f32 0.0, %v1765
      %1767 = vmatmul.bf16.gmra.mxu0 %v1663
      %v1768 = vpop.f32.mrf.mxu0
      %v1769 = vadd.f32 0.0, %v1768
      %v1770 = vpop.f32.mrf.mxu0
      %v1771 = vadd.f32 0.0, %v1770
      %1772 = vmatmul.bf16.gmra.mxu0 %v1664
      %v1773 = vpop.f32.mrf.mxu0
      %v1774 = vadd.f32 0.0, %v1773
      %v1775 = vpop.f32.mrf.mxu0
      %v1776 = vadd.f32 0.0, %v1775
      %1777 = vmatmul.bf16.gmra.mxu0 %v1665
      %v1778 = vpop.f32.mrf.mxu0
      %v1779 = vadd.f32 0.0, %v1778
      %v1780 = vpop.f32.mrf.mxu0
      %v1781 = vadd.f32 0.0, %v1780
      %1782 = vmatmul.bf16.gmra.mxu0 %v1666
      %v1783 = vpop.f32.mrf.mxu0
      %v1784 = vadd.f32 0.0, %v1783
      %v1785 = vpop.f32.mrf.mxu0
      %v1786 = vadd.f32 0.0, %v1785
      %1787 = vmatmul.bf16.gmra.mxu0 %v1667
      %v1788 = vpop.f32.mrf.mxu0
      %v1789 = vadd.f32 0.0, %v1788
      %v1790 = vpop.f32.mrf.mxu0
      %v1791 = vadd.f32 0.0, %v1790
      %1792 = vmatmul.bf16.gmra.mxu0 %v1668
      %v1793 = vpop.f32.mrf.mxu0
      %v1794 = vadd.f32 0.0, %v1793
      %v1795 = vpop.f32.mrf.mxu0
      %v1796 = vadd.f32 0.0, %v1795
      %1797 = vmatmul.bf16.gmra.mxu0 %v1669
      %v1798 = vpop.f32.mrf.mxu0
      %v1799 = vadd.f32 0.0, %v1798
      %v1800 = vpop.f32.mrf.mxu0
      %v1801 = vadd.f32 0.0, %v1800
      %1802 = vmatmul.bf16.gmra.mxu0 %v1670
      %v1803 = vpop.f32.mrf.mxu0
      %v1804 = vadd.f32 0.0, %v1803
      %v1805 = vpop.f32.mrf.mxu0
      %v1806 = vadd.f32 0.0, %v1805
      %1807 = vmatmul.bf16.gmra.mxu0 %v1671
      %v1808 = vpop.f32.mrf.mxu0
      %v1809 = vadd.f32 0.0, %v1808
      %v1810 = vpop.f32.mrf.mxu0
      %v1811 = vadd.f32 0.0, %v1810
      %1812 = vmatmul.bf16.gmra.mxu0 %v1672
      %v1813 = vpop.f32.mrf.mxu0
      %v1814 = vadd.f32 0.0, %v1813
      %v1815 = vpop.f32.mrf.mxu0
      %v1816 = vadd.f32 0.0, %v1815
      %1817 = vmatmul.bf16.gmra.mxu0 %v1673
      %v1818 = vpop.f32.mrf.mxu0
      %v1819 = vadd.f32 0.0, %v1818
      %v1820 = vpop.f32.mrf.mxu0
      %v1821 = vadd.f32 0.0, %v1820
      %1822 = vmatmul.bf16.gmra.mxu0 %v1674
      %v1823 = vpop.f32.mrf.mxu0
      %v1824 = vadd.f32 0.0, %v1823
      %v1825 = vpop.f32.mrf.mxu0
      %v1826 = vadd.f32 0.0, %v1825
      %1827 = vdwg.mxu0
      %v1828 = vadd.f32 %v1510, %v1749
      %v1829 = vadd.f32 %v1511, %v1751
      %v1830 = vadd.f32 %v1512, %v1754
      %v1831 = vadd.f32 %v1513, %v1756
      %v1832 = vadd.f32 %v1514, %v1759
      %v1833 = vadd.f32 %v1515, %v1761
      %v1834 = vadd.f32 %v1516, %v1764
      %v1835 = vadd.f32 %v1517, %v1766
      %v1836 = vadd.f32 %v1518, %v1769
      %v1837 = vadd.f32 %v1519, %v1771
      %v1838 = vadd.f32 %v1520, %v1774
      %v1839 = vadd.f32 %v1521, %v1776
      %v1840 = vadd.f32 %v1522, %v1779
      %v1841 = vadd.f32 %v1523, %v1781
      %v1842 = vadd.f32 %v1524, %v1784
      %v1843 = vadd.f32 %v1525, %v1786
      %v1844 = vadd.f32 %v1526, %v1789
      %v1845 = vadd.f32 %v1527, %v1791
      %v1846 = vadd.f32 %v1528, %v1794
      %v1847 = vadd.f32 %v1529, %v1796
      %v1848 = vadd.f32 %v1530, %v1799
      %v1849 = vadd.f32 %v1531, %v1801
      %v1850 = vadd.f32 %v1532, %v1804
      %v1851 = vadd.f32 %v1533, %v1806
      %v1852 = vadd.f32 %v1534, %v1809
      %v1853 = vadd.f32 %v1535, %v1811
      %v1854 = vadd.f32 %v1536, %v1814
      %v1855 = vadd.f32 %v1537, %v1816
      %v1856 = vadd.f32 %v1538, %v1819
      %v1857 = vadd.f32 %v1539, %v1821
      %v1858 = vadd.f32 %v1540, %v1824
      %v1859 = vadd.f32 %v1541, %v1826
      %v1860 = vld [vmem:[%s1545] sm:$0xf]
      %v1861 = vld [vmem:[%s1545 + $0x4] sm:$0xf]
      %v1862 = vld [vmem:[%s1545 + $0x8] sm:$0x1]
      %v1863 = vld [vmem:[%s1545 + $0xc] sm:$0xf]
      %v1864 = vld [vmem:[%s1545 + $0x10] sm:$0xf]
      %v1865 = vld [vmem:[%s1545 + $0x14] sm:$0x1]
      %v1866 = vld [vmem:[%s1545 + $0x18] sm:$0xf]
      %v1867 = vld [vmem:[%s1545 + $0x1c] sm:$0xf]
      %v1868 = vld [vmem:[%s1545 + $0x20] sm:$0x1]
      %v1869 = vld [vmem:[%s1545 + $0x24] sm:$0xf]
      %v1870 = vld [vmem:[%s1545 + $0x28] sm:$0xf]
      %v1871 = vld [vmem:[%s1545 + $0x2c] sm:$0x1]
      %v1872 = vld [vmem:[%s1545 + $0x30] sm:$0xf]
      %v1873 = vld [vmem:[%s1545 + $0x34] sm:$0xf]
      %v1874 = vld [vmem:[%s1545 + $0x38] sm:$0x1]
      %v1875 = vld [vmem:[%s1545 + $0x3c] sm:$0xf]
      %v1876 = vld [vmem:[%s1545 + $0x40] sm:$0xf]
      %v1877 = vld [vmem:[%s1545 + $0x44] sm:$0x1]
      %v1878 = vld [vmem:[%s1545 + $0x48] sm:$0xf]
      %v1879 = vld [vmem:[%s1545 + $0x4c] sm:$0xf]
      %v1880 = vld [vmem:[%s1545 + $0x50] sm:$0x1]
      %v1881 = vld [vmem:[%s1545 + $0x54] sm:$0xf]
      %v1882 = vld [vmem:[%s1545 + $0x58] sm:$0xf]
      %v1883 = vld [vmem:[%s1545 + $0x5c] sm:$0x1]
      %v1884 = vld [vmem:[%s1545 + $0x60] sm:$0xf]
      %v1885 = vld [vmem:[%s1545 + $0x64] sm:$0xf]
      %v1886 = vld [vmem:[%s1545 + $0x68] sm:$0x1]
      %v1887 = vld [vmem:[%s1545 + $0x6c] sm:$0xf]
      %v1888 = vld [vmem:[%s1545 + $0x70] sm:$0xf]
      %v1889 = vld [vmem:[%s1545 + $0x74] sm:$0x1]
      %v1890 = vld [vmem:[%s1545 + $0x78] sm:$0xf]
      %v1891 = vld [vmem:[%s1545 + $0x7c] sm:$0xf]
      %v1892 = vld [vmem:[%s1545 + $0x80] sm:$0x1]
      %v1893 = vld [vmem:[%s1545 + $0x84] sm:$0xf]
      %v1894 = vld [vmem:[%s1545 + $0x88] sm:$0xf]
      %v1895 = vld [vmem:[%s1545 + $0x8c] sm:$0x1]
      %v1896 = vld [vmem:[%s1545 + $0x90] sm:$0xf]
      %v1897 = vld [vmem:[%s1545 + $0x94] sm:$0xf]
      %v1898 = vld [vmem:[%s1545 + $0x98] sm:$0x1]
      %v1899 = vld [vmem:[%s1545 + $0x9c] sm:$0xf]
      %v1900 = vld [vmem:[%s1545 + $0xa0] sm:$0xf]
      %v1901 = vld [vmem:[%s1545 + $0xa4] sm:$0x1]
      %v1902 = vld [vmem:[%s1545 + $0xa8] sm:$0xf]
      %v1903 = vld [vmem:[%s1545 + $0xac] sm:$0xf]
      %v1904 = vld [vmem:[%s1545 + $0xb0] sm:$0x1]
      %v1905 = vld [vmem:[%s1545 + $0xb4] sm:$0xf]
      %v1906 = vld [vmem:[%s1545 + $0xb8] sm:$0xf]
      %v1907 = vld [vmem:[%s1545 + $0xbc] sm:$0x1]
      %v1909 = vshrl.u32 %v1860, 16
      %v1911 = vrot.slane %v1909, 4
      %v1912 = vshll.u32 %v1860, 16
      %v1914 = vrot.slane %v1912, 5
      %v1915 = vor.u32 %v1911, %v1914
      %v1916 = vrot.slane %v1915, 4
      %v1918 = vshll.u32 %v1861, 16
      %v1920 = vrot.slane %v1918, 5
      %v1921 = vsel %vm293, %v1916, %v1920
      %v1922 = vshrl.u32 %v1861, 16
      %v1924 = vrot.slane %v1922, 4
      %v1925 = vor.u32 %v1924, %v1920
      %v1926 = vrot.slane %v1925, 4
      %v1928 = vshll.u32 %v1862, 16
      %v1930 = vrot.slane %v1928, 5
      %v1931 = vsel %vm293, %v1926, %v1930
      %v1933 = vshrl.u32 %v1863, 16
      %v1935 = vrot.slane %v1933, 4
      %v1936 = vshll.u32 %v1863, 16
      %v1938 = vrot.slane %v1936, 5
      %v1939 = vor.u32 %v1935, %v1938
      %v1940 = vrot.slane %v1939, 4
      %v1942 = vshll.u32 %v1864, 16
      %v1944 = vrot.slane %v1942, 5
      %v1945 = vsel %vm293, %v1940, %v1944
      %v1946 = vshrl.u32 %v1864, 16
      %v1948 = vrot.slane %v1946, 4
      %v1949 = vor.u32 %v1948, %v1944
      %v1950 = vrot.slane %v1949, 4
      %v1952 = vshll.u32 %v1865, 16
      %v1954 = vrot.slane %v1952, 5
      %v1955 = vsel %vm293, %v1950, %v1954
      %v1957 = vshrl.u32 %v1866, 16
      %v1959 = vrot.slane %v1957, 4
      %v1960 = vshll.u32 %v1866, 16
      %v1962 = vrot.slane %v1960, 5
      %v1963 = vor.u32 %v1959, %v1962
      %v1964 = vrot.slane %v1963, 4
      %v1966 = vshll.u32 %v1867, 16
      %v1968 = vrot.slane %v1966, 5
      %v1969 = vsel %vm293, %v1964, %v1968
      %v1970 = vshrl.u32 %v1867, 16
      %v1972 = vrot.slane %v1970, 4
      %v1973 = vor.u32 %v1972, %v1968
      %v1974 = vrot.slane %v1973, 4
      %v1976 = vshll.u32 %v1868, 16
      %v1978 = vrot.slane %v1976, 5
      %v1979 = vsel %vm293, %v1974, %v1978
      %v1981 = vshrl.u32 %v1869, 16
      %v1983 = vrot.slane %v1981, 4
      %v1984 = vshll.u32 %v1869, 16
      %v1986 = vrot.slane %v1984, 5
      %v1987 = vor.u32 %v1983, %v1986
      %v1988 = vrot.slane %v1987, 4
      %v1990 = vshll.u32 %v1870, 16
      %v1992 = vrot.slane %v1990, 5
      %v1993 = vsel %vm293, %v1988, %v1992
      %v1994 = vshrl.u32 %v1870, 16
      %v1996 = vrot.slane %v1994, 4
      %v1997 = vor.u32 %v1996, %v1992
      %v1998 = vrot.slane %v1997, 4
      %v2000 = vshll.u32 %v1871, 16
      %v2002 = vrot.slane %v2000, 5
      %v2003 = vsel %vm293, %v1998, %v2002
      %v2005 = vshrl.u32 %v1872, 16
      %v2007 = vrot.slane %v2005, 4
      %v2008 = vshll.u32 %v1872, 16
      %v2010 = vrot.slane %v2008, 5
      %v2011 = vor.u32 %v2007, %v2010
      %v2012 = vrot.slane %v2011, 4
      %v2014 = vshll.u32 %v1873, 16
      %v2016 = vrot.slane %v2014, 5
      %v2017 = vsel %vm293, %v2012, %v2016
      %v2018 = vshrl.u32 %v1873, 16
      %v2020 = vrot.slane %v2018, 4
      %v2021 = vor.u32 %v2020, %v2016
      %v2022 = vrot.slane %v2021, 4
      %v2024 = vshll.u32 %v1874, 16
      %v2026 = vrot.slane %v2024, 5
      %v2027 = vsel %vm293, %v2022, %v2026
      %v2029 = vshrl.u32 %v1875, 16
      %v2031 = vrot.slane %v2029, 4
      %v2032 = vshll.u32 %v1875, 16
      %v2034 = vrot.slane %v2032, 5
      %v2035 = vor.u32 %v2031, %v2034
      %v2036 = vrot.slane %v2035, 4
      %v2038 = vshll.u32 %v1876, 16
      %v2040 = vrot.slane %v2038, 5
      %v2041 = vsel %vm293, %v2036, %v2040
      %v2042 = vshrl.u32 %v1876, 16
      %v2044 = vrot.slane %v2042, 4
      %v2045 = vor.u32 %v2044, %v2040
      %v2046 = vrot.slane %v2045, 4
      %v2048 = vshll.u32 %v1877, 16
      %v2050 = vrot.slane %v2048, 5
      %v2051 = vsel %vm293, %v2046, %v2050
      %v2053 = vshrl.u32 %v1878, 16
      %v2055 = vrot.slane %v2053, 4
      %v2056 = vshll.u32 %v1878, 16
      %v2058 = vrot.slane %v2056, 5
      %v2059 = vor.u32 %v2055, %v2058
      %v2060 = vrot.slane %v2059, 4
      %v2062 = vshll.u32 %v1879, 16
      %v2064 = vrot.slane %v2062, 5
      %v2065 = vsel %vm293, %v2060, %v2064
      %v2066 = vshrl.u32 %v1879, 16
      %v2068 = vrot.slane %v2066, 4
      %v2069 = vor.u32 %v2068, %v2064
      %v2070 = vrot.slane %v2069, 4
      %v2072 = vshll.u32 %v1880, 16
      %v2074 = vrot.slane %v2072, 5
      %v2075 = vsel %vm293, %v2070, %v2074
      %v2077 = vshrl.u32 %v1881, 16
      %v2079 = vrot.slane %v2077, 4
      %v2080 = vshll.u32 %v1881, 16
      %v2082 = vrot.slane %v2080, 5
      %v2083 = vor.u32 %v2079, %v2082
      %v2084 = vrot.slane %v2083, 4
      %v2086 = vshll.u32 %v1882, 16
      %v2088 = vrot.slane %v2086, 5
      %v2089 = vsel %vm293, %v2084, %v2088
      %v2090 = vshrl.u32 %v1882, 16
      %v2092 = vrot.slane %v2090, 4
      %v2093 = vor.u32 %v2092, %v2088
      %v2094 = vrot.slane %v2093, 4
      %v2096 = vshll.u32 %v1883, 16
      %v2098 = vrot.slane %v2096, 5
      %v2099 = vsel %vm293, %v2094, %v2098
      %v2101 = vshrl.u32 %v1884, 16
      %v2103 = vrot.slane %v2101, 4
      %v2104 = vshll.u32 %v1884, 16
      %v2106 = vrot.slane %v2104, 5
      %v2107 = vor.u32 %v2103, %v2106
      %v2108 = vrot.slane %v2107, 4
      %v2110 = vshll.u32 %v1885, 16
      %v2112 = vrot.slane %v2110, 5
      %v2113 = vsel %vm293, %v2108, %v2112
      %v2114 = vshrl.u32 %v1885, 16
      %v2116 = vrot.slane %v2114, 4
      %v2117 = vor.u32 %v2116, %v2112
      %v2118 = vrot.slane %v2117, 4
      %v2120 = vshll.u32 %v1886, 16
      %v2122 = vrot.slane %v2120, 5
      %v2123 = vsel %vm293, %v2118, %v2122
      %v2125 = vshrl.u32 %v1887, 16
      %v2127 = vrot.slane %v2125, 4
      %v2128 = vshll.u32 %v1887, 16
      %v2130 = vrot.slane %v2128, 5
      %v2131 = vor.u32 %v2127, %v2130
      %v2132 = vrot.slane %v2131, 4
      %v2134 = vshll.u32 %v1888, 16
      %v2136 = vrot.slane %v2134, 5
      %v2137 = vsel %vm293, %v2132, %v2136
      %v2138 = vshrl.u32 %v1888, 16
      %v2140 = vrot.slane %v2138, 4
      %v2141 = vor.u32 %v2140, %v2136
      %v2142 = vrot.slane %v2141, 4
      %v2144 = vshll.u32 %v1889, 16
      %v2146 = vrot.slane %v2144, 5
      %v2147 = vsel %vm293, %v2142, %v2146
      %v2149 = vshrl.u32 %v1890, 16
      %v2151 = vrot.slane %v2149, 4
      %v2152 = vshll.u32 %v1890, 16
      %v2154 = vrot.slane %v2152, 5
      %v2155 = vor.u32 %v2151, %v2154
      %v2156 = vrot.slane %v2155, 4
      %v2158 = vshll.u32 %v1891, 16
      %v2160 = vrot.slane %v2158, 5
      %v2161 = vsel %vm293, %v2156, %v2160
      %v2162 = vshrl.u32 %v1891, 16
      %v2164 = vrot.slane %v2162, 4
      %v2165 = vor.u32 %v2164, %v2160
      %v2166 = vrot.slane %v2165, 4
      %v2168 = vshll.u32 %v1892, 16
      %v2170 = vrot.slane %v2168, 5
      %v2171 = vsel %vm293, %v2166, %v2170
      %v2173 = vshrl.u32 %v1893, 16
      %v2175 = vrot.slane %v2173, 4
      %v2176 = vshll.u32 %v1893, 16
      %v2178 = vrot.slane %v2176, 5
      %v2179 = vor.u32 %v2175, %v2178
      %v2180 = vrot.slane %v2179, 4
      %v2182 = vshll.u32 %v1894, 16
      %v2184 = vrot.slane %v2182, 5
      %v2185 = vsel %vm293, %v2180, %v2184
      %v2186 = vshrl.u32 %v1894, 16
      %v2188 = vrot.slane %v2186, 4
      %v2189 = vor.u32 %v2188, %v2184
      %v2190 = vrot.slane %v2189, 4
      %v2192 = vshll.u32 %v1895, 16
      %v2194 = vrot.slane %v2192, 5
      %v2195 = vsel %vm293, %v2190, %v2194
      %v2197 = vshrl.u32 %v1896, 16
      %v2199 = vrot.slane %v2197, 4
      %v2200 = vshll.u32 %v1896, 16
      %v2202 = vrot.slane %v2200, 5
      %v2203 = vor.u32 %v2199, %v2202
      %v2204 = vrot.slane %v2203, 4
      %v2206 = vshll.u32 %v1897, 16
      %v2208 = vrot.slane %v2206, 5
      %v2209 = vsel %vm293, %v2204, %v2208
      %v2210 = vshrl.u32 %v1897, 16
      %v2212 = vrot.slane %v2210, 4
      %v2213 = vor.u32 %v2212, %v2208
      %v2214 = vrot.slane %v2213, 4
      %v2216 = vshll.u32 %v1898, 16
      %v2218 = vrot.slane %v2216, 5
      %v2219 = vsel %vm293, %v2214, %v2218
      %v2221 = vshrl.u32 %v1899, 16
      %v2223 = vrot.slane %v2221, 4
      %v2224 = vshll.u32 %v1899, 16
      %v2226 = vrot.slane %v2224, 5
      %v2227 = vor.u32 %v2223, %v2226
      %v2228 = vrot.slane %v2227, 4
      %v2230 = vshll.u32 %v1900, 16
      %v2232 = vrot.slane %v2230, 5
      %v2233 = vsel %vm293, %v2228, %v2232
      %v2234 = vshrl.u32 %v1900, 16
      %v2236 = vrot.slane %v2234, 4
      %v2237 = vor.u32 %v2236, %v2232
      %v2238 = vrot.slane %v2237, 4
      %v2240 = vshll.u32 %v1901, 16
      %v2242 = vrot.slane %v2240, 5
      %v2243 = vsel %vm293, %v2238, %v2242
      %v2245 = vshrl.u32 %v1902, 16
      %v2247 = vrot.slane %v2245, 4
      %v2248 = vshll.u32 %v1902, 16
      %v2250 = vrot.slane %v2248, 5
      %v2251 = vor.u32 %v2247, %v2250
      %v2252 = vrot.slane %v2251, 4
      %v2254 = vshll.u32 %v1903, 16
      %v2256 = vrot.slane %v2254, 5
      %v2257 = vsel %vm293, %v2252, %v2256
      %v2258 = vshrl.u32 %v1903, 16
      %v2260 = vrot.slane %v2258, 4
      %v2261 = vor.u32 %v2260, %v2256
      %v2262 = vrot.slane %v2261, 4
      %v2264 = vshll.u32 %v1904, 16
      %v2266 = vrot.slane %v2264, 5
      %v2267 = vsel %vm293, %v2262, %v2266
      %v2269 = vshrl.u32 %v1905, 16
      %v2271 = vrot.slane %v2269, 4
      %v2272 = vshll.u32 %v1905, 16
      %v2274 = vrot.slane %v2272, 5
      %v2275 = vor.u32 %v2271, %v2274
      %v2276 = vrot.slane %v2275, 4
      %v2278 = vshll.u32 %v1906, 16
      %v2280 = vrot.slane %v2278, 5
      %v2281 = vsel %vm293, %v2276, %v2280
      %v2282 = vshrl.u32 %v1906, 16
      %v2284 = vrot.slane %v2282, 4
      %v2285 = vor.u32 %v2284, %v2280
      %v2286 = vrot.slane %v2285, 4
      %v2288 = vshll.u32 %v1907, 16
      %v2290 = vrot.slane %v2288, 5
      %v2291 = vsel %vm293, %v2286, %v2290
      %s2292 = scalar_lea.vmem %s1, 256
      %v2293 = vld [vmem:[%s2292] sm:$0xf]
      %v2294 = vld [vmem:[%s2292 + $0x4] sm:$0xf]
      %v2295 = vld [vmem:[%s2292 + $0x8] sm:$0xf]
      %v2296 = vld [vmem:[%s2292 + $0xc] sm:$0xf]
      %v2297 = vld [vmem:[%s2292 + $0x10] sm:$0xf]
      %v2298 = vld [vmem:[%s2292 + $0x14] sm:$0xf]
      %v2299 = vld [vmem:[%s2292 + $0x18] sm:$0xf]
      %v2300 = vld [vmem:[%s2292 + $0x1c] sm:$0xf]
      %v2301 = vld [vmem:[%s2292 + $0x20] sm:$0xf]
      %v2302 = vld [vmem:[%s2292 + $0x24] sm:$0xf]
      %v2303 = vld [vmem:[%s2292 + $0x28] sm:$0xf]
      %v2304 = vld [vmem:[%s2292 + $0x2c] sm:$0xf]
      %v2305 = vld [vmem:[%s2292 + $0x30] sm:$0xf]
      %v2306 = vld [vmem:[%s2292 + $0x34] sm:$0xf]
      %v2307 = vld [vmem:[%s2292 + $0x38] sm:$0xf]
      %v2308 = vld [vmem:[%s2292 + $0x3c] sm:$0xf]
      %v2309 = vunpack.c.l.b16 %v1921
      %v2310 = vunpack.c.l.b16 %v1931
      %v2311 = vunpack.c.l.b16 %v1945
      %v2312 = vunpack.c.l.b16 %v1955
      %v2313 = vunpack.c.l.b16 %v1969
      %v2314 = vunpack.c.l.b16 %v1979
      %v2315 = vunpack.c.l.b16 %v1993
      %v2316 = vunpack.c.l.b16 %v2003
      %v2317 = vunpack.c.l.b16 %v2017
      %v2318 = vunpack.c.l.b16 %v2027
      %v2319 = vunpack.c.l.b16 %v2041
      %v2320 = vunpack.c.l.b16 %v2051
      %v2321 = vunpack.c.l.b16 %v2065
      %v2322 = vunpack.c.l.b16 %v2075
      %v2323 = vunpack.c.l.b16 %v2089
      %v2324 = vunpack.c.l.b16 %v2099
      %v2325 = vunpack.c.l.b16 %v2113
      %v2326 = vunpack.c.l.b16 %v2123
      %v2327 = vunpack.c.l.b16 %v2137
      %v2328 = vunpack.c.l.b16 %v2147
      %v2329 = vunpack.c.l.b16 %v2161
      %v2330 = vunpack.c.l.b16 %v2171
      %v2331 = vunpack.c.l.b16 %v2185
      %v2332 = vunpack.c.l.b16 %v2195
      %v2333 = vunpack.c.l.b16 %v2209
      %v2334 = vunpack.c.l.b16 %v2219
      %v2335 = vunpack.c.l.b16 %v2233
      %v2336 = vunpack.c.l.b16 %v2243
      %v2337 = vunpack.c.l.b16 %v2257
      %v2338 = vunpack.c.l.b16 %v2267
      %v2339 = vunpack.c.l.b16 %v2281
      %v2340 = vunpack.c.l.b16 %v2291
      %v2341 = vpack.c.b16 %v2310, %v2309
      %v2342 = vpack.c.b16 %v2312, %v2311
      %v2343 = vpack.c.b16 %v2314, %v2313
      %v2344 = vpack.c.b16 %v2316, %v2315
      %v2345 = vpack.c.b16 %v2318, %v2317
      %v2346 = vpack.c.b16 %v2320, %v2319
      %v2347 = vpack.c.b16 %v2322, %v2321
      %v2348 = vpack.c.b16 %v2324, %v2323
      %v2349 = vpack.c.b16 %v2326, %v2325
      %v2350 = vpack.c.b16 %v2328, %v2327
      %v2351 = vpack.c.b16 %v2330, %v2329
      %v2352 = vpack.c.b16 %v2332, %v2331
      %v2353 = vpack.c.b16 %v2334, %v2333
      %v2354 = vpack.c.b16 %v2336, %v2335
      %v2355 = vpack.c.b16 %v2338, %v2337
      %v2356 = vpack.c.b16 %v2340, %v2339
      %v2389 = vunpack.c.l.b16 %v2293
      %v2390 = vunpack.c.l.b16 %v2294
      %v2391 = vunpack.c.l.b16 %v2295
      %v2392 = vunpack.c.l.b16 %v2296
      %v2393 = vunpack.c.l.b16 %v2297
      %v2394 = vunpack.c.l.b16 %v2298
      %v2395 = vunpack.c.l.b16 %v2299
      %v2396 = vunpack.c.l.b16 %v2300
      %v2397 = vunpack.c.l.b16 %v2301
      %v2398 = vunpack.c.l.b16 %v2302
      %v2399 = vunpack.c.l.b16 %v2303
      %v2400 = vunpack.c.l.b16 %v2304
      %v2401 = vunpack.c.l.b16 %v2305
      %v2402 = vunpack.c.l.b16 %v2306
      %v2403 = vunpack.c.l.b16 %v2307
      %v2404 = vunpack.c.l.b16 %v2308
      %v2405 = vpack.c.b16 %v2390, %v2389
      %v2406 = vpack.c.b16 %v2392, %v2391
      %v2407 = vpack.c.b16 %v2394, %v2393
      %v2408 = vpack.c.b16 %v2396, %v2395
      %v2409 = vpack.c.b16 %v2398, %v2397
      %v2410 = vpack.c.b16 %v2400, %v2399
      %v2411 = vpack.c.b16 %v2402, %v2401
      %v2412 = vpack.c.b16 %v2404, %v2403
      %2421 = vmatpush.bf16.msra.mxu0 %v2412
      %2422 = vmatpush.bf16.msra.mxu0 %v2411
      %2423 = vmatpush.bf16.msra.mxu0 %v2410
      %2424 = vmatpush.bf16.msra.mxu0 %v2409
      %2425 = vmatpush.bf16.msra.mxu0 %v2408
      %2426 = vmatpush.bf16.msra.mxu0 %v2407
      %2427 = vmatpush.bf16.msra.mxu0 %v2406
      %2428 = vmatpush.bf16.msra.mxu0 %v2405
      %2429 = vmatmul.bf16.gmra.mxu0 %v2341
      %v2430 = vpop.f32.mrf.mxu0
      %v2431 = vadd.f32 0.0, %v2430
      %v2432 = vpop.f32.mrf.mxu0
      %v2433 = vadd.f32 0.0, %v2432
      %2434 = vmatmul.bf16.gmra.mxu0 %v2342
      %v2435 = vpop.f32.mrf.mxu0
      %v2436 = vadd.f32 0.0, %v2435
      %v2437 = vpop.f32.mrf.mxu0
      %v2438 = vadd.f32 0.0, %v2437
      %2439 = vmatmul.bf16.gmra.mxu0 %v2343
      %v2440 = vpop.f32.mrf.mxu0
      %v2441 = vadd.f32 0.0, %v2440
      %v2442 = vpop.f32.mrf.mxu0
      %v2443 = vadd.f32 0.0, %v2442
      %2444 = vmatmul.bf16.gmra.mxu0 %v2344
      %v2445 = vpop.f32.mrf.mxu0
      %v2446 = vadd.f32 0.0, %v2445
      %v2447 = vpop.f32.mrf.mxu0
      %v2448 = vadd.f32 0.0, %v2447
      %2449 = vmatmul.bf16.gmra.mxu0 %v2345
      %v2450 = vpop.f32.mrf.mxu0
      %v2451 = vadd.f32 0.0, %v2450
      %v2452 = vpop.f32.mrf.mxu0
      %v2453 = vadd.f32 0.0, %v2452
      %2454 = vmatmul.bf16.gmra.mxu0 %v2346
      %v2455 = vpop.f32.mrf.mxu0
      %v2456 = vadd.f32 0.0, %v2455
      %v2457 = vpop.f32.mrf.mxu0
      %v2458 = vadd.f32 0.0, %v2457
      %2459 = vmatmul.bf16.gmra.mxu0 %v2347
      %v2460 = vpop.f32.mrf.mxu0
      %v2461 = vadd.f32 0.0, %v2460
      %v2462 = vpop.f32.mrf.mxu0
      %v2463 = vadd.f32 0.0, %v2462
      %2464 = vmatmul.bf16.gmra.mxu0 %v2348
      %v2465 = vpop.f32.mrf.mxu0
      %v2466 = vadd.f32 0.0, %v2465
      %v2467 = vpop.f32.mrf.mxu0
      %v2468 = vadd.f32 0.0, %v2467
      %2469 = vmatmul.bf16.gmra.mxu0 %v2349
      %v2470 = vpop.f32.mrf.mxu0
      %v2471 = vadd.f32 0.0, %v2470
      %v2472 = vpop.f32.mrf.mxu0
      %v2473 = vadd.f32 0.0, %v2472
      %2474 = vmatmul.bf16.gmra.mxu0 %v2350
      %v2475 = vpop.f32.mrf.mxu0
      %v2476 = vadd.f32 0.0, %v2475
      %v2477 = vpop.f32.mrf.mxu0
      %v2478 = vadd.f32 0.0, %v2477
      %2479 = vmatmul.bf16.gmra.mxu0 %v2351
      %v2480 = vpop.f32.mrf.mxu0
      %v2481 = vadd.f32 0.0, %v2480
      %v2482 = vpop.f32.mrf.mxu0
      %v2483 = vadd.f32 0.0, %v2482
      %2484 = vmatmul.bf16.gmra.mxu0 %v2352
      %v2485 = vpop.f32.mrf.mxu0
      %v2486 = vadd.f32 0.0, %v2485
      %v2487 = vpop.f32.mrf.mxu0
      %v2488 = vadd.f32 0.0, %v2487
      %2489 = vmatmul.bf16.gmra.mxu0 %v2353
      %v2490 = vpop.f32.mrf.mxu0
      %v2491 = vadd.f32 0.0, %v2490
      %v2492 = vpop.f32.mrf.mxu0
      %v2493 = vadd.f32 0.0, %v2492
      %2494 = vmatmul.bf16.gmra.mxu0 %v2354
      %v2495 = vpop.f32.mrf.mxu0
      %v2496 = vadd.f32 0.0, %v2495
      %v2497 = vpop.f32.mrf.mxu0
      %v2498 = vadd.f32 0.0, %v2497
      %2499 = vmatmul.bf16.gmra.mxu0 %v2355
      %v2500 = vpop.f32.mrf.mxu0
      %v2501 = vadd.f32 0.0, %v2500
      %v2502 = vpop.f32.mrf.mxu0
      %v2503 = vadd.f32 0.0, %v2502
      %2504 = vmatmul.bf16.gmra.mxu0 %v2356
      %v2505 = vpop.f32.mrf.mxu0
      %v2506 = vadd.f32 0.0, %v2505
      %v2507 = vpop.f32.mrf.mxu0
      %v2508 = vadd.f32 0.0, %v2507
      %2509 = vdwg.mxu0
      %v2510 = vadd.f32 %v1828, %v2431
      %v2511 = vadd.f32 %v1829, %v2433
      %v2512 = vadd.f32 %v1830, %v2436
      %v2513 = vadd.f32 %v1831, %v2438
      %v2514 = vadd.f32 %v1832, %v2441
      %v2515 = vadd.f32 %v1833, %v2443
      %v2516 = vadd.f32 %v1834, %v2446
      %v2517 = vadd.f32 %v1835, %v2448
      %v2518 = vadd.f32 %v1836, %v2451
      %v2519 = vadd.f32 %v1837, %v2453
      %v2520 = vadd.f32 %v1838, %v2456
      %v2521 = vadd.f32 %v1839, %v2458
      %v2522 = vadd.f32 %v1840, %v2461
      %v2523 = vadd.f32 %v1841, %v2463
      %v2524 = vadd.f32 %v1842, %v2466
      %v2525 = vadd.f32 %v1843, %v2468
      %v2526 = vadd.f32 %v1844, %v2471
      %v2527 = vadd.f32 %v1845, %v2473
      %v2528 = vadd.f32 %v1846, %v2476
      %v2529 = vadd.f32 %v1847, %v2478
      %v2530 = vadd.f32 %v1848, %v2481
      %v2531 = vadd.f32 %v1849, %v2483
      %v2532 = vadd.f32 %v1850, %v2486
      %v2533 = vadd.f32 %v1851, %v2488
      %v2534 = vadd.f32 %v1852, %v2491
      %v2535 = vadd.f32 %v1853, %v2493
      %v2536 = vadd.f32 %v1854, %v2496
      %v2537 = vadd.f32 %v1855, %v2498
      %v2538 = vadd.f32 %v1856, %v2501
      %v2539 = vadd.f32 %v1857, %v2503
      %v2540 = vadd.f32 %v1858, %v2506
      %v2541 = vadd.f32 %v1859, %v2508
      %v2542 = vld [vmem:[%s1545] sm:$0xe]
      %v2543 = vld [vmem:[%s1545 + $0xc] sm:$0xe]
      %v2544 = vld [vmem:[%s1545 + $0x18] sm:$0xe]
      %v2545 = vld [vmem:[%s1545 + $0x24] sm:$0xe]
      %v2546 = vld [vmem:[%s1545 + $0x30] sm:$0xe]
      %v2547 = vld [vmem:[%s1545 + $0x3c] sm:$0xe]
      %v2548 = vld [vmem:[%s1545 + $0x48] sm:$0xe]
      %v2549 = vld [vmem:[%s1545 + $0x54] sm:$0xe]
      %v2550 = vld [vmem:[%s1545 + $0x60] sm:$0xe]
      %v2551 = vld [vmem:[%s1545 + $0x6c] sm:$0xe]
      %v2552 = vld [vmem:[%s1545 + $0x78] sm:$0xe]
      %v2553 = vld [vmem:[%s1545 + $0x84] sm:$0xe]
      %v2554 = vld [vmem:[%s1545 + $0x90] sm:$0xe]
      %v2555 = vld [vmem:[%s1545 + $0x9c] sm:$0xe]
      %v2556 = vld [vmem:[%s1545 + $0xa8] sm:$0xe]
      %v2557 = vld [vmem:[%s1545 + $0xb4] sm:$0xe]
      %v2606 = vrot.slane %v2542, 5
      %v2607 = vrot.slane %v2606, 4
      %v2608 = vrot.slane %v1861, 5
      %v2609 = vsel %vm1179, %v2607, %v2608
      %v2610 = vrot.slane %v2608, 4
      %v2611 = vrot.slane %v1862, 5
      %v2612 = vsel %vm1179, %v2610, %v2611
      %v2613 = vrot.slane %v2543, 5
      %v2614 = vrot.slane %v2613, 4
      %v2615 = vrot.slane %v1864, 5
      %v2616 = vsel %vm1179, %v2614, %v2615
      %v2617 = vrot.slane %v2615, 4
      %v2618 = vrot.slane %v1865, 5
      %v2619 = vsel %vm1179, %v2617, %v2618
      %v2620 = vrot.slane %v2544, 5
      %v2621 = vrot.slane %v2620, 4
      %v2622 = vrot.slane %v1867, 5
      %v2623 = vsel %vm1179, %v2621, %v2622
      %v2624 = vrot.slane %v2622, 4
      %v2625 = vrot.slane %v1868, 5
      %v2626 = vsel %vm1179, %v2624, %v2625
      %v2627 = vrot.slane %v2545, 5
      %v2628 = vrot.slane %v2627, 4
      %v2629 = vrot.slane %v1870, 5
      %v2630 = vsel %vm1179, %v2628, %v2629
      %v2631 = vrot.slane %v2629, 4
      %v2632 = vrot.slane %v1871, 5
      %v2633 = vsel %vm1179, %v2631, %v2632
      %v2634 = vrot.slane %v2546, 5
      %v2635 = vrot.slane %v2634, 4
      %v2636 = vrot.slane %v1873, 5
      %v2637 = vsel %vm1179, %v2635, %v2636
      %v2638 = vrot.slane %v2636, 4
      %v2639 = vrot.slane %v1874, 5
      %v2640 = vsel %vm1179, %v2638, %v2639
      %v2641 = vrot.slane %v2547, 5
      %v2642 = vrot.slane %v2641, 4
      %v2643 = vrot.slane %v1876, 5
      %v2644 = vsel %vm1179, %v2642, %v2643
      %v2645 = vrot.slane %v2643, 4
      %v2646 = vrot.slane %v1877, 5
      %v2647 = vsel %vm1179, %v2645, %v2646
      %v2648 = vrot.slane %v2548, 5
      %v2649 = vrot.slane %v2648, 4
      %v2650 = vrot.slane %v1879, 5
      %v2651 = vsel %vm1179, %v2649, %v2650
      %v2652 = vrot.slane %v2650, 4
      %v2653 = vrot.slane %v1880, 5
      %v2654 = vsel %vm1179, %v2652, %v2653
      %v2655 = vrot.slane %v2549, 5
      %v2656 = vrot.slane %v2655, 4
      %v2657 = vrot.slane %v1882, 5
      %v2658 = vsel %vm1179, %v2656, %v2657
      %v2659 = vrot.slane %v2657, 4
      %v2660 = vrot.slane %v1883, 5
      %v2661 = vsel %vm1179, %v2659, %v2660
      %v2662 = vrot.slane %v2550, 5
      %v2663 = vrot.slane %v2662, 4
      %v2664 = vrot.slane %v1885, 5
      %v2665 = vsel %vm1179, %v2663, %v2664
      %v2666 = vrot.slane %v2664, 4
      %v2667 = vrot.slane %v1886, 5
      %v2668 = vsel %vm1179, %v2666, %v2667
      %v2669 = vrot.slane %v2551, 5
      %v2670 = vrot.slane %v2669, 4
      %v2671 = vrot.slane %v1888, 5
      %v2672 = vsel %vm1179, %v2670, %v2671
      %v2673 = vrot.slane %v2671, 4
      %v2674 = vrot.slane %v1889, 5
      %v2675 = vsel %vm1179, %v2673, %v2674
      %v2676 = vrot.slane %v2552, 5
      %v2677 = vrot.slane %v2676, 4
      %v2678 = vrot.slane %v1891, 5
      %v2679 = vsel %vm1179, %v2677, %v2678
      %v2680 = vrot.slane %v2678, 4
      %v2681 = vrot.slane %v1892, 5
      %v2682 = vsel %vm1179, %v2680, %v2681
      %v2683 = vrot.slane %v2553, 5
      %v2684 = vrot.slane %v2683, 4
      %v2685 = vrot.slane %v1894, 5
      %v2686 = vsel %vm1179, %v2684, %v2685
      %v2687 = vrot.slane %v2685, 4
      %v2688 = vrot.slane %v1895, 5
      %v2689 = vsel %vm1179, %v2687, %v2688
      %v2690 = vrot.slane %v2554, 5
      %v2691 = vrot.slane %v2690, 4
      %v2692 = vrot.slane %v1897, 5
      %v2693 = vsel %vm1179, %v2691, %v2692
      %v2694 = vrot.slane %v2692, 4
      %v2695 = vrot.slane %v1898, 5
      %v2696 = vsel %vm1179, %v2694, %v2695
      %v2697 = vrot.slane %v2555, 5
      %v2698 = vrot.slane %v2697, 4
      %v2699 = vrot.slane %v1900, 5
      %v2700 = vsel %vm1179, %v2698, %v2699
      %v2701 = vrot.slane %v2699, 4
      %v2702 = vrot.slane %v1901, 5
      %v2703 = vsel %vm1179, %v2701, %v2702
      %v2704 = vrot.slane %v2556, 5
      %v2705 = vrot.slane %v2704, 4
      %v2706 = vrot.slane %v1903, 5
      %v2707 = vsel %vm1179, %v2705, %v2706
      %v2708 = vrot.slane %v2706, 4
      %v2709 = vrot.slane %v1904, 5
      %v2710 = vsel %vm1179, %v2708, %v2709
      %v2711 = vrot.slane %v2557, 5
      %v2712 = vrot.slane %v2711, 4
      %v2713 = vrot.slane %v1906, 5
      %v2714 = vsel %vm1179, %v2712, %v2713
      %v2715 = vrot.slane %v2713, 4
      %v2716 = vrot.slane %v1907, 5
      %v2717 = vsel %vm1179, %v2715, %v2716
      %s2718 = scalar_lea.vmem %s1, 320
      %v2719 = vld [vmem:[%s2718] sm:$0xf]
      %v2720 = vld [vmem:[%s2718 + $0x4] sm:$0xf]
      %v2721 = vld [vmem:[%s2718 + $0x8] sm:$0xf]
      %v2722 = vld [vmem:[%s2718 + $0xc] sm:$0xf]
      %v2723 = vld [vmem:[%s2718 + $0x10] sm:$0xf]
      %v2724 = vld [vmem:[%s2718 + $0x14] sm:$0xf]
      %v2725 = vld [vmem:[%s2718 + $0x18] sm:$0xf]
      %v2726 = vld [vmem:[%s2718 + $0x1c] sm:$0xf]
      %v2727 = vld [vmem:[%s2718 + $0x20] sm:$0xf]
      %v2728 = vld [vmem:[%s2718 + $0x24] sm:$0xf]
      %v2729 = vld [vmem:[%s2718 + $0x28] sm:$0xf]
      %v2730 = vld [vmem:[%s2718 + $0x2c] sm:$0xf]
      %v2731 = vld [vmem:[%s2718 + $0x30] sm:$0xf]
      %v2732 = vld [vmem:[%s2718 + $0x34] sm:$0xf]
      %v2733 = vld [vmem:[%s2718 + $0x38] sm:$0xf]
      %v2734 = vld [vmem:[%s2718 + $0x3c] sm:$0xf]
      %v2735 = vunpack.c.l.b16 %v2609
      %v2736 = vunpack.c.l.b16 %v2612
      %v2737 = vunpack.c.l.b16 %v2616
      %v2738 = vunpack.c.l.b16 %v2619
      %v2739 = vunpack.c.l.b16 %v2623
      %v2740 = vunpack.c.l.b16 %v2626
      %v2741 = vunpack.c.l.b16 %v2630
      %v2742 = vunpack.c.l.b16 %v2633
      %v2743 = vunpack.c.l.b16 %v2637
      %v2744 = vunpack.c.l.b16 %v2640
      %v2745 = vunpack.c.l.b16 %v2644
      %v2746 = vunpack.c.l.b16 %v2647
      %v2747 = vunpack.c.l.b16 %v2651
      %v2748 = vunpack.c.l.b16 %v2654
      %v2749 = vunpack.c.l.b16 %v2658
      %v2750 = vunpack.c.l.b16 %v2661
      %v2751 = vunpack.c.l.b16 %v2665
      %v2752 = vunpack.c.l.b16 %v2668
      %v2753 = vunpack.c.l.b16 %v2672
      %v2754 = vunpack.c.l.b16 %v2675
      %v2755 = vunpack.c.l.b16 %v2679
      %v2756 = vunpack.c.l.b16 %v2682
      %v2757 = vunpack.c.l.b16 %v2686
      %v2758 = vunpack.c.l.b16 %v2689
      %v2759 = vunpack.c.l.b16 %v2693
      %v2760 = vunpack.c.l.b16 %v2696
      %v2761 = vunpack.c.l.b16 %v2700
      %v2762 = vunpack.c.l.b16 %v2703
      %v2763 = vunpack.c.l.b16 %v2707
      %v2764 = vunpack.c.l.b16 %v2710
      %v2765 = vunpack.c.l.b16 %v2714
      %v2766 = vunpack.c.l.b16 %v2717
      %v2767 = vpack.c.b16 %v2736, %v2735
      %v2768 = vpack.c.b16 %v2738, %v2737
      %v2769 = vpack.c.b16 %v2740, %v2739
      %v2770 = vpack.c.b16 %v2742, %v2741
      %v2771 = vpack.c.b16 %v2744, %v2743
      %v2772 = vpack.c.b16 %v2746, %v2745
      %v2773 = vpack.c.b16 %v2748, %v2747
      %v2774 = vpack.c.b16 %v2750, %v2749
      %v2775 = vpack.c.b16 %v2752, %v2751
      %v2776 = vpack.c.b16 %v2754, %v2753
      %v2777 = vpack.c.b16 %v2756, %v2755
      %v2778 = vpack.c.b16 %v2758, %v2757
      %v2779 = vpack.c.b16 %v2760, %v2759
      %v2780 = vpack.c.b16 %v2762, %v2761
      %v2781 = vpack.c.b16 %v2764, %v2763
      %v2782 = vpack.c.b16 %v2766, %v2765
      %v2815 = vunpack.c.l.b16 %v2719
      %v2816 = vunpack.c.l.b16 %v2720
      %v2817 = vunpack.c.l.b16 %v2721
      %v2818 = vunpack.c.l.b16 %v2722
      %v2819 = vunpack.c.l.b16 %v2723
      %v2820 = vunpack.c.l.b16 %v2724
      %v2821 = vunpack.c.l.b16 %v2725
      %v2822 = vunpack.c.l.b16 %v2726
      %v2823 = vunpack.c.l.b16 %v2727
      %v2824 = vunpack.c.l.b16 %v2728
      %v2825 = vunpack.c.l.b16 %v2729
      %v2826 = vunpack.c.l.b16 %v2730
      %v2827 = vunpack.c.l.b16 %v2731
      %v2828 = vunpack.c.l.b16 %v2732
      %v2829 = vunpack.c.l.b16 %v2733
      %v2830 = vunpack.c.l.b16 %v2734
      %v2831 = vpack.c.b16 %v2816, %v2815
      %v2832 = vpack.c.b16 %v2818, %v2817
      %v2833 = vpack.c.b16 %v2820, %v2819
      %v2834 = vpack.c.b16 %v2822, %v2821
      %v2835 = vpack.c.b16 %v2824, %v2823
      %v2836 = vpack.c.b16 %v2826, %v2825
      %v2837 = vpack.c.b16 %v2828, %v2827
      %v2838 = vpack.c.b16 %v2830, %v2829
      %2847 = vmatpush.bf16.msra.mxu0 %v2838
      %2848 = vmatpush.bf16.msra.mxu0 %v2837
      %2849 = vmatpush.bf16.msra.mxu0 %v2836
      %2850 = vmatpush.bf16.msra.mxu0 %v2835
      %2851 = vmatpush.bf16.msra.mxu0 %v2834
      %2852 = vmatpush.bf16.msra.mxu0 %v2833
      %2853 = vmatpush.bf16.msra.mxu0 %v2832
      %2854 = vmatpush.bf16.msra.mxu0 %v2831
      %2855 = vmatmul.bf16.gmra.mxu0 %v2767
      %v2856 = vpop.f32.mrf.mxu0
      %v2857 = vadd.f32 0.0, %v2856
      %v2858 = vpop.f32.mrf.mxu0
      %v2859 = vadd.f32 0.0, %v2858
      %2860 = vmatmul.bf16.gmra.mxu0 %v2768
      %v2861 = vpop.f32.mrf.mxu0
      %v2862 = vadd.f32 0.0, %v2861
      %v2863 = vpop.f32.mrf.mxu0
      %v2864 = vadd.f32 0.0, %v2863
      %2865 = vmatmul.bf16.gmra.mxu0 %v2769
      %v2866 = vpop.f32.mrf.mxu0
      %v2867 = vadd.f32 0.0, %v2866
      %v2868 = vpop.f32.mrf.mxu0
      %v2869 = vadd.f32 0.0, %v2868
      %2870 = vmatmul.bf16.gmra.mxu0 %v2770
      %v2871 = vpop.f32.mrf.mxu0
      %v2872 = vadd.f32 0.0, %v2871
      %v2873 = vpop.f32.mrf.mxu0
      %v2874 = vadd.f32 0.0, %v2873
      %2875 = vmatmul.bf16.gmra.mxu0 %v2771
      %v2876 = vpop.f32.mrf.mxu0
      %v2877 = vadd.f32 0.0, %v2876
      %v2878 = vpop.f32.mrf.mxu0
      %v2879 = vadd.f32 0.0, %v2878
      %2880 = vmatmul.bf16.gmra.mxu0 %v2772
      %v2881 = vpop.f32.mrf.mxu0
      %v2882 = vadd.f32 0.0, %v2881
      %v2883 = vpop.f32.mrf.mxu0
      %v2884 = vadd.f32 0.0, %v2883
      %2885 = vmatmul.bf16.gmra.mxu0 %v2773
      %v2886 = vpop.f32.mrf.mxu0
      %v2887 = vadd.f32 0.0, %v2886
      %v2888 = vpop.f32.mrf.mxu0
      %v2889 = vadd.f32 0.0, %v2888
      %2890 = vmatmul.bf16.gmra.mxu0 %v2774
      %v2891 = vpop.f32.mrf.mxu0
      %v2892 = vadd.f32 0.0, %v2891
      %v2893 = vpop.f32.mrf.mxu0
      %v2894 = vadd.f32 0.0, %v2893
      %2895 = vmatmul.bf16.gmra.mxu0 %v2775
      %v2896 = vpop.f32.mrf.mxu0
      %v2897 = vadd.f32 0.0, %v2896
      %v2898 = vpop.f32.mrf.mxu0
      %v2899 = vadd.f32 0.0, %v2898
      %2900 = vmatmul.bf16.gmra.mxu0 %v2776
      %v2901 = vpop.f32.mrf.mxu0
      %v2902 = vadd.f32 0.0, %v2901
      %v2903 = vpop.f32.mrf.mxu0
      %v2904 = vadd.f32 0.0, %v2903
      %2905 = vmatmul.bf16.gmra.mxu0 %v2777
      %v2906 = vpop.f32.mrf.mxu0
      %v2907 = vadd.f32 0.0, %v2906
      %v2908 = vpop.f32.mrf.mxu0
      %v2909 = vadd.f32 0.0, %v2908
      %2910 = vmatmul.bf16.gmra.mxu0 %v2778
      %v2911 = vpop.f32.mrf.mxu0
      %v2912 = vadd.f32 0.0, %v2911
      %v2913 = vpop.f32.mrf.mxu0
      %v2914 = vadd.f32 0.0, %v2913
      %2915 = vmatmul.bf16.gmra.mxu0 %v2779
      %v2916 = vpop.f32.mrf.mxu0
      %v2917 = vadd.f32 0.0, %v2916
      %v2918 = vpop.f32.mrf.mxu0
      %v2919 = vadd.f32 0.0, %v2918
      %2920 = vmatmul.bf16.gmra.mxu0 %v2780
      %v2921 = vpop.f32.mrf.mxu0
      %v2922 = vadd.f32 0.0, %v2921
      %v2923 = vpop.f32.mrf.mxu0
      %v2924 = vadd.f32 0.0, %v2923
      %2925 = vmatmul.bf16.gmra.mxu0 %v2781
      %v2926 = vpop.f32.mrf.mxu0
      %v2927 = vadd.f32 0.0, %v2926
      %v2928 = vpop.f32.mrf.mxu0
      %v2929 = vadd.f32 0.0, %v2928
      %2930 = vmatmul.bf16.gmra.mxu0 %v2782
      %v2931 = vpop.f32.mrf.mxu0
      %v2932 = vadd.f32 0.0, %v2931
      %v2933 = vpop.f32.mrf.mxu0
      %v2934 = vadd.f32 0.0, %v2933
      %2935 = vdwg.mxu0
      %v2936 = vadd.f32 %v2510, %v2857
      %v2937 = vadd.f32 %v2511, %v2859
      %v2938 = vadd.f32 %v2512, %v2862
      %v2939 = vadd.f32 %v2513, %v2864
      %v2940 = vadd.f32 %v2514, %v2867
      %v2941 = vadd.f32 %v2515, %v2869
      %v2942 = vadd.f32 %v2516, %v2872
      %v2943 = vadd.f32 %v2517, %v2874
      %v2944 = vadd.f32 %v2518, %v2877
      %v2945 = vadd.f32 %v2519, %v2879
      %v2946 = vadd.f32 %v2520, %v2882
      %v2947 = vadd.f32 %v2521, %v2884
      %v2948 = vadd.f32 %v2522, %v2887
      %v2949 = vadd.f32 %v2523, %v2889
      %v2950 = vadd.f32 %v2524, %v2892
      %v2951 = vadd.f32 %v2525, %v2894
      %v2952 = vadd.f32 %v2526, %v2897
      %v2953 = vadd.f32 %v2527, %v2899
      %v2954 = vadd.f32 %v2528, %v2902
      %v2955 = vadd.f32 %v2529, %v2904
      %v2956 = vadd.f32 %v2530, %v2907
      %v2957 = vadd.f32 %v2531, %v2909
      %v2958 = vadd.f32 %v2532, %v2912
      %v2959 = vadd.f32 %v2533, %v2914
      %v2960 = vadd.f32 %v2534, %v2917
      %v2961 = vadd.f32 %v2535, %v2919
      %v2962 = vadd.f32 %v2536, %v2922
      %v2963 = vadd.f32 %v2537, %v2924
      %v2964 = vadd.f32 %v2538, %v2927
      %v2965 = vadd.f32 %v2539, %v2929
      %v2966 = vadd.f32 %v2540, %v2932
      %v2967 = vadd.f32 %v2541, %v2934
      %s2968 = sadd.s32 %s223, 2
      %s2969 = smul.u32 %s2968, 3
      %s2970 = smul.addr %s2969, 4
      %s2971 = scalar_lea.vmem %s211, %s2970
      %v2972 = vld [vmem:[%s2971] sm:$0xf]
      %v2973 = vld [vmem:[%s2971 + $0x4] sm:$0xf]
      %v2974 = vld [vmem:[%s2971 + $0xc] sm:$0xf]
      %v2975 = vld [vmem:[%s2971 + $0x10] sm:$0xf]
      %v2976 = vld [vmem:[%s2971 + $0x18] sm:$0xf]
      %v2977 = vld [vmem:[%s2971 + $0x1c] sm:$0xf]
      %v2978 = vld [vmem:[%s2971 + $0x24] sm:$0xf]
      %v2979 = vld [vmem:[%s2971 + $0x28] sm:$0xf]
      %v2980 = vld [vmem:[%s2971 + $0x30] sm:$0xf]
      %v2981 = vld [vmem:[%s2971 + $0x34] sm:$0xf]
      %v2982 = vld [vmem:[%s2971 + $0x3c] sm:$0xf]
      %v2983 = vld [vmem:[%s2971 + $0x40] sm:$0xf]
      %v2984 = vld [vmem:[%s2971 + $0x48] sm:$0xf]
      %v2985 = vld [vmem:[%s2971 + $0x4c] sm:$0xf]
      %v2986 = vld [vmem:[%s2971 + $0x54] sm:$0xf]
      %v2987 = vld [vmem:[%s2971 + $0x58] sm:$0xf]
      %v2988 = vld [vmem:[%s2971 + $0x60] sm:$0xf]
      %v2989 = vld [vmem:[%s2971 + $0x64] sm:$0xf]
      %v2990 = vld [vmem:[%s2971 + $0x6c] sm:$0xf]
      %v2991 = vld [vmem:[%s2971 + $0x70] sm:$0xf]
      %v2992 = vld [vmem:[%s2971 + $0x78] sm:$0xf]
      %v2993 = vld [vmem:[%s2971 + $0x7c] sm:$0xf]
      %v2994 = vld [vmem:[%s2971 + $0x84] sm:$0xf]
      %v2995 = vld [vmem:[%s2971 + $0x88] sm:$0xf]
      %v2996 = vld [vmem:[%s2971 + $0x90] sm:$0xf]
      %v2997 = vld [vmem:[%s2971 + $0x94] sm:$0xf]
      %v2998 = vld [vmem:[%s2971 + $0x9c] sm:$0xf]
      %v2999 = vld [vmem:[%s2971 + $0xa0] sm:$0xf]
      %v3000 = vld [vmem:[%s2971 + $0xa8] sm:$0xf]
      %v3001 = vld [vmem:[%s2971 + $0xac] sm:$0xf]
      %v3002 = vld [vmem:[%s2971 + $0xb4] sm:$0xf]
      %v3003 = vld [vmem:[%s2971 + $0xb8] sm:$0xf]
      %s3004 = scalar_lea.vmem %s1, 384
      %v3005 = vld [vmem:[%s3004] sm:$0xf]
      %v3006 = vld [vmem:[%s3004 + $0x4] sm:$0xf]
      %v3007 = vld [vmem:[%s3004 + $0x8] sm:$0xf]
      %v3008 = vld [vmem:[%s3004 + $0xc] sm:$0xf]
      %v3009 = vld [vmem:[%s3004 + $0x10] sm:$0xf]
      %v3010 = vld [vmem:[%s3004 + $0x14] sm:$0xf]
      %v3011 = vld [vmem:[%s3004 + $0x18] sm:$0xf]
      %v3012 = vld [vmem:[%s3004 + $0x1c] sm:$0xf]
      %v3013 = vld [vmem:[%s3004 + $0x20] sm:$0xf]
      %v3014 = vld [vmem:[%s3004 + $0x24] sm:$0xf]
      %v3015 = vld [vmem:[%s3004 + $0x28] sm:$0xf]
      %v3016 = vld [vmem:[%s3004 + $0x2c] sm:$0xf]
      %v3017 = vld [vmem:[%s3004 + $0x30] sm:$0xf]
      %v3018 = vld [vmem:[%s3004 + $0x34] sm:$0xf]
      %v3019 = vld [vmem:[%s3004 + $0x38] sm:$0xf]
      %v3020 = vld [vmem:[%s3004 + $0x3c] sm:$0xf]
      %v3053 = vunpack.c.l.b16 %v2972
      %v3054 = vunpack.c.l.b16 %v2973
      %v3055 = vunpack.c.l.b16 %v2974
      %v3056 = vunpack.c.l.b16 %v2975
      %v3057 = vunpack.c.l.b16 %v2976
      %v3058 = vunpack.c.l.b16 %v2977
      %v3059 = vunpack.c.l.b16 %v2978
      %v3060 = vunpack.c.l.b16 %v2979
      %v3061 = vunpack.c.l.b16 %v2980
      %v3062 = vunpack.c.l.b16 %v2981
      %v3063 = vunpack.c.l.b16 %v2982
      %v3064 = vunpack.c.l.b16 %v2983
      %v3065 = vunpack.c.l.b16 %v2984
      %v3066 = vunpack.c.l.b16 %v2985
      %v3067 = vunpack.c.l.b16 %v2986
      %v3068 = vunpack.c.l.b16 %v2987
      %v3069 = vunpack.c.l.b16 %v2988
      %v3070 = vunpack.c.l.b16 %v2989
      %v3071 = vunpack.c.l.b16 %v2990
      %v3072 = vunpack.c.l.b16 %v2991
      %v3073 = vunpack.c.l.b16 %v2992
      %v3074 = vunpack.c.l.b16 %v2993
      %v3075 = vunpack.c.l.b16 %v2994
      %v3076 = vunpack.c.l.b16 %v2995
      %v3077 = vunpack.c.l.b16 %v2996
      %v3078 = vunpack.c.l.b16 %v2997
      %v3079 = vunpack.c.l.b16 %v2998
      %v3080 = vunpack.c.l.b16 %v2999
      %v3081 = vunpack.c.l.b16 %v3000
      %v3082 = vunpack.c.l.b16 %v3001
      %v3083 = vunpack.c.l.b16 %v3002
      %v3084 = vunpack.c.l.b16 %v3003
      %v3085 = vpack.c.b16 %v3054, %v3053
      %v3086 = vpack.c.b16 %v3056, %v3055
      %v3087 = vpack.c.b16 %v3058, %v3057
      %v3088 = vpack.c.b16 %v3060, %v3059
      %v3089 = vpack.c.b16 %v3062, %v3061
      %v3090 = vpack.c.b16 %v3064, %v3063
      %v3091 = vpack.c.b16 %v3066, %v3065
      %v3092 = vpack.c.b16 %v3068, %v3067
      %v3093 = vpack.c.b16 %v3070, %v3069
      %v3094 = vpack.c.b16 %v3072, %v3071
      %v3095 = vpack.c.b16 %v3074, %v3073
      %v3096 = vpack.c.b16 %v3076, %v3075
      %v3097 = vpack.c.b16 %v3078, %v3077
      %v3098 = vpack.c.b16 %v3080, %v3079
      %v3099 = vpack.c.b16 %v3082, %v3081
      %v3100 = vpack.c.b16 %v3084, %v3083
      %v3133 = vunpack.c.l.b16 %v3005
      %v3134 = vunpack.c.l.b16 %v3006
      %v3135 = vunpack.c.l.b16 %v3007
      %v3136 = vunpack.c.l.b16 %v3008
      %v3137 = vunpack.c.l.b16 %v3009
      %v3138 = vunpack.c.l.b16 %v3010
      %v3139 = vunpack.c.l.b16 %v3011
      %v3140 = vunpack.c.l.b16 %v3012
      %v3141 = vunpack.c.l.b16 %v3013
      %v3142 = vunpack.c.l.b16 %v3014
      %v3143 = vunpack.c.l.b16 %v3015
      %v3144 = vunpack.c.l.b16 %v3016
      %v3145 = vunpack.c.l.b16 %v3017
      %v3146 = vunpack.c.l.b16 %v3018
      %v3147 = vunpack.c.l.b16 %v3019
      %v3148 = vunpack.c.l.b16 %v3020
      %v3149 = vpack.c.b16 %v3134, %v3133
      %v3150 = vpack.c.b16 %v3136, %v3135
      %v3151 = vpack.c.b16 %v3138, %v3137
      %v3152 = vpack.c.b16 %v3140, %v3139
      %v3153 = vpack.c.b16 %v3142, %v3141
      %v3154 = vpack.c.b16 %v3144, %v3143
      %v3155 = vpack.c.b16 %v3146, %v3145
      %v3156 = vpack.c.b16 %v3148, %v3147
      %3165 = vmatpush.bf16.msra.mxu0 %v3156
      %3166 = vmatpush.bf16.msra.mxu0 %v3155
      %3167 = vmatpush.bf16.msra.mxu0 %v3154
      %3168 = vmatpush.bf16.msra.mxu0 %v3153
      %3169 = vmatpush.bf16.msra.mxu0 %v3152
      %3170 = vmatpush.bf16.msra.mxu0 %v3151
      %3171 = vmatpush.bf16.msra.mxu0 %v3150
      %3172 = vmatpush.bf16.msra.mxu0 %v3149
      %3173 = vmatmul.bf16.gmra.mxu0 %v3085
      %v3174 = vpop.f32.mrf.mxu0
      %v3175 = vadd.f32 0.0, %v3174
      %v3176 = vpop.f32.mrf.mxu0
      %v3177 = vadd.f32 0.0, %v3176
      %3178 = vmatmul.bf16.gmra.mxu0 %v3086
      %v3179 = vpop.f32.mrf.mxu0
      %v3180 = vadd.f32 0.0, %v3179
      %v3181 = vpop.f32.mrf.mxu0
      %v3182 = vadd.f32 0.0, %v3181
      %3183 = vmatmul.bf16.gmra.mxu0 %v3087
      %v3184 = vpop.f32.mrf.mxu0
      %v3185 = vadd.f32 0.0, %v3184
      %v3186 = vpop.f32.mrf.mxu0
      %v3187 = vadd.f32 0.0, %v3186
      %3188 = vmatmul.bf16.gmra.mxu0 %v3088
      %v3189 = vpop.f32.mrf.mxu0
      %v3190 = vadd.f32 0.0, %v3189
      %v3191 = vpop.f32.mrf.mxu0
      %v3192 = vadd.f32 0.0, %v3191
      %3193 = vmatmul.bf16.gmra.mxu0 %v3089
      %v3194 = vpop.f32.mrf.mxu0
      %v3195 = vadd.f32 0.0, %v3194
      %v3196 = vpop.f32.mrf.mxu0
      %v3197 = vadd.f32 0.0, %v3196
      %3198 = vmatmul.bf16.gmra.mxu0 %v3090
      %v3199 = vpop.f32.mrf.mxu0
      %v3200 = vadd.f32 0.0, %v3199
      %v3201 = vpop.f32.mrf.mxu0
      %v3202 = vadd.f32 0.0, %v3201
      %3203 = vmatmul.bf16.gmra.mxu0 %v3091
      %v3204 = vpop.f32.mrf.mxu0
      %v3205 = vadd.f32 0.0, %v3204
      %v3206 = vpop.f32.mrf.mxu0
      %v3207 = vadd.f32 0.0, %v3206
      %3208 = vmatmul.bf16.gmra.mxu0 %v3092
      %v3209 = vpop.f32.mrf.mxu0
      %v3210 = vadd.f32 0.0, %v3209
      %v3211 = vpop.f32.mrf.mxu0
      %v3212 = vadd.f32 0.0, %v3211
      %3213 = vmatmul.bf16.gmra.mxu0 %v3093
      %v3214 = vpop.f32.mrf.mxu0
      %v3215 = vadd.f32 0.0, %v3214
      %v3216 = vpop.f32.mrf.mxu0
      %v3217 = vadd.f32 0.0, %v3216
      %3218 = vmatmul.bf16.gmra.mxu0 %v3094
      %v3219 = vpop.f32.mrf.mxu0
      %v3220 = vadd.f32 0.0, %v3219
      %v3221 = vpop.f32.mrf.mxu0
      %v3222 = vadd.f32 0.0, %v3221
      %3223 = vmatmul.bf16.gmra.mxu0 %v3095
      %v3224 = vpop.f32.mrf.mxu0
      %v3225 = vadd.f32 0.0, %v3224
      %v3226 = vpop.f32.mrf.mxu0
      %v3227 = vadd.f32 0.0, %v3226
      %3228 = vmatmul.bf16.gmra.mxu0 %v3096
      %v3229 = vpop.f32.mrf.mxu0
      %v3230 = vadd.f32 0.0, %v3229
      %v3231 = vpop.f32.mrf.mxu0
      %v3232 = vadd.f32 0.0, %v3231
      %3233 = vmatmul.bf16.gmra.mxu0 %v3097
      %v3234 = vpop.f32.mrf.mxu0
      %v3235 = vadd.f32 0.0, %v3234
      %v3236 = vpop.f32.mrf.mxu0
      %v3237 = vadd.f32 0.0, %v3236
      %3238 = vmatmul.bf16.gmra.mxu0 %v3098
      %v3239 = vpop.f32.mrf.mxu0
      %v3240 = vadd.f32 0.0, %v3239
      %v3241 = vpop.f32.mrf.mxu0
      %v3242 = vadd.f32 0.0, %v3241
      %3243 = vmatmul.bf16.gmra.mxu0 %v3099
      %v3244 = vpop.f32.mrf.mxu0
      %v3245 = vadd.f32 0.0, %v3244
      %v3246 = vpop.f32.mrf.mxu0
      %v3247 = vadd.f32 0.0, %v3246
      %3248 = vmatmul.bf16.gmra.mxu0 %v3100
      %v3249 = vpop.f32.mrf.mxu0
      %v3250 = vadd.f32 0.0, %v3249
      %v3251 = vpop.f32.mrf.mxu0
      %v3252 = vadd.f32 0.0, %v3251
      %3253 = vdwg.mxu0
      %v3254 = vadd.f32 %v2936, %v3175
      %v3255 = vadd.f32 %v2937, %v3177
      %v3256 = vadd.f32 %v2938, %v3180
      %v3257 = vadd.f32 %v2939, %v3182
      %v3258 = vadd.f32 %v2940, %v3185
      %v3259 = vadd.f32 %v2941, %v3187
      %v3260 = vadd.f32 %v2942, %v3190
      %v3261 = vadd.f32 %v2943, %v3192
      %v3262 = vadd.f32 %v2944, %v3195
      %v3263 = vadd.f32 %v2945, %v3197
      %v3264 = vadd.f32 %v2946, %v3200
      %v3265 = vadd.f32 %v2947, %v3202
      %v3266 = vadd.f32 %v2948, %v3205
      %v3267 = vadd.f32 %v2949, %v3207
      %v3268 = vadd.f32 %v2950, %v3210
      %v3269 = vadd.f32 %v2951, %v3212
      %v3270 = vadd.f32 %v2952, %v3215
      %v3271 = vadd.f32 %v2953, %v3217
      %v3272 = vadd.f32 %v2954, %v3220
      %v3273 = vadd.f32 %v2955, %v3222
      %v3274 = vadd.f32 %v2956, %v3225
      %v3275 = vadd.f32 %v2957, %v3227
      %v3276 = vadd.f32 %v2958, %v3230
      %v3277 = vadd.f32 %v2959, %v3232
      %v3278 = vadd.f32 %v2960, %v3235
      %v3279 = vadd.f32 %v2961, %v3237
      %v3280 = vadd.f32 %v2962, %v3240
      %v3281 = vadd.f32 %v2963, %v3242
      %v3282 = vadd.f32 %v2964, %v3245
      %v3283 = vadd.f32 %v2965, %v3247
      %v3284 = vadd.f32 %v2966, %v3250
      %v3285 = vadd.f32 %v2967, %v3252
      %v3286 = vld [vmem:[%s2971] sm:$0xf]
      %v3287 = vld [vmem:[%s2971 + $0x4] sm:$0xf]
      %v3288 = vld [vmem:[%s2971 + $0x8] sm:$0x1]
      %v3289 = vld [vmem:[%s2971 + $0xc] sm:$0xf]
      %v3290 = vld [vmem:[%s2971 + $0x10] sm:$0xf]
      %v3291 = vld [vmem:[%s2971 + $0x14] sm:$0x1]
      %v3292 = vld [vmem:[%s2971 + $0x18] sm:$0xf]
      %v3293 = vld [vmem:[%s2971 + $0x1c] sm:$0xf]
      %v3294 = vld [vmem:[%s2971 + $0x20] sm:$0x1]
      %v3295 = vld [vmem:[%s2971 + $0x24] sm:$0xf]
      %v3296 = vld [vmem:[%s2971 + $0x28] sm:$0xf]
      %v3297 = vld [vmem:[%s2971 + $0x2c] sm:$0x1]
      %v3298 = vld [vmem:[%s2971 + $0x30] sm:$0xf]
      %v3299 = vld [vmem:[%s2971 + $0x34] sm:$0xf]
      %v3300 = vld [vmem:[%s2971 + $0x38] sm:$0x1]
      %v3301 = vld [vmem:[%s2971 + $0x3c] sm:$0xf]
      %v3302 = vld [vmem:[%s2971 + $0x40] sm:$0xf]
      %v3303 = vld [vmem:[%s2971 + $0x44] sm:$0x1]
      %v3304 = vld [vmem:[%s2971 + $0x48] sm:$0xf]
      %v3305 = vld [vmem:[%s2971 + $0x4c] sm:$0xf]
      %v3306 = vld [vmem:[%s2971 + $0x50] sm:$0x1]
      %v3307 = vld [vmem:[%s2971 + $0x54] sm:$0xf]
      %v3308 = vld [vmem:[%s2971 + $0x58] sm:$0xf]
      %v3309 = vld [vmem:[%s2971 + $0x5c] sm:$0x1]
      %v3310 = vld [vmem:[%s2971 + $0x60] sm:$0xf]
      %v3311 = vld [vmem:[%s2971 + $0x64] sm:$0xf]
      %v3312 = vld [vmem:[%s2971 + $0x68] sm:$0x1]
      %v3313 = vld [vmem:[%s2971 + $0x6c] sm:$0xf]
      %v3314 = vld [vmem:[%s2971 + $0x70] sm:$0xf]
      %v3315 = vld [vmem:[%s2971 + $0x74] sm:$0x1]
      %v3316 = vld [vmem:[%s2971 + $0x78] sm:$0xf]
      %v3317 = vld [vmem:[%s2971 + $0x7c] sm:$0xf]
      %v3318 = vld [vmem:[%s2971 + $0x80] sm:$0x1]
      %v3319 = vld [vmem:[%s2971 + $0x84] sm:$0xf]
      %v3320 = vld [vmem:[%s2971 + $0x88] sm:$0xf]
      %v3321 = vld [vmem:[%s2971 + $0x8c] sm:$0x1]
      %v3322 = vld [vmem:[%s2971 + $0x90] sm:$0xf]
      %v3323 = vld [vmem:[%s2971 + $0x94] sm:$0xf]
      %v3324 = vld [vmem:[%s2971 + $0x98] sm:$0x1]
      %v3325 = vld [vmem:[%s2971 + $0x9c] sm:$0xf]
      %v3326 = vld [vmem:[%s2971 + $0xa0] sm:$0xf]
      %v3327 = vld [vmem:[%s2971 + $0xa4] sm:$0x1]
      %v3328 = vld [vmem:[%s2971 + $0xa8] sm:$0xf]
      %v3329 = vld [vmem:[%s2971 + $0xac] sm:$0xf]
      %v3330 = vld [vmem:[%s2971 + $0xb0] sm:$0x1]
      %v3331 = vld [vmem:[%s2971 + $0xb4] sm:$0xf]
      %v3332 = vld [vmem:[%s2971 + $0xb8] sm:$0xf]
      %v3333 = vld [vmem:[%s2971 + $0xbc] sm:$0x1]
      %v3335 = vshrl.u32 %v3286, 16
      %v3337 = vrot.slane %v3335, 4
      %v3338 = vshll.u32 %v3286, 16
      %v3340 = vrot.slane %v3338, 5
      %v3341 = vor.u32 %v3337, %v3340
      %v3342 = vrot.slane %v3341, 4
      %v3344 = vshll.u32 %v3287, 16
      %v3346 = vrot.slane %v3344, 5
      %v3347 = vsel %vm293, %v3342, %v3346
      %v3348 = vshrl.u32 %v3287, 16
      %v3350 = vrot.slane %v3348, 4
      %v3351 = vor.u32 %v3350, %v3346
      %v3352 = vrot.slane %v3351, 4
      %v3354 = vshll.u32 %v3288, 16
      %v3356 = vrot.slane %v3354, 5
      %v3357 = vsel %vm293, %v3352, %v3356
      %v3359 = vshrl.u32 %v3289, 16
      %v3361 = vrot.slane %v3359, 4
      %v3362 = vshll.u32 %v3289, 16
      %v3364 = vrot.slane %v3362, 5
      %v3365 = vor.u32 %v3361, %v3364
      %v3366 = vrot.slane %v3365, 4
      %v3368 = vshll.u32 %v3290, 16
      %v3370 = vrot.slane %v3368, 5
      %v3371 = vsel %vm293, %v3366, %v3370
      %v3372 = vshrl.u32 %v3290, 16
      %v3374 = vrot.slane %v3372, 4
      %v3375 = vor.u32 %v3374, %v3370
      %v3376 = vrot.slane %v3375, 4
      %v3378 = vshll.u32 %v3291, 16
      %v3380 = vrot.slane %v3378, 5
      %v3381 = vsel %vm293, %v3376, %v3380
      %v3383 = vshrl.u32 %v3292, 16
      %v3385 = vrot.slane %v3383, 4
      %v3386 = vshll.u32 %v3292, 16
      %v3388 = vrot.slane %v3386, 5
      %v3389 = vor.u32 %v3385, %v3388
      %v3390 = vrot.slane %v3389, 4
      %v3392 = vshll.u32 %v3293, 16
      %v3394 = vrot.slane %v3392, 5
      %v3395 = vsel %vm293, %v3390, %v3394
      %v3396 = vshrl.u32 %v3293, 16
      %v3398 = vrot.slane %v3396, 4
      %v3399 = vor.u32 %v3398, %v3394
      %v3400 = vrot.slane %v3399, 4
      %v3402 = vshll.u32 %v3294, 16
      %v3404 = vrot.slane %v3402, 5
      %v3405 = vsel %vm293, %v3400, %v3404
      %v3407 = vshrl.u32 %v3295, 16
      %v3409 = vrot.slane %v3407, 4
      %v3410 = vshll.u32 %v3295, 16
      %v3412 = vrot.slane %v3410, 5
      %v3413 = vor.u32 %v3409, %v3412
      %v3414 = vrot.slane %v3413, 4
      %v3416 = vshll.u32 %v3296, 16
      %v3418 = vrot.slane %v3416, 5
      %v3419 = vsel %vm293, %v3414, %v3418
      %v3420 = vshrl.u32 %v3296, 16
      %v3422 = vrot.slane %v3420, 4
      %v3423 = vor.u32 %v3422, %v3418
      %v3424 = vrot.slane %v3423, 4
      %v3426 = vshll.u32 %v3297, 16
      %v3428 = vrot.slane %v3426, 5
      %v3429 = vsel %vm293, %v3424, %v3428
      %v3431 = vshrl.u32 %v3298, 16
      %v3433 = vrot.slane %v3431, 4
      %v3434 = vshll.u32 %v3298, 16
      %v3436 = vrot.slane %v3434, 5
      %v3437 = vor.u32 %v3433, %v3436
      %v3438 = vrot.slane %v3437, 4
      %v3440 = vshll.u32 %v3299, 16
      %v3442 = vrot.slane %v3440, 5
      %v3443 = vsel %vm293, %v3438, %v3442
      %v3444 = vshrl.u32 %v3299, 16
      %v3446 = vrot.slane %v3444, 4
      %v3447 = vor.u32 %v3446, %v3442
      %v3448 = vrot.slane %v3447, 4
      %v3450 = vshll.u32 %v3300, 16
      %v3452 = vrot.slane %v3450, 5
      %v3453 = vsel %vm293, %v3448, %v3452
      %v3455 = vshrl.u32 %v3301, 16
      %v3457 = vrot.slane %v3455, 4
      %v3458 = vshll.u32 %v3301, 16
      %v3460 = vrot.slane %v3458, 5
      %v3461 = vor.u32 %v3457, %v3460
      %v3462 = vrot.slane %v3461, 4
      %v3464 = vshll.u32 %v3302, 16
      %v3466 = vrot.slane %v3464, 5
      %v3467 = vsel %vm293, %v3462, %v3466
      %v3468 = vshrl.u32 %v3302, 16
      %v3470 = vrot.slane %v3468, 4
      %v3471 = vor.u32 %v3470, %v3466
      %v3472 = vrot.slane %v3471, 4
      %v3474 = vshll.u32 %v3303, 16
      %v3476 = vrot.slane %v3474, 5
      %v3477 = vsel %vm293, %v3472, %v3476
      %v3479 = vshrl.u32 %v3304, 16
      %v3481 = vrot.slane %v3479, 4
      %v3482 = vshll.u32 %v3304, 16
      %v3484 = vrot.slane %v3482, 5
      %v3485 = vor.u32 %v3481, %v3484
      %v3486 = vrot.slane %v3485, 4
      %v3488 = vshll.u32 %v3305, 16
      %v3490 = vrot.slane %v3488, 5
      %v3491 = vsel %vm293, %v3486, %v3490
      %v3492 = vshrl.u32 %v3305, 16
      %v3494 = vrot.slane %v3492, 4
      %v3495 = vor.u32 %v3494, %v3490
      %v3496 = vrot.slane %v3495, 4
      %v3498 = vshll.u32 %v3306, 16
      %v3500 = vrot.slane %v3498, 5
      %v3501 = vsel %vm293, %v3496, %v3500
      %v3503 = vshrl.u32 %v3307, 16
      %v3505 = vrot.slane %v3503, 4
      %v3506 = vshll.u32 %v3307, 16
      %v3508 = vrot.slane %v3506, 5
      %v3509 = vor.u32 %v3505, %v3508
      %v3510 = vrot.slane %v3509, 4
      %v3512 = vshll.u32 %v3308, 16
      %v3514 = vrot.slane %v3512, 5
      %v3515 = vsel %vm293, %v3510, %v3514
      %v3516 = vshrl.u32 %v3308, 16
      %v3518 = vrot.slane %v3516, 4
      %v3519 = vor.u32 %v3518, %v3514
      %v3520 = vrot.slane %v3519, 4
      %v3522 = vshll.u32 %v3309, 16
      %v3524 = vrot.slane %v3522, 5
      %v3525 = vsel %vm293, %v3520, %v3524
      %v3527 = vshrl.u32 %v3310, 16
      %v3529 = vrot.slane %v3527, 4
      %v3530 = vshll.u32 %v3310, 16
      %v3532 = vrot.slane %v3530, 5
      %v3533 = vor.u32 %v3529, %v3532
      %v3534 = vrot.slane %v3533, 4
      %v3536 = vshll.u32 %v3311, 16
      %v3538 = vrot.slane %v3536, 5
      %v3539 = vsel %vm293, %v3534, %v3538
      %v3540 = vshrl.u32 %v3311, 16
      %v3542 = vrot.slane %v3540, 4
      %v3543 = vor.u32 %v3542, %v3538
      %v3544 = vrot.slane %v3543, 4
      %v3546 = vshll.u32 %v3312, 16
      %v3548 = vrot.slane %v3546, 5
      %v3549 = vsel %vm293, %v3544, %v3548
      %v3551 = vshrl.u32 %v3313, 16
      %v3553 = vrot.slane %v3551, 4
      %v3554 = vshll.u32 %v3313, 16
      %v3556 = vrot.slane %v3554, 5
      %v3557 = vor.u32 %v3553, %v3556
      %v3558 = vrot.slane %v3557, 4
      %v3560 = vshll.u32 %v3314, 16
      %v3562 = vrot.slane %v3560, 5
      %v3563 = vsel %vm293, %v3558, %v3562
      %v3564 = vshrl.u32 %v3314, 16
      %v3566 = vrot.slane %v3564, 4
      %v3567 = vor.u32 %v3566, %v3562
      %v3568 = vrot.slane %v3567, 4
      %v3570 = vshll.u32 %v3315, 16
      %v3572 = vrot.slane %v3570, 5
      %v3573 = vsel %vm293, %v3568, %v3572
      %v3575 = vshrl.u32 %v3316, 16
      %v3577 = vrot.slane %v3575, 4
      %v3578 = vshll.u32 %v3316, 16
      %v3580 = vrot.slane %v3578, 5
      %v3581 = vor.u32 %v3577, %v3580
      %v3582 = vrot.slane %v3581, 4
      %v3584 = vshll.u32 %v3317, 16
      %v3586 = vrot.slane %v3584, 5
      %v3587 = vsel %vm293, %v3582, %v3586
      %v3588 = vshrl.u32 %v3317, 16
      %v3590 = vrot.slane %v3588, 4
      %v3591 = vor.u32 %v3590, %v3586
      %v3592 = vrot.slane %v3591, 4
      %v3594 = vshll.u32 %v3318, 16
      %v3596 = vrot.slane %v3594, 5
      %v3597 = vsel %vm293, %v3592, %v3596
      %v3599 = vshrl.u32 %v3319, 16
      %v3601 = vrot.slane %v3599, 4
      %v3602 = vshll.u32 %v3319, 16
      %v3604 = vrot.slane %v3602, 5
      %v3605 = vor.u32 %v3601, %v3604
      %v3606 = vrot.slane %v3605, 4
      %v3608 = vshll.u32 %v3320, 16
      %v3610 = vrot.slane %v3608, 5
      %v3611 = vsel %vm293, %v3606, %v3610
      %v3612 = vshrl.u32 %v3320, 16
      %v3614 = vrot.slane %v3612, 4
      %v3615 = vor.u32 %v3614, %v3610
      %v3616 = vrot.slane %v3615, 4
      %v3618 = vshll.u32 %v3321, 16
      %v3620 = vrot.slane %v3618, 5
      %v3621 = vsel %vm293, %v3616, %v3620
      %v3623 = vshrl.u32 %v3322, 16
      %v3625 = vrot.slane %v3623, 4
      %v3626 = vshll.u32 %v3322, 16
      %v3628 = vrot.slane %v3626, 5
      %v3629 = vor.u32 %v3625, %v3628
      %v3630 = vrot.slane %v3629, 4
      %v3632 = vshll.u32 %v3323, 16
      %v3634 = vrot.slane %v3632, 5
      %v3635 = vsel %vm293, %v3630, %v3634
      %v3636 = vshrl.u32 %v3323, 16
      %v3638 = vrot.slane %v3636, 4
      %v3639 = vor.u32 %v3638, %v3634
      %v3640 = vrot.slane %v3639, 4
      %v3642 = vshll.u32 %v3324, 16
      %v3644 = vrot.slane %v3642, 5
      %v3645 = vsel %vm293, %v3640, %v3644
      %v3647 = vshrl.u32 %v3325, 16
      %v3649 = vrot.slane %v3647, 4
      %v3650 = vshll.u32 %v3325, 16
      %v3652 = vrot.slane %v3650, 5
      %v3653 = vor.u32 %v3649, %v3652
      %v3654 = vrot.slane %v3653, 4
      %v3656 = vshll.u32 %v3326, 16
      %v3658 = vrot.slane %v3656, 5
      %v3659 = vsel %vm293, %v3654, %v3658
      %v3660 = vshrl.u32 %v3326, 16
      %v3662 = vrot.slane %v3660, 4
      %v3663 = vor.u32 %v3662, %v3658
      %v3664 = vrot.slane %v3663, 4
      %v3666 = vshll.u32 %v3327, 16
      %v3668 = vrot.slane %v3666, 5
      %v3669 = vsel %vm293, %v3664, %v3668
      %v3671 = vshrl.u32 %v3328, 16
      %v3673 = vrot.slane %v3671, 4
      %v3674 = vshll.u32 %v3328, 16
      %v3676 = vrot.slane %v3674, 5
      %v3677 = vor.u32 %v3673, %v3676
      %v3678 = vrot.slane %v3677, 4
      %v3680 = vshll.u32 %v3329, 16
      %v3682 = vrot.slane %v3680, 5
      %v3683 = vsel %vm293, %v3678, %v3682
      %v3684 = vshrl.u32 %v3329, 16
      %v3686 = vrot.slane %v3684, 4
      %v3687 = vor.u32 %v3686, %v3682
      %v3688 = vrot.slane %v3687, 4
      %v3690 = vshll.u32 %v3330, 16
      %v3692 = vrot.slane %v3690, 5
      %v3693 = vsel %vm293, %v3688, %v3692
      %v3695 = vshrl.u32 %v3331, 16
      %v3697 = vrot.slane %v3695, 4
      %v3698 = vshll.u32 %v3331, 16
      %v3700 = vrot.slane %v3698, 5
      %v3701 = vor.u32 %v3697, %v3700
      %v3702 = vrot.slane %v3701, 4
      %v3704 = vshll.u32 %v3332, 16
      %v3706 = vrot.slane %v3704, 5
      %v3707 = vsel %vm293, %v3702, %v3706
      %v3708 = vshrl.u32 %v3332, 16
      %v3710 = vrot.slane %v3708, 4
      %v3711 = vor.u32 %v3710, %v3706
      %v3712 = vrot.slane %v3711, 4
      %v3714 = vshll.u32 %v3333, 16
      %v3716 = vrot.slane %v3714, 5
      %v3717 = vsel %vm293, %v3712, %v3716
      %s3718 = scalar_lea.vmem %s1, 448
      %v3719 = vld [vmem:[%s3718] sm:$0xf]
      %v3720 = vld [vmem:[%s3718 + $0x4] sm:$0xf]
      %v3721 = vld [vmem:[%s3718 + $0x8] sm:$0xf]
      %v3722 = vld [vmem:[%s3718 + $0xc] sm:$0xf]
      %v3723 = vld [vmem:[%s3718 + $0x10] sm:$0xf]
      %v3724 = vld [vmem:[%s3718 + $0x14] sm:$0xf]
      %v3725 = vld [vmem:[%s3718 + $0x18] sm:$0xf]
      %v3726 = vld [vmem:[%s3718 + $0x1c] sm:$0xf]
      %v3727 = vld [vmem:[%s3718 + $0x20] sm:$0xf]
      %v3728 = vld [vmem:[%s3718 + $0x24] sm:$0xf]
      %v3729 = vld [vmem:[%s3718 + $0x28] sm:$0xf]
      %v3730 = vld [vmem:[%s3718 + $0x2c] sm:$0xf]
      %v3731 = vld [vmem:[%s3718 + $0x30] sm:$0xf]
      %v3732 = vld [vmem:[%s3718 + $0x34] sm:$0xf]
      %v3733 = vld [vmem:[%s3718 + $0x38] sm:$0xf]
      %v3734 = vld [vmem:[%s3718 + $0x3c] sm:$0xf]
      %v3735 = vunpack.c.l.b16 %v3347
      %v3736 = vunpack.c.l.b16 %v3357
      %v3737 = vunpack.c.l.b16 %v3371
      %v3738 = vunpack.c.l.b16 %v3381
      %v3739 = vunpack.c.l.b16 %v3395
      %v3740 = vunpack.c.l.b16 %v3405
      %v3741 = vunpack.c.l.b16 %v3419
      %v3742 = vunpack.c.l.b16 %v3429
      %v3743 = vunpack.c.l.b16 %v3443
      %v3744 = vunpack.c.l.b16 %v3453
      %v3745 = vunpack.c.l.b16 %v3467
      %v3746 = vunpack.c.l.b16 %v3477
      %v3747 = vunpack.c.l.b16 %v3491
      %v3748 = vunpack.c.l.b16 %v3501
      %v3749 = vunpack.c.l.b16 %v3515
      %v3750 = vunpack.c.l.b16 %v3525
      %v3751 = vunpack.c.l.b16 %v3539
      %v3752 = vunpack.c.l.b16 %v3549
      %v3753 = vunpack.c.l.b16 %v3563
      %v3754 = vunpack.c.l.b16 %v3573
      %v3755 = vunpack.c.l.b16 %v3587
      %v3756 = vunpack.c.l.b16 %v3597
      %v3757 = vunpack.c.l.b16 %v3611
      %v3758 = vunpack.c.l.b16 %v3621
      %v3759 = vunpack.c.l.b16 %v3635
      %v3760 = vunpack.c.l.b16 %v3645
      %v3761 = vunpack.c.l.b16 %v3659
      %v3762 = vunpack.c.l.b16 %v3669
      %v3763 = vunpack.c.l.b16 %v3683
      %v3764 = vunpack.c.l.b16 %v3693
      %v3765 = vunpack.c.l.b16 %v3707
      %v3766 = vunpack.c.l.b16 %v3717
      %v3767 = vpack.c.b16 %v3736, %v3735
      %v3768 = vpack.c.b16 %v3738, %v3737
      %v3769 = vpack.c.b16 %v3740, %v3739
      %v3770 = vpack.c.b16 %v3742, %v3741
      %v3771 = vpack.c.b16 %v3744, %v3743
      %v3772 = vpack.c.b16 %v3746, %v3745
      %v3773 = vpack.c.b16 %v3748, %v3747
      %v3774 = vpack.c.b16 %v3750, %v3749
      %v3775 = vpack.c.b16 %v3752, %v3751
      %v3776 = vpack.c.b16 %v3754, %v3753
      %v3777 = vpack.c.b16 %v3756, %v3755
      %v3778 = vpack.c.b16 %v3758, %v3757
      %v3779 = vpack.c.b16 %v3760, %v3759
      %v3780 = vpack.c.b16 %v3762, %v3761
      %v3781 = vpack.c.b16 %v3764, %v3763
      %v3782 = vpack.c.b16 %v3766, %v3765
      %v3815 = vunpack.c.l.b16 %v3719
      %v3816 = vunpack.c.l.b16 %v3720
      %v3817 = vunpack.c.l.b16 %v3721
      %v3818 = vunpack.c.l.b16 %v3722
      %v3819 = vunpack.c.l.b16 %v3723
      %v3820 = vunpack.c.l.b16 %v3724
      %v3821 = vunpack.c.l.b16 %v3725
      %v3822 = vunpack.c.l.b16 %v3726
      %v3823 = vunpack.c.l.b16 %v3727
      %v3824 = vunpack.c.l.b16 %v3728
      %v3825 = vunpack.c.l.b16 %v3729
      %v3826 = vunpack.c.l.b16 %v3730
      %v3827 = vunpack.c.l.b16 %v3731
      %v3828 = vunpack.c.l.b16 %v3732
      %v3829 = vunpack.c.l.b16 %v3733
      %v3830 = vunpack.c.l.b16 %v3734
      %v3831 = vpack.c.b16 %v3816, %v3815
      %v3832 = vpack.c.b16 %v3818, %v3817
      %v3833 = vpack.c.b16 %v3820, %v3819
      %v3834 = vpack.c.b16 %v3822, %v3821
      %v3835 = vpack.c.b16 %v3824, %v3823
      %v3836 = vpack.c.b16 %v3826, %v3825
      %v3837 = vpack.c.b16 %v3828, %v3827
      %v3838 = vpack.c.b16 %v3830, %v3829
      %3847 = vmatpush.bf16.msra.mxu0 %v3838
      %3848 = vmatpush.bf16.msra.mxu0 %v3837
      %3849 = vmatpush.bf16.msra.mxu0 %v3836
      %3850 = vmatpush.bf16.msra.mxu0 %v3835
      %3851 = vmatpush.bf16.msra.mxu0 %v3834
      %3852 = vmatpush.bf16.msra.mxu0 %v3833
      %3853 = vmatpush.bf16.msra.mxu0 %v3832
      %3854 = vmatpush.bf16.msra.mxu0 %v3831
      %3855 = vmatmul.bf16.gmra.mxu0 %v3767
      %v3856 = vpop.f32.mrf.mxu0
      %v3857 = vadd.f32 0.0, %v3856
      %v3858 = vpop.f32.mrf.mxu0
      %v3859 = vadd.f32 0.0, %v3858
      %3860 = vmatmul.bf16.gmra.mxu0 %v3768
      %v3861 = vpop.f32.mrf.mxu0
      %v3862 = vadd.f32 0.0, %v3861
      %v3863 = vpop.f32.mrf.mxu0
      %v3864 = vadd.f32 0.0, %v3863
      %3865 = vmatmul.bf16.gmra.mxu0 %v3769
      %v3866 = vpop.f32.mrf.mxu0
      %v3867 = vadd.f32 0.0, %v3866
      %v3868 = vpop.f32.mrf.mxu0
      %v3869 = vadd.f32 0.0, %v3868
      %3870 = vmatmul.bf16.gmra.mxu0 %v3770
      %v3871 = vpop.f32.mrf.mxu0
      %v3872 = vadd.f32 0.0, %v3871
      %v3873 = vpop.f32.mrf.mxu0
      %v3874 = vadd.f32 0.0, %v3873
      %3875 = vmatmul.bf16.gmra.mxu0 %v3771
      %v3876 = vpop.f32.mrf.mxu0
      %v3877 = vadd.f32 0.0, %v3876
      %v3878 = vpop.f32.mrf.mxu0
      %v3879 = vadd.f32 0.0, %v3878
      %3880 = vmatmul.bf16.gmra.mxu0 %v3772
      %v3881 = vpop.f32.mrf.mxu0
      %v3882 = vadd.f32 0.0, %v3881
      %v3883 = vpop.f32.mrf.mxu0
      %v3884 = vadd.f32 0.0, %v3883
      %3885 = vmatmul.bf16.gmra.mxu0 %v3773
      %v3886 = vpop.f32.mrf.mxu0
      %v3887 = vadd.f32 0.0, %v3886
      %v3888 = vpop.f32.mrf.mxu0
      %v3889 = vadd.f32 0.0, %v3888
      %3890 = vmatmul.bf16.gmra.mxu0 %v3774
      %v3891 = vpop.f32.mrf.mxu0
      %v3892 = vadd.f32 0.0, %v3891
      %v3893 = vpop.f32.mrf.mxu0
      %v3894 = vadd.f32 0.0, %v3893
      %3895 = vmatmul.bf16.gmra.mxu0 %v3775
      %v3896 = vpop.f32.mrf.mxu0
      %v3897 = vadd.f32 0.0, %v3896
      %v3898 = vpop.f32.mrf.mxu0
      %v3899 = vadd.f32 0.0, %v3898
      %3900 = vmatmul.bf16.gmra.mxu0 %v3776
      %v3901 = vpop.f32.mrf.mxu0
      %v3902 = vadd.f32 0.0, %v3901
      %v3903 = vpop.f32.mrf.mxu0
      %v3904 = vadd.f32 0.0, %v3903
      %3905 = vmatmul.bf16.gmra.mxu0 %v3777
      %v3906 = vpop.f32.mrf.mxu0
      %v3907 = vadd.f32 0.0, %v3906
      %v3908 = vpop.f32.mrf.mxu0
      %v3909 = vadd.f32 0.0, %v3908
      %3910 = vmatmul.bf16.gmra.mxu0 %v3778
      %v3911 = vpop.f32.mrf.mxu0
      %v3912 = vadd.f32 0.0, %v3911
      %v3913 = vpop.f32.mrf.mxu0
      %v3914 = vadd.f32 0.0, %v3913
      %3915 = vmatmul.bf16.gmra.mxu0 %v3779
      %v3916 = vpop.f32.mrf.mxu0
      %v3917 = vadd.f32 0.0, %v3916
      %v3918 = vpop.f32.mrf.mxu0
      %v3919 = vadd.f32 0.0, %v3918
      %3920 = vmatmul.bf16.gmra.mxu0 %v3780
      %v3921 = vpop.f32.mrf.mxu0
      %v3922 = vadd.f32 0.0, %v3921
      %v3923 = vpop.f32.mrf.mxu0
      %v3924 = vadd.f32 0.0, %v3923
      %3925 = vmatmul.bf16.gmra.mxu0 %v3781
      %v3926 = vpop.f32.mrf.mxu0
      %v3927 = vadd.f32 0.0, %v3926
      %v3928 = vpop.f32.mrf.mxu0
      %v3929 = vadd.f32 0.0, %v3928
      %3930 = vmatmul.bf16.gmra.mxu0 %v3782
      %v3931 = vpop.f32.mrf.mxu0
      %v3932 = vadd.f32 0.0, %v3931
      %v3933 = vpop.f32.mrf.mxu0
      %v3934 = vadd.f32 0.0, %v3933
      %3935 = vdwg.mxu0
      %v3936 = vadd.f32 %v3254, %v3857
      %v3937 = vadd.f32 %v3255, %v3859
      %v3938 = vadd.f32 %v3256, %v3862
      %v3939 = vadd.f32 %v3257, %v3864
      %v3940 = vadd.f32 %v3258, %v3867
      %v3941 = vadd.f32 %v3259, %v3869
      %v3942 = vadd.f32 %v3260, %v3872
      %v3943 = vadd.f32 %v3261, %v3874
      %v3944 = vadd.f32 %v3262, %v3877
      %v3945 = vadd.f32 %v3263, %v3879
      %v3946 = vadd.f32 %v3264, %v3882
      %v3947 = vadd.f32 %v3265, %v3884
      %v3948 = vadd.f32 %v3266, %v3887
      %v3949 = vadd.f32 %v3267, %v3889
      %v3950 = vadd.f32 %v3268, %v3892
      %v3951 = vadd.f32 %v3269, %v3894
      %v3952 = vadd.f32 %v3270, %v3897
      %v3953 = vadd.f32 %v3271, %v3899
      %v3954 = vadd.f32 %v3272, %v3902
      %v3955 = vadd.f32 %v3273, %v3904
      %v3956 = vadd.f32 %v3274, %v3907
      %v3957 = vadd.f32 %v3275, %v3909
      %v3958 = vadd.f32 %v3276, %v3912
      %v3959 = vadd.f32 %v3277, %v3914
      %v3960 = vadd.f32 %v3278, %v3917
      %v3961 = vadd.f32 %v3279, %v3919
      %v3962 = vadd.f32 %v3280, %v3922
      %v3963 = vadd.f32 %v3281, %v3924
      %v3964 = vadd.f32 %v3282, %v3927
      %v3965 = vadd.f32 %v3283, %v3929
      %v3966 = vadd.f32 %v3284, %v3932
      %v3967 = vadd.f32 %v3285, %v3934
      %v3968 = vld [vmem:[%s2971] sm:$0xe]
      %v3969 = vld [vmem:[%s2971 + $0xc] sm:$0xe]
      %v3970 = vld [vmem:[%s2971 + $0x18] sm:$0xe]
      %v3971 = vld [vmem:[%s2971 + $0x24] sm:$0xe]
      %v3972 = vld [vmem:[%s2971 + $0x30] sm:$0xe]
      %v3973 = vld [vmem:[%s2971 + $0x3c] sm:$0xe]
      %v3974 = vld [vmem:[%s2971 + $0x48] sm:$0xe]
      %v3975 = vld [vmem:[%s2971 + $0x54] sm:$0xe]
      %v3976 = vld [vmem:[%s2971 + $0x60] sm:$0xe]
      %v3977 = vld [vmem:[%s2971 + $0x6c] sm:$0xe]
      %v3978 = vld [vmem:[%s2971 + $0x78] sm:$0xe]
      %v3979 = vld [vmem:[%s2971 + $0x84] sm:$0xe]
      %v3980 = vld [vmem:[%s2971 + $0x90] sm:$0xe]
      %v3981 = vld [vmem:[%s2971 + $0x9c] sm:$0xe]
      %v3982 = vld [vmem:[%s2971 + $0xa8] sm:$0xe]
      %v3983 = vld [vmem:[%s2971 + $0xb4] sm:$0xe]
      %v4032 = vrot.slane %v3968, 5
      %v4033 = vrot.slane %v4032, 4
      %v4034 = vrot.slane %v3287, 5
      %v4035 = vsel %vm1179, %v4033, %v4034
      %v4036 = vrot.slane %v4034, 4
      %v4037 = vrot.slane %v3288, 5
      %v4038 = vsel %vm1179, %v4036, %v4037
      %v4039 = vrot.slane %v3969, 5
      %v4040 = vrot.slane %v4039, 4
      %v4041 = vrot.slane %v3290, 5
      %v4042 = vsel %vm1179, %v4040, %v4041
      %v4043 = vrot.slane %v4041, 4
      %v4044 = vrot.slane %v3291, 5
      %v4045 = vsel %vm1179, %v4043, %v4044
      %v4046 = vrot.slane %v3970, 5
      %v4047 = vrot.slane %v4046, 4
      %v4048 = vrot.slane %v3293, 5
      %v4049 = vsel %vm1179, %v4047, %v4048
      %v4050 = vrot.slane %v4048, 4
      %v4051 = vrot.slane %v3294, 5
      %v4052 = vsel %vm1179, %v4050, %v4051
      %v4053 = vrot.slane %v3971, 5
      %v4054 = vrot.slane %v4053, 4
      %v4055 = vrot.slane %v3296, 5
      %v4056 = vsel %vm1179, %v4054, %v4055
      %v4057 = vrot.slane %v4055, 4
      %v4058 = vrot.slane %v3297, 5
      %v4059 = vsel %vm1179, %v4057, %v4058
      %v4060 = vrot.slane %v3972, 5
      %v4061 = vrot.slane %v4060, 4
      %v4062 = vrot.slane %v3299, 5
      %v4063 = vsel %vm1179, %v4061, %v4062
      %v4064 = vrot.slane %v4062, 4
      %v4065 = vrot.slane %v3300, 5
      %v4066 = vsel %vm1179, %v4064, %v4065
      %v4067 = vrot.slane %v3973, 5
      %v4068 = vrot.slane %v4067, 4
      %v4069 = vrot.slane %v3302, 5
      %v4070 = vsel %vm1179, %v4068, %v4069
      %v4071 = vrot.slane %v4069, 4
      %v4072 = vrot.slane %v3303, 5
      %v4073 = vsel %vm1179, %v4071, %v4072
      %v4074 = vrot.slane %v3974, 5
      %v4075 = vrot.slane %v4074, 4
      %v4076 = vrot.slane %v3305, 5
      %v4077 = vsel %vm1179, %v4075, %v4076
      %v4078 = vrot.slane %v4076, 4
      %v4079 = vrot.slane %v3306, 5
      %v4080 = vsel %vm1179, %v4078, %v4079
      %v4081 = vrot.slane %v3975, 5
      %v4082 = vrot.slane %v4081, 4
      %v4083 = vrot.slane %v3308, 5
      %v4084 = vsel %vm1179, %v4082, %v4083
      %v4085 = vrot.slane %v4083, 4
      %v4086 = vrot.slane %v3309, 5
      %v4087 = vsel %vm1179, %v4085, %v4086
      %v4088 = vrot.slane %v3976, 5
      %v4089 = vrot.slane %v4088, 4
      %v4090 = vrot.slane %v3311, 5
      %v4091 = vsel %vm1179, %v4089, %v4090
      %v4092 = vrot.slane %v4090, 4
      %v4093 = vrot.slane %v3312, 5
      %v4094 = vsel %vm1179, %v4092, %v4093
      %v4095 = vrot.slane %v3977, 5
      %v4096 = vrot.slane %v4095, 4
      %v4097 = vrot.slane %v3314, 5
      %v4098 = vsel %vm1179, %v4096, %v4097
      %v4099 = vrot.slane %v4097, 4
      %v4100 = vrot.slane %v3315, 5
      %v4101 = vsel %vm1179, %v4099, %v4100
      %v4102 = vrot.slane %v3978, 5
      %v4103 = vrot.slane %v4102, 4
      %v4104 = vrot.slane %v3317, 5
      %v4105 = vsel %vm1179, %v4103, %v4104
      %v4106 = vrot.slane %v4104, 4
      %v4107 = vrot.slane %v3318, 5
      %v4108 = vsel %vm1179, %v4106, %v4107
      %v4109 = vrot.slane %v3979, 5
      %v4110 = vrot.slane %v4109, 4
      %v4111 = vrot.slane %v3320, 5
      %v4112 = vsel %vm1179, %v4110, %v4111
      %v4113 = vrot.slane %v4111, 4
      %v4114 = vrot.slane %v3321, 5
      %v4115 = vsel %vm1179, %v4113, %v4114
      %v4116 = vrot.slane %v3980, 5
      %v4117 = vrot.slane %v4116, 4
      %v4118 = vrot.slane %v3323, 5
      %v4119 = vsel %vm1179, %v4117, %v4118
      %v4120 = vrot.slane %v4118, 4
      %v4121 = vrot.slane %v3324, 5
      %v4122 = vsel %vm1179, %v4120, %v4121
      %v4123 = vrot.slane %v3981, 5
      %v4124 = vrot.slane %v4123, 4
      %v4125 = vrot.slane %v3326, 5
      %v4126 = vsel %vm1179, %v4124, %v4125
      %v4127 = vrot.slane %v4125, 4
      %v4128 = vrot.slane %v3327, 5
      %v4129 = vsel %vm1179, %v4127, %v4128
      %v4130 = vrot.slane %v3982, 5
      %v4131 = vrot.slane %v4130, 4
      %v4132 = vrot.slane %v3329, 5
      %v4133 = vsel %vm1179, %v4131, %v4132
      %v4134 = vrot.slane %v4132, 4
      %v4135 = vrot.slane %v3330, 5
      %v4136 = vsel %vm1179, %v4134, %v4135
      %v4137 = vrot.slane %v3983, 5
      %v4138 = vrot.slane %v4137, 4
      %v4139 = vrot.slane %v3332, 5
      %v4140 = vsel %vm1179, %v4138, %v4139
      %v4141 = vrot.slane %v4139, 4
      %v4142 = vrot.slane %v3333, 5
      %v4143 = vsel %vm1179, %v4141, %v4142
      %s4144 = scalar_lea.vmem %s1, 512
      %v4145 = vld [vmem:[%s4144] sm:$0xf]
      %v4146 = vld [vmem:[%s4144 + $0x4] sm:$0xf]
      %v4147 = vld [vmem:[%s4144 + $0x8] sm:$0xf]
      %v4148 = vld [vmem:[%s4144 + $0xc] sm:$0xf]
      %v4149 = vld [vmem:[%s4144 + $0x10] sm:$0xf]
      %v4150 = vld [vmem:[%s4144 + $0x14] sm:$0xf]
      %v4151 = vld [vmem:[%s4144 + $0x18] sm:$0xf]
      %v4152 = vld [vmem:[%s4144 + $0x1c] sm:$0xf]
      %v4153 = vld [vmem:[%s4144 + $0x20] sm:$0xf]
      %v4154 = vld [vmem:[%s4144 + $0x24] sm:$0xf]
      %v4155 = vld [vmem:[%s4144 + $0x28] sm:$0xf]
      %v4156 = vld [vmem:[%s4144 + $0x2c] sm:$0xf]
      %v4157 = vld [vmem:[%s4144 + $0x30] sm:$0xf]
      %v4158 = vld [vmem:[%s4144 + $0x34] sm:$0xf]
      %v4159 = vld [vmem:[%s4144 + $0x38] sm:$0xf]
      %v4160 = vld [vmem:[%s4144 + $0x3c] sm:$0xf]
      %v4161 = vunpack.c.l.b16 %v4035
      %v4162 = vunpack.c.l.b16 %v4038
      %v4163 = vunpack.c.l.b16 %v4042
      %v4164 = vunpack.c.l.b16 %v4045
      %v4165 = vunpack.c.l.b16 %v4049
      %v4166 = vunpack.c.l.b16 %v4052
      %v4167 = vunpack.c.l.b16 %v4056
      %v4168 = vunpack.c.l.b16 %v4059
      %v4169 = vunpack.c.l.b16 %v4063
      %v4170 = vunpack.c.l.b16 %v4066
      %v4171 = vunpack.c.l.b16 %v4070
      %v4172 = vunpack.c.l.b16 %v4073
      %v4173 = vunpack.c.l.b16 %v4077
      %v4174 = vunpack.c.l.b16 %v4080
      %v4175 = vunpack.c.l.b16 %v4084
      %v4176 = vunpack.c.l.b16 %v4087
      %v4177 = vunpack.c.l.b16 %v4091
      %v4178 = vunpack.c.l.b16 %v4094
      %v4179 = vunpack.c.l.b16 %v4098
      %v4180 = vunpack.c.l.b16 %v4101
      %v4181 = vunpack.c.l.b16 %v4105
      %v4182 = vunpack.c.l.b16 %v4108
      %v4183 = vunpack.c.l.b16 %v4112
      %v4184 = vunpack.c.l.b16 %v4115
      %v4185 = vunpack.c.l.b16 %v4119
      %v4186 = vunpack.c.l.b16 %v4122
      %v4187 = vunpack.c.l.b16 %v4126
      %v4188 = vunpack.c.l.b16 %v4129
      %v4189 = vunpack.c.l.b16 %v4133
      %v4190 = vunpack.c.l.b16 %v4136
      %v4191 = vunpack.c.l.b16 %v4140
      %v4192 = vunpack.c.l.b16 %v4143
      %v4193 = vpack.c.b16 %v4162, %v4161
      %v4194 = vpack.c.b16 %v4164, %v4163
      %v4195 = vpack.c.b16 %v4166, %v4165
      %v4196 = vpack.c.b16 %v4168, %v4167
      %v4197 = vpack.c.b16 %v4170, %v4169
      %v4198 = vpack.c.b16 %v4172, %v4171
      %v4199 = vpack.c.b16 %v4174, %v4173
      %v4200 = vpack.c.b16 %v4176, %v4175
      %v4201 = vpack.c.b16 %v4178, %v4177
      %v4202 = vpack.c.b16 %v4180, %v4179
      %v4203 = vpack.c.b16 %v4182, %v4181
      %v4204 = vpack.c.b16 %v4184, %v4183
      %v4205 = vpack.c.b16 %v4186, %v4185
      %v4206 = vpack.c.b16 %v4188, %v4187
      %v4207 = vpack.c.b16 %v4190, %v4189
      %v4208 = vpack.c.b16 %v4192, %v4191
      %v4241 = vunpack.c.l.b16 %v4145
      %v4242 = vunpack.c.l.b16 %v4146
      %v4243 = vunpack.c.l.b16 %v4147
      %v4244 = vunpack.c.l.b16 %v4148
      %v4245 = vunpack.c.l.b16 %v4149
      %v4246 = vunpack.c.l.b16 %v4150
      %v4247 = vunpack.c.l.b16 %v4151
      %v4248 = vunpack.c.l.b16 %v4152
      %v4249 = vunpack.c.l.b16 %v4153
      %v4250 = vunpack.c.l.b16 %v4154
      %v4251 = vunpack.c.l.b16 %v4155
      %v4252 = vunpack.c.l.b16 %v4156
      %v4253 = vunpack.c.l.b16 %v4157
      %v4254 = vunpack.c.l.b16 %v4158
      %v4255 = vunpack.c.l.b16 %v4159
      %v4256 = vunpack.c.l.b16 %v4160
      %v4257 = vpack.c.b16 %v4242, %v4241
      %v4258 = vpack.c.b16 %v4244, %v4243
      %v4259 = vpack.c.b16 %v4246, %v4245
      %v4260 = vpack.c.b16 %v4248, %v4247
      %v4261 = vpack.c.b16 %v4250, %v4249
      %v4262 = vpack.c.b16 %v4252, %v4251
      %v4263 = vpack.c.b16 %v4254, %v4253
      %v4264 = vpack.c.b16 %v4256, %v4255
      %4273 = vmatpush.bf16.msra.mxu0 %v4264
      %4274 = vmatpush.bf16.msra.mxu0 %v4263
      %4275 = vmatpush.bf16.msra.mxu0 %v4262
      %4276 = vmatpush.bf16.msra.mxu0 %v4261
      %4277 = vmatpush.bf16.msra.mxu0 %v4260
      %4278 = vmatpush.bf16.msra.mxu0 %v4259
      %4279 = vmatpush.bf16.msra.mxu0 %v4258
      %4280 = vmatpush.bf16.msra.mxu0 %v4257
      %4281 = vmatmul.bf16.gmra.mxu0 %v4193
      %v4282 = vpop.f32.mrf.mxu0
      %v4283 = vadd.f32 0.0, %v4282
      %v4284 = vpop.f32.mrf.mxu0
      %v4285 = vadd.f32 0.0, %v4284
      %4286 = vmatmul.bf16.gmra.mxu0 %v4194
      %v4287 = vpop.f32.mrf.mxu0
      %v4288 = vadd.f32 0.0, %v4287
      %v4289 = vpop.f32.mrf.mxu0
      %v4290 = vadd.f32 0.0, %v4289
      %4291 = vmatmul.bf16.gmra.mxu0 %v4195
      %v4292 = vpop.f32.mrf.mxu0
      %v4293 = vadd.f32 0.0, %v4292
      %v4294 = vpop.f32.mrf.mxu0
      %v4295 = vadd.f32 0.0, %v4294
      %4296 = vmatmul.bf16.gmra.mxu0 %v4196
      %v4297 = vpop.f32.mrf.mxu0
      %v4298 = vadd.f32 0.0, %v4297
      %v4299 = vpop.f32.mrf.mxu0
      %v4300 = vadd.f32 0.0, %v4299
      %4301 = vmatmul.bf16.gmra.mxu0 %v4197
      %v4302 = vpop.f32.mrf.mxu0
      %v4303 = vadd.f32 0.0, %v4302
      %v4304 = vpop.f32.mrf.mxu0
      %v4305 = vadd.f32 0.0, %v4304
      %4306 = vmatmul.bf16.gmra.mxu0 %v4198
      %v4307 = vpop.f32.mrf.mxu0
      %v4308 = vadd.f32 0.0, %v4307
      %v4309 = vpop.f32.mrf.mxu0
      %v4310 = vadd.f32 0.0, %v4309
      %4311 = vmatmul.bf16.gmra.mxu0 %v4199
      %v4312 = vpop.f32.mrf.mxu0
      %v4313 = vadd.f32 0.0, %v4312
      %v4314 = vpop.f32.mrf.mxu0
      %v4315 = vadd.f32 0.0, %v4314
      %4316 = vmatmul.bf16.gmra.mxu0 %v4200
      %v4317 = vpop.f32.mrf.mxu0
      %v4318 = vadd.f32 0.0, %v4317
      %v4319 = vpop.f32.mrf.mxu0
      %v4320 = vadd.f32 0.0, %v4319
      %4321 = vmatmul.bf16.gmra.mxu0 %v4201
      %v4322 = vpop.f32.mrf.mxu0
      %v4323 = vadd.f32 0.0, %v4322
      %v4324 = vpop.f32.mrf.mxu0
      %v4325 = vadd.f32 0.0, %v4324
      %4326 = vmatmul.bf16.gmra.mxu0 %v4202
      %v4327 = vpop.f32.mrf.mxu0
      %v4328 = vadd.f32 0.0, %v4327
      %v4329 = vpop.f32.mrf.mxu0
      %v4330 = vadd.f32 0.0, %v4329
      %4331 = vmatmul.bf16.gmra.mxu0 %v4203
      %v4332 = vpop.f32.mrf.mxu0
      %v4333 = vadd.f32 0.0, %v4332
      %v4334 = vpop.f32.mrf.mxu0
      %v4335 = vadd.f32 0.0, %v4334
      %4336 = vmatmul.bf16.gmra.mxu0 %v4204
      %v4337 = vpop.f32.mrf.mxu0
      %v4338 = vadd.f32 0.0, %v4337
      %v4339 = vpop.f32.mrf.mxu0
      %v4340 = vadd.f32 0.0, %v4339
      %4341 = vmatmul.bf16.gmra.mxu0 %v4205
      %v4342 = vpop.f32.mrf.mxu0
      %v4343 = vadd.f32 0.0, %v4342
      %v4344 = vpop.f32.mrf.mxu0
      %v4345 = vadd.f32 0.0, %v4344
      %4346 = vmatmul.bf16.gmra.mxu0 %v4206
      %v4347 = vpop.f32.mrf.mxu0
      %v4348 = vadd.f32 0.0, %v4347
      %v4349 = vpop.f32.mrf.mxu0
      %v4350 = vadd.f32 0.0, %v4349
      %4351 = vmatmul.bf16.gmra.mxu0 %v4207
      %v4352 = vpop.f32.mrf.mxu0
      %v4353 = vadd.f32 0.0, %v4352
      %v4354 = vpop.f32.mrf.mxu0
      %v4355 = vadd.f32 0.0, %v4354
      %4356 = vmatmul.bf16.gmra.mxu0 %v4208
      %v4357 = vpop.f32.mrf.mxu0
      %v4358 = vadd.f32 0.0, %v4357
      %v4359 = vpop.f32.mrf.mxu0
      %v4360 = vadd.f32 0.0, %v4359
      %4361 = vdwg.mxu0
      %v4362 = vadd.f32 %v3936, %v4283
      %v4363 = vadd.f32 %v3937, %v4285
      %v4364 = vadd.f32 %v3938, %v4288
      %v4365 = vadd.f32 %v3939, %v4290
      %v4366 = vadd.f32 %v3940, %v4293
      %v4367 = vadd.f32 %v3941, %v4295
      %v4368 = vadd.f32 %v3942, %v4298
      %v4369 = vadd.f32 %v3943, %v4300
      %v4370 = vadd.f32 %v3944, %v4303
      %v4371 = vadd.f32 %v3945, %v4305
      %v4372 = vadd.f32 %v3946, %v4308
      %v4373 = vadd.f32 %v3947, %v4310
      %v4374 = vadd.f32 %v3948, %v4313
      %v4375 = vadd.f32 %v3949, %v4315
      %v4376 = vadd.f32 %v3950, %v4318
      %v4377 = vadd.f32 %v3951, %v4320
      %v4378 = vadd.f32 %v3952, %v4323
      %v4379 = vadd.f32 %v3953, %v4325
      %v4380 = vadd.f32 %v3954, %v4328
      %v4381 = vadd.f32 %v3955, %v4330
      %v4382 = vadd.f32 %v3956, %v4333
      %v4383 = vadd.f32 %v3957, %v4335
      %v4384 = vadd.f32 %v3958, %v4338
      %v4385 = vadd.f32 %v3959, %v4340
      %v4386 = vadd.f32 %v3960, %v4343
      %v4387 = vadd.f32 %v3961, %v4345
      %v4388 = vadd.f32 %v3962, %v4348
      %v4389 = vadd.f32 %v3963, %v4350
      %v4390 = vadd.f32 %v3964, %v4353
      %v4391 = vadd.f32 %v3965, %v4355
      %v4392 = vadd.f32 %v3966, %v4358
      %v4393 = vadd.f32 %v3967, %v4360
      %v4394 = vld [vmem:[%s2] sm:$0x1]
      %v4396 = vperm.slane %v4394, 0
      %v4398 = vadd.f32 %v4362, %v4396
      %v4399 = vadd.f32 %v4363, %v4396
      %v4400 = vadd.f32 %v4364, %v4396
      %v4401 = vadd.f32 %v4365, %v4396
      %v4402 = vadd.f32 %v4366, %v4396
      %v4403 = vadd.f32 %v4367, %v4396
      %v4404 = vadd.f32 %v4368, %v4396
      %v4405 = vadd.f32 %v4369, %v4396
      %v4406 = vadd.f32 %v4370, %v4396
      %v4407 = vadd.f32 %v4371, %v4396
      %v4408 = vadd.f32 %v4372, %v4396
      %v4409 = vadd.f32 %v4373, %v4396
      %v4410 = vadd.f32 %v4374, %v4396
      %v4411 = vadd.f32 %v4375, %v4396
      %v4412 = vadd.f32 %v4376, %v4396
      %v4413 = vadd.f32 %v4377, %v4396
      %v4414 = vadd.f32 %v4378, %v4396
      %v4415 = vadd.f32 %v4379, %v4396
      %v4416 = vadd.f32 %v4380, %v4396
      %v4417 = vadd.f32 %v4381, %v4396
      %v4418 = vadd.f32 %v4382, %v4396
      %v4419 = vadd.f32 %v4383, %v4396
      %v4420 = vadd.f32 %v4384, %v4396
      %v4421 = vadd.f32 %v4385, %v4396
      %v4422 = vadd.f32 %v4386, %v4396
      %v4423 = vadd.f32 %v4387, %v4396
      %v4424 = vadd.f32 %v4388, %v4396
      %v4425 = vadd.f32 %v4389, %v4396
      %v4426 = vadd.f32 %v4390, %v4396
      %v4427 = vadd.f32 %v4391, %v4396
      %v4428 = vadd.f32 %v4392, %v4396
      %v4429 = vadd.f32 %v4393, %v4396
      %v4430 = vld [vmem:[%s3] sm:$0x1]
      %vm4431 = vcmp.gt.f32.partialorder %v4398, 0.0
      %vm4432 = vcmp.gt.f32.partialorder %v4399, 0.0
      %vm4433 = vcmp.gt.f32.partialorder %v4400, 0.0
      %vm4434 = vcmp.gt.f32.partialorder %v4401, 0.0
      %vm4435 = vcmp.gt.f32.partialorder %v4402, 0.0
      %vm4436 = vcmp.gt.f32.partialorder %v4403, 0.0
      %vm4437 = vcmp.gt.f32.partialorder %v4404, 0.0
      %vm4438 = vcmp.gt.f32.partialorder %v4405, 0.0
      %vm4439 = vcmp.gt.f32.partialorder %v4406, 0.0
      %vm4440 = vcmp.gt.f32.partialorder %v4407, 0.0
      %vm4441 = vcmp.gt.f32.partialorder %v4408, 0.0
      %vm4442 = vcmp.gt.f32.partialorder %v4409, 0.0
      %vm4443 = vcmp.gt.f32.partialorder %v4410, 0.0
      %vm4444 = vcmp.gt.f32.partialorder %v4411, 0.0
      %vm4445 = vcmp.gt.f32.partialorder %v4412, 0.0
      %vm4446 = vcmp.gt.f32.partialorder %v4413, 0.0
      %vm4447 = vcmp.gt.f32.partialorder %v4414, 0.0
      %vm4448 = vcmp.gt.f32.partialorder %v4415, 0.0
      %vm4449 = vcmp.gt.f32.partialorder %v4416, 0.0
      %vm4450 = vcmp.gt.f32.partialorder %v4417, 0.0
      %vm4451 = vcmp.gt.f32.partialorder %v4418, 0.0
      %vm4452 = vcmp.gt.f32.partialorder %v4419, 0.0
      %vm4453 = vcmp.gt.f32.partialorder %v4420, 0.0
      %vm4454 = vcmp.gt.f32.partialorder %v4421, 0.0
      %vm4455 = vcmp.gt.f32.partialorder %v4422, 0.0
      %vm4456 = vcmp.gt.f32.partialorder %v4423, 0.0
      %vm4457 = vcmp.gt.f32.partialorder %v4424, 0.0
      %vm4458 = vcmp.gt.f32.partialorder %v4425, 0.0
      %vm4459 = vcmp.gt.f32.partialorder %v4426, 0.0
      %vm4460 = vcmp.gt.f32.partialorder %v4427, 0.0
      %vm4461 = vcmp.gt.f32.partialorder %v4428, 0.0
      %vm4462 = vcmp.gt.f32.partialorder %v4429, 0.0
      %v4464 = vperm.slane %v4430, 0
      %v4466 = vmul.f32 %v4398, %v4464
      %v4467 = vmul.f32 %v4399, %v4464
      %v4468 = vmul.f32 %v4400, %v4464
      %v4469 = vmul.f32 %v4401, %v4464
      %v4470 = vmul.f32 %v4402, %v4464
      %v4471 = vmul.f32 %v4403, %v4464
      %v4472 = vmul.f32 %v4404, %v4464
      %v4473 = vmul.f32 %v4405, %v4464
      %v4474 = vmul.f32 %v4406, %v4464
      %v4475 = vmul.f32 %v4407, %v4464
      %v4476 = vmul.f32 %v4408, %v4464
      %v4477 = vmul.f32 %v4409, %v4464
      %v4478 = vmul.f32 %v4410, %v4464
      %v4479 = vmul.f32 %v4411, %v4464
      %v4480 = vmul.f32 %v4412, %v4464
      %v4481 = vmul.f32 %v4413, %v4464
      %v4482 = vmul.f32 %v4414, %v4464
      %v4483 = vmul.f32 %v4415, %v4464
      %v4484 = vmul.f32 %v4416, %v4464
      %v4485 = vmul.f32 %v4417, %v4464
      %v4486 = vmul.f32 %v4418, %v4464
      %v4487 = vmul.f32 %v4419, %v4464
      %v4488 = vmul.f32 %v4420, %v4464
      %v4489 = vmul.f32 %v4421, %v4464
      %v4490 = vmul.f32 %v4422, %v4464
      %v4491 = vmul.f32 %v4423, %v4464
      %v4492 = vmul.f32 %v4424, %v4464
      %v4493 = vmul.f32 %v4425, %v4464
      %v4494 = vmul.f32 %v4426, %v4464
      %v4495 = vmul.f32 %v4427, %v4464
      %v4496 = vmul.f32 %v4428, %v4464
      %v4497 = vmul.f32 %v4429, %v4464
      %v4498 = vsel %vm4431, %v4398, %v4466
      %v4499 = vsel %vm4432, %v4399, %v4467
      %v4500 = vsel %vm4433, %v4400, %v4468
      %v4501 = vsel %vm4434, %v4401, %v4469
      %v4502 = vsel %vm4435, %v4402, %v4470
      %v4503 = vsel %vm4436, %v4403, %v4471
      %v4504 = vsel %vm4437, %v4404, %v4472
      %v4505 = vsel %vm4438, %v4405, %v4473
      %v4506 = vsel %vm4439, %v4406, %v4474
      %v4507 = vsel %vm4440, %v4407, %v4475
      %v4508 = vsel %vm4441, %v4408, %v4476
      %v4509 = vsel %vm4442, %v4409, %v4477
      %v4510 = vsel %vm4443, %v4410, %v4478
      %v4511 = vsel %vm4444, %v4411, %v4479
      %v4512 = vsel %vm4445, %v4412, %v4480
      %v4513 = vsel %vm4446, %v4413, %v4481
      %v4514 = vsel %vm4447, %v4414, %v4482
      %v4515 = vsel %vm4448, %v4415, %v4483
      %v4516 = vsel %vm4449, %v4416, %v4484
      %v4517 = vsel %vm4450, %v4417, %v4485
      %v4518 = vsel %vm4451, %v4418, %v4486
      %v4519 = vsel %vm4452, %v4419, %v4487
      %v4520 = vsel %vm4453, %v4420, %v4488
      %v4521 = vsel %vm4454, %v4421, %v4489
      %v4522 = vsel %vm4455, %v4422, %v4490
      %v4523 = vsel %vm4456, %v4423, %v4491
      %v4524 = vsel %vm4457, %v4424, %v4492
      %v4525 = vsel %vm4458, %v4425, %v4493
      %v4526 = vsel %vm4459, %v4426, %v4494
      %v4527 = vsel %vm4460, %v4427, %v4495
      %v4528 = vsel %vm4461, %v4428, %v4496
      %v4529 = vsel %vm4462, %v4429, %v4497
      %v4530 = vpack.c.bf16 %v4498, %v4498
      %v4531 = vpack.c.bf16 %v4499, %v4499
      %v4532 = vpack.c.bf16 %v4500, %v4500
      %v4533 = vpack.c.bf16 %v4501, %v4501
      %v4534 = vpack.c.bf16 %v4502, %v4502
      %v4535 = vpack.c.bf16 %v4503, %v4503
      %v4536 = vpack.c.bf16 %v4504, %v4504
      %v4537 = vpack.c.bf16 %v4505, %v4505
      %v4538 = vpack.c.bf16 %v4506, %v4506
      %v4539 = vpack.c.bf16 %v4507, %v4507
      %v4540 = vpack.c.bf16 %v4508, %v4508
      %v4541 = vpack.c.bf16 %v4509, %v4509
      %v4542 = vpack.c.bf16 %v4510, %v4510
      %v4543 = vpack.c.bf16 %v4511, %v4511
      %v4544 = vpack.c.bf16 %v4512, %v4512
      %v4545 = vpack.c.bf16 %v4513, %v4513
      %v4546 = vpack.c.bf16 %v4514, %v4514
      %v4547 = vpack.c.bf16 %v4515, %v4515
      %v4548 = vpack.c.bf16 %v4516, %v4516
      %v4549 = vpack.c.bf16 %v4517, %v4517
      %v4550 = vpack.c.bf16 %v4518, %v4518
      %v4551 = vpack.c.bf16 %v4519, %v4519
      %v4552 = vpack.c.bf16 %v4520, %v4520
      %v4553 = vpack.c.bf16 %v4521, %v4521
      %v4554 = vpack.c.bf16 %v4522, %v4522
      %v4555 = vpack.c.bf16 %v4523, %v4523
      %v4556 = vpack.c.bf16 %v4524, %v4524
      %v4557 = vpack.c.bf16 %v4525, %v4525
      %v4558 = vpack.c.bf16 %v4526, %v4526
      %v4559 = vpack.c.bf16 %v4527, %v4527
      %v4560 = vpack.c.bf16 %v4528, %v4528
      %v4561 = vpack.c.bf16 %v4529, %v4529
      %4562 = vst [vmem:[%s221] sm:$0xf] %v4530
      %4563 = vst [vmem:[%s221 + $0x4] sm:$0xf] %v4531
      %4564 = vst [vmem:[%s221 + $0x8] sm:$0xf] %v4532
      %4565 = vst [vmem:[%s221 + $0xc] sm:$0xf] %v4533
      %4566 = vst [vmem:[%s221 + $0x10] sm:$0xf] %v4534
      %4567 = vst [vmem:[%s221 + $0x14] sm:$0xf] %v4535
      %4568 = vst [vmem:[%s221 + $0x18] sm:$0xf] %v4536
      %4569 = vst [vmem:[%s221 + $0x1c] sm:$0xf] %v4537
      %4570 = vst [vmem:[%s221 + $0x20] sm:$0xf] %v4538
      %4571 = vst [vmem:[%s221 + $0x24] sm:$0xf] %v4539
      %4572 = vst [vmem:[%s221 + $0x28] sm:$0xf] %v4540
      %4573 = vst [vmem:[%s221 + $0x2c] sm:$0xf] %v4541
      %4574 = vst [vmem:[%s221 + $0x30] sm:$0xf] %v4542
      %4575 = vst [vmem:[%s221 + $0x34] sm:$0xf] %v4543
      %4576 = vst [vmem:[%s221 + $0x38] sm:$0xf] %v4544
      %4577 = vst [vmem:[%s221 + $0x3c] sm:$0xf] %v4545
      %4578 = vst [vmem:[%s221 + $0x40] sm:$0xf] %v4546
      %4579 = vst [vmem:[%s221 + $0x44] sm:$0xf] %v4547
      %4580 = vst [vmem:[%s221 + $0x48] sm:$0xf] %v4548
      %4581 = vst [vmem:[%s221 + $0x4c] sm:$0xf] %v4549
      %4582 = vst [vmem:[%s221 + $0x50] sm:$0xf] %v4550
      %4583 = vst [vmem:[%s221 + $0x54] sm:$0xf] %v4551
      %4584 = vst [vmem:[%s221 + $0x58] sm:$0xf] %v4552
      %4585 = vst [vmem:[%s221 + $0x5c] sm:$0xf] %v4553
      %4586 = vst [vmem:[%s221 + $0x60] sm:$0xf] %v4554
      %4587 = vst [vmem:[%s221 + $0x64] sm:$0xf] %v4555
      %4588 = vst [vmem:[%s221 + $0x68] sm:$0xf] %v4556
      %4589 = vst [vmem:[%s221 + $0x6c] sm:$0xf] %v4557
      %4590 = vst [vmem:[%s221 + $0x70] sm:$0xf] %v4558
      %4591 = vst [vmem:[%s221 + $0x74] sm:$0xf] %v4559
      %4592 = vst [vmem:[%s221 + $0x78] sm:$0xf] %v4560
      %4593 = vst [vmem:[%s221 + $0x7c] sm:$0xf] %v4561
      %s4594 = smul.u32 16, %s20
      %p4595 = scmp.lt.s32.totalorder %s19, 1
      %s4596 = scalar_select %p4595, %s19, 1
      %p4597 = scmp.lt.s32.totalorder %s4594, 15
      %s4598 = scalar_select %p4597, %s4594, 15
      %s4599 = smul.addr %s4598, 2
      %s4600 = smul.addr %s4596, 32
      %s4601 = sadd.s32 %s4599, %s4600
      %s4602 = smul.addr %s4601, 4
      %s4603 = scalar_lea.vmem %s4, %s4602
      // Predicated region
      $region37: #{basic_block_ir_forward.2} parent=35 // pred_check
        %p4604 = pneg %p136
      $region38: #{basic_block_ir_forward.2} parent=35 // pred_check_branch
        %4606 = sbr.rel (%p4604) target = $region40
      $region39: #{basic_block_ir_forward.2} parent=35 // pred_region
        %s4607 = smul.u32 16, %s20
      $region40: #{basic_block_ir_forward.2} parent=35 // pred_fallthru
        _
    $region36: #{basic_block_ir_forward.2} parent=5 // pred_fallthru
      _
    %p4608 = scmp.le.s32.totalorder 2, %s10
    // Predicated region
    $region41: #{basic_block_ir_forward.2} parent=5 // pred_check
      %p4609 = pneg %p4608
    $region42: #{basic_block_ir_forward.2} parent=5 // pred_check_branch
      %4611 = sbr.rel (%p4609) target = $region44
    $region43: #{basic_block_ir_forward.2} parent=5 // pred_region
      %s4612 = ssub.s32 %s10, 2
      // Predicated region
      $region45: #{basic_block_ir_forward.2} parent=43 // pred_check
        %p4613 = pneg %p142
      $region46: #{basic_block_ir_forward.2} parent=43 // pred_check_branch
        %4615 = sbr.rel (%p4613) target = $region48
      $region47: #{basic_block_ir_forward.2} parent=43 // pred_region
        %s4616 = smul.u32 16, %s22
        %p4617 = scmp.lt.s32.totalorder %s21, 1
        %s4618 = scalar_select %p4617, %s21, 1
        %p4619 = scmp.lt.s32.totalorder %s4616, 15
        %s4620 = scalar_select %p4619, %s4616, 15
        %s4621 = smul.addr %s4620, 2
        %s4622 = smul.addr %s4618, 32
        %s4623 = sadd.s32 %s4621, %s4622
        %s4624 = smul.addr %s4623, 4
        %s4625 = scalar_lea.vmem %s4, %s4624
      $region48: #{basic_block_ir_forward.2} parent=43 // pred_fallthru
        _
    $region44: #{basic_block_ir_forward.2} parent=5 // pred_fallthru
      _
  $region6: #{basic_block_ir_forward.2} parent=0 // loop_footer
    %s14 = sadd.s32 1, %s10
  $region7: #{basic_block_ir_forward.2} parent=0 // loop_footer_branch
    %9 = sbr.rel target = $region3
  $region8: #{basic_block_ir_forward.2} parent=0 // loop_exit
    _

// kernel: basic_block_ir_forward.3
$region0: #{basic_block_ir_forward.3}
  #allocation0 [shape = 'u32[]', space=smem, size = 0x4, offset = 0x4, fixed_abs, tag = 'smem constant byte address 0x4 - core index']
  #allocation1 [shape = 'u32[72,128]{1,0:T(1,128)}', space=vmem, size = 0x9000, scoped, tag = 'internal scratch']
  %s0 = inlined_call_operand.vmem [shape: bf16[2,18,24,128], index: 0, kind: input, shape index: {}]
  %s1 = inlined_call_operand.vmem [shape: bf16[9,128,128], index: 1, kind: input, shape index: {}]
  %s2 = inlined_call_operand.vmem [shape: f32[1,128], index: 2, kind: input, shape index: {}]
  %s3 = inlined_call_operand.vmem [shape: bf16[2,16,16,128], index: 3, kind: input, shape index: {}]
  %s4 = inlined_call_operand.vmem [shape: bf16[2,16,16,128], index: 4, kind: output, shape index: {}]
  %s5 = sld [smem:[#allocation0]]
  $region49: #{basic_block_ir_forward.3} parent=0
    _
  %s7 = ssub.s32 1, %s5
  %s8 = scalar_select 0, %s7, %s5
  loop: start=0, step=1, limit=4
  $region2: #{basic_block_ir_forward.3} parent=0 // loop_pre_header
    _
  $region3: #{basic_block_ir_forward.3} parent=0 // loop_header
    %s10 = sphi 0, %s14
    %p11 = scmp.ge.s32.totalorder %s10, 4
    %s17 = sphi 0, %s29
    %s18 = sphi 0, %s25
    %s19 = sphi 0, %s17
    %s20 = sphi 0, %s18
    %s21 = sphi 0, %s19
    %s22 = sphi 0, %s20
    %s32 = sphi 0, %s34
    %s35 = sphi 0, %s32
    %s36 = sphi 0, %s35
    %s52 = sphi 0, %s36
    %s56 = sphi 0, %s56
    %s58 = sphi 0, %s56
    %s59 = sphi 0, %s58
    %s73 = sphi 0, %s59
    %s77 = sphi 0, %s77
    %s79 = sphi 0, %s77
    %s80 = sphi 0, %s79
    %s94 = sphi 0, %s80
    %s102 = sphi 0, %s104
    %s105 = sphi 0, %s102
    %s106 = sphi 0, %s105
    %s122 = sphi 0, %s106
    %s130 = sphi 0, %s132
    %s133 = sphi 0, %s130
    %s134 = sphi 0, %s133
    %s150 = sphi 0, %s134
  $region4: #{basic_block_ir_forward.3} parent=0 // loop_header_branch
    %13 = sbr.rel (%p11) target = $region8
  $region5: #{basic_block_ir_forward.3} parent=0 // loop_body
    %s15 = ssub.s32 %s10, 1
    %s16 = ssub.s32 %s10, 2
    %s23 = sadd.s32 1, %s18
    %p24 = scmp.ge.s32.totalorder %s23, 1
    %s25 = scalar_select %p24, 0, %s23
    %s26 = sadd.s32 1, %s17
    %s27 = scalar_select %p24, %s26, %s17
    %p28 = scmp.ge.s32.totalorder %s27, 2
    %s29 = scalar_select %p28, 0, %s27
    %s30 = ssub.s32 %s17, %s29
    %p31 = scmp.eq.s32.totalorder %s30, 0
    %s33 = sadd.s32 %s32, 1
    %s34 = scalar_select %p31, %s32, %s33
    %p37 = pneg %p31
    %p38 = scmp.eq.s32.totalorder %s10, 1
    %p39 = por %p37, %p38
    %p40 = scmp.ne.s32.totalorder %s32, %s35
    %p41 = scmp.eq.s32.totalorder %s10, 0
    %p42 = por %p40, %p41
    %p43 = scmp.ne.s32.totalorder %s32, %s35
    %p44 = scmp.eq.s32.totalorder %s15, 1
    %p45 = por %p43, %p44
    %p46 = scmp.ne.s32.totalorder %s35, %s36
    %p47 = scmp.eq.s32.totalorder %s15, 0
    %p48 = por %p46, %p47
    %p49 = scmp.ne.s32.totalorder %s35, %s36
    %p50 = scmp.eq.s32.totalorder %s16, 1
    %p51 = por %p49, %p50
    %p53 = scmp.ne.s32.totalorder %s36, %s52
    %p54 = scmp.eq.s32.totalorder %s16, 0
    %p55 = por %p53, %p54
    %s57 = sadd.s32 %s56, 1
    %p60 = scmp.eq.s32.totalorder %s10, 1
    %p61 = scmp.ne.s32.totalorder %s56, %s58
    %p62 = scmp.eq.s32.totalorder %s10, 0
    %p63 = por %p61, %p62
    %p64 = scmp.ne.s32.totalorder %s56, %s58
    %p65 = scmp.eq.s32.totalorder %s15, 1
    %p66 = por %p64, %p65
    %p67 = scmp.ne.s32.totalorder %s58, %s59
    %p68 = scmp.eq.s32.totalorder %s15, 0
    %p69 = por %p67, %p68
    %p70 = scmp.ne.s32.totalorder %s58, %s59
    %p71 = scmp.eq.s32.totalorder %s16, 1
    %p72 = por %p70, %p71
    %p74 = scmp.ne.s32.totalorder %s59, %s73
    %p75 = scmp.eq.s32.totalorder %s16, 0
    %p76 = por %p74, %p75
    %s78 = sadd.s32 %s77, 1
    %p81 = scmp.eq.s32.totalorder %s10, 1
    %p82 = scmp.ne.s32.totalorder %s77, %s79
    %p83 = scmp.eq.s32.totalorder %s10, 0
    %p84 = por %p82, %p83
    %p85 = scmp.ne.s32.totalorder %s77, %s79
    %p86 = scmp.eq.s32.totalorder %s15, 1
    %p87 = por %p85, %p86
    %p88 = scmp.ne.s32.totalorder %s79, %s80
    %p89 = scmp.eq.s32.totalorder %s15, 0
    %p90 = por %p88, %p89
    %p91 = scmp.ne.s32.totalorder %s79, %s80
    %p92 = scmp.eq.s32.totalorder %s16, 1
    %p93 = por %p91, %p92
    %p95 = scmp.ne.s32.totalorder %s80, %s94
    %p96 = scmp.eq.s32.totalorder %s16, 0
    %p97 = por %p95, %p96
    %s98 = ssub.s32 %s17, %s29
    %s99 = ssub.s32 %s18, %s25
    %s100 = sor.u32 %s98, %s99
    %p101 = scmp.eq.s32.totalorder %s100, 0
    %s103 = sadd.s32 %s102, 1
    %s104 = scalar_select %p101, %s102, %s103
    %p107 = pneg %p101
    %p108 = scmp.eq.s32.totalorder %s10, 1
    %p109 = por %p107, %p108
    %p110 = scmp.ne.s32.totalorder %s102, %s105
    %p111 = scmp.eq.s32.totalorder %s10, 0
    %p112 = por %p110, %p111
    %p113 = scmp.ne.s32.totalorder %s102, %s105
    %p114 = scmp.eq.s32.totalorder %s15, 1
    %p115 = por %p113, %p114
    %p116 = scmp.ne.s32.totalorder %s105, %s106
    %p117 = scmp.eq.s32.totalorder %s15, 0
    %p118 = por %p116, %p117
    %p119 = scmp.ne.s32.totalorder %s105, %s106
    %p120 = scmp.eq.s32.totalorder %s16, 1
    %p121 = por %p119, %p120
    %p123 = scmp.ne.s32.totalorder %s106, %s122
    %p124 = scmp.eq.s32.totalorder %s16, 0
    %p125 = por %p123, %p124
    %s126 = ssub.s32 %s17, %s29
    %s127 = ssub.s32 %s18, %s25
    %s128 = sor.u32 %s126, %s127
    %p129 = scmp.eq.s32.totalorder %s128, 0
    %s131 = sadd.s32 %s130, 1
    %s132 = scalar_select %p129, %s130, %s131
    %p135 = pneg %p129
    %p136 = scmp.eq.s32.totalorder %s10, 1
    %p137 = por %p135, %p136
    %p138 = scmp.ne.s32.totalorder %s130, %s133
    %p139 = scmp.eq.s32.totalorder %s10, 0
    %p140 = por %p138, %p139
    %p141 = scmp.ne.s32.totalorder %s130, %s133
    %p142 = scmp.eq.s32.totalorder %s15, 1
    %p143 = por %p141, %p142
    %p144 = scmp.ne.s32.totalorder %s133, %s134
    %p145 = scmp.eq.s32.totalorder %s15, 0
    %p146 = por %p144, %p145
    %p147 = scmp.ne.s32.totalorder %s133, %s134
    %p148 = scmp.eq.s32.totalorder %s16, 1
    %p149 = por %p147, %p148
    %p151 = scmp.ne.s32.totalorder %s134, %s150
    %p152 = scmp.eq.s32.totalorder %s16, 0
    %p153 = por %p151, %p152
    %p154 = scmp.le.s32.totalorder 1, %s10
    %p155 = scmp.lt.s32.totalorder %s10, 3
    %p156 = pnand %p154, %p155
    %p157 = pneg %p156
    // Predicated region
    $region9: #{basic_block_ir_forward.3} parent=5 // pred_check
      _
    $region10: #{basic_block_ir_forward.3} parent=5 // pred_check_branch
      %159 = sbr.rel (%p156) target = $region12
    $region11: #{basic_block_ir_forward.3} parent=5 // pred_region
      %s160 = ssub.s32 %s10, 1
      // Predicated region
      $region13: #{basic_block_ir_forward.3} parent=11 // pred_check
        %p161 = pneg %p69
      $region14: #{basic_block_ir_forward.3} parent=11 // pred_check_branch
        %163 = sbr.rel (%p161) target = $region16
      $region15: #{basic_block_ir_forward.3} parent=11 // pred_region
        _
      $region16: #{basic_block_ir_forward.3} parent=11 // pred_fallthru
        _
      // Predicated region
      $region17: #{basic_block_ir_forward.3} parent=11 // pred_check
        %p164 = pneg %p90
      $region18: #{basic_block_ir_forward.3} parent=11 // pred_check_branch
        %166 = sbr.rel (%p164) target = $region20
      $region19: #{basic_block_ir_forward.3} parent=11 // pred_region
        _
      $region20: #{basic_block_ir_forward.3} parent=11 // pred_fallthru
        _
    $region12: #{basic_block_ir_forward.3} parent=5 // pred_fallthru
      _
    %p167 = scmp.lt.s32.totalorder %s10, 2
    // Predicated region
    $region21: #{basic_block_ir_forward.3} parent=5 // pred_check
      %p168 = pneg %p167
    $region22: #{basic_block_ir_forward.3} parent=5 // pred_check_branch
      %170 = sbr.rel (%p168) target = $region24
    $region23: #{basic_block_ir_forward.3} parent=5 // pred_region
      // Predicated region
      $region25: #{basic_block_ir_forward.3} parent=23 // pred_check
        %p171 = pneg %p42
      $region26: #{basic_block_ir_forward.3} parent=23 // pred_check_branch
        %173 = sbr.rel (%p171) target = $region28
      $region27: #{basic_block_ir_forward.3} parent=23 // pred_region
        %p174 = scmp.lt.s32.totalorder %s17, 1
        %s175 = scalar_select %p174, %s17, 1
        %s176 = smul.addr %s175, 54
        %s177 = smul.addr %s176, 4
        %s178 = scalar_lea.vmem %s0, %s177
      $region28: #{basic_block_ir_forward.3} parent=23 // pred_fallthru
        _
      // Predicated region
      $region29: #{basic_block_ir_forward.3} parent=23 // pred_check
        %p179 = pneg %p112
      $region30: #{basic_block_ir_forward.3} parent=23 // pred_check_branch
        %181 = sbr.rel (%p179) target = $region32
      $region31: #{basic_block_ir_forward.3} parent=23 // pred_region
        %s182 = smul.u32 16, %s18
        %p183 = scmp.lt.s32.totalorder %s17, 1
        %s184 = scalar_select %p183, %s17, 1
        %p185 = scmp.lt.s32.totalorder %s182, 15
        %s186 = scalar_select %p185, %s182, 15
        %s187 = smul.addr %s186, 2
        %s188 = smul.addr %s184, 32
        %s189 = sadd.s32 %s187, %s188
        %s190 = smul.addr %s189, 4
        %s191 = scalar_lea.vmem %s3, %s190
        %s192 = smul.u32 16, %s18
      $region32: #{basic_block_ir_forward.3} parent=23 // pred_fallthru
        _
    $region24: #{basic_block_ir_forward.3} parent=5 // pred_fallthru
      _
    %p193 = scmp.le.s32.totalorder 1, %s10
    %p194 = scmp.lt.s32.totalorder %s10, 3
    %p195 = pnand %p193, %p194
    %p196 = pneg %p195
    // Predicated region
    $region33: #{basic_block_ir_forward.3} parent=5 // pred_check
      _
    $region34: #{basic_block_ir_forward.3} parent=5 // pred_check_branch
      %198 = sbr.rel (%p195) target = $region36
    $region35: #{basic_block_ir_forward.3} parent=5 // pred_region
      %s199 = ssub.s32 %s10, 1
      %p200 = scmp.lt.s32.totalorder %s19, 1
      %s201 = scalar_select %p200, %s19, 1
      %s202 = smul.addr %s201, 54
      %s203 = smul.addr %s202, 4
      %s204 = scalar_lea.vmem %s0, %s203
      %p205 = pneg %p48
      %p206 = pneg %p45
      %p207 = pneg %p69
      %p208 = pneg %p66
      %p209 = pneg %p90
      %p210 = pneg %p87
      %s211 = smul.u32 16, %s20
      %p212 = scmp.lt.s32.totalorder %s19, 1
      %s213 = scalar_select %p212, %s19, 1
      %p214 = scmp.lt.s32.totalorder %s211, 15
      %s215 = scalar_select %p214, %s211, 15
      %s216 = smul.addr %s215, 2
      %s217 = smul.addr %s213, 32
      %s218 = sadd.s32 %s216, %s217
      %s219 = smul.addr %s218, 4
      %s220 = scalar_lea.vmem %s3, %s219
      %p221 = pneg %p118
      %p222 = pneg %p115
      %p223 = pneg %p146
      %p224 = pneg %p143
      %s225 = smul.u32 16, %s20
      %p226 = scmp.lt.s32.totalorder %s19, 1
      %s227 = scalar_select %p226, %s19, 1
      %p228 = scmp.lt.s32.totalorder %s225, 15
      %s229 = scalar_select %p228, %s225, 15
      %s230 = smul.addr %s229, 2
      %s231 = smul.addr %s227, 32
      %s232 = sadd.s32 %s230, %s231
      %s233 = smul.addr %s232, 4
      %s234 = scalar_lea.vmem %s4, %s233
      %p235 = scmp.lt.s32.totalorder %s19, 1
      %s236 = scalar_select %p235, %s19, 1
      %s237 = smul.addr %s236, 54
      %s238 = smul.addr %s237, 4
      %s239 = scalar_lea.vmem %s0, %s238
      %s240 = smul.u32 16, %s20
      %p241 = scmp.lt.s32.totalorder %s19, 1
      %s242 = scalar_select %p241, %s19, 1
      %p243 = scmp.lt.s32.totalorder %s240, 15
      %s244 = scalar_select %p243, %s240, 15
      %s245 = smul.addr %s244, 2
      %s246 = smul.addr %s242, 32
      %s247 = sadd.s32 %s245, %s246
      %s248 = smul.addr %s247, 4
      %s249 = scalar_lea.vmem %s3, %s248
      %s250 = smul.u32 16, %s20
      %s251 = smul.u32 16, %s20
      %p252 = scmp.lt.s32.totalorder %s19, 1
      %s253 = scalar_select %p252, %s19, 1
      %p254 = scmp.lt.s32.totalorder %s251, 15
      %s255 = scalar_select %p254, %s251, 15
      %s256 = smul.addr %s255, 2
      %s257 = smul.addr %s253, 32
      %s258 = sadd.s32 %s256, %s257
      %s259 = smul.addr %s258, 4
      %s260 = scalar_lea.vmem %s4, %s259
      %s261 = smul.u32 16, %s20
      %s262 = smul.u32 %s20, 16
      %s263 = smul.u32 %s262, 3
      %s264 = smul.addr %s263, 4
      %s265 = scalar_lea.vmem %s239, %s264
      %v266 = vld [vmem:[%s265] sm:$0xf]
      %v267 = vld [vmem:[%s265 + $0x4] sm:$0xf]
      %v268 = vld [vmem:[%s265 + $0xc] sm:$0xf]
      %v269 = vld [vmem:[%s265 + $0x10] sm:$0xf]
      %v270 = vld [vmem:[%s265 + $0x18] sm:$0xf]
      %v271 = vld [vmem:[%s265 + $0x1c] sm:$0xf]
      %v272 = vld [vmem:[%s265 + $0x24] sm:$0xf]
      %v273 = vld [vmem:[%s265 + $0x28] sm:$0xf]
      %v274 = vld [vmem:[%s265 + $0x30] sm:$0xf]
      %v275 = vld [vmem:[%s265 + $0x34] sm:$0xf]
      %v276 = vld [vmem:[%s265 + $0x3c] sm:$0xf]
      %v277 = vld [vmem:[%s265 + $0x40] sm:$0xf]
      %v278 = vld [vmem:[%s265 + $0x48] sm:$0xf]
      %v279 = vld [vmem:[%s265 + $0x4c] sm:$0xf]
      %v280 = vld [vmem:[%s265 + $0x54] sm:$0xf]
      %v281 = vld [vmem:[%s265 + $0x58] sm:$0xf]
      %v282 = vld [vmem:[%s265 + $0x60] sm:$0xf]
      %v283 = vld [vmem:[%s265 + $0x64] sm:$0xf]
      %v284 = vld [vmem:[%s265 + $0x6c] sm:$0xf]
      %v285 = vld [vmem:[%s265 + $0x70] sm:$0xf]
      %v286 = vld [vmem:[%s265 + $0x78] sm:$0xf]
      %v287 = vld [vmem:[%s265 + $0x7c] sm:$0xf]
      %v288 = vld [vmem:[%s265 + $0x84] sm:$0xf]
      %v289 = vld [vmem:[%s265 + $0x88] sm:$0xf]
      %v290 = vld [vmem:[%s265 + $0x90] sm:$0xf]
      %v291 = vld [vmem:[%s265 + $0x94] sm:$0xf]
      %v292 = vld [vmem:[%s265 + $0x9c] sm:$0xf]
      %v293 = vld [vmem:[%s265 + $0xa0] sm:$0xf]
      %v294 = vld [vmem:[%s265 + $0xa8] sm:$0xf]
      %v295 = vld [vmem:[%s265 + $0xac] sm:$0xf]
      %v296 = vld [vmem:[%s265 + $0xb4] sm:$0xf]
      %v297 = vld [vmem:[%s265 + $0xb8] sm:$0xf]
      %v298 = vld [vmem:[%s1] sm:$0xf]
      %v299 = vld [vmem:[%s1 + $0x4] sm:$0xf]
      %v300 = vld [vmem:[%s1 + $0x8] sm:$0xf]
      %v301 = vld [vmem:[%s1 + $0xc] sm:$0xf]
      %v302 = vld [vmem:[%s1 + $0x10] sm:$0xf]
      %v303 = vld [vmem:[%s1 + $0x14] sm:$0xf]
      %v304 = vld [vmem:[%s1 + $0x18] sm:$0xf]
      %v305 = vld [vmem:[%s1 + $0x1c] sm:$0xf]
      %v306 = vld [vmem:[%s1 + $0x20] sm:$0xf]
      %v307 = vld [vmem:[%s1 + $0x24] sm:$0xf]
      %v308 = vld [vmem:[%s1 + $0x28] sm:$0xf]
      %v309 = vld [vmem:[%s1 + $0x2c] sm:$0xf]
      %v310 = vld [vmem:[%s1 + $0x30] sm:$0xf]
      %v311 = vld [vmem:[%s1 + $0x34] sm:$0xf]
      %v312 = vld [vmem:[%s1 + $0x38] sm:$0xf]
      %v313 = vld [vmem:[%s1 + $0x3c] sm:$0xf]
      %v314 = vld [vmem:[%s265 + $0x8] sm:$0x1]
      %v315 = vld [vmem:[%s265 + $0x14] sm:$0x1]
      %v316 = vld [vmem:[%s265 + $0x20] sm:$0x1]
      %v317 = vld [vmem:[%s265 + $0x2c] sm:$0x1]
      %v318 = vld [vmem:[%s265 + $0x38] sm:$0x1]
      %v319 = vld [vmem:[%s265 + $0x44] sm:$0x1]
      %v320 = vld [vmem:[%s265 + $0x50] sm:$0x1]
      %v321 = vld [vmem:[%s265 + $0x5c] sm:$0x1]
      %v322 = vld [vmem:[%s265 + $0x68] sm:$0x1]
      %v323 = vld [vmem:[%s265 + $0x74] sm:$0x1]
      %v324 = vld [vmem:[%s265 + $0x80] sm:$0x1]
      %v325 = vld [vmem:[%s265 + $0x8c] sm:$0x1]
      %v326 = vld [vmem:[%s265 + $0x98] sm:$0x1]
      %v327 = vld [vmem:[%s265 + $0xa4] sm:$0x1]
      %v328 = vld [vmem:[%s265 + $0xb0] sm:$0x1]
      %v329 = vld [vmem:[%s265 + $0xbc] sm:$0x1]
      %vm330 = vsmask.f32 3328
      %vm331 = vsmask.f32 7440
      %vm332 = vmor %vm330, %vm331
      %v334 = vshrl.u32 %v266, 16
      %v336 = vrot.slane %v334, 4
      %v337 = vshll.u32 %v266, 16
      %v339 = vrot.slane %v337, 5
      %v340 = vor.u32 %v336, %v339
      %v341 = vrot.slane %v340, 4
      %v343 = vshll.u32 %v267, 16
      %v345 = vrot.slane %v343, 5
      %v346 = vsel %vm332, %v341, %v345
      %v347 = vshrl.u32 %v267, 16
      %v349 = vrot.slane %v347, 4
      %v350 = vor.u32 %v349, %v345
      %v351 = vrot.slane %v350, 4
      %v353 = vshll.u32 %v314, 16
      %v355 = vrot.slane %v353, 5
      %v356 = vsel %vm332, %v351, %v355
      %v358 = vshrl.u32 %v268, 16
      %v360 = vrot.slane %v358, 4
      %v361 = vshll.u32 %v268, 16
      %v363 = vrot.slane %v361, 5
      %v364 = vor.u32 %v360, %v363
      %v365 = vrot.slane %v364, 4
      %v367 = vshll.u32 %v269, 16
      %v369 = vrot.slane %v367, 5
      %v370 = vsel %vm332, %v365, %v369
      %v371 = vshrl.u32 %v269, 16
      %v373 = vrot.slane %v371, 4
      %v374 = vor.u32 %v373, %v369
      %v375 = vrot.slane %v374, 4
      %v377 = vshll.u32 %v315, 16
      %v379 = vrot.slane %v377, 5
      %v380 = vsel %vm332, %v375, %v379
      %v382 = vshrl.u32 %v270, 16
      %v384 = vrot.slane %v382, 4
      %v385 = vshll.u32 %v270, 16
      %v387 = vrot.slane %v385, 5
      %v388 = vor.u32 %v384, %v387
      %v389 = vrot.slane %v388, 4
      %v391 = vshll.u32 %v271, 16
      %v393 = vrot.slane %v391, 5
      %v394 = vsel %vm332, %v389, %v393
      %v395 = vshrl.u32 %v271, 16
      %v397 = vrot.slane %v395, 4
      %v398 = vor.u32 %v397, %v393
      %v399 = vrot.slane %v398, 4
      %v401 = vshll.u32 %v316, 16
      %v403 = vrot.slane %v401, 5
      %v404 = vsel %vm332, %v399, %v403
      %v406 = vshrl.u32 %v272, 16
      %v408 = vrot.slane %v406, 4
      %v409 = vshll.u32 %v272, 16
      %v411 = vrot.slane %v409, 5
      %v412 = vor.u32 %v408, %v411
      %v413 = vrot.slane %v412, 4
      %v415 = vshll.u32 %v273, 16
      %v417 = vrot.slane %v415, 5
      %v418 = vsel %vm332, %v413, %v417
      %v419 = vshrl.u32 %v273, 16
      %v421 = vrot.slane %v419, 4
      %v422 = vor.u32 %v421, %v417
      %v423 = vrot.slane %v422, 4
      %v425 = vshll.u32 %v317, 16
      %v427 = vrot.slane %v425, 5
      %v428 = vsel %vm332, %v423, %v427
      %v430 = vshrl.u32 %v274, 16
      %v432 = vrot.slane %v430, 4
      %v433 = vshll.u32 %v274, 16
      %v435 = vrot.slane %v433, 5
      %v436 = vor.u32 %v432, %v435
      %v437 = vrot.slane %v436, 4
      %v439 = vshll.u32 %v275, 16
      %v441 = vrot.slane %v439, 5
      %v442 = vsel %vm332, %v437, %v441
      %v443 = vshrl.u32 %v275, 16
      %v445 = vrot.slane %v443, 4
      %v446 = vor.u32 %v445, %v441
      %v447 = vrot.slane %v446, 4
      %v449 = vshll.u32 %v318, 16
      %v451 = vrot.slane %v449, 5
      %v452 = vsel %vm332, %v447, %v451
      %v454 = vshrl.u32 %v276, 16
      %v456 = vrot.slane %v454, 4
      %v457 = vshll.u32 %v276, 16
      %v459 = vrot.slane %v457, 5
      %v460 = vor.u32 %v456, %v459
      %v461 = vrot.slane %v460, 4
      %v463 = vshll.u32 %v277, 16
      %v465 = vrot.slane %v463, 5
      %v466 = vsel %vm332, %v461, %v465
      %v467 = vshrl.u32 %v277, 16
      %v469 = vrot.slane %v467, 4
      %v470 = vor.u32 %v469, %v465
      %v471 = vrot.slane %v470, 4
      %v473 = vshll.u32 %v319, 16
      %v475 = vrot.slane %v473, 5
      %v476 = vsel %vm332, %v471, %v475
      %v478 = vshrl.u32 %v278, 16
      %v480 = vrot.slane %v478, 4
      %v481 = vshll.u32 %v278, 16
      %v483 = vrot.slane %v481, 5
      %v484 = vor.u32 %v480, %v483
      %v485 = vrot.slane %v484, 4
      %v487 = vshll.u32 %v279, 16
      %v489 = vrot.slane %v487, 5
      %v490 = vsel %vm332, %v485, %v489
      %v491 = vshrl.u32 %v279, 16
      %v493 = vrot.slane %v491, 4
      %v494 = vor.u32 %v493, %v489
      %v495 = vrot.slane %v494, 4
      %v497 = vshll.u32 %v320, 16
      %v499 = vrot.slane %v497, 5
      %v500 = vsel %vm332, %v495, %v499
      %v502 = vshrl.u32 %v280, 16
      %v504 = vrot.slane %v502, 4
      %v505 = vshll.u32 %v280, 16
      %v507 = vrot.slane %v505, 5
      %v508 = vor.u32 %v504, %v507
      %v509 = vrot.slane %v508, 4
      %v511 = vshll.u32 %v281, 16
      %v513 = vrot.slane %v511, 5
      %v514 = vsel %vm332, %v509, %v513
      %v515 = vshrl.u32 %v281, 16
      %v517 = vrot.slane %v515, 4
      %v518 = vor.u32 %v517, %v513
      %v519 = vrot.slane %v518, 4
      %v521 = vshll.u32 %v321, 16
      %v523 = vrot.slane %v521, 5
      %v524 = vsel %vm332, %v519, %v523
      %v526 = vshrl.u32 %v282, 16
      %v528 = vrot.slane %v526, 4
      %v529 = vshll.u32 %v282, 16
      %v531 = vrot.slane %v529, 5
      %v532 = vor.u32 %v528, %v531
      %v533 = vrot.slane %v532, 4
      %v535 = vshll.u32 %v283, 16
      %v537 = vrot.slane %v535, 5
      %v538 = vsel %vm332, %v533, %v537
      %v539 = vshrl.u32 %v283, 16
      %v541 = vrot.slane %v539, 4
      %v542 = vor.u32 %v541, %v537
      %v543 = vrot.slane %v542, 4
      %v545 = vshll.u32 %v322, 16
      %v547 = vrot.slane %v545, 5
      %v548 = vsel %vm332, %v543, %v547
      %v550 = vshrl.u32 %v284, 16
      %v552 = vrot.slane %v550, 4
      %v553 = vshll.u32 %v284, 16
      %v555 = vrot.slane %v553, 5
      %v556 = vor.u32 %v552, %v555
      %v557 = vrot.slane %v556, 4
      %v559 = vshll.u32 %v285, 16
      %v561 = vrot.slane %v559, 5
      %v562 = vsel %vm332, %v557, %v561
      %v563 = vshrl.u32 %v285, 16
      %v565 = vrot.slane %v563, 4
      %v566 = vor.u32 %v565, %v561
      %v567 = vrot.slane %v566, 4
      %v569 = vshll.u32 %v323, 16
      %v571 = vrot.slane %v569, 5
      %v572 = vsel %vm332, %v567, %v571
      %v574 = vshrl.u32 %v286, 16
      %v576 = vrot.slane %v574, 4
      %v577 = vshll.u32 %v286, 16
      %v579 = vrot.slane %v577, 5
      %v580 = vor.u32 %v576, %v579
      %v581 = vrot.slane %v580, 4
      %v583 = vshll.u32 %v287, 16
      %v585 = vrot.slane %v583, 5
      %v586 = vsel %vm332, %v581, %v585
      %v587 = vshrl.u32 %v287, 16
      %v589 = vrot.slane %v587, 4
      %v590 = vor.u32 %v589, %v585
      %v591 = vrot.slane %v590, 4
      %v593 = vshll.u32 %v324, 16
      %v595 = vrot.slane %v593, 5
      %v596 = vsel %vm332, %v591, %v595
      %v598 = vshrl.u32 %v288, 16
      %v600 = vrot.slane %v598, 4
      %v601 = vshll.u32 %v288, 16
      %v603 = vrot.slane %v601, 5
      %v604 = vor.u32 %v600, %v603
      %v605 = vrot.slane %v604, 4
      %v607 = vshll.u32 %v289, 16
      %v609 = vrot.slane %v607, 5
      %v610 = vsel %vm332, %v605, %v609
      %v611 = vshrl.u32 %v289, 16
      %v613 = vrot.slane %v611, 4
      %v614 = vor.u32 %v613, %v609
      %v615 = vrot.slane %v614, 4
      %v617 = vshll.u32 %v325, 16
      %v619 = vrot.slane %v617, 5
      %v620 = vsel %vm332, %v615, %v619
      %v622 = vshrl.u32 %v290, 16
      %v624 = vrot.slane %v622, 4
      %v625 = vshll.u32 %v290, 16
      %v627 = vrot.slane %v625, 5
      %v628 = vor.u32 %v624, %v627
      %v629 = vrot.slane %v628, 4
      %v631 = vshll.u32 %v291, 16
      %v633 = vrot.slane %v631, 5
      %v634 = vsel %vm332, %v629, %v633
      %v635 = vshrl.u32 %v291, 16
      %v637 = vrot.slane %v635, 4
      %v638 = vor.u32 %v637, %v633
      %v639 = vrot.slane %v638, 4
      %v641 = vshll.u32 %v326, 16
      %v643 = vrot.slane %v641, 5
      %v644 = vsel %vm332, %v639, %v643
      %v646 = vshrl.u32 %v292, 16
      %v648 = vrot.slane %v646, 4
      %v649 = vshll.u32 %v292, 16
      %v651 = vrot.slane %v649, 5
      %v652 = vor.u32 %v648, %v651
      %v653 = vrot.slane %v652, 4
      %v655 = vshll.u32 %v293, 16
      %v657 = vrot.slane %v655, 5
      %v658 = vsel %vm332, %v653, %v657
      %v659 = vshrl.u32 %v293, 16
      %v661 = vrot.slane %v659, 4
      %v662 = vor.u32 %v661, %v657
      %v663 = vrot.slane %v662, 4
      %v665 = vshll.u32 %v327, 16
      %v667 = vrot.slane %v665, 5
      %v668 = vsel %vm332, %v663, %v667
      %v670 = vshrl.u32 %v294, 16
      %v672 = vrot.slane %v670, 4
      %v673 = vshll.u32 %v294, 16
      %v675 = vrot.slane %v673, 5
      %v676 = vor.u32 %v672, %v675
      %v677 = vrot.slane %v676, 4
      %v679 = vshll.u32 %v295, 16
      %v681 = vrot.slane %v679, 5
      %v682 = vsel %vm332, %v677, %v681
      %v683 = vshrl.u32 %v295, 16
      %v685 = vrot.slane %v683, 4
      %v686 = vor.u32 %v685, %v681
      %v687 = vrot.slane %v686, 4
      %v689 = vshll.u32 %v328, 16
      %v691 = vrot.slane %v689, 5
      %v692 = vsel %vm332, %v687, %v691
      %v694 = vshrl.u32 %v296, 16
      %v696 = vrot.slane %v694, 4
      %v697 = vshll.u32 %v296, 16
      %v699 = vrot.slane %v697, 5
      %v700 = vor.u32 %v696, %v699
      %v701 = vrot.slane %v700, 4
      %v703 = vshll.u32 %v297, 16
      %v705 = vrot.slane %v703, 5
      %v706 = vsel %vm332, %v701, %v705
      %v707 = vshrl.u32 %v297, 16
      %v709 = vrot.slane %v707, 4
      %v710 = vor.u32 %v709, %v705
      %v711 = vrot.slane %v710, 4
      %v713 = vshll.u32 %v329, 16
      %v715 = vrot.slane %v713, 5
      %v716 = vsel %vm332, %v711, %v715
      %s717 = scalar_lea.vmem %s1, 64
      %v718 = vld [vmem:[%s717] sm:$0xf]
      %v719 = vld [vmem:[%s717 + $0x4] sm:$0xf]
      %v720 = vld [vmem:[%s717 + $0x8] sm:$0xf]
      %v721 = vld [vmem:[%s717 + $0xc] sm:$0xf]
      %v722 = vld [vmem:[%s717 + $0x10] sm:$0xf]
      %v723 = vld [vmem:[%s717 + $0x14] sm:$0xf]
      %v724 = vld [vmem:[%s717 + $0x18] sm:$0xf]
      %v725 = vld [vmem:[%s717 + $0x1c] sm:$0xf]
      %v726 = vld [vmem:[%s717 + $0x20] sm:$0xf]
      %v727 = vld [vmem:[%s717 + $0x24] sm:$0xf]
      %v728 = vld [vmem:[%s717 + $0x28] sm:$0xf]
      %v729 = vld [vmem:[%s717 + $0x2c] sm:$0xf]
      %v730 = vld [vmem:[%s717 + $0x30] sm:$0xf]
      %v731 = vld [vmem:[%s717 + $0x34] sm:$0xf]
      %v732 = vld [vmem:[%s717 + $0x38] sm:$0xf]
      %v733 = vld [vmem:[%s717 + $0x3c] sm:$0xf]
      %v734 = vunpack.c.l.b16 %v346
      %v735 = vunpack.c.l.b16 %v356
      %v736 = vunpack.c.l.b16 %v370
      %v737 = vunpack.c.l.b16 %v380
      %v738 = vunpack.c.l.b16 %v394
      %v739 = vunpack.c.l.b16 %v404
      %v740 = vunpack.c.l.b16 %v418
      %v741 = vunpack.c.l.b16 %v428
      %v742 = vunpack.c.l.b16 %v442
      %v743 = vunpack.c.l.b16 %v452
      %v744 = vunpack.c.l.b16 %v466
      %v745 = vunpack.c.l.b16 %v476
      %v746 = vunpack.c.l.b16 %v490
      %v747 = vunpack.c.l.b16 %v500
      %v748 = vunpack.c.l.b16 %v514
      %v749 = vunpack.c.l.b16 %v524
      %v750 = vunpack.c.l.b16 %v538
      %v751 = vunpack.c.l.b16 %v548
      %v752 = vunpack.c.l.b16 %v562
      %v753 = vunpack.c.l.b16 %v572
      %v754 = vunpack.c.l.b16 %v586
      %v755 = vunpack.c.l.b16 %v596
      %v756 = vunpack.c.l.b16 %v610
      %v757 = vunpack.c.l.b16 %v620
      %v758 = vunpack.c.l.b16 %v634
      %v759 = vunpack.c.l.b16 %v644
      %v760 = vunpack.c.l.b16 %v658
      %v761 = vunpack.c.l.b16 %v668
      %v762 = vunpack.c.l.b16 %v682
      %v763 = vunpack.c.l.b16 %v692
      %v764 = vunpack.c.l.b16 %v706
      %v765 = vunpack.c.l.b16 %v716
      %v766 = vpack.c.b16 %v735, %v734
      %v767 = vpack.c.b16 %v737, %v736
      %v768 = vpack.c.b16 %v739, %v738
      %v769 = vpack.c.b16 %v741, %v740
      %v770 = vpack.c.b16 %v743, %v742
      %v771 = vpack.c.b16 %v745, %v744
      %v772 = vpack.c.b16 %v747, %v746
      %v773 = vpack.c.b16 %v749, %v748
      %v774 = vpack.c.b16 %v751, %v750
      %v775 = vpack.c.b16 %v753, %v752
      %v776 = vpack.c.b16 %v755, %v754
      %v777 = vpack.c.b16 %v757, %v756
      %v778 = vpack.c.b16 %v759, %v758
      %v779 = vpack.c.b16 %v761, %v760
      %v780 = vpack.c.b16 %v763, %v762
      %v781 = vpack.c.b16 %v765, %v764
      %v814 = vunpack.c.l.b16 %v718
      %v815 = vunpack.c.l.b16 %v719
      %v816 = vunpack.c.l.b16 %v720
      %v817 = vunpack.c.l.b16 %v721
      %v818 = vunpack.c.l.b16 %v722
      %v819 = vunpack.c.l.b16 %v723
      %v820 = vunpack.c.l.b16 %v724
      %v821 = vunpack.c.l.b16 %v725
      %v822 = vunpack.c.l.b16 %v726
      %v823 = vunpack.c.l.b16 %v727
      %v824 = vunpack.c.l.b16 %v728
      %v825 = vunpack.c.l.b16 %v729
      %v826 = vunpack.c.l.b16 %v730
      %v827 = vunpack.c.l.b16 %v731
      %v828 = vunpack.c.l.b16 %v732
      %v829 = vunpack.c.l.b16 %v733
      %v830 = vpack.c.b16 %v815, %v814
      %v831 = vpack.c.b16 %v817, %v816
      %v832 = vpack.c.b16 %v819, %v818
      %v833 = vpack.c.b16 %v821, %v820
      %v834 = vpack.c.b16 %v823, %v822
      %v835 = vpack.c.b16 %v825, %v824
      %v836 = vpack.c.b16 %v827, %v826
      %v837 = vpack.c.b16 %v829, %v828
      %846 = vmatpush.bf16.msra.mxu0 %v837
      %847 = vmatpush.bf16.msra.mxu0 %v836
      %848 = vmatpush.bf16.msra.mxu0 %v835
      %849 = vmatpush.bf16.msra.mxu0 %v834
      %850 = vmatpush.bf16.msra.mxu0 %v833
      %851 = vmatpush.bf16.msra.mxu0 %v832
      %852 = vmatpush.bf16.msra.mxu0 %v831
      %853 = vmatpush.bf16.msra.mxu0 %v830
      %854 = vmatmul.bf16.gmra.mxu0 %v766
      %v855 = vpop.f32.mrf.mxu0
      %v856 = vadd.f32 0.0, %v855
      %v857 = vpop.f32.mrf.mxu0
      %v858 = vadd.f32 0.0, %v857
      %859 = vmatmul.bf16.gmra.mxu0 %v767
      %v860 = vpop.f32.mrf.mxu0
      %v861 = vadd.f32 0.0, %v860
      %v862 = vpop.f32.mrf.mxu0
      %v863 = vadd.f32 0.0, %v862
      %864 = vmatmul.bf16.gmra.mxu0 %v768
      %v865 = vpop.f32.mrf.mxu0
      %v866 = vadd.f32 0.0, %v865
      %v867 = vpop.f32.mrf.mxu0
      %v868 = vadd.f32 0.0, %v867
      %869 = vmatmul.bf16.gmra.mxu0 %v769
      %v870 = vpop.f32.mrf.mxu0
      %v871 = vadd.f32 0.0, %v870
      %v872 = vpop.f32.mrf.mxu0
      %v873 = vadd.f32 0.0, %v872
      %874 = vmatmul.bf16.gmra.mxu0 %v770
      %v875 = vpop.f32.mrf.mxu0
      %v876 = vadd.f32 0.0, %v875
      %v877 = vpop.f32.mrf.mxu0
      %v878 = vadd.f32 0.0, %v877
      %879 = vmatmul.bf16.gmra.mxu0 %v771
      %v880 = vpop.f32.mrf.mxu0
      %v881 = vadd.f32 0.0, %v880
      %v882 = vpop.f32.mrf.mxu0
      %v883 = vadd.f32 0.0, %v882
      %884 = vmatmul.bf16.gmra.mxu0 %v772
      %v885 = vpop.f32.mrf.mxu0
      %v886 = vadd.f32 0.0, %v885
      %v887 = vpop.f32.mrf.mxu0
      %v888 = vadd.f32 0.0, %v887
      %889 = vmatmul.bf16.gmra.mxu0 %v773
      %v890 = vpop.f32.mrf.mxu0
      %v891 = vadd.f32 0.0, %v890
      %v892 = vpop.f32.mrf.mxu0
      %v893 = vadd.f32 0.0, %v892
      %894 = vmatmul.bf16.gmra.mxu0 %v774
      %v895 = vpop.f32.mrf.mxu0
      %v896 = vadd.f32 0.0, %v895
      %v897 = vpop.f32.mrf.mxu0
      %v898 = vadd.f32 0.0, %v897
      %899 = vmatmul.bf16.gmra.mxu0 %v775
      %v900 = vpop.f32.mrf.mxu0
      %v901 = vadd.f32 0.0, %v900
      %v902 = vpop.f32.mrf.mxu0
      %v903 = vadd.f32 0.0, %v902
      %904 = vmatmul.bf16.gmra.mxu0 %v776
      %v905 = vpop.f32.mrf.mxu0
      %v906 = vadd.f32 0.0, %v905
      %v907 = vpop.f32.mrf.mxu0
      %v908 = vadd.f32 0.0, %v907
      %909 = vmatmul.bf16.gmra.mxu0 %v777
      %v910 = vpop.f32.mrf.mxu0
      %v911 = vadd.f32 0.0, %v910
      %v912 = vpop.f32.mrf.mxu0
      %v913 = vadd.f32 0.0, %v912
      %914 = vmatmul.bf16.gmra.mxu0 %v778
      %v915 = vpop.f32.mrf.mxu0
      %v916 = vadd.f32 0.0, %v915
      %v917 = vpop.f32.mrf.mxu0
      %v918 = vadd.f32 0.0, %v917
      %919 = vmatmul.bf16.gmra.mxu0 %v779
      %v920 = vpop.f32.mrf.mxu0
      %v921 = vadd.f32 0.0, %v920
      %v922 = vpop.f32.mrf.mxu0
      %v923 = vadd.f32 0.0, %v922
      %924 = vmatmul.bf16.gmra.mxu0 %v780
      %v925 = vpop.f32.mrf.mxu0
      %v926 = vadd.f32 0.0, %v925
      %v927 = vpop.f32.mrf.mxu0
      %v928 = vadd.f32 0.0, %v927
      %929 = vmatmul.bf16.gmra.mxu0 %v781
      %v930 = vpop.f32.mrf.mxu0
      %v931 = vadd.f32 0.0, %v930
      %v932 = vpop.f32.mrf.mxu0
      %v933 = vadd.f32 0.0, %v932
      %934 = vdwg.mxu0
      %v967 = vunpack.c.l.b16 %v266
      %v968 = vunpack.c.l.b16 %v267
      %v969 = vunpack.c.l.b16 %v268
      %v970 = vunpack.c.l.b16 %v269
      %v971 = vunpack.c.l.b16 %v270
      %v972 = vunpack.c.l.b16 %v271
      %v973 = vunpack.c.l.b16 %v272
      %v974 = vunpack.c.l.b16 %v273
      %v975 = vunpack.c.l.b16 %v274
      %v976 = vunpack.c.l.b16 %v275
      %v977 = vunpack.c.l.b16 %v276
      %v978 = vunpack.c.l.b16 %v277
      %v979 = vunpack.c.l.b16 %v278
      %v980 = vunpack.c.l.b16 %v279
      %v981 = vunpack.c.l.b16 %v280
      %v982 = vunpack.c.l.b16 %v281
      %v983 = vunpack.c.l.b16 %v282
      %v984 = vunpack.c.l.b16 %v283
      %v985 = vunpack.c.l.b16 %v284
      %v986 = vunpack.c.l.b16 %v285
      %v987 = vunpack.c.l.b16 %v286
      %v988 = vunpack.c.l.b16 %v287
      %v989 = vunpack.c.l.b16 %v288
      %v990 = vunpack.c.l.b16 %v289
      %v991 = vunpack.c.l.b16 %v290
      %v992 = vunpack.c.l.b16 %v291
      %v993 = vunpack.c.l.b16 %v292
      %v994 = vunpack.c.l.b16 %v293
      %v995 = vunpack.c.l.b16 %v294
      %v996 = vunpack.c.l.b16 %v295
      %v997 = vunpack.c.l.b16 %v296
      %v998 = vunpack.c.l.b16 %v297
      %v999 = vpack.c.b16 %v968, %v967
      %v1000 = vpack.c.b16 %v970, %v969
      %v1001 = vpack.c.b16 %v972, %v971
      %v1002 = vpack.c.b16 %v974, %v973
      %v1003 = vpack.c.b16 %v976, %v975
      %v1004 = vpack.c.b16 %v978, %v977
      %v1005 = vpack.c.b16 %v980, %v979
      %v1006 = vpack.c.b16 %v982, %v981
      %v1007 = vpack.c.b16 %v984, %v983
      %v1008 = vpack.c.b16 %v986, %v985
      %v1009 = vpack.c.b16 %v988, %v987
      %v1010 = vpack.c.b16 %v990, %v989
      %v1011 = vpack.c.b16 %v992, %v991
      %v1012 = vpack.c.b16 %v994, %v993
      %v1013 = vpack.c.b16 %v996, %v995
      %v1014 = vpack.c.b16 %v998, %v997
      %v1047 = vunpack.c.l.b16 %v298
      %v1048 = vunpack.c.l.b16 %v299
      %v1049 = vunpack.c.l.b16 %v300
      %v1050 = vunpack.c.l.b16 %v301
      %v1051 = vunpack.c.l.b16 %v302
      %v1052 = vunpack.c.l.b16 %v303
      %v1053 = vunpack.c.l.b16 %v304
      %v1054 = vunpack.c.l.b16 %v305
      %v1055 = vunpack.c.l.b16 %v306
      %v1056 = vunpack.c.l.b16 %v307
      %v1057 = vunpack.c.l.b16 %v308
      %v1058 = vunpack.c.l.b16 %v309
      %v1059 = vunpack.c.l.b16 %v310
      %v1060 = vunpack.c.l.b16 %v311
      %v1061 = vunpack.c.l.b16 %v312
      %v1062 = vunpack.c.l.b16 %v313
      %v1063 = vpack.c.b16 %v1048, %v1047
      %v1064 = vpack.c.b16 %v1050, %v1049
      %v1065 = vpack.c.b16 %v1052, %v1051
      %v1066 = vpack.c.b16 %v1054, %v1053
      %v1067 = vpack.c.b16 %v1056, %v1055
      %v1068 = vpack.c.b16 %v1058, %v1057
      %v1069 = vpack.c.b16 %v1060, %v1059
      %v1070 = vpack.c.b16 %v1062, %v1061
      %1079 = vmatpush.bf16.msra.mxu0 %v1070
      %1080 = vmatpush.bf16.msra.mxu0 %v1069
      %1081 = vmatpush.bf16.msra.mxu0 %v1068
      %1082 = vmatpush.bf16.msra.mxu0 %v1067
      %1083 = vmatpush.bf16.msra.mxu0 %v1066
      %1084 = vmatpush.bf16.msra.mxu0 %v1065
      %1085 = vmatpush.bf16.msra.mxu0 %v1064
      %1086 = vmatpush.bf16.msra.mxu0 %v1063
      %1087 = vmatmul.bf16.gmra.mxu0 %v999
      %v1088 = vpop.f32.mrf.mxu0
      %v1089 = vadd.f32 %v856, %v1088
      %v1090 = vpop.f32.mrf.mxu0
      %v1091 = vadd.f32 %v858, %v1090
      %1092 = vmatmul.bf16.gmra.mxu0 %v1000
      %v1093 = vpop.f32.mrf.mxu0
      %v1094 = vadd.f32 %v861, %v1093
      %v1095 = vpop.f32.mrf.mxu0
      %v1096 = vadd.f32 %v863, %v1095
      %1097 = vmatmul.bf16.gmra.mxu0 %v1001
      %v1098 = vpop.f32.mrf.mxu0
      %v1099 = vadd.f32 %v866, %v1098
      %v1100 = vpop.f32.mrf.mxu0
      %v1101 = vadd.f32 %v868, %v1100
      %1102 = vmatmul.bf16.gmra.mxu0 %v1002
      %v1103 = vpop.f32.mrf.mxu0
      %v1104 = vadd.f32 %v871, %v1103
      %v1105 = vpop.f32.mrf.mxu0
      %v1106 = vadd.f32 %v873, %v1105
      %1107 = vmatmul.bf16.gmra.mxu0 %v1003
      %v1108 = vpop.f32.mrf.mxu0
      %v1109 = vadd.f32 %v876, %v1108
      %v1110 = vpop.f32.mrf.mxu0
      %v1111 = vadd.f32 %v878, %v1110
      %1112 = vmatmul.bf16.gmra.mxu0 %v1004
      %v1113 = vpop.f32.mrf.mxu0
      %v1114 = vadd.f32 %v881, %v1113
      %v1115 = vpop.f32.mrf.mxu0
      %v1116 = vadd.f32 %v883, %v1115
      %1117 = vmatmul.bf16.gmra.mxu0 %v1005
      %v1118 = vpop.f32.mrf.mxu0
      %v1119 = vadd.f32 %v886, %v1118
      %v1120 = vpop.f32.mrf.mxu0
      %v1121 = vadd.f32 %v888, %v1120
      %1122 = vmatmul.bf16.gmra.mxu0 %v1006
      %v1123 = vpop.f32.mrf.mxu0
      %v1124 = vadd.f32 %v891, %v1123
      %v1125 = vpop.f32.mrf.mxu0
      %v1126 = vadd.f32 %v893, %v1125
      %1127 = vmatmul.bf16.gmra.mxu0 %v1007
      %v1128 = vpop.f32.mrf.mxu0
      %v1129 = vadd.f32 %v896, %v1128
      %v1130 = vpop.f32.mrf.mxu0
      %v1131 = vadd.f32 %v898, %v1130
      %1132 = vmatmul.bf16.gmra.mxu0 %v1008
      %v1133 = vpop.f32.mrf.mxu0
      %v1134 = vadd.f32 %v901, %v1133
      %v1135 = vpop.f32.mrf.mxu0
      %v1136 = vadd.f32 %v903, %v1135
      %1137 = vmatmul.bf16.gmra.mxu0 %v1009
      %v1138 = vpop.f32.mrf.mxu0
      %v1139 = vadd.f32 %v906, %v1138
      %v1140 = vpop.f32.mrf.mxu0
      %v1141 = vadd.f32 %v908, %v1140
      %1142 = vmatmul.bf16.gmra.mxu0 %v1010
      %v1143 = vpop.f32.mrf.mxu0
      %v1144 = vadd.f32 %v911, %v1143
      %v1145 = vpop.f32.mrf.mxu0
      %v1146 = vadd.f32 %v913, %v1145
      %1147 = vmatmul.bf16.gmra.mxu0 %v1011
      %v1148 = vpop.f32.mrf.mxu0
      %v1149 = vadd.f32 %v916, %v1148
      %v1150 = vpop.f32.mrf.mxu0
      %v1151 = vadd.f32 %v918, %v1150
      %1152 = vmatmul.bf16.gmra.mxu0 %v1012
      %v1153 = vpop.f32.mrf.mxu0
      %v1154 = vadd.f32 %v921, %v1153
      %v1155 = vpop.f32.mrf.mxu0
      %v1156 = vadd.f32 %v923, %v1155
      %1157 = vmatmul.bf16.gmra.mxu0 %v1013
      %v1158 = vpop.f32.mrf.mxu0
      %v1159 = vadd.f32 %v926, %v1158
      %v1160 = vpop.f32.mrf.mxu0
      %v1161 = vadd.f32 %v928, %v1160
      %1162 = vmatmul.bf16.gmra.mxu0 %v1014
      %v1163 = vpop.f32.mrf.mxu0
      %v1164 = vadd.f32 %v931, %v1163
      %v1165 = vpop.f32.mrf.mxu0
      %v1166 = vadd.f32 %v933, %v1165
      %1167 = vdwg.mxu0
      %v1168 = vld [vmem:[%s265] sm:$0xe]
      %v1169 = vld [vmem:[%s265 + $0xc] sm:$0xe]
      %v1170 = vld [vmem:[%s265 + $0x18] sm:$0xe]
      %v1171 = vld [vmem:[%s265 + $0x24] sm:$0xe]
      %v1172 = vld [vmem:[%s265 + $0x30] sm:$0xe]
      %v1173 = vld [vmem:[%s265 + $0x3c] sm:$0xe]
      %v1174 = vld [vmem:[%s265 + $0x48] sm:$0xe]
      %v1175 = vld [vmem:[%s265 + $0x54] sm:$0xe]
      %v1176 = vld [vmem:[%s265 + $0x60] sm:$0xe]
      %v1177 = vld [vmem:[%s265 + $0x6c] sm:$0xe]
      %v1178 = vld [vmem:[%s265 + $0x78] sm:$0xe]
      %v1179 = vld [vmem:[%s265 + $0x84] sm:$0xe]
      %v1180 = vld [vmem:[%s265 + $0x90] sm:$0xe]
      %v1181 = vld [vmem:[%s265 + $0x9c] sm:$0xe]
      %v1182 = vld [vmem:[%s265 + $0xa8] sm:$0xe]
      %v1183 = vld [vmem:[%s265 + $0xb4] sm:$0xe]
      %vm1216 = vcmask 1042432
      %vm1217 = vcmask 1046532
      %vm1218 = vmor %vm1216, %vm1217
      %v1219 = vrot.slane %v1168, 5
      %v1220 = vrot.slane %v1219, 4
      %v1221 = vrot.slane %v267, 5
      %v1222 = vsel %vm1218, %v1220, %v1221
      %v1223 = vrot.slane %v1221, 4
      %v1224 = vrot.slane %v314, 5
      %v1225 = vsel %vm1218, %v1223, %v1224
      %v1226 = vrot.slane %v1169, 5
      %v1227 = vrot.slane %v1226, 4
      %v1228 = vrot.slane %v269, 5
      %v1229 = vsel %vm1218, %v1227, %v1228
      %v1230 = vrot.slane %v1228, 4
      %v1231 = vrot.slane %v315, 5
      %v1232 = vsel %vm1218, %v1230, %v1231
      %v1233 = vrot.slane %v1170, 5
      %v1234 = vrot.slane %v1233, 4
      %v1235 = vrot.slane %v271, 5
      %v1236 = vsel %vm1218, %v1234, %v1235
      %v1237 = vrot.slane %v1235, 4
      %v1238 = vrot.slane %v316, 5
      %v1239 = vsel %vm1218, %v1237, %v1238
      %v1240 = vrot.slane %v1171, 5
      %v1241 = vrot.slane %v1240, 4
      %v1242 = vrot.slane %v273, 5
      %v1243 = vsel %vm1218, %v1241, %v1242
      %v1244 = vrot.slane %v1242, 4
      %v1245 = vrot.slane %v317, 5
      %v1246 = vsel %vm1218, %v1244, %v1245
      %v1247 = vrot.slane %v1172, 5
      %v1248 = vrot.slane %v1247, 4
      %v1249 = vrot.slane %v275, 5
      %v1250 = vsel %vm1218, %v1248, %v1249
      %v1251 = vrot.slane %v1249, 4
      %v1252 = vrot.slane %v318, 5
      %v1253 = vsel %vm1218, %v1251, %v1252
      %v1254 = vrot.slane %v1173, 5
      %v1255 = vrot.slane %v1254, 4
      %v1256 = vrot.slane %v277, 5
      %v1257 = vsel %vm1218, %v1255, %v1256
      %v1258 = vrot.slane %v1256, 4
      %v1259 = vrot.slane %v319, 5
      %v1260 = vsel %vm1218, %v1258, %v1259
      %v1261 = vrot.slane %v1174, 5
      %v1262 = vrot.slane %v1261, 4
      %v1263 = vrot.slane %v279, 5
      %v1264 = vsel %vm1218, %v1262, %v1263
      %v1265 = vrot.slane %v1263, 4
      %v1266 = vrot.slane %v320, 5
      %v1267 = vsel %vm1218, %v1265, %v1266
      %v1268 = vrot.slane %v1175, 5
      %v1269 = vrot.slane %v1268, 4
      %v1270 = vrot.slane %v281, 5
      %v1271 = vsel %vm1218, %v1269, %v1270
      %v1272 = vrot.slane %v1270, 4
      %v1273 = vrot.slane %v321, 5
      %v1274 = vsel %vm1218, %v1272, %v1273
      %v1275 = vrot.slane %v1176, 5
      %v1276 = vrot.slane %v1275, 4
      %v1277 = vrot.slane %v283, 5
      %v1278 = vsel %vm1218, %v1276, %v1277
      %v1279 = vrot.slane %v1277, 4
      %v1280 = vrot.slane %v322, 5
      %v1281 = vsel %vm1218, %v1279, %v1280
      %v1282 = vrot.slane %v1177, 5
      %v1283 = vrot.slane %v1282, 4
      %v1284 = vrot.slane %v285, 5
      %v1285 = vsel %vm1218, %v1283, %v1284
      %v1286 = vrot.slane %v1284, 4
      %v1287 = vrot.slane %v323, 5
      %v1288 = vsel %vm1218, %v1286, %v1287
      %v1289 = vrot.slane %v1178, 5
      %v1290 = vrot.slane %v1289, 4
      %v1291 = vrot.slane %v287, 5
      %v1292 = vsel %vm1218, %v1290, %v1291
      %v1293 = vrot.slane %v1291, 4
      %v1294 = vrot.slane %v324, 5
      %v1295 = vsel %vm1218, %v1293, %v1294
      %v1296 = vrot.slane %v1179, 5
      %v1297 = vrot.slane %v1296, 4
      %v1298 = vrot.slane %v289, 5
      %v1299 = vsel %vm1218, %v1297, %v1298
      %v1300 = vrot.slane %v1298, 4
      %v1301 = vrot.slane %v325, 5
      %v1302 = vsel %vm1218, %v1300, %v1301
      %v1303 = vrot.slane %v1180, 5
      %v1304 = vrot.slane %v1303, 4
      %v1305 = vrot.slane %v291, 5
      %v1306 = vsel %vm1218, %v1304, %v1305
      %v1307 = vrot.slane %v1305, 4
      %v1308 = vrot.slane %v326, 5
      %v1309 = vsel %vm1218, %v1307, %v1308
      %v1310 = vrot.slane %v1181, 5
      %v1311 = vrot.slane %v1310, 4
      %v1312 = vrot.slane %v293, 5
      %v1313 = vsel %vm1218, %v1311, %v1312
      %v1314 = vrot.slane %v1312, 4
      %v1315 = vrot.slane %v327, 5
      %v1316 = vsel %vm1218, %v1314, %v1315
      %v1317 = vrot.slane %v1182, 5
      %v1318 = vrot.slane %v1317, 4
      %v1319 = vrot.slane %v295, 5
      %v1320 = vsel %vm1218, %v1318, %v1319
      %v1321 = vrot.slane %v1319, 4
      %v1322 = vrot.slane %v328, 5
      %v1323 = vsel %vm1218, %v1321, %v1322
      %v1324 = vrot.slane %v1183, 5
      %v1325 = vrot.slane %v1324, 4
      %v1326 = vrot.slane %v297, 5
      %v1327 = vsel %vm1218, %v1325, %v1326
      %v1328 = vrot.slane %v1326, 4
      %v1329 = vrot.slane %v329, 5
      %v1330 = vsel %vm1218, %v1328, %v1329
      %s1331 = scalar_lea.vmem %s1, 128
      %v1332 = vld [vmem:[%s1331] sm:$0xf]
      %v1333 = vld [vmem:[%s1331 + $0x4] sm:$0xf]
      %v1334 = vld [vmem:[%s1331 + $0x8] sm:$0xf]
      %v1335 = vld [vmem:[%s1331 + $0xc] sm:$0xf]
      %v1336 = vld [vmem:[%s1331 + $0x10] sm:$0xf]
      %v1337 = vld [vmem:[%s1331 + $0x14] sm:$0xf]
      %v1338 = vld [vmem:[%s1331 + $0x18] sm:$0xf]
      %v1339 = vld [vmem:[%s1331 + $0x1c] sm:$0xf]
      %v1340 = vld [vmem:[%s1331 + $0x20] sm:$0xf]
      %v1341 = vld [vmem:[%s1331 + $0x24] sm:$0xf]
      %v1342 = vld [vmem:[%s1331 + $0x28] sm:$0xf]
      %v1343 = vld [vmem:[%s1331 + $0x2c] sm:$0xf]
      %v1344 = vld [vmem:[%s1331 + $0x30] sm:$0xf]
      %v1345 = vld [vmem:[%s1331 + $0x34] sm:$0xf]
      %v1346 = vld [vmem:[%s1331 + $0x38] sm:$0xf]
      %v1347 = vld [vmem:[%s1331 + $0x3c] sm:$0xf]
      %v1348 = vunpack.c.l.b16 %v1222
      %v1349 = vunpack.c.l.b16 %v1225
      %v1350 = vunpack.c.l.b16 %v1229
      %v1351 = vunpack.c.l.b16 %v1232
      %v1352 = vunpack.c.l.b16 %v1236
      %v1353 = vunpack.c.l.b16 %v1239
      %v1354 = vunpack.c.l.b16 %v1243
      %v1355 = vunpack.c.l.b16 %v1246
      %v1356 = vunpack.c.l.b16 %v1250
      %v1357 = vunpack.c.l.b16 %v1253
      %v1358 = vunpack.c.l.b16 %v1257
      %v1359 = vunpack.c.l.b16 %v1260
      %v1360 = vunpack.c.l.b16 %v1264
      %v1361 = vunpack.c.l.b16 %v1267
      %v1362 = vunpack.c.l.b16 %v1271
      %v1363 = vunpack.c.l.b16 %v1274
      %v1364 = vunpack.c.l.b16 %v1278
      %v1365 = vunpack.c.l.b16 %v1281
      %v1366 = vunpack.c.l.b16 %v1285
      %v1367 = vunpack.c.l.b16 %v1288
      %v1368 = vunpack.c.l.b16 %v1292
      %v1369 = vunpack.c.l.b16 %v1295
      %v1370 = vunpack.c.l.b16 %v1299
      %v1371 = vunpack.c.l.b16 %v1302
      %v1372 = vunpack.c.l.b16 %v1306
      %v1373 = vunpack.c.l.b16 %v1309
      %v1374 = vunpack.c.l.b16 %v1313
      %v1375 = vunpack.c.l.b16 %v1316
      %v1376 = vunpack.c.l.b16 %v1320
      %v1377 = vunpack.c.l.b16 %v1323
      %v1378 = vunpack.c.l.b16 %v1327
      %v1379 = vunpack.c.l.b16 %v1330
      %v1380 = vpack.c.b16 %v1349, %v1348
      %v1381 = vpack.c.b16 %v1351, %v1350
      %v1382 = vpack.c.b16 %v1353, %v1352
      %v1383 = vpack.c.b16 %v1355, %v1354
      %v1384 = vpack.c.b16 %v1357, %v1356
      %v1385 = vpack.c.b16 %v1359, %v1358
      %v1386 = vpack.c.b16 %v1361, %v1360
      %v1387 = vpack.c.b16 %v1363, %v1362
      %v1388 = vpack.c.b16 %v1365, %v1364
      %v1389 = vpack.c.b16 %v1367, %v1366
      %v1390 = vpack.c.b16 %v1369, %v1368
      %v1391 = vpack.c.b16 %v1371, %v1370
      %v1392 = vpack.c.b16 %v1373, %v1372
      %v1393 = vpack.c.b16 %v1375, %v1374
      %v1394 = vpack.c.b16 %v1377, %v1376
      %v1395 = vpack.c.b16 %v1379, %v1378
      %v1428 = vunpack.c.l.b16 %v1332
      %v1429 = vunpack.c.l.b16 %v1333
      %v1430 = vunpack.c.l.b16 %v1334
      %v1431 = vunpack.c.l.b16 %v1335
      %v1432 = vunpack.c.l.b16 %v1336
      %v1433 = vunpack.c.l.b16 %v1337
      %v1434 = vunpack.c.l.b16 %v1338
      %v1435 = vunpack.c.l.b16 %v1339
      %v1436 = vunpack.c.l.b16 %v1340
      %v1437 = vunpack.c.l.b16 %v1341
      %v1438 = vunpack.c.l.b16 %v1342
      %v1439 = vunpack.c.l.b16 %v1343
      %v1440 = vunpack.c.l.b16 %v1344
      %v1441 = vunpack.c.l.b16 %v1345
      %v1442 = vunpack.c.l.b16 %v1346
      %v1443 = vunpack.c.l.b16 %v1347
      %v1444 = vpack.c.b16 %v1429, %v1428
      %v1445 = vpack.c.b16 %v1431, %v1430
      %v1446 = vpack.c.b16 %v1433, %v1432
      %v1447 = vpack.c.b16 %v1435, %v1434
      %v1448 = vpack.c.b16 %v1437, %v1436
      %v1449 = vpack.c.b16 %v1439, %v1438
      %v1450 = vpack.c.b16 %v1441, %v1440
      %v1451 = vpack.c.b16 %v1443, %v1442
      %1460 = vmatpush.bf16.msra.mxu0 %v1451
      %1461 = vmatpush.bf16.msra.mxu0 %v1450
      %1462 = vmatpush.bf16.msra.mxu0 %v1449
      %1463 = vmatpush.bf16.msra.mxu0 %v1448
      %1464 = vmatpush.bf16.msra.mxu0 %v1447
      %1465 = vmatpush.bf16.msra.mxu0 %v1446
      %1466 = vmatpush.bf16.msra.mxu0 %v1445
      %1467 = vmatpush.bf16.msra.mxu0 %v1444
      %1468 = vmatmul.bf16.gmra.mxu0 %v1380
      %v1469 = vpop.f32.mrf.mxu0
      %v1470 = vadd.f32 0.0, %v1469
      %v1471 = vpop.f32.mrf.mxu0
      %v1472 = vadd.f32 0.0, %v1471
      %1473 = vmatmul.bf16.gmra.mxu0 %v1381
      %v1474 = vpop.f32.mrf.mxu0
      %v1475 = vadd.f32 0.0, %v1474
      %v1476 = vpop.f32.mrf.mxu0
      %v1477 = vadd.f32 0.0, %v1476
      %1478 = vmatmul.bf16.gmra.mxu0 %v1382
      %v1479 = vpop.f32.mrf.mxu0
      %v1480 = vadd.f32 0.0, %v1479
      %v1481 = vpop.f32.mrf.mxu0
      %v1482 = vadd.f32 0.0, %v1481
      %1483 = vmatmul.bf16.gmra.mxu0 %v1383
      %v1484 = vpop.f32.mrf.mxu0
      %v1485 = vadd.f32 0.0, %v1484
      %v1486 = vpop.f32.mrf.mxu0
      %v1487 = vadd.f32 0.0, %v1486
      %1488 = vmatmul.bf16.gmra.mxu0 %v1384
      %v1489 = vpop.f32.mrf.mxu0
      %v1490 = vadd.f32 0.0, %v1489
      %v1491 = vpop.f32.mrf.mxu0
      %v1492 = vadd.f32 0.0, %v1491
      %1493 = vmatmul.bf16.gmra.mxu0 %v1385
      %v1494 = vpop.f32.mrf.mxu0
      %v1495 = vadd.f32 0.0, %v1494
      %v1496 = vpop.f32.mrf.mxu0
      %v1497 = vadd.f32 0.0, %v1496
      %1498 = vmatmul.bf16.gmra.mxu0 %v1386
      %v1499 = vpop.f32.mrf.mxu0
      %v1500 = vadd.f32 0.0, %v1499
      %v1501 = vpop.f32.mrf.mxu0
      %v1502 = vadd.f32 0.0, %v1501
      %1503 = vmatmul.bf16.gmra.mxu0 %v1387
      %v1504 = vpop.f32.mrf.mxu0
      %v1505 = vadd.f32 0.0, %v1504
      %v1506 = vpop.f32.mrf.mxu0
      %v1507 = vadd.f32 0.0, %v1506
      %1508 = vmatmul.bf16.gmra.mxu0 %v1388
      %v1509 = vpop.f32.mrf.mxu0
      %v1510 = vadd.f32 0.0, %v1509
      %v1511 = vpop.f32.mrf.mxu0
      %v1512 = vadd.f32 0.0, %v1511
      %1513 = vmatmul.bf16.gmra.mxu0 %v1389
      %v1514 = vpop.f32.mrf.mxu0
      %v1515 = vadd.f32 0.0, %v1514
      %v1516 = vpop.f32.mrf.mxu0
      %v1517 = vadd.f32 0.0, %v1516
      %1518 = vmatmul.bf16.gmra.mxu0 %v1390
      %v1519 = vpop.f32.mrf.mxu0
      %v1520 = vadd.f32 0.0, %v1519
      %v1521 = vpop.f32.mrf.mxu0
      %v1522 = vadd.f32 0.0, %v1521
      %1523 = vmatmul.bf16.gmra.mxu0 %v1391
      %v1524 = vpop.f32.mrf.mxu0
      %v1525 = vadd.f32 0.0, %v1524
      %v1526 = vpop.f32.mrf.mxu0
      %v1527 = vadd.f32 0.0, %v1526
      %1528 = vmatmul.bf16.gmra.mxu0 %v1392
      %v1529 = vpop.f32.mrf.mxu0
      %v1530 = vadd.f32 0.0, %v1529
      %v1531 = vpop.f32.mrf.mxu0
      %v1532 = vadd.f32 0.0, %v1531
      %1533 = vmatmul.bf16.gmra.mxu0 %v1393
      %v1534 = vpop.f32.mrf.mxu0
      %v1535 = vadd.f32 0.0, %v1534
      %v1536 = vpop.f32.mrf.mxu0
      %v1537 = vadd.f32 0.0, %v1536
      %1538 = vmatmul.bf16.gmra.mxu0 %v1394
      %v1539 = vpop.f32.mrf.mxu0
      %v1540 = vadd.f32 0.0, %v1539
      %v1541 = vpop.f32.mrf.mxu0
      %v1542 = vadd.f32 0.0, %v1541
      %1543 = vmatmul.bf16.gmra.mxu0 %v1395
      %v1544 = vpop.f32.mrf.mxu0
      %v1545 = vadd.f32 0.0, %v1544
      %v1546 = vpop.f32.mrf.mxu0
      %v1547 = vadd.f32 0.0, %v1546
      %1548 = vdwg.mxu0
      %v1549 = vadd.f32 %v1089, %v1470
      %v1550 = vadd.f32 %v1091, %v1472
      %v1551 = vadd.f32 %v1094, %v1475
      %v1552 = vadd.f32 %v1096, %v1477
      %v1553 = vadd.f32 %v1099, %v1480
      %v1554 = vadd.f32 %v1101, %v1482
      %v1555 = vadd.f32 %v1104, %v1485
      %v1556 = vadd.f32 %v1106, %v1487
      %v1557 = vadd.f32 %v1109, %v1490
      %v1558 = vadd.f32 %v1111, %v1492
      %v1559 = vadd.f32 %v1114, %v1495
      %v1560 = vadd.f32 %v1116, %v1497
      %v1561 = vadd.f32 %v1119, %v1500
      %v1562 = vadd.f32 %v1121, %v1502
      %v1563 = vadd.f32 %v1124, %v1505
      %v1564 = vadd.f32 %v1126, %v1507
      %v1565 = vadd.f32 %v1129, %v1510
      %v1566 = vadd.f32 %v1131, %v1512
      %v1567 = vadd.f32 %v1134, %v1515
      %v1568 = vadd.f32 %v1136, %v1517
      %v1569 = vadd.f32 %v1139, %v1520
      %v1570 = vadd.f32 %v1141, %v1522
      %v1571 = vadd.f32 %v1144, %v1525
      %v1572 = vadd.f32 %v1146, %v1527
      %v1573 = vadd.f32 %v1149, %v1530
      %v1574 = vadd.f32 %v1151, %v1532
      %v1575 = vadd.f32 %v1154, %v1535
      %v1576 = vadd.f32 %v1156, %v1537
      %v1577 = vadd.f32 %v1159, %v1540
      %v1578 = vadd.f32 %v1161, %v1542
      %v1579 = vadd.f32 %v1164, %v1545
      %v1580 = vadd.f32 %v1166, %v1547
      %s1581 = sadd.s32 %s262, 1
      %s1582 = smul.u32 %s1581, 3
      %s1583 = smul.addr %s1582, 4
      %s1584 = scalar_lea.vmem %s239, %s1583
      %v1585 = vld [vmem:[%s1584] sm:$0xf]
      %v1586 = vld [vmem:[%s1584 + $0x4] sm:$0xf]
      %v1587 = vld [vmem:[%s1584 + $0xc] sm:$0xf]
      %v1588 = vld [vmem:[%s1584 + $0x10] sm:$0xf]
      %v1589 = vld [vmem:[%s1584 + $0x18] sm:$0xf]
      %v1590 = vld [vmem:[%s1584 + $0x1c] sm:$0xf]
      %v1591 = vld [vmem:[%s1584 + $0x24] sm:$0xf]
      %v1592 = vld [vmem:[%s1584 + $0x28] sm:$0xf]
      %v1593 = vld [vmem:[%s1584 + $0x30] sm:$0xf]
      %v1594 = vld [vmem:[%s1584 + $0x34] sm:$0xf]
      %v1595 = vld [vmem:[%s1584 + $0x3c] sm:$0xf]
      %v1596 = vld [vmem:[%s1584 + $0x40] sm:$0xf]
      %v1597 = vld [vmem:[%s1584 + $0x48] sm:$0xf]
      %v1598 = vld [vmem:[%s1584 + $0x4c] sm:$0xf]
      %v1599 = vld [vmem:[%s1584 + $0x54] sm:$0xf]
      %v1600 = vld [vmem:[%s1584 + $0x58] sm:$0xf]
      %v1601 = vld [vmem:[%s1584 + $0x60] sm:$0xf]
      %v1602 = vld [vmem:[%s1584 + $0x64] sm:$0xf]
      %v1603 = vld [vmem:[%s1584 + $0x6c] sm:$0xf]
      %v1604 = vld [vmem:[%s1584 + $0x70] sm:$0xf]
      %v1605 = vld [vmem:[%s1584 + $0x78] sm:$0xf]
      %v1606 = vld [vmem:[%s1584 + $0x7c] sm:$0xf]
      %v1607 = vld [vmem:[%s1584 + $0x84] sm:$0xf]
      %v1608 = vld [vmem:[%s1584 + $0x88] sm:$0xf]
      %v1609 = vld [vmem:[%s1584 + $0x90] sm:$0xf]
      %v1610 = vld [vmem:[%s1584 + $0x94] sm:$0xf]
      %v1611 = vld [vmem:[%s1584 + $0x9c] sm:$0xf]
      %v1612 = vld [vmem:[%s1584 + $0xa0] sm:$0xf]
      %v1613 = vld [vmem:[%s1584 + $0xa8] sm:$0xf]
      %v1614 = vld [vmem:[%s1584 + $0xac] sm:$0xf]
      %v1615 = vld [vmem:[%s1584 + $0xb4] sm:$0xf]
      %v1616 = vld [vmem:[%s1584 + $0xb8] sm:$0xf]
      %s1617 = scalar_lea.vmem %s1, 192
      %v1618 = vld [vmem:[%s1617] sm:$0xf]
      %v1619 = vld [vmem:[%s1617 + $0x4] sm:$0xf]
      %v1620 = vld [vmem:[%s1617 + $0x8] sm:$0xf]
      %v1621 = vld [vmem:[%s1617 + $0xc] sm:$0xf]
      %v1622 = vld [vmem:[%s1617 + $0x10] sm:$0xf]
      %v1623 = vld [vmem:[%s1617 + $0x14] sm:$0xf]
      %v1624 = vld [vmem:[%s1617 + $0x18] sm:$0xf]
      %v1625 = vld [vmem:[%s1617 + $0x1c] sm:$0xf]
      %v1626 = vld [vmem:[%s1617 + $0x20] sm:$0xf]
      %v1627 = vld [vmem:[%s1617 + $0x24] sm:$0xf]
      %v1628 = vld [vmem:[%s1617 + $0x28] sm:$0xf]
      %v1629 = vld [vmem:[%s1617 + $0x2c] sm:$0xf]
      %v1630 = vld [vmem:[%s1617 + $0x30] sm:$0xf]
      %v1631 = vld [vmem:[%s1617 + $0x34] sm:$0xf]
      %v1632 = vld [vmem:[%s1617 + $0x38] sm:$0xf]
      %v1633 = vld [vmem:[%s1617 + $0x3c] sm:$0xf]
      %v1666 = vunpack.c.l.b16 %v1585
      %v1667 = vunpack.c.l.b16 %v1586
      %v1668 = vunpack.c.l.b16 %v1587
      %v1669 = vunpack.c.l.b16 %v1588
      %v1670 = vunpack.c.l.b16 %v1589
      %v1671 = vunpack.c.l.b16 %v1590
      %v1672 = vunpack.c.l.b16 %v1591
      %v1673 = vunpack.c.l.b16 %v1592
      %v1674 = vunpack.c.l.b16 %v1593
      %v1675 = vunpack.c.l.b16 %v1594
      %v1676 = vunpack.c.l.b16 %v1595
      %v1677 = vunpack.c.l.b16 %v1596
      %v1678 = vunpack.c.l.b16 %v1597
      %v1679 = vunpack.c.l.b16 %v1598
      %v1680 = vunpack.c.l.b16 %v1599
      %v1681 = vunpack.c.l.b16 %v1600
      %v1682 = vunpack.c.l.b16 %v1601
      %v1683 = vunpack.c.l.b16 %v1602
      %v1684 = vunpack.c.l.b16 %v1603
      %v1685 = vunpack.c.l.b16 %v1604
      %v1686 = vunpack.c.l.b16 %v1605
      %v1687 = vunpack.c.l.b16 %v1606
      %v1688 = vunpack.c.l.b16 %v1607
      %v1689 = vunpack.c.l.b16 %v1608
      %v1690 = vunpack.c.l.b16 %v1609
      %v1691 = vunpack.c.l.b16 %v1610
      %v1692 = vunpack.c.l.b16 %v1611
      %v1693 = vunpack.c.l.b16 %v1612
      %v1694 = vunpack.c.l.b16 %v1613
      %v1695 = vunpack.c.l.b16 %v1614
      %v1696 = vunpack.c.l.b16 %v1615
      %v1697 = vunpack.c.l.b16 %v1616
      %v1698 = vpack.c.b16 %v1667, %v1666
      %v1699 = vpack.c.b16 %v1669, %v1668
      %v1700 = vpack.c.b16 %v1671, %v1670
      %v1701 = vpack.c.b16 %v1673, %v1672
      %v1702 = vpack.c.b16 %v1675, %v1674
      %v1703 = vpack.c.b16 %v1677, %v1676
      %v1704 = vpack.c.b16 %v1679, %v1678
      %v1705 = vpack.c.b16 %v1681, %v1680
      %v1706 = vpack.c.b16 %v1683, %v1682
      %v1707 = vpack.c.b16 %v1685, %v1684
      %v1708 = vpack.c.b16 %v1687, %v1686
      %v1709 = vpack.c.b16 %v1689, %v1688
      %v1710 = vpack.c.b16 %v1691, %v1690
      %v1711 = vpack.c.b16 %v1693, %v1692
      %v1712 = vpack.c.b16 %v1695, %v1694
      %v1713 = vpack.c.b16 %v1697, %v1696
      %v1746 = vunpack.c.l.b16 %v1618
      %v1747 = vunpack.c.l.b16 %v1619
      %v1748 = vunpack.c.l.b16 %v1620
      %v1749 = vunpack.c.l.b16 %v1621
      %v1750 = vunpack.c.l.b16 %v1622
      %v1751 = vunpack.c.l.b16 %v1623
      %v1752 = vunpack.c.l.b16 %v1624
      %v1753 = vunpack.c.l.b16 %v1625
      %v1754 = vunpack.c.l.b16 %v1626
      %v1755 = vunpack.c.l.b16 %v1627
      %v1756 = vunpack.c.l.b16 %v1628
      %v1757 = vunpack.c.l.b16 %v1629
      %v1758 = vunpack.c.l.b16 %v1630
      %v1759 = vunpack.c.l.b16 %v1631
      %v1760 = vunpack.c.l.b16 %v1632
      %v1761 = vunpack.c.l.b16 %v1633
      %v1762 = vpack.c.b16 %v1747, %v1746
      %v1763 = vpack.c.b16 %v1749, %v1748
      %v1764 = vpack.c.b16 %v1751, %v1750
      %v1765 = vpack.c.b16 %v1753, %v1752
      %v1766 = vpack.c.b16 %v1755, %v1754
      %v1767 = vpack.c.b16 %v1757, %v1756
      %v1768 = vpack.c.b16 %v1759, %v1758
      %v1769 = vpack.c.b16 %v1761, %v1760
      %1778 = vmatpush.bf16.msra.mxu0 %v1769
      %1779 = vmatpush.bf16.msra.mxu0 %v1768
      %1780 = vmatpush.bf16.msra.mxu0 %v1767
      %1781 = vmatpush.bf16.msra.mxu0 %v1766
      %1782 = vmatpush.bf16.msra.mxu0 %v1765
      %1783 = vmatpush.bf16.msra.mxu0 %v1764
      %1784 = vmatpush.bf16.msra.mxu0 %v1763
      %1785 = vmatpush.bf16.msra.mxu0 %v1762
      %1786 = vmatmul.bf16.gmra.mxu0 %v1698
      %v1787 = vpop.f32.mrf.mxu0
      %v1788 = vadd.f32 0.0, %v1787
      %v1789 = vpop.f32.mrf.mxu0
      %v1790 = vadd.f32 0.0, %v1789
      %1791 = vmatmul.bf16.gmra.mxu0 %v1699
      %v1792 = vpop.f32.mrf.mxu0
      %v1793 = vadd.f32 0.0, %v1792
      %v1794 = vpop.f32.mrf.mxu0
      %v1795 = vadd.f32 0.0, %v1794
      %1796 = vmatmul.bf16.gmra.mxu0 %v1700
      %v1797 = vpop.f32.mrf.mxu0
      %v1798 = vadd.f32 0.0, %v1797
      %v1799 = vpop.f32.mrf.mxu0
      %v1800 = vadd.f32 0.0, %v1799
      %1801 = vmatmul.bf16.gmra.mxu0 %v1701
      %v1802 = vpop.f32.mrf.mxu0
      %v1803 = vadd.f32 0.0, %v1802
      %v1804 = vpop.f32.mrf.mxu0
      %v1805 = vadd.f32 0.0, %v1804
      %1806 = vmatmul.bf16.gmra.mxu0 %v1702
      %v1807 = vpop.f32.mrf.mxu0
      %v1808 = vadd.f32 0.0, %v1807
      %v1809 = vpop.f32.mrf.mxu0
      %v1810 = vadd.f32 0.0, %v1809
      %1811 = vmatmul.bf16.gmra.mxu0 %v1703
      %v1812 = vpop.f32.mrf.mxu0
      %v1813 = vadd.f32 0.0, %v1812
      %v1814 = vpop.f32.mrf.mxu0
      %v1815 = vadd.f32 0.0, %v1814
      %1816 = vmatmul.bf16.gmra.mxu0 %v1704
      %v1817 = vpop.f32.mrf.mxu0
      %v1818 = vadd.f32 0.0, %v1817
      %v1819 = vpop.f32.mrf.mxu0
      %v1820 = vadd.f32 0.0, %v1819
      %1821 = vmatmul.bf16.gmra.mxu0 %v1705
      %v1822 = vpop.f32.mrf.mxu0
      %v1823 = vadd.f32 0.0, %v1822
      %v1824 = vpop.f32.mrf.mxu0
      %v1825 = vadd.f32 0.0, %v1824
      %1826 = vmatmul.bf16.gmra.mxu0 %v1706
      %v1827 = vpop.f32.mrf.mxu0
      %v1828 = vadd.f32 0.0, %v1827
      %v1829 = vpop.f32.mrf.mxu0
      %v1830 = vadd.f32 0.0, %v1829
      %1831 = vmatmul.bf16.gmra.mxu0 %v1707
      %v1832 = vpop.f32.mrf.mxu0
      %v1833 = vadd.f32 0.0, %v1832
      %v1834 = vpop.f32.mrf.mxu0
      %v1835 = vadd.f32 0.0, %v1834
      %1836 = vmatmul.bf16.gmra.mxu0 %v1708
      %v1837 = vpop.f32.mrf.mxu0
      %v1838 = vadd.f32 0.0, %v1837
      %v1839 = vpop.f32.mrf.mxu0
      %v1840 = vadd.f32 0.0, %v1839
      %1841 = vmatmul.bf16.gmra.mxu0 %v1709
      %v1842 = vpop.f32.mrf.mxu0
      %v1843 = vadd.f32 0.0, %v1842
      %v1844 = vpop.f32.mrf.mxu0
      %v1845 = vadd.f32 0.0, %v1844
      %1846 = vmatmul.bf16.gmra.mxu0 %v1710
      %v1847 = vpop.f32.mrf.mxu0
      %v1848 = vadd.f32 0.0, %v1847
      %v1849 = vpop.f32.mrf.mxu0
      %v1850 = vadd.f32 0.0, %v1849
      %1851 = vmatmul.bf16.gmra.mxu0 %v1711
      %v1852 = vpop.f32.mrf.mxu0
      %v1853 = vadd.f32 0.0, %v1852
      %v1854 = vpop.f32.mrf.mxu0
      %v1855 = vadd.f32 0.0, %v1854
      %1856 = vmatmul.bf16.gmra.mxu0 %v1712
      %v1857 = vpop.f32.mrf.mxu0
      %v1858 = vadd.f32 0.0, %v1857
      %v1859 = vpop.f32.mrf.mxu0
      %v1860 = vadd.f32 0.0, %v1859
      %1861 = vmatmul.bf16.gmra.mxu0 %v1713
      %v1862 = vpop.f32.mrf.mxu0
      %v1863 = vadd.f32 0.0, %v1862
      %v1864 = vpop.f32.mrf.mxu0
      %v1865 = vadd.f32 0.0, %v1864
      %1866 = vdwg.mxu0
      %v1867 = vadd.f32 %v1549, %v1788
      %v1868 = vadd.f32 %v1550, %v1790
      %v1869 = vadd.f32 %v1551, %v1793
      %v1870 = vadd.f32 %v1552, %v1795
      %v1871 = vadd.f32 %v1553, %v1798
      %v1872 = vadd.f32 %v1554, %v1800
      %v1873 = vadd.f32 %v1555, %v1803
      %v1874 = vadd.f32 %v1556, %v1805
      %v1875 = vadd.f32 %v1557, %v1808
      %v1876 = vadd.f32 %v1558, %v1810
      %v1877 = vadd.f32 %v1559, %v1813
      %v1878 = vadd.f32 %v1560, %v1815
      %v1879 = vadd.f32 %v1561, %v1818
      %v1880 = vadd.f32 %v1562, %v1820
      %v1881 = vadd.f32 %v1563, %v1823
      %v1882 = vadd.f32 %v1564, %v1825
      %v1883 = vadd.f32 %v1565, %v1828
      %v1884 = vadd.f32 %v1566, %v1830
      %v1885 = vadd.f32 %v1567, %v1833
      %v1886 = vadd.f32 %v1568, %v1835
      %v1887 = vadd.f32 %v1569, %v1838
      %v1888 = vadd.f32 %v1570, %v1840
      %v1889 = vadd.f32 %v1571, %v1843
      %v1890 = vadd.f32 %v1572, %v1845
      %v1891 = vadd.f32 %v1573, %v1848
      %v1892 = vadd.f32 %v1574, %v1850
      %v1893 = vadd.f32 %v1575, %v1853
      %v1894 = vadd.f32 %v1576, %v1855
      %v1895 = vadd.f32 %v1577, %v1858
      %v1896 = vadd.f32 %v1578, %v1860
      %v1897 = vadd.f32 %v1579, %v1863
      %v1898 = vadd.f32 %v1580, %v1865
      %v1899 = vld [vmem:[%s1584] sm:$0xf]
      %v1900 = vld [vmem:[%s1584 + $0x4] sm:$0xf]
      %v1901 = vld [vmem:[%s1584 + $0x8] sm:$0x1]
      %v1902 = vld [vmem:[%s1584 + $0xc] sm:$0xf]
      %v1903 = vld [vmem:[%s1584 + $0x10] sm:$0xf]
      %v1904 = vld [vmem:[%s1584 + $0x14] sm:$0x1]
      %v1905 = vld [vmem:[%s1584 + $0x18] sm:$0xf]
      %v1906 = vld [vmem:[%s1584 + $0x1c] sm:$0xf]
      %v1907 = vld [vmem:[%s1584 + $0x20] sm:$0x1]
      %v1908 = vld [vmem:[%s1584 + $0x24] sm:$0xf]
      %v1909 = vld [vmem:[%s1584 + $0x28] sm:$0xf]
      %v1910 = vld [vmem:[%s1584 + $0x2c] sm:$0x1]
      %v1911 = vld [vmem:[%s1584 + $0x30] sm:$0xf]
      %v1912 = vld [vmem:[%s1584 + $0x34] sm:$0xf]
      %v1913 = vld [vmem:[%s1584 + $0x38] sm:$0x1]
      %v1914 = vld [vmem:[%s1584 + $0x3c] sm:$0xf]
      %v1915 = vld [vmem:[%s1584 + $0x40] sm:$0xf]
      %v1916 = vld [vmem:[%s1584 + $0x44] sm:$0x1]
      %v1917 = vld [vmem:[%s1584 + $0x48] sm:$0xf]
      %v1918 = vld [vmem:[%s1584 + $0x4c] sm:$0xf]
      %v1919 = vld [vmem:[%s1584 + $0x50] sm:$0x1]
      %v1920 = vld [vmem:[%s1584 + $0x54] sm:$0xf]
      %v1921 = vld [vmem:[%s1584 + $0x58] sm:$0xf]
      %v1922 = vld [vmem:[%s1584 + $0x5c] sm:$0x1]
      %v1923 = vld [vmem:[%s1584 + $0x60] sm:$0xf]
      %v1924 = vld [vmem:[%s1584 + $0x64] sm:$0xf]
      %v1925 = vld [vmem:[%s1584 + $0x68] sm:$0x1]
      %v1926 = vld [vmem:[%s1584 + $0x6c] sm:$0xf]
      %v1927 = vld [vmem:[%s1584 + $0x70] sm:$0xf]
      %v1928 = vld [vmem:[%s1584 + $0x74] sm:$0x1]
      %v1929 = vld [vmem:[%s1584 + $0x78] sm:$0xf]
      %v1930 = vld [vmem:[%s1584 + $0x7c] sm:$0xf]
      %v1931 = vld [vmem:[%s1584 + $0x80] sm:$0x1]
      %v1932 = vld [vmem:[%s1584 + $0x84] sm:$0xf]
      %v1933 = vld [vmem:[%s1584 + $0x88] sm:$0xf]
      %v1934 = vld [vmem:[%s1584 + $0x8c] sm:$0x1]
      %v1935 = vld [vmem:[%s1584 + $0x90] sm:$0xf]
      %v1936 = vld [vmem:[%s1584 + $0x94] sm:$0xf]
      %v1937 = vld [vmem:[%s1584 + $0x98] sm:$0x1]
      %v1938 = vld [vmem:[%s1584 + $0x9c] sm:$0xf]
      %v1939 = vld [vmem:[%s1584 + $0xa0] sm:$0xf]
      %v1940 = vld [vmem:[%s1584 + $0xa4] sm:$0x1]
      %v1941 = vld [vmem:[%s1584 + $0xa8] sm:$0xf]
      %v1942 = vld [vmem:[%s1584 + $0xac] sm:$0xf]
      %v1943 = vld [vmem:[%s1584 + $0xb0] sm:$0x1]
      %v1944 = vld [vmem:[%s1584 + $0xb4] sm:$0xf]
      %v1945 = vld [vmem:[%s1584 + $0xb8] sm:$0xf]
      %v1946 = vld [vmem:[%s1584 + $0xbc] sm:$0x1]
      %v1948 = vshrl.u32 %v1899, 16
      %v1950 = vrot.slane %v1948, 4
      %v1951 = vshll.u32 %v1899, 16
      %v1953 = vrot.slane %v1951, 5
      %v1954 = vor.u32 %v1950, %v1953
      %v1955 = vrot.slane %v1954, 4
      %v1957 = vshll.u32 %v1900, 16
      %v1959 = vrot.slane %v1957, 5
      %v1960 = vsel %vm332, %v1955, %v1959
      %v1961 = vshrl.u32 %v1900, 16
      %v1963 = vrot.slane %v1961, 4
      %v1964 = vor.u32 %v1963, %v1959
      %v1965 = vrot.slane %v1964, 4
      %v1967 = vshll.u32 %v1901, 16
      %v1969 = vrot.slane %v1967, 5
      %v1970 = vsel %vm332, %v1965, %v1969
      %v1972 = vshrl.u32 %v1902, 16
      %v1974 = vrot.slane %v1972, 4
      %v1975 = vshll.u32 %v1902, 16
      %v1977 = vrot.slane %v1975, 5
      %v1978 = vor.u32 %v1974, %v1977
      %v1979 = vrot.slane %v1978, 4
      %v1981 = vshll.u32 %v1903, 16
      %v1983 = vrot.slane %v1981, 5
      %v1984 = vsel %vm332, %v1979, %v1983
      %v1985 = vshrl.u32 %v1903, 16
      %v1987 = vrot.slane %v1985, 4
      %v1988 = vor.u32 %v1987, %v1983
      %v1989 = vrot.slane %v1988, 4
      %v1991 = vshll.u32 %v1904, 16
      %v1993 = vrot.slane %v1991, 5
      %v1994 = vsel %vm332, %v1989, %v1993
      %v1996 = vshrl.u32 %v1905, 16
      %v1998 = vrot.slane %v1996, 4
      %v1999 = vshll.u32 %v1905, 16
      %v2001 = vrot.slane %v1999, 5
      %v2002 = vor.u32 %v1998, %v2001
      %v2003 = vrot.slane %v2002, 4
      %v2005 = vshll.u32 %v1906, 16
      %v2007 = vrot.slane %v2005, 5
      %v2008 = vsel %vm332, %v2003, %v2007
      %v2009 = vshrl.u32 %v1906, 16
      %v2011 = vrot.slane %v2009, 4
      %v2012 = vor.u32 %v2011, %v2007
      %v2013 = vrot.slane %v2012, 4
      %v2015 = vshll.u32 %v1907, 16
      %v2017 = vrot.slane %v2015, 5
      %v2018 = vsel %vm332, %v2013, %v2017
      %v2020 = vshrl.u32 %v1908, 16
      %v2022 = vrot.slane %v2020, 4
      %v2023 = vshll.u32 %v1908, 16
      %v2025 = vrot.slane %v2023, 5
      %v2026 = vor.u32 %v2022, %v2025
      %v2027 = vrot.slane %v2026, 4
      %v2029 = vshll.u32 %v1909, 16
      %v2031 = vrot.slane %v2029, 5
      %v2032 = vsel %vm332, %v2027, %v2031
      %v2033 = vshrl.u32 %v1909, 16
      %v2035 = vrot.slane %v2033, 4
      %v2036 = vor.u32 %v2035, %v2031
      %v2037 = vrot.slane %v2036, 4
      %v2039 = vshll.u32 %v1910, 16
      %v2041 = vrot.slane %v2039, 5
      %v2042 = vsel %vm332, %v2037, %v2041
      %v2044 = vshrl.u32 %v1911, 16
      %v2046 = vrot.slane %v2044, 4
      %v2047 = vshll.u32 %v1911, 16
      %v2049 = vrot.slane %v2047, 5
      %v2050 = vor.u32 %v2046, %v2049
      %v2051 = vrot.slane %v2050, 4
      %v2053 = vshll.u32 %v1912, 16
      %v2055 = vrot.slane %v2053, 5
      %v2056 = vsel %vm332, %v2051, %v2055
      %v2057 = vshrl.u32 %v1912, 16
      %v2059 = vrot.slane %v2057, 4
      %v2060 = vor.u32 %v2059, %v2055
      %v2061 = vrot.slane %v2060, 4
      %v2063 = vshll.u32 %v1913, 16
      %v2065 = vrot.slane %v2063, 5
      %v2066 = vsel %vm332, %v2061, %v2065
      %v2068 = vshrl.u32 %v1914, 16
      %v2070 = vrot.slane %v2068, 4
      %v2071 = vshll.u32 %v1914, 16
      %v2073 = vrot.slane %v2071, 5
      %v2074 = vor.u32 %v2070, %v2073
      %v2075 = vrot.slane %v2074, 4
      %v2077 = vshll.u32 %v1915, 16
      %v2079 = vrot.slane %v2077, 5
      %v2080 = vsel %vm332, %v2075, %v2079
      %v2081 = vshrl.u32 %v1915, 16
      %v2083 = vrot.slane %v2081, 4
      %v2084 = vor.u32 %v2083, %v2079
      %v2085 = vrot.slane %v2084, 4
      %v2087 = vshll.u32 %v1916, 16
      %v2089 = vrot.slane %v2087, 5
      %v2090 = vsel %vm332, %v2085, %v2089
      %v2092 = vshrl.u32 %v1917, 16
      %v2094 = vrot.slane %v2092, 4
      %v2095 = vshll.u32 %v1917, 16
      %v2097 = vrot.slane %v2095, 5
      %v2098 = vor.u32 %v2094, %v2097
      %v2099 = vrot.slane %v2098, 4
      %v2101 = vshll.u32 %v1918, 16
      %v2103 = vrot.slane %v2101, 5
      %v2104 = vsel %vm332, %v2099, %v2103
      %v2105 = vshrl.u32 %v1918, 16
      %v2107 = vrot.slane %v2105, 4
      %v2108 = vor.u32 %v2107, %v2103
      %v2109 = vrot.slane %v2108, 4
      %v2111 = vshll.u32 %v1919, 16
      %v2113 = vrot.slane %v2111, 5
      %v2114 = vsel %vm332, %v2109, %v2113
      %v2116 = vshrl.u32 %v1920, 16
      %v2118 = vrot.slane %v2116, 4
      %v2119 = vshll.u32 %v1920, 16
      %v2121 = vrot.slane %v2119, 5
      %v2122 = vor.u32 %v2118, %v2121
      %v2123 = vrot.slane %v2122, 4
      %v2125 = vshll.u32 %v1921, 16
      %v2127 = vrot.slane %v2125, 5
      %v2128 = vsel %vm332, %v2123, %v2127
      %v2129 = vshrl.u32 %v1921, 16
      %v2131 = vrot.slane %v2129, 4
      %v2132 = vor.u32 %v2131, %v2127
      %v2133 = vrot.slane %v2132, 4
      %v2135 = vshll.u32 %v1922, 16
      %v2137 = vrot.slane %v2135, 5
      %v2138 = vsel %vm332, %v2133, %v2137
      %v2140 = vshrl.u32 %v1923, 16
      %v2142 = vrot.slane %v2140, 4
      %v2143 = vshll.u32 %v1923, 16
      %v2145 = vrot.slane %v2143, 5
      %v2146 = vor.u32 %v2142, %v2145
      %v2147 = vrot.slane %v2146, 4
      %v2149 = vshll.u32 %v1924, 16
      %v2151 = vrot.slane %v2149, 5
      %v2152 = vsel %vm332, %v2147, %v2151
      %v2153 = vshrl.u32 %v1924, 16
      %v2155 = vrot.slane %v2153, 4
      %v2156 = vor.u32 %v2155, %v2151
      %v2157 = vrot.slane %v2156, 4
      %v2159 = vshll.u32 %v1925, 16
      %v2161 = vrot.slane %v2159, 5
      %v2162 = vsel %vm332, %v2157, %v2161
      %v2164 = vshrl.u32 %v1926, 16
      %v2166 = vrot.slane %v2164, 4
      %v2167 = vshll.u32 %v1926, 16
      %v2169 = vrot.slane %v2167, 5
      %v2170 = vor.u32 %v2166, %v2169
      %v2171 = vrot.slane %v2170, 4
      %v2173 = vshll.u32 %v1927, 16
      %v2175 = vrot.slane %v2173, 5
      %v2176 = vsel %vm332, %v2171, %v2175
      %v2177 = vshrl.u32 %v1927, 16
      %v2179 = vrot.slane %v2177, 4
      %v2180 = vor.u32 %v2179, %v2175
      %v2181 = vrot.slane %v2180, 4
      %v2183 = vshll.u32 %v1928, 16
      %v2185 = vrot.slane %v2183, 5
      %v2186 = vsel %vm332, %v2181, %v2185
      %v2188 = vshrl.u32 %v1929, 16
      %v2190 = vrot.slane %v2188, 4
      %v2191 = vshll.u32 %v1929, 16
      %v2193 = vrot.slane %v2191, 5
      %v2194 = vor.u32 %v2190, %v2193
      %v2195 = vrot.slane %v2194, 4
      %v2197 = vshll.u32 %v1930, 16
      %v2199 = vrot.slane %v2197, 5
      %v2200 = vsel %vm332, %v2195, %v2199
      %v2201 = vshrl.u32 %v1930, 16
      %v2203 = vrot.slane %v2201, 4
      %v2204 = vor.u32 %v2203, %v2199
      %v2205 = vrot.slane %v2204, 4
      %v2207 = vshll.u32 %v1931, 16
      %v2209 = vrot.slane %v2207, 5
      %v2210 = vsel %vm332, %v2205, %v2209
      %v2212 = vshrl.u32 %v1932, 16
      %v2214 = vrot.slane %v2212, 4
      %v2215 = vshll.u32 %v1932, 16
      %v2217 = vrot.slane %v2215, 5
      %v2218 = vor.u32 %v2214, %v2217
      %v2219 = vrot.slane %v2218, 4
      %v2221 = vshll.u32 %v1933, 16
      %v2223 = vrot.slane %v2221, 5
      %v2224 = vsel %vm332, %v2219, %v2223
      %v2225 = vshrl.u32 %v1933, 16
      %v2227 = vrot.slane %v2225, 4
      %v2228 = vor.u32 %v2227, %v2223
      %v2229 = vrot.slane %v2228, 4
      %v2231 = vshll.u32 %v1934, 16
      %v2233 = vrot.slane %v2231, 5
      %v2234 = vsel %vm332, %v2229, %v2233
      %v2236 = vshrl.u32 %v1935, 16
      %v2238 = vrot.slane %v2236, 4
      %v2239 = vshll.u32 %v1935, 16
      %v2241 = vrot.slane %v2239, 5
      %v2242 = vor.u32 %v2238, %v2241
      %v2243 = vrot.slane %v2242, 4
      %v2245 = vshll.u32 %v1936, 16
      %v2247 = vrot.slane %v2245, 5
      %v2248 = vsel %vm332, %v2243, %v2247
      %v2249 = vshrl.u32 %v1936, 16
      %v2251 = vrot.slane %v2249, 4
      %v2252 = vor.u32 %v2251, %v2247
      %v2253 = vrot.slane %v2252, 4
      %v2255 = vshll.u32 %v1937, 16
      %v2257 = vrot.slane %v2255, 5
      %v2258 = vsel %vm332, %v2253, %v2257
      %v2260 = vshrl.u32 %v1938, 16
      %v2262 = vrot.slane %v2260, 4
      %v2263 = vshll.u32 %v1938, 16
      %v2265 = vrot.slane %v2263, 5
      %v2266 = vor.u32 %v2262, %v2265
      %v2267 = vrot.slane %v2266, 4
      %v2269 = vshll.u32 %v1939, 16
      %v2271 = vrot.slane %v2269, 5
      %v2272 = vsel %vm332, %v2267, %v2271
      %v2273 = vshrl.u32 %v1939, 16
      %v2275 = vrot.slane %v2273, 4
      %v2276 = vor.u32 %v2275, %v2271
      %v2277 = vrot.slane %v2276, 4
      %v2279 = vshll.u32 %v1940, 16
      %v2281 = vrot.slane %v2279, 5
      %v2282 = vsel %vm332, %v2277, %v2281
      %v2284 = vshrl.u32 %v1941, 16
      %v2286 = vrot.slane %v2284, 4
      %v2287 = vshll.u32 %v1941, 16
      %v2289 = vrot.slane %v2287, 5
      %v2290 = vor.u32 %v2286, %v2289
      %v2291 = vrot.slane %v2290, 4
      %v2293 = vshll.u32 %v1942, 16
      %v2295 = vrot.slane %v2293, 5
      %v2296 = vsel %vm332, %v2291, %v2295
      %v2297 = vshrl.u32 %v1942, 16
      %v2299 = vrot.slane %v2297, 4
      %v2300 = vor.u32 %v2299, %v2295
      %v2301 = vrot.slane %v2300, 4
      %v2303 = vshll.u32 %v1943, 16
      %v2305 = vrot.slane %v2303, 5
      %v2306 = vsel %vm332, %v2301, %v2305
      %v2308 = vshrl.u32 %v1944, 16
      %v2310 = vrot.slane %v2308, 4
      %v2311 = vshll.u32 %v1944, 16
      %v2313 = vrot.slane %v2311, 5
      %v2314 = vor.u32 %v2310, %v2313
      %v2315 = vrot.slane %v2314, 4
      %v2317 = vshll.u32 %v1945, 16
      %v2319 = vrot.slane %v2317, 5
      %v2320 = vsel %vm332, %v2315, %v2319
      %v2321 = vshrl.u32 %v1945, 16
      %v2323 = vrot.slane %v2321, 4
      %v2324 = vor.u32 %v2323, %v2319
      %v2325 = vrot.slane %v2324, 4
      %v2327 = vshll.u32 %v1946, 16
      %v2329 = vrot.slane %v2327, 5
      %v2330 = vsel %vm332, %v2325, %v2329
      %s2331 = scalar_lea.vmem %s1, 256
      %v2332 = vld [vmem:[%s2331] sm:$0xf]
      %v2333 = vld [vmem:[%s2331 + $0x4] sm:$0xf]
      %v2334 = vld [vmem:[%s2331 + $0x8] sm:$0xf]
      %v2335 = vld [vmem:[%s2331 + $0xc] sm:$0xf]
      %v2336 = vld [vmem:[%s2331 + $0x10] sm:$0xf]
      %v2337 = vld [vmem:[%s2331 + $0x14] sm:$0xf]
      %v2338 = vld [vmem:[%s2331 + $0x18] sm:$0xf]
      %v2339 = vld [vmem:[%s2331 + $0x1c] sm:$0xf]
      %v2340 = vld [vmem:[%s2331 + $0x20] sm:$0xf]
      %v2341 = vld [vmem:[%s2331 + $0x24] sm:$0xf]
      %v2342 = vld [vmem:[%s2331 + $0x28] sm:$0xf]
      %v2343 = vld [vmem:[%s2331 + $0x2c] sm:$0xf]
      %v2344 = vld [vmem:[%s2331 + $0x30] sm:$0xf]
      %v2345 = vld [vmem:[%s2331 + $0x34] sm:$0xf]
      %v2346 = vld [vmem:[%s2331 + $0x38] sm:$0xf]
      %v2347 = vld [vmem:[%s2331 + $0x3c] sm:$0xf]
      %v2348 = vunpack.c.l.b16 %v1960
      %v2349 = vunpack.c.l.b16 %v1970
      %v2350 = vunpack.c.l.b16 %v1984
      %v2351 = vunpack.c.l.b16 %v1994
      %v2352 = vunpack.c.l.b16 %v2008
      %v2353 = vunpack.c.l.b16 %v2018
      %v2354 = vunpack.c.l.b16 %v2032
      %v2355 = vunpack.c.l.b16 %v2042
      %v2356 = vunpack.c.l.b16 %v2056
      %v2357 = vunpack.c.l.b16 %v2066
      %v2358 = vunpack.c.l.b16 %v2080
      %v2359 = vunpack.c.l.b16 %v2090
      %v2360 = vunpack.c.l.b16 %v2104
      %v2361 = vunpack.c.l.b16 %v2114
      %v2362 = vunpack.c.l.b16 %v2128
      %v2363 = vunpack.c.l.b16 %v2138
      %v2364 = vunpack.c.l.b16 %v2152
      %v2365 = vunpack.c.l.b16 %v2162
      %v2366 = vunpack.c.l.b16 %v2176
      %v2367 = vunpack.c.l.b16 %v2186
      %v2368 = vunpack.c.l.b16 %v2200
      %v2369 = vunpack.c.l.b16 %v2210
      %v2370 = vunpack.c.l.b16 %v2224
      %v2371 = vunpack.c.l.b16 %v2234
      %v2372 = vunpack.c.l.b16 %v2248
      %v2373 = vunpack.c.l.b16 %v2258
      %v2374 = vunpack.c.l.b16 %v2272
      %v2375 = vunpack.c.l.b16 %v2282
      %v2376 = vunpack.c.l.b16 %v2296
      %v2377 = vunpack.c.l.b16 %v2306
      %v2378 = vunpack.c.l.b16 %v2320
      %v2379 = vunpack.c.l.b16 %v2330
      %v2380 = vpack.c.b16 %v2349, %v2348
      %v2381 = vpack.c.b16 %v2351, %v2350
      %v2382 = vpack.c.b16 %v2353, %v2352
      %v2383 = vpack.c.b16 %v2355, %v2354
      %v2384 = vpack.c.b16 %v2357, %v2356
      %v2385 = vpack.c.b16 %v2359, %v2358
      %v2386 = vpack.c.b16 %v2361, %v2360
      %v2387 = vpack.c.b16 %v2363, %v2362
      %v2388 = vpack.c.b16 %v2365, %v2364
      %v2389 = vpack.c.b16 %v2367, %v2366
      %v2390 = vpack.c.b16 %v2369, %v2368
      %v2391 = vpack.c.b16 %v2371, %v2370
      %v2392 = vpack.c.b16 %v2373, %v2372
      %v2393 = vpack.c.b16 %v2375, %v2374
      %v2394 = vpack.c.b16 %v2377, %v2376
      %v2395 = vpack.c.b16 %v2379, %v2378
      %v2428 = vunpack.c.l.b16 %v2332
      %v2429 = vunpack.c.l.b16 %v2333
      %v2430 = vunpack.c.l.b16 %v2334
      %v2431 = vunpack.c.l.b16 %v2335
      %v2432 = vunpack.c.l.b16 %v2336
      %v2433 = vunpack.c.l.b16 %v2337
      %v2434 = vunpack.c.l.b16 %v2338
      %v2435 = vunpack.c.l.b16 %v2339
      %v2436 = vunpack.c.l.b16 %v2340
      %v2437 = vunpack.c.l.b16 %v2341
      %v2438 = vunpack.c.l.b16 %v2342
      %v2439 = vunpack.c.l.b16 %v2343
      %v2440 = vunpack.c.l.b16 %v2344
      %v2441 = vunpack.c.l.b16 %v2345
      %v2442 = vunpack.c.l.b16 %v2346
      %v2443 = vunpack.c.l.b16 %v2347
      %v2444 = vpack.c.b16 %v2429, %v2428
      %v2445 = vpack.c.b16 %v2431, %v2430
      %v2446 = vpack.c.b16 %v2433, %v2432
      %v2447 = vpack.c.b16 %v2435, %v2434
      %v2448 = vpack.c.b16 %v2437, %v2436
      %v2449 = vpack.c.b16 %v2439, %v2438
      %v2450 = vpack.c.b16 %v2441, %v2440
      %v2451 = vpack.c.b16 %v2443, %v2442
      %2460 = vmatpush.bf16.msra.mxu0 %v2451
      %2461 = vmatpush.bf16.msra.mxu0 %v2450
      %2462 = vmatpush.bf16.msra.mxu0 %v2449
      %2463 = vmatpush.bf16.msra.mxu0 %v2448
      %2464 = vmatpush.bf16.msra.mxu0 %v2447
      %2465 = vmatpush.bf16.msra.mxu0 %v2446
      %2466 = vmatpush.bf16.msra.mxu0 %v2445
      %2467 = vmatpush.bf16.msra.mxu0 %v2444
      %2468 = vmatmul.bf16.gmra.mxu0 %v2380
      %v2469 = vpop.f32.mrf.mxu0
      %v2470 = vadd.f32 0.0, %v2469
      %v2471 = vpop.f32.mrf.mxu0
      %v2472 = vadd.f32 0.0, %v2471
      %2473 = vmatmul.bf16.gmra.mxu0 %v2381
      %v2474 = vpop.f32.mrf.mxu0
      %v2475 = vadd.f32 0.0, %v2474
      %v2476 = vpop.f32.mrf.mxu0
      %v2477 = vadd.f32 0.0, %v2476
      %2478 = vmatmul.bf16.gmra.mxu0 %v2382
      %v2479 = vpop.f32.mrf.mxu0
      %v2480 = vadd.f32 0.0, %v2479
      %v2481 = vpop.f32.mrf.mxu0
      %v2482 = vadd.f32 0.0, %v2481
      %2483 = vmatmul.bf16.gmra.mxu0 %v2383
      %v2484 = vpop.f32.mrf.mxu0
      %v2485 = vadd.f32 0.0, %v2484
      %v2486 = vpop.f32.mrf.mxu0
      %v2487 = vadd.f32 0.0, %v2486
      %2488 = vmatmul.bf16.gmra.mxu0 %v2384
      %v2489 = vpop.f32.mrf.mxu0
      %v2490 = vadd.f32 0.0, %v2489
      %v2491 = vpop.f32.mrf.mxu0
      %v2492 = vadd.f32 0.0, %v2491
      %2493 = vmatmul.bf16.gmra.mxu0 %v2385
      %v2494 = vpop.f32.mrf.mxu0
      %v2495 = vadd.f32 0.0, %v2494
      %v2496 = vpop.f32.mrf.mxu0
      %v2497 = vadd.f32 0.0, %v2496
      %2498 = vmatmul.bf16.gmra.mxu0 %v2386
      %v2499 = vpop.f32.mrf.mxu0
      %v2500 = vadd.f32 0.0, %v2499
      %v2501 = vpop.f32.mrf.mxu0
      %v2502 = vadd.f32 0.0, %v2501
      %2503 = vmatmul.bf16.gmra.mxu0 %v2387
      %v2504 = vpop.f32.mrf.mxu0
      %v2505 = vadd.f32 0.0, %v2504
      %v2506 = vpop.f32.mrf.mxu0
      %v2507 = vadd.f32 0.0, %v2506
      %2508 = vmatmul.bf16.gmra.mxu0 %v2388
      %v2509 = vpop.f32.mrf.mxu0
      %v2510 = vadd.f32 0.0, %v2509
      %v2511 = vpop.f32.mrf.mxu0
      %v2512 = vadd.f32 0.0, %v2511
      %2513 = vmatmul.bf16.gmra.mxu0 %v2389
      %v2514 = vpop.f32.mrf.mxu0
      %v2515 = vadd.f32 0.0, %v2514
      %v2516 = vpop.f32.mrf.mxu0
      %v2517 = vadd.f32 0.0, %v2516
      %2518 = vmatmul.bf16.gmra.mxu0 %v2390
      %v2519 = vpop.f32.mrf.mxu0
      %v2520 = vadd.f32 0.0, %v2519
      %v2521 = vpop.f32.mrf.mxu0
      %v2522 = vadd.f32 0.0, %v2521
      %2523 = vmatmul.bf16.gmra.mxu0 %v2391
      %v2524 = vpop.f32.mrf.mxu0
      %v2525 = vadd.f32 0.0, %v2524
      %v2526 = vpop.f32.mrf.mxu0
      %v2527 = vadd.f32 0.0, %v2526
      %2528 = vmatmul.bf16.gmra.mxu0 %v2392
      %v2529 = vpop.f32.mrf.mxu0
      %v2530 = vadd.f32 0.0, %v2529
      %v2531 = vpop.f32.mrf.mxu0
      %v2532 = vadd.f32 0.0, %v2531
      %2533 = vmatmul.bf16.gmra.mxu0 %v2393
      %v2534 = vpop.f32.mrf.mxu0
      %v2535 = vadd.f32 0.0, %v2534
      %v2536 = vpop.f32.mrf.mxu0
      %v2537 = vadd.f32 0.0, %v2536
      %2538 = vmatmul.bf16.gmra.mxu0 %v2394
      %v2539 = vpop.f32.mrf.mxu0
      %v2540 = vadd.f32 0.0, %v2539
      %v2541 = vpop.f32.mrf.mxu0
      %v2542 = vadd.f32 0.0, %v2541
      %2543 = vmatmul.bf16.gmra.mxu0 %v2395
      %v2544 = vpop.f32.mrf.mxu0
      %v2545 = vadd.f32 0.0, %v2544
      %v2546 = vpop.f32.mrf.mxu0
      %v2547 = vadd.f32 0.0, %v2546
      %2548 = vdwg.mxu0
      %v2549 = vadd.f32 %v1867, %v2470
      %v2550 = vadd.f32 %v1868, %v2472
      %v2551 = vadd.f32 %v1869, %v2475
      %v2552 = vadd.f32 %v1870, %v2477
      %v2553 = vadd.f32 %v1871, %v2480
      %v2554 = vadd.f32 %v1872, %v2482
      %v2555 = vadd.f32 %v1873, %v2485
      %v2556 = vadd.f32 %v1874, %v2487
      %v2557 = vadd.f32 %v1875, %v2490
      %v2558 = vadd.f32 %v1876, %v2492
      %v2559 = vadd.f32 %v1877, %v2495
      %v2560 = vadd.f32 %v1878, %v2497
      %v2561 = vadd.f32 %v1879, %v2500
      %v2562 = vadd.f32 %v1880, %v2502
      %v2563 = vadd.f32 %v1881, %v2505
      %v2564 = vadd.f32 %v1882, %v2507
      %v2565 = vadd.f32 %v1883, %v2510
      %v2566 = vadd.f32 %v1884, %v2512
      %v2567 = vadd.f32 %v1885, %v2515
      %v2568 = vadd.f32 %v1886, %v2517
      %v2569 = vadd.f32 %v1887, %v2520
      %v2570 = vadd.f32 %v1888, %v2522
      %v2571 = vadd.f32 %v1889, %v2525
      %v2572 = vadd.f32 %v1890, %v2527
      %v2573 = vadd.f32 %v1891, %v2530
      %v2574 = vadd.f32 %v1892, %v2532
      %v2575 = vadd.f32 %v1893, %v2535
      %v2576 = vadd.f32 %v1894, %v2537
      %v2577 = vadd.f32 %v1895, %v2540
      %v2578 = vadd.f32 %v1896, %v2542
      %v2579 = vadd.f32 %v1897, %v2545
      %v2580 = vadd.f32 %v1898, %v2547
      %v2581 = vld [vmem:[%s1584] sm:$0xe]
      %v2582 = vld [vmem:[%s1584 + $0xc] sm:$0xe]
      %v2583 = vld [vmem:[%s1584 + $0x18] sm:$0xe]
      %v2584 = vld [vmem:[%s1584 + $0x24] sm:$0xe]
      %v2585 = vld [vmem:[%s1584 + $0x30] sm:$0xe]
      %v2586 = vld [vmem:[%s1584 + $0x3c] sm:$0xe]
      %v2587 = vld [vmem:[%s1584 + $0x48] sm:$0xe]
      %v2588 = vld [vmem:[%s1584 + $0x54] sm:$0xe]
      %v2589 = vld [vmem:[%s1584 + $0x60] sm:$0xe]
      %v2590 = vld [vmem:[%s1584 + $0x6c] sm:$0xe]
      %v2591 = vld [vmem:[%s1584 + $0x78] sm:$0xe]
      %v2592 = vld [vmem:[%s1584 + $0x84] sm:$0xe]
      %v2593 = vld [vmem:[%s1584 + $0x90] sm:$0xe]
      %v2594 = vld [vmem:[%s1584 + $0x9c] sm:$0xe]
      %v2595 = vld [vmem:[%s1584 + $0xa8] sm:$0xe]
      %v2596 = vld [vmem:[%s1584 + $0xb4] sm:$0xe]
      %v2645 = vrot.slane %v2581, 5
      %v2646 = vrot.slane %v2645, 4
      %v2647 = vrot.slane %v1900, 5
      %v2648 = vsel %vm1218, %v2646, %v2647
      %v2649 = vrot.slane %v2647, 4
      %v2650 = vrot.slane %v1901, 5
      %v2651 = vsel %vm1218, %v2649, %v2650
      %v2652 = vrot.slane %v2582, 5
      %v2653 = vrot.slane %v2652, 4
      %v2654 = vrot.slane %v1903, 5
      %v2655 = vsel %vm1218, %v2653, %v2654
      %v2656 = vrot.slane %v2654, 4
      %v2657 = vrot.slane %v1904, 5
      %v2658 = vsel %vm1218, %v2656, %v2657
      %v2659 = vrot.slane %v2583, 5
      %v2660 = vrot.slane %v2659, 4
      %v2661 = vrot.slane %v1906, 5
      %v2662 = vsel %vm1218, %v2660, %v2661
      %v2663 = vrot.slane %v2661, 4
      %v2664 = vrot.slane %v1907, 5
      %v2665 = vsel %vm1218, %v2663, %v2664
      %v2666 = vrot.slane %v2584, 5
      %v2667 = vrot.slane %v2666, 4
      %v2668 = vrot.slane %v1909, 5
      %v2669 = vsel %vm1218, %v2667, %v2668
      %v2670 = vrot.slane %v2668, 4
      %v2671 = vrot.slane %v1910, 5
      %v2672 = vsel %vm1218, %v2670, %v2671
      %v2673 = vrot.slane %v2585, 5
      %v2674 = vrot.slane %v2673, 4
      %v2675 = vrot.slane %v1912, 5
      %v2676 = vsel %vm1218, %v2674, %v2675
      %v2677 = vrot.slane %v2675, 4
      %v2678 = vrot.slane %v1913, 5
      %v2679 = vsel %vm1218, %v2677, %v2678
      %v2680 = vrot.slane %v2586, 5
      %v2681 = vrot.slane %v2680, 4
      %v2682 = vrot.slane %v1915, 5
      %v2683 = vsel %vm1218, %v2681, %v2682
      %v2684 = vrot.slane %v2682, 4
      %v2685 = vrot.slane %v1916, 5
      %v2686 = vsel %vm1218, %v2684, %v2685
      %v2687 = vrot.slane %v2587, 5
      %v2688 = vrot.slane %v2687, 4
      %v2689 = vrot.slane %v1918, 5
      %v2690 = vsel %vm1218, %v2688, %v2689
      %v2691 = vrot.slane %v2689, 4
      %v2692 = vrot.slane %v1919, 5
      %v2693 = vsel %vm1218, %v2691, %v2692
      %v2694 = vrot.slane %v2588, 5
      %v2695 = vrot.slane %v2694, 4
      %v2696 = vrot.slane %v1921, 5
      %v2697 = vsel %vm1218, %v2695, %v2696
      %v2698 = vrot.slane %v2696, 4
      %v2699 = vrot.slane %v1922, 5
      %v2700 = vsel %vm1218, %v2698, %v2699
      %v2701 = vrot.slane %v2589, 5
      %v2702 = vrot.slane %v2701, 4
      %v2703 = vrot.slane %v1924, 5
      %v2704 = vsel %vm1218, %v2702, %v2703
      %v2705 = vrot.slane %v2703, 4
      %v2706 = vrot.slane %v1925, 5
      %v2707 = vsel %vm1218, %v2705, %v2706
      %v2708 = vrot.slane %v2590, 5
      %v2709 = vrot.slane %v2708, 4
      %v2710 = vrot.slane %v1927, 5
      %v2711 = vsel %vm1218, %v2709, %v2710
      %v2712 = vrot.slane %v2710, 4
      %v2713 = vrot.slane %v1928, 5
      %v2714 = vsel %vm1218, %v2712, %v2713
      %v2715 = vrot.slane %v2591, 5
      %v2716 = vrot.slane %v2715, 4
      %v2717 = vrot.slane %v1930, 5
      %v2718 = vsel %vm1218, %v2716, %v2717
      %v2719 = vrot.slane %v2717, 4
      %v2720 = vrot.slane %v1931, 5
      %v2721 = vsel %vm1218, %v2719, %v2720
      %v2722 = vrot.slane %v2592, 5
      %v2723 = vrot.slane %v2722, 4
      %v2724 = vrot.slane %v1933, 5
      %v2725 = vsel %vm1218, %v2723, %v2724
      %v2726 = vrot.slane %v2724, 4
      %v2727 = vrot.slane %v1934, 5
      %v2728 = vsel %vm1218, %v2726, %v2727
      %v2729 = vrot.slane %v2593, 5
      %v2730 = vrot.slane %v2729, 4
      %v2731 = vrot.slane %v1936, 5
      %v2732 = vsel %vm1218, %v2730, %v2731
      %v2733 = vrot.slane %v2731, 4
      %v2734 = vrot.slane %v1937, 5
      %v2735 = vsel %vm1218, %v2733, %v2734
      %v2736 = vrot.slane %v2594, 5
      %v2737 = vrot.slane %v2736, 4
      %v2738 = vrot.slane %v1939, 5
      %v2739 = vsel %vm1218, %v2737, %v2738
      %v2740 = vrot.slane %v2738, 4
      %v2741 = vrot.slane %v1940, 5
      %v2742 = vsel %vm1218, %v2740, %v2741
      %v2743 = vrot.slane %v2595, 5
      %v2744 = vrot.slane %v2743, 4
      %v2745 = vrot.slane %v1942, 5
      %v2746 = vsel %vm1218, %v2744, %v2745
      %v2747 = vrot.slane %v2745, 4
      %v2748 = vrot.slane %v1943, 5
      %v2749 = vsel %vm1218, %v2747, %v2748
      %v2750 = vrot.slane %v2596, 5
      %v2751 = vrot.slane %v2750, 4
      %v2752 = vrot.slane %v1945, 5
      %v2753 = vsel %vm1218, %v2751, %v2752
      %v2754 = vrot.slane %v2752, 4
      %v2755 = vrot.slane %v1946, 5
      %v2756 = vsel %vm1218, %v2754, %v2755
      %s2757 = scalar_lea.vmem %s1, 320
      %v2758 = vld [vmem:[%s2757] sm:$0xf]
      %v2759 = vld [vmem:[%s2757 + $0x4] sm:$0xf]
      %v2760 = vld [vmem:[%s2757 + $0x8] sm:$0xf]
      %v2761 = vld [vmem:[%s2757 + $0xc] sm:$0xf]
      %v2762 = vld [vmem:[%s2757 + $0x10] sm:$0xf]
      %v2763 = vld [vmem:[%s2757 + $0x14] sm:$0xf]
      %v2764 = vld [vmem:[%s2757 + $0x18] sm:$0xf]
      %v2765 = vld [vmem:[%s2757 + $0x1c] sm:$0xf]
      %v2766 = vld [vmem:[%s2757 + $0x20] sm:$0xf]
      %v2767 = vld [vmem:[%s2757 + $0x24] sm:$0xf]
      %v2768 = vld [vmem:[%s2757 + $0x28] sm:$0xf]
      %v2769 = vld [vmem:[%s2757 + $0x2c] sm:$0xf]
      %v2770 = vld [vmem:[%s2757 + $0x30] sm:$0xf]
      %v2771 = vld [vmem:[%s2757 + $0x34] sm:$0xf]
      %v2772 = vld [vmem:[%s2757 + $0x38] sm:$0xf]
      %v2773 = vld [vmem:[%s2757 + $0x3c] sm:$0xf]
      %v2774 = vunpack.c.l.b16 %v2648
      %v2775 = vunpack.c.l.b16 %v2651
      %v2776 = vunpack.c.l.b16 %v2655
      %v2777 = vunpack.c.l.b16 %v2658
      %v2778 = vunpack.c.l.b16 %v2662
      %v2779 = vunpack.c.l.b16 %v2665
      %v2780 = vunpack.c.l.b16 %v2669
      %v2781 = vunpack.c.l.b16 %v2672
      %v2782 = vunpack.c.l.b16 %v2676
      %v2783 = vunpack.c.l.b16 %v2679
      %v2784 = vunpack.c.l.b16 %v2683
      %v2785 = vunpack.c.l.b16 %v2686
      %v2786 = vunpack.c.l.b16 %v2690
      %v2787 = vunpack.c.l.b16 %v2693
      %v2788 = vunpack.c.l.b16 %v2697
      %v2789 = vunpack.c.l.b16 %v2700
      %v2790 = vunpack.c.l.b16 %v2704
      %v2791 = vunpack.c.l.b16 %v2707
      %v2792 = vunpack.c.l.b16 %v2711
      %v2793 = vunpack.c.l.b16 %v2714
      %v2794 = vunpack.c.l.b16 %v2718
      %v2795 = vunpack.c.l.b16 %v2721
      %v2796 = vunpack.c.l.b16 %v2725
      %v2797 = vunpack.c.l.b16 %v2728
      %v2798 = vunpack.c.l.b16 %v2732
      %v2799 = vunpack.c.l.b16 %v2735
      %v2800 = vunpack.c.l.b16 %v2739
      %v2801 = vunpack.c.l.b16 %v2742
      %v2802 = vunpack.c.l.b16 %v2746
      %v2803 = vunpack.c.l.b16 %v2749
      %v2804 = vunpack.c.l.b16 %v2753
      %v2805 = vunpack.c.l.b16 %v2756
      %v2806 = vpack.c.b16 %v2775, %v2774
      %v2807 = vpack.c.b16 %v2777, %v2776
      %v2808 = vpack.c.b16 %v2779, %v2778
      %v2809 = vpack.c.b16 %v2781, %v2780
      %v2810 = vpack.c.b16 %v2783, %v2782
      %v2811 = vpack.c.b16 %v2785, %v2784
      %v2812 = vpack.c.b16 %v2787, %v2786
      %v2813 = vpack.c.b16 %v2789, %v2788
      %v2814 = vpack.c.b16 %v2791, %v2790
      %v2815 = vpack.c.b16 %v2793, %v2792
      %v2816 = vpack.c.b16 %v2795, %v2794
      %v2817 = vpack.c.b16 %v2797, %v2796
      %v2818 = vpack.c.b16 %v2799, %v2798
      %v2819 = vpack.c.b16 %v2801, %v2800
      %v2820 = vpack.c.b16 %v2803, %v2802
      %v2821 = vpack.c.b16 %v2805, %v2804
      %v2854 = vunpack.c.l.b16 %v2758
      %v2855 = vunpack.c.l.b16 %v2759
      %v2856 = vunpack.c.l.b16 %v2760
      %v2857 = vunpack.c.l.b16 %v2761
      %v2858 = vunpack.c.l.b16 %v2762
      %v2859 = vunpack.c.l.b16 %v2763
      %v2860 = vunpack.c.l.b16 %v2764
      %v2861 = vunpack.c.l.b16 %v2765
      %v2862 = vunpack.c.l.b16 %v2766
      %v2863 = vunpack.c.l.b16 %v2767
      %v2864 = vunpack.c.l.b16 %v2768
      %v2865 = vunpack.c.l.b16 %v2769
      %v2866 = vunpack.c.l.b16 %v2770
      %v2867 = vunpack.c.l.b16 %v2771
      %v2868 = vunpack.c.l.b16 %v2772
      %v2869 = vunpack.c.l.b16 %v2773
      %v2870 = vpack.c.b16 %v2855, %v2854
      %v2871 = vpack.c.b16 %v2857, %v2856
      %v2872 = vpack.c.b16 %v2859, %v2858
      %v2873 = vpack.c.b16 %v2861, %v2860
      %v2874 = vpack.c.b16 %v2863, %v2862
      %v2875 = vpack.c.b16 %v2865, %v2864
      %v2876 = vpack.c.b16 %v2867, %v2866
      %v2877 = vpack.c.b16 %v2869, %v2868
      %2886 = vmatpush.bf16.msra.mxu0 %v2877
      %2887 = vmatpush.bf16.msra.mxu0 %v2876
      %2888 = vmatpush.bf16.msra.mxu0 %v2875
      %2889 = vmatpush.bf16.msra.mxu0 %v2874
      %2890 = vmatpush.bf16.msra.mxu0 %v2873
      %2891 = vmatpush.bf16.msra.mxu0 %v2872
      %2892 = vmatpush.bf16.msra.mxu0 %v2871
      %2893 = vmatpush.bf16.msra.mxu0 %v2870
      %2894 = vmatmul.bf16.gmra.mxu0 %v2806
      %v2895 = vpop.f32.mrf.mxu0
      %v2896 = vadd.f32 0.0, %v2895
      %v2897 = vpop.f32.mrf.mxu0
      %v2898 = vadd.f32 0.0, %v2897
      %2899 = vmatmul.bf16.gmra.mxu0 %v2807
      %v2900 = vpop.f32.mrf.mxu0
      %v2901 = vadd.f32 0.0, %v2900
      %v2902 = vpop.f32.mrf.mxu0
      %v2903 = vadd.f32 0.0, %v2902
      %2904 = vmatmul.bf16.gmra.mxu0 %v2808
      %v2905 = vpop.f32.mrf.mxu0
      %v2906 = vadd.f32 0.0, %v2905
      %v2907 = vpop.f32.mrf.mxu0
      %v2908 = vadd.f32 0.0, %v2907
      %2909 = vmatmul.bf16.gmra.mxu0 %v2809
      %v2910 = vpop.f32.mrf.mxu0
      %v2911 = vadd.f32 0.0, %v2910
      %v2912 = vpop.f32.mrf.mxu0
      %v2913 = vadd.f32 0.0, %v2912
      %2914 = vmatmul.bf16.gmra.mxu0 %v2810
      %v2915 = vpop.f32.mrf.mxu0
      %v2916 = vadd.f32 0.0, %v2915
      %v2917 = vpop.f32.mrf.mxu0
      %v2918 = vadd.f32 0.0, %v2917
      %2919 = vmatmul.bf16.gmra.mxu0 %v2811
      %v2920 = vpop.f32.mrf.mxu0
      %v2921 = vadd.f32 0.0, %v2920
      %v2922 = vpop.f32.mrf.mxu0
      %v2923 = vadd.f32 0.0, %v2922
      %2924 = vmatmul.bf16.gmra.mxu0 %v2812
      %v2925 = vpop.f32.mrf.mxu0
      %v2926 = vadd.f32 0.0, %v2925
      %v2927 = vpop.f32.mrf.mxu0
      %v2928 = vadd.f32 0.0, %v2927
      %2929 = vmatmul.bf16.gmra.mxu0 %v2813
      %v2930 = vpop.f32.mrf.mxu0
      %v2931 = vadd.f32 0.0, %v2930
      %v2932 = vpop.f32.mrf.mxu0
      %v2933 = vadd.f32 0.0, %v2932
      %2934 = vmatmul.bf16.gmra.mxu0 %v2814
      %v2935 = vpop.f32.mrf.mxu0
      %v2936 = vadd.f32 0.0, %v2935
      %v2937 = vpop.f32.mrf.mxu0
      %v2938 = vadd.f32 0.0, %v2937
      %2939 = vmatmul.bf16.gmra.mxu0 %v2815
      %v2940 = vpop.f32.mrf.mxu0
      %v2941 = vadd.f32 0.0, %v2940
      %v2942 = vpop.f32.mrf.mxu0
      %v2943 = vadd.f32 0.0, %v2942
      %2944 = vmatmul.bf16.gmra.mxu0 %v2816
      %v2945 = vpop.f32.mrf.mxu0
      %v2946 = vadd.f32 0.0, %v2945
      %v2947 = vpop.f32.mrf.mxu0
      %v2948 = vadd.f32 0.0, %v2947
      %2949 = vmatmul.bf16.gmra.mxu0 %v2817
      %v2950 = vpop.f32.mrf.mxu0
      %v2951 = vadd.f32 0.0, %v2950
      %v2952 = vpop.f32.mrf.mxu0
      %v2953 = vadd.f32 0.0, %v2952
      %2954 = vmatmul.bf16.gmra.mxu0 %v2818
      %v2955 = vpop.f32.mrf.mxu0
      %v2956 = vadd.f32 0.0, %v2955
      %v2957 = vpop.f32.mrf.mxu0
      %v2958 = vadd.f32 0.0, %v2957
      %2959 = vmatmul.bf16.gmra.mxu0 %v2819
      %v2960 = vpop.f32.mrf.mxu0
      %v2961 = vadd.f32 0.0, %v2960
      %v2962 = vpop.f32.mrf.mxu0
      %v2963 = vadd.f32 0.0, %v2962
      %2964 = vmatmul.bf16.gmra.mxu0 %v2820
      %v2965 = vpop.f32.mrf.mxu0
      %v2966 = vadd.f32 0.0, %v2965
      %v2967 = vpop.f32.mrf.mxu0
      %v2968 = vadd.f32 0.0, %v2967
      %2969 = vmatmul.bf16.gmra.mxu0 %v2821
      %v2970 = vpop.f32.mrf.mxu0
      %v2971 = vadd.f32 0.0, %v2970
      %v2972 = vpop.f32.mrf.mxu0
      %v2973 = vadd.f32 0.0, %v2972
      %2974 = vdwg.mxu0
      %v2975 = vadd.f32 %v2549, %v2896
      %v2976 = vadd.f32 %v2550, %v2898
      %v2977 = vadd.f32 %v2551, %v2901
      %v2978 = vadd.f32 %v2552, %v2903
      %v2979 = vadd.f32 %v2553, %v2906
      %v2980 = vadd.f32 %v2554, %v2908
      %v2981 = vadd.f32 %v2555, %v2911
      %v2982 = vadd.f32 %v2556, %v2913
      %v2983 = vadd.f32 %v2557, %v2916
      %v2984 = vadd.f32 %v2558, %v2918
      %v2985 = vadd.f32 %v2559, %v2921
      %v2986 = vadd.f32 %v2560, %v2923
      %v2987 = vadd.f32 %v2561, %v2926
      %v2988 = vadd.f32 %v2562, %v2928
      %v2989 = vadd.f32 %v2563, %v2931
      %v2990 = vadd.f32 %v2564, %v2933
      %v2991 = vadd.f32 %v2565, %v2936
      %v2992 = vadd.f32 %v2566, %v2938
      %v2993 = vadd.f32 %v2567, %v2941
      %v2994 = vadd.f32 %v2568, %v2943
      %v2995 = vadd.f32 %v2569, %v2946
      %v2996 = vadd.f32 %v2570, %v2948
      %v2997 = vadd.f32 %v2571, %v2951
      %v2998 = vadd.f32 %v2572, %v2953
      %v2999 = vadd.f32 %v2573, %v2956
      %v3000 = vadd.f32 %v2574, %v2958
      %v3001 = vadd.f32 %v2575, %v2961
      %v3002 = vadd.f32 %v2576, %v2963
      %v3003 = vadd.f32 %v2577, %v2966
      %v3004 = vadd.f32 %v2578, %v2968
      %v3005 = vadd.f32 %v2579, %v2971
      %v3006 = vadd.f32 %v2580, %v2973
      %s3007 = sadd.s32 %s262, 2
      %s3008 = smul.u32 %s3007, 3
      %s3009 = smul.addr %s3008, 4
      %s3010 = scalar_lea.vmem %s239, %s3009
      %v3011 = vld [vmem:[%s3010] sm:$0xf]
      %v3012 = vld [vmem:[%s3010 + $0x4] sm:$0xf]
      %v3013 = vld [vmem:[%s3010 + $0xc] sm:$0xf]
      %v3014 = vld [vmem:[%s3010 + $0x10] sm:$0xf]
      %v3015 = vld [vmem:[%s3010 + $0x18] sm:$0xf]
      %v3016 = vld [vmem:[%s3010 + $0x1c] sm:$0xf]
      %v3017 = vld [vmem:[%s3010 + $0x24] sm:$0xf]
      %v3018 = vld [vmem:[%s3010 + $0x28] sm:$0xf]
      %v3019 = vld [vmem:[%s3010 + $0x30] sm:$0xf]
      %v3020 = vld [vmem:[%s3010 + $0x34] sm:$0xf]
      %v3021 = vld [vmem:[%s3010 + $0x3c] sm:$0xf]
      %v3022 = vld [vmem:[%s3010 + $0x40] sm:$0xf]
      %v3023 = vld [vmem:[%s3010 + $0x48] sm:$0xf]
      %v3024 = vld [vmem:[%s3010 + $0x4c] sm:$0xf]
      %v3025 = vld [vmem:[%s3010 + $0x54] sm:$0xf]
      %v3026 = vld [vmem:[%s3010 + $0x58] sm:$0xf]
      %v3027 = vld [vmem:[%s3010 + $0x60] sm:$0xf]
      %v3028 = vld [vmem:[%s3010 + $0x64] sm:$0xf]
      %v3029 = vld [vmem:[%s3010 + $0x6c] sm:$0xf]
      %v3030 = vld [vmem:[%s3010 + $0x70] sm:$0xf]
      %v3031 = vld [vmem:[%s3010 + $0x78] sm:$0xf]
      %v3032 = vld [vmem:[%s3010 + $0x7c] sm:$0xf]
      %v3033 = vld [vmem:[%s3010 + $0x84] sm:$0xf]
      %v3034 = vld [vmem:[%s3010 + $0x88] sm:$0xf]
      %v3035 = vld [vmem:[%s3010 + $0x90] sm:$0xf]
      %v3036 = vld [vmem:[%s3010 + $0x94] sm:$0xf]
      %v3037 = vld [vmem:[%s3010 + $0x9c] sm:$0xf]
      %v3038 = vld [vmem:[%s3010 + $0xa0] sm:$0xf]
      %v3039 = vld [vmem:[%s3010 + $0xa8] sm:$0xf]
      %v3040 = vld [vmem:[%s3010 + $0xac] sm:$0xf]
      %v3041 = vld [vmem:[%s3010 + $0xb4] sm:$0xf]
      %v3042 = vld [vmem:[%s3010 + $0xb8] sm:$0xf]
      %s3043 = scalar_lea.vmem %s1, 384
      %v3044 = vld [vmem:[%s3043] sm:$0xf]
      %v3045 = vld [vmem:[%s3043 + $0x4] sm:$0xf]
      %v3046 = vld [vmem:[%s3043 + $0x8] sm:$0xf]
      %v3047 = vld [vmem:[%s3043 + $0xc] sm:$0xf]
      %v3048 = vld [vmem:[%s3043 + $0x10] sm:$0xf]
      %v3049 = vld [vmem:[%s3043 + $0x14] sm:$0xf]
      %v3050 = vld [vmem:[%s3043 + $0x18] sm:$0xf]
      %v3051 = vld [vmem:[%s3043 + $0x1c] sm:$0xf]
      %v3052 = vld [vmem:[%s3043 + $0x20] sm:$0xf]
      %v3053 = vld [vmem:[%s3043 + $0x24] sm:$0xf]
      %v3054 = vld [vmem:[%s3043 + $0x28] sm:$0xf]
      %v3055 = vld [vmem:[%s3043 + $0x2c] sm:$0xf]
      %v3056 = vld [vmem:[%s3043 + $0x30] sm:$0xf]
      %v3057 = vld [vmem:[%s3043 + $0x34] sm:$0xf]
      %v3058 = vld [vmem:[%s3043 + $0x38] sm:$0xf]
      %v3059 = vld [vmem:[%s3043 + $0x3c] sm:$0xf]
      %v3092 = vunpack.c.l.b16 %v3011
      %v3093 = vunpack.c.l.b16 %v3012
      %v3094 = vunpack.c.l.b16 %v3013
      %v3095 = vunpack.c.l.b16 %v3014
      %v3096 = vunpack.c.l.b16 %v3015
      %v3097 = vunpack.c.l.b16 %v3016
      %v3098 = vunpack.c.l.b16 %v3017
      %v3099 = vunpack.c.l.b16 %v3018
      %v3100 = vunpack.c.l.b16 %v3019
      %v3101 = vunpack.c.l.b16 %v3020
      %v3102 = vunpack.c.l.b16 %v3021
      %v3103 = vunpack.c.l.b16 %v3022
      %v3104 = vunpack.c.l.b16 %v3023
      %v3105 = vunpack.c.l.b16 %v3024
      %v3106 = vunpack.c.l.b16 %v3025
      %v3107 = vunpack.c.l.b16 %v3026
      %v3108 = vunpack.c.l.b16 %v3027
      %v3109 = vunpack.c.l.b16 %v3028
      %v3110 = vunpack.c.l.b16 %v3029
      %v3111 = vunpack.c.l.b16 %v3030
      %v3112 = vunpack.c.l.b16 %v3031
      %v3113 = vunpack.c.l.b16 %v3032
      %v3114 = vunpack.c.l.b16 %v3033
      %v3115 = vunpack.c.l.b16 %v3034
      %v3116 = vunpack.c.l.b16 %v3035
      %v3117 = vunpack.c.l.b16 %v3036
      %v3118 = vunpack.c.l.b16 %v3037
      %v3119 = vunpack.c.l.b16 %v3038
      %v3120 = vunpack.c.l.b16 %v3039
      %v3121 = vunpack.c.l.b16 %v3040
      %v3122 = vunpack.c.l.b16 %v3041
      %v3123 = vunpack.c.l.b16 %v3042
      %v3124 = vpack.c.b16 %v3093, %v3092
      %v3125 = vpack.c.b16 %v3095, %v3094
      %v3126 = vpack.c.b16 %v3097, %v3096
      %v3127 = vpack.c.b16 %v3099, %v3098
      %v3128 = vpack.c.b16 %v3101, %v3100
      %v3129 = vpack.c.b16 %v3103, %v3102
      %v3130 = vpack.c.b16 %v3105, %v3104
      %v3131 = vpack.c.b16 %v3107, %v3106
      %v3132 = vpack.c.b16 %v3109, %v3108
      %v3133 = vpack.c.b16 %v3111, %v3110
      %v3134 = vpack.c.b16 %v3113, %v3112
      %v3135 = vpack.c.b16 %v3115, %v3114
      %v3136 = vpack.c.b16 %v3117, %v3116
      %v3137 = vpack.c.b16 %v3119, %v3118
      %v3138 = vpack.c.b16 %v3121, %v3120
      %v3139 = vpack.c.b16 %v3123, %v3122
      %v3172 = vunpack.c.l.b16 %v3044
      %v3173 = vunpack.c.l.b16 %v3045
      %v3174 = vunpack.c.l.b16 %v3046
      %v3175 = vunpack.c.l.b16 %v3047
      %v3176 = vunpack.c.l.b16 %v3048
      %v3177 = vunpack.c.l.b16 %v3049
      %v3178 = vunpack.c.l.b16 %v3050
      %v3179 = vunpack.c.l.b16 %v3051
      %v3180 = vunpack.c.l.b16 %v3052
      %v3181 = vunpack.c.l.b16 %v3053
      %v3182 = vunpack.c.l.b16 %v3054
      %v3183 = vunpack.c.l.b16 %v3055
      %v3184 = vunpack.c.l.b16 %v3056
      %v3185 = vunpack.c.l.b16 %v3057
      %v3186 = vunpack.c.l.b16 %v3058
      %v3187 = vunpack.c.l.b16 %v3059
      %v3188 = vpack.c.b16 %v3173, %v3172
      %v3189 = vpack.c.b16 %v3175, %v3174
      %v3190 = vpack.c.b16 %v3177, %v3176
      %v3191 = vpack.c.b16 %v3179, %v3178
      %v3192 = vpack.c.b16 %v3181, %v3180
      %v3193 = vpack.c.b16 %v3183, %v3182
      %v3194 = vpack.c.b16 %v3185, %v3184
      %v3195 = vpack.c.b16 %v3187, %v3186
      %3204 = vmatpush.bf16.msra.mxu0 %v3195
      %3205 = vmatpush.bf16.msra.mxu0 %v3194
      %3206 = vmatpush.bf16.msra.mxu0 %v3193
      %3207 = vmatpush.bf16.msra.mxu0 %v3192
      %3208 = vmatpush.bf16.msra.mxu0 %v3191
      %3209 = vmatpush.bf16.msra.mxu0 %v3190
      %3210 = vmatpush.bf16.msra.mxu0 %v3189
      %3211 = vmatpush.bf16.msra.mxu0 %v3188
      %3212 = vmatmul.bf16.gmra.mxu0 %v3124
      %v3213 = vpop.f32.mrf.mxu0
      %v3214 = vadd.f32 0.0, %v3213
      %v3215 = vpop.f32.mrf.mxu0
      %v3216 = vadd.f32 0.0, %v3215
      %3217 = vmatmul.bf16.gmra.mxu0 %v3125
      %v3218 = vpop.f32.mrf.mxu0
      %v3219 = vadd.f32 0.0, %v3218
      %v3220 = vpop.f32.mrf.mxu0
      %v3221 = vadd.f32 0.0, %v3220
      %3222 = vmatmul.bf16.gmra.mxu0 %v3126
      %v3223 = vpop.f32.mrf.mxu0
      %v3224 = vadd.f32 0.0, %v3223
      %v3225 = vpop.f32.mrf.mxu0
      %v3226 = vadd.f32 0.0, %v3225
      %3227 = vmatmul.bf16.gmra.mxu0 %v3127
      %v3228 = vpop.f32.mrf.mxu0
      %v3229 = vadd.f32 0.0, %v3228
      %v3230 = vpop.f32.mrf.mxu0
      %v3231 = vadd.f32 0.0, %v3230
      %3232 = vmatmul.bf16.gmra.mxu0 %v3128
      %v3233 = vpop.f32.mrf.mxu0
      %v3234 = vadd.f32 0.0, %v3233
      %v3235 = vpop.f32.mrf.mxu0
      %v3236 = vadd.f32 0.0, %v3235
      %3237 = vmatmul.bf16.gmra.mxu0 %v3129
      %v3238 = vpop.f32.mrf.mxu0
      %v3239 = vadd.f32 0.0, %v3238
      %v3240 = vpop.f32.mrf.mxu0
      %v3241 = vadd.f32 0.0, %v3240
      %3242 = vmatmul.bf16.gmra.mxu0 %v3130
      %v3243 = vpop.f32.mrf.mxu0
      %v3244 = vadd.f32 0.0, %v3243
      %v3245 = vpop.f32.mrf.mxu0
      %v3246 = vadd.f32 0.0, %v3245
      %3247 = vmatmul.bf16.gmra.mxu0 %v3131
      %v3248 = vpop.f32.mrf.mxu0
      %v3249 = vadd.f32 0.0, %v3248
      %v3250 = vpop.f32.mrf.mxu0
      %v3251 = vadd.f32 0.0, %v3250
      %3252 = vmatmul.bf16.gmra.mxu0 %v3132
      %v3253 = vpop.f32.mrf.mxu0
      %v3254 = vadd.f32 0.0, %v3253
      %v3255 = vpop.f32.mrf.mxu0
      %v3256 = vadd.f32 0.0, %v3255
      %3257 = vmatmul.bf16.gmra.mxu0 %v3133
      %v3258 = vpop.f32.mrf.mxu0
      %v3259 = vadd.f32 0.0, %v3258
      %v3260 = vpop.f32.mrf.mxu0
      %v3261 = vadd.f32 0.0, %v3260
      %3262 = vmatmul.bf16.gmra.mxu0 %v3134
      %v3263 = vpop.f32.mrf.mxu0
      %v3264 = vadd.f32 0.0, %v3263
      %v3265 = vpop.f32.mrf.mxu0
      %v3266 = vadd.f32 0.0, %v3265
      %3267 = vmatmul.bf16.gmra.mxu0 %v3135
      %v3268 = vpop.f32.mrf.mxu0
      %v3269 = vadd.f32 0.0, %v3268
      %v3270 = vpop.f32.mrf.mxu0
      %v3271 = vadd.f32 0.0, %v3270
      %3272 = vmatmul.bf16.gmra.mxu0 %v3136
      %v3273 = vpop.f32.mrf.mxu0
      %v3274 = vadd.f32 0.0, %v3273
      %v3275 = vpop.f32.mrf.mxu0
      %v3276 = vadd.f32 0.0, %v3275
      %3277 = vmatmul.bf16.gmra.mxu0 %v3137
      %v3278 = vpop.f32.mrf.mxu0
      %v3279 = vadd.f32 0.0, %v3278
      %v3280 = vpop.f32.mrf.mxu0
      %v3281 = vadd.f32 0.0, %v3280
      %3282 = vmatmul.bf16.gmra.mxu0 %v3138
      %v3283 = vpop.f32.mrf.mxu0
      %v3284 = vadd.f32 0.0, %v3283
      %v3285 = vpop.f32.mrf.mxu0
      %v3286 = vadd.f32 0.0, %v3285
      %3287 = vmatmul.bf16.gmra.mxu0 %v3139
      %v3288 = vpop.f32.mrf.mxu0
      %v3289 = vadd.f32 0.0, %v3288
      %v3290 = vpop.f32.mrf.mxu0
      %v3291 = vadd.f32 0.0, %v3290
      %3292 = vdwg.mxu0
      %v3293 = vadd.f32 %v2975, %v3214
      %v3294 = vadd.f32 %v2976, %v3216
      %v3295 = vadd.f32 %v2977, %v3219
      %v3296 = vadd.f32 %v2978, %v3221
      %v3297 = vadd.f32 %v2979, %v3224
      %v3298 = vadd.f32 %v2980, %v3226
      %v3299 = vadd.f32 %v2981, %v3229
      %v3300 = vadd.f32 %v2982, %v3231
      %v3301 = vadd.f32 %v2983, %v3234
      %v3302 = vadd.f32 %v2984, %v3236
      %v3303 = vadd.f32 %v2985, %v3239
      %v3304 = vadd.f32 %v2986, %v3241
      %v3305 = vadd.f32 %v2987, %v3244
      %v3306 = vadd.f32 %v2988, %v3246
      %v3307 = vadd.f32 %v2989, %v3249
      %v3308 = vadd.f32 %v2990, %v3251
      %v3309 = vadd.f32 %v2991, %v3254
      %v3310 = vadd.f32 %v2992, %v3256
      %v3311 = vadd.f32 %v2993, %v3259
      %v3312 = vadd.f32 %v2994, %v3261
      %v3313 = vadd.f32 %v2995, %v3264
      %v3314 = vadd.f32 %v2996, %v3266
      %v3315 = vadd.f32 %v2997, %v3269
      %v3316 = vadd.f32 %v2998, %v3271
      %v3317 = vadd.f32 %v2999, %v3274
      %v3318 = vadd.f32 %v3000, %v3276
      %v3319 = vadd.f32 %v3001, %v3279
      %v3320 = vadd.f32 %v3002, %v3281
      %v3321 = vadd.f32 %v3003, %v3284
      %v3322 = vadd.f32 %v3004, %v3286
      %v3323 = vadd.f32 %v3005, %v3289
      %v3324 = vadd.f32 %v3006, %v3291
      %v3325 = vld [vmem:[%s3010] sm:$0xf]
      %v3326 = vld [vmem:[%s3010 + $0x4] sm:$0xf]
      %v3327 = vld [vmem:[%s3010 + $0x8] sm:$0x1]
      %v3328 = vld [vmem:[%s3010 + $0xc] sm:$0xf]
      %v3329 = vld [vmem:[%s3010 + $0x10] sm:$0xf]
      %v3330 = vld [vmem:[%s3010 + $0x14] sm:$0x1]
      %v3331 = vld [vmem:[%s3010 + $0x18] sm:$0xf]
      %v3332 = vld [vmem:[%s3010 + $0x1c] sm:$0xf]
      %v3333 = vld [vmem:[%s3010 + $0x20] sm:$0x1]
      %v3334 = vld [vmem:[%s3010 + $0x24] sm:$0xf]
      %v3335 = vld [vmem:[%s3010 + $0x28] sm:$0xf]
      %v3336 = vld [vmem:[%s3010 + $0x2c] sm:$0x1]
      %v3337 = vld [vmem:[%s3010 + $0x30] sm:$0xf]
      %v3338 = vld [vmem:[%s3010 + $0x34] sm:$0xf]
      %v3339 = vld [vmem:[%s3010 + $0x38] sm:$0x1]
      %v3340 = vld [vmem:[%s3010 + $0x3c] sm:$0xf]
      %v3341 = vld [vmem:[%s3010 + $0x40] sm:$0xf]
      %v3342 = vld [vmem:[%s3010 + $0x44] sm:$0x1]
      %v3343 = vld [vmem:[%s3010 + $0x48] sm:$0xf]
      %v3344 = vld [vmem:[%s3010 + $0x4c] sm:$0xf]
      %v3345 = vld [vmem:[%s3010 + $0x50] sm:$0x1]
      %v3346 = vld [vmem:[%s3010 + $0x54] sm:$0xf]
      %v3347 = vld [vmem:[%s3010 + $0x58] sm:$0xf]
      %v3348 = vld [vmem:[%s3010 + $0x5c] sm:$0x1]
      %v3349 = vld [vmem:[%s3010 + $0x60] sm:$0xf]
      %v3350 = vld [vmem:[%s3010 + $0x64] sm:$0xf]
      %v3351 = vld [vmem:[%s3010 + $0x68] sm:$0x1]
      %v3352 = vld [vmem:[%s3010 + $0x6c] sm:$0xf]
      %v3353 = vld [vmem:[%s3010 + $0x70] sm:$0xf]
      %v3354 = vld [vmem:[%s3010 + $0x74] sm:$0x1]
      %v3355 = vld [vmem:[%s3010 + $0x78] sm:$0xf]
      %v3356 = vld [vmem:[%s3010 + $0x7c] sm:$0xf]
      %v3357 = vld [vmem:[%s3010 + $0x80] sm:$0x1]
      %v3358 = vld [vmem:[%s3010 + $0x84] sm:$0xf]
      %v3359 = vld [vmem:[%s3010 + $0x88] sm:$0xf]
      %v3360 = vld [vmem:[%s3010 + $0x8c] sm:$0x1]
      %v3361 = vld [vmem:[%s3010 + $0x90] sm:$0xf]
      %v3362 = vld [vmem:[%s3010 + $0x94] sm:$0xf]
      %v3363 = vld [vmem:[%s3010 + $0x98] sm:$0x1]
      %v3364 = vld [vmem:[%s3010 + $0x9c] sm:$0xf]
      %v3365 = vld [vmem:[%s3010 + $0xa0] sm:$0xf]
      %v3366 = vld [vmem:[%s3010 + $0xa4] sm:$0x1]
      %v3367 = vld [vmem:[%s3010 + $0xa8] sm:$0xf]
      %v3368 = vld [vmem:[%s3010 + $0xac] sm:$0xf]
      %v3369 = vld [vmem:[%s3010 + $0xb0] sm:$0x1]
      %v3370 = vld [vmem:[%s3010 + $0xb4] sm:$0xf]
      %v3371 = vld [vmem:[%s3010 + $0xb8] sm:$0xf]
      %v3372 = vld [vmem:[%s3010 + $0xbc] sm:$0x1]
      %v3374 = vshrl.u32 %v3325, 16
      %v3376 = vrot.slane %v3374, 4
      %v3377 = vshll.u32 %v3325, 16
      %v3379 = vrot.slane %v3377, 5
      %v3380 = vor.u32 %v3376, %v3379
      %v3381 = vrot.slane %v3380, 4
      %v3383 = vshll.u32 %v3326, 16
      %v3385 = vrot.slane %v3383, 5
      %v3386 = vsel %vm332, %v3381, %v3385
      %v3387 = vshrl.u32 %v3326, 16
      %v3389 = vrot.slane %v3387, 4
      %v3390 = vor.u32 %v3389, %v3385
      %v3391 = vrot.slane %v3390, 4
      %v3393 = vshll.u32 %v3327, 16
      %v3395 = vrot.slane %v3393, 5
      %v3396 = vsel %vm332, %v3391, %v3395
      %v3398 = vshrl.u32 %v3328, 16
      %v3400 = vrot.slane %v3398, 4
      %v3401 = vshll.u32 %v3328, 16
      %v3403 = vrot.slane %v3401, 5
      %v3404 = vor.u32 %v3400, %v3403
      %v3405 = vrot.slane %v3404, 4
      %v3407 = vshll.u32 %v3329, 16
      %v3409 = vrot.slane %v3407, 5
      %v3410 = vsel %vm332, %v3405, %v3409
      %v3411 = vshrl.u32 %v3329, 16
      %v3413 = vrot.slane %v3411, 4
      %v3414 = vor.u32 %v3413, %v3409
      %v3415 = vrot.slane %v3414, 4
      %v3417 = vshll.u32 %v3330, 16
      %v3419 = vrot.slane %v3417, 5
      %v3420 = vsel %vm332, %v3415, %v3419
      %v3422 = vshrl.u32 %v3331, 16
      %v3424 = vrot.slane %v3422, 4
      %v3425 = vshll.u32 %v3331, 16
      %v3427 = vrot.slane %v3425, 5
      %v3428 = vor.u32 %v3424, %v3427
      %v3429 = vrot.slane %v3428, 4
      %v3431 = vshll.u32 %v3332, 16
      %v3433 = vrot.slane %v3431, 5
      %v3434 = vsel %vm332, %v3429, %v3433
      %v3435 = vshrl.u32 %v3332, 16
      %v3437 = vrot.slane %v3435, 4
      %v3438 = vor.u32 %v3437, %v3433
      %v3439 = vrot.slane %v3438, 4
      %v3441 = vshll.u32 %v3333, 16
      %v3443 = vrot.slane %v3441, 5
      %v3444 = vsel %vm332, %v3439, %v3443
      %v3446 = vshrl.u32 %v3334, 16
      %v3448 = vrot.slane %v3446, 4
      %v3449 = vshll.u32 %v3334, 16
      %v3451 = vrot.slane %v3449, 5
      %v3452 = vor.u32 %v3448, %v3451
      %v3453 = vrot.slane %v3452, 4
      %v3455 = vshll.u32 %v3335, 16
      %v3457 = vrot.slane %v3455, 5
      %v3458 = vsel %vm332, %v3453, %v3457
      %v3459 = vshrl.u32 %v3335, 16
      %v3461 = vrot.slane %v3459, 4
      %v3462 = vor.u32 %v3461, %v3457
      %v3463 = vrot.slane %v3462, 4
      %v3465 = vshll.u32 %v3336, 16
      %v3467 = vrot.slane %v3465, 5
      %v3468 = vsel %vm332, %v3463, %v3467
      %v3470 = vshrl.u32 %v3337, 16
      %v3472 = vrot.slane %v3470, 4
      %v3473 = vshll.u32 %v3337, 16
      %v3475 = vrot.slane %v3473, 5
      %v3476 = vor.u32 %v3472, %v3475
      %v3477 = vrot.slane %v3476, 4
      %v3479 = vshll.u32 %v3338, 16
      %v3481 = vrot.slane %v3479, 5
      %v3482 = vsel %vm332, %v3477, %v3481
      %v3483 = vshrl.u32 %v3338, 16
      %v3485 = vrot.slane %v3483, 4
      %v3486 = vor.u32 %v3485, %v3481
      %v3487 = vrot.slane %v3486, 4
      %v3489 = vshll.u32 %v3339, 16
      %v3491 = vrot.slane %v3489, 5
      %v3492 = vsel %vm332, %v3487, %v3491
      %v3494 = vshrl.u32 %v3340, 16
      %v3496 = vrot.slane %v3494, 4
      %v3497 = vshll.u32 %v3340, 16
      %v3499 = vrot.slane %v3497, 5
      %v3500 = vor.u32 %v3496, %v3499
      %v3501 = vrot.slane %v3500, 4
      %v3503 = vshll.u32 %v3341, 16
      %v3505 = vrot.slane %v3503, 5
      %v3506 = vsel %vm332, %v3501, %v3505
      %v3507 = vshrl.u32 %v3341, 16
      %v3509 = vrot.slane %v3507, 4
      %v3510 = vor.u32 %v3509, %v3505
      %v3511 = vrot.slane %v3510, 4
      %v3513 = vshll.u32 %v3342, 16
      %v3515 = vrot.slane %v3513, 5
      %v3516 = vsel %vm332, %v3511, %v3515
      %v3518 = vshrl.u32 %v3343, 16
      %v3520 = vrot.slane %v3518, 4
      %v3521 = vshll.u32 %v3343, 16
      %v3523 = vrot.slane %v3521, 5
      %v3524 = vor.u32 %v3520, %v3523
      %v3525 = vrot.slane %v3524, 4
      %v3527 = vshll.u32 %v3344, 16
      %v3529 = vrot.slane %v3527, 5
      %v3530 = vsel %vm332, %v3525, %v3529
      %v3531 = vshrl.u32 %v3344, 16
      %v3533 = vrot.slane %v3531, 4
      %v3534 = vor.u32 %v3533, %v3529
      %v3535 = vrot.slane %v3534, 4
      %v3537 = vshll.u32 %v3345, 16
      %v3539 = vrot.slane %v3537, 5
      %v3540 = vsel %vm332, %v3535, %v3539
      %v3542 = vshrl.u32 %v3346, 16
      %v3544 = vrot.slane %v3542, 4
      %v3545 = vshll.u32 %v3346, 16
      %v3547 = vrot.slane %v3545, 5
      %v3548 = vor.u32 %v3544, %v3547
      %v3549 = vrot.slane %v3548, 4
      %v3551 = vshll.u32 %v3347, 16
      %v3553 = vrot.slane %v3551, 5
      %v3554 = vsel %vm332, %v3549, %v3553
      %v3555 = vshrl.u32 %v3347, 16
      %v3557 = vrot.slane %v3555, 4
      %v3558 = vor.u32 %v3557, %v3553
      %v3559 = vrot.slane %v3558, 4
      %v3561 = vshll.u32 %v3348, 16
      %v3563 = vrot.slane %v3561, 5
      %v3564 = vsel %vm332, %v3559, %v3563
      %v3566 = vshrl.u32 %v3349, 16
      %v3568 = vrot.slane %v3566, 4
      %v3569 = vshll.u32 %v3349, 16
      %v3571 = vrot.slane %v3569, 5
      %v3572 = vor.u32 %v3568, %v3571
      %v3573 = vrot.slane %v3572, 4
      %v3575 = vshll.u32 %v3350, 16
      %v3577 = vrot.slane %v3575, 5
      %v3578 = vsel %vm332, %v3573, %v3577
      %v3579 = vshrl.u32 %v3350, 16
      %v3581 = vrot.slane %v3579, 4
      %v3582 = vor.u32 %v3581, %v3577
      %v3583 = vrot.slane %v3582, 4
      %v3585 = vshll.u32 %v3351, 16
      %v3587 = vrot.slane %v3585, 5
      %v3588 = vsel %vm332, %v3583, %v3587
      %v3590 = vshrl.u32 %v3352, 16
      %v3592 = vrot.slane %v3590, 4
      %v3593 = vshll.u32 %v3352, 16
      %v3595 = vrot.slane %v3593, 5
      %v3596 = vor.u32 %v3592, %v3595
      %v3597 = vrot.slane %v3596, 4
      %v3599 = vshll.u32 %v3353, 16
      %v3601 = vrot.slane %v3599, 5
      %v3602 = vsel %vm332, %v3597, %v3601
      %v3603 = vshrl.u32 %v3353, 16
      %v3605 = vrot.slane %v3603, 4
      %v3606 = vor.u32 %v3605, %v3601
      %v3607 = vrot.slane %v3606, 4
      %v3609 = vshll.u32 %v3354, 16
      %v3611 = vrot.slane %v3609, 5
      %v3612 = vsel %vm332, %v3607, %v3611
      %v3614 = vshrl.u32 %v3355, 16
      %v3616 = vrot.slane %v3614, 4
      %v3617 = vshll.u32 %v3355, 16
      %v3619 = vrot.slane %v3617, 5
      %v3620 = vor.u32 %v3616, %v3619
      %v3621 = vrot.slane %v3620, 4
      %v3623 = vshll.u32 %v3356, 16
      %v3625 = vrot.slane %v3623, 5
      %v3626 = vsel %vm332, %v3621, %v3625
      %v3627 = vshrl.u32 %v3356, 16
      %v3629 = vrot.slane %v3627, 4
      %v3630 = vor.u32 %v3629, %v3625
      %v3631 = vrot.slane %v3630, 4
      %v3633 = vshll.u32 %v3357, 16
      %v3635 = vrot.slane %v3633, 5
      %v3636 = vsel %vm332, %v3631, %v3635
      %v3638 = vshrl.u32 %v3358, 16
      %v3640 = vrot.slane %v3638, 4
      %v3641 = vshll.u32 %v3358, 16
      %v3643 = vrot.slane %v3641, 5
      %v3644 = vor.u32 %v3640, %v3643
      %v3645 = vrot.slane %v3644, 4
      %v3647 = vshll.u32 %v3359, 16
      %v3649 = vrot.slane %v3647, 5
      %v3650 = vsel %vm332, %v3645, %v3649
      %v3651 = vshrl.u32 %v3359, 16
      %v3653 = vrot.slane %v3651, 4
      %v3654 = vor.u32 %v3653, %v3649
      %v3655 = vrot.slane %v3654, 4
      %v3657 = vshll.u32 %v3360, 16
      %v3659 = vrot.slane %v3657, 5
      %v3660 = vsel %vm332, %v3655, %v3659
      %v3662 = vshrl.u32 %v3361, 16
      %v3664 = vrot.slane %v3662, 4
      %v3665 = vshll.u32 %v3361, 16
      %v3667 = vrot.slane %v3665, 5
      %v3668 = vor.u32 %v3664, %v3667
      %v3669 = vrot.slane %v3668, 4
      %v3671 = vshll.u32 %v3362, 16
      %v3673 = vrot.slane %v3671, 5
      %v3674 = vsel %vm332, %v3669, %v3673
      %v3675 = vshrl.u32 %v3362, 16
      %v3677 = vrot.slane %v3675, 4
      %v3678 = vor.u32 %v3677, %v3673
      %v3679 = vrot.slane %v3678, 4
      %v3681 = vshll.u32 %v3363, 16
      %v3683 = vrot.slane %v3681, 5
      %v3684 = vsel %vm332, %v3679, %v3683
      %v3686 = vshrl.u32 %v3364, 16
      %v3688 = vrot.slane %v3686, 4
      %v3689 = vshll.u32 %v3364, 16
      %v3691 = vrot.slane %v3689, 5
      %v3692 = vor.u32 %v3688, %v3691
      %v3693 = vrot.slane %v3692, 4
      %v3695 = vshll.u32 %v3365, 16
      %v3697 = vrot.slane %v3695, 5
      %v3698 = vsel %vm332, %v3693, %v3697
      %v3699 = vshrl.u32 %v3365, 16
      %v3701 = vrot.slane %v3699, 4
      %v3702 = vor.u32 %v3701, %v3697
      %v3703 = vrot.slane %v3702, 4
      %v3705 = vshll.u32 %v3366, 16
      %v3707 = vrot.slane %v3705, 5
      %v3708 = vsel %vm332, %v3703, %v3707
      %v3710 = vshrl.u32 %v3367, 16
      %v3712 = vrot.slane %v3710, 4
      %v3713 = vshll.u32 %v3367, 16
      %v3715 = vrot.slane %v3713, 5
      %v3716 = vor.u32 %v3712, %v3715
      %v3717 = vrot.slane %v3716, 4
      %v3719 = vshll.u32 %v3368, 16
      %v3721 = vrot.slane %v3719, 5
      %v3722 = vsel %vm332, %v3717, %v3721
      %v3723 = vshrl.u32 %v3368, 16
      %v3725 = vrot.slane %v3723, 4
      %v3726 = vor.u32 %v3725, %v3721
      %v3727 = vrot.slane %v3726, 4
      %v3729 = vshll.u32 %v3369, 16
      %v3731 = vrot.slane %v3729, 5
      %v3732 = vsel %vm332, %v3727, %v3731
      %v3734 = vshrl.u32 %v3370, 16
      %v3736 = vrot.slane %v3734, 4
      %v3737 = vshll.u32 %v3370, 16
      %v3739 = vrot.slane %v3737, 5
      %v3740 = vor.u32 %v3736, %v3739
      %v3741 = vrot.slane %v3740, 4
      %v3743 = vshll.u32 %v3371, 16
      %v3745 = vrot.slane %v3743, 5
      %v3746 = vsel %vm332, %v3741, %v3745
      %v3747 = vshrl.u32 %v3371, 16
      %v3749 = vrot.slane %v3747, 4
      %v3750 = vor.u32 %v3749, %v3745
      %v3751 = vrot.slane %v3750, 4
      %v3753 = vshll.u32 %v3372, 16
      %v3755 = vrot.slane %v3753, 5
      %v3756 = vsel %vm332, %v3751, %v3755
      %s3757 = scalar_lea.vmem %s1, 448
      %v3758 = vld [vmem:[%s3757] sm:$0xf]
      %v3759 = vld [vmem:[%s3757 + $0x4] sm:$0xf]
      %v3760 = vld [vmem:[%s3757 + $0x8] sm:$0xf]
      %v3761 = vld [vmem:[%s3757 + $0xc] sm:$0xf]
      %v3762 = vld [vmem:[%s3757 + $0x10] sm:$0xf]
      %v3763 = vld [vmem:[%s3757 + $0x14] sm:$0xf]
      %v3764 = vld [vmem:[%s3757 + $0x18] sm:$0xf]
      %v3765 = vld [vmem:[%s3757 + $0x1c] sm:$0xf]
      %v3766 = vld [vmem:[%s3757 + $0x20] sm:$0xf]
      %v3767 = vld [vmem:[%s3757 + $0x24] sm:$0xf]
      %v3768 = vld [vmem:[%s3757 + $0x28] sm:$0xf]
      %v3769 = vld [vmem:[%s3757 + $0x2c] sm:$0xf]
      %v3770 = vld [vmem:[%s3757 + $0x30] sm:$0xf]
      %v3771 = vld [vmem:[%s3757 + $0x34] sm:$0xf]
      %v3772 = vld [vmem:[%s3757 + $0x38] sm:$0xf]
      %v3773 = vld [vmem:[%s3757 + $0x3c] sm:$0xf]
      %v3774 = vunpack.c.l.b16 %v3386
      %v3775 = vunpack.c.l.b16 %v3396
      %v3776 = vunpack.c.l.b16 %v3410
      %v3777 = vunpack.c.l.b16 %v3420
      %v3778 = vunpack.c.l.b16 %v3434
      %v3779 = vunpack.c.l.b16 %v3444
      %v3780 = vunpack.c.l.b16 %v3458
      %v3781 = vunpack.c.l.b16 %v3468
      %v3782 = vunpack.c.l.b16 %v3482
      %v3783 = vunpack.c.l.b16 %v3492
      %v3784 = vunpack.c.l.b16 %v3506
      %v3785 = vunpack.c.l.b16 %v3516
      %v3786 = vunpack.c.l.b16 %v3530
      %v3787 = vunpack.c.l.b16 %v3540
      %v3788 = vunpack.c.l.b16 %v3554
      %v3789 = vunpack.c.l.b16 %v3564
      %v3790 = vunpack.c.l.b16 %v3578
      %v3791 = vunpack.c.l.b16 %v3588
      %v3792 = vunpack.c.l.b16 %v3602
      %v3793 = vunpack.c.l.b16 %v3612
      %v3794 = vunpack.c.l.b16 %v3626
      %v3795 = vunpack.c.l.b16 %v3636
      %v3796 = vunpack.c.l.b16 %v3650
      %v3797 = vunpack.c.l.b16 %v3660
      %v3798 = vunpack.c.l.b16 %v3674
      %v3799 = vunpack.c.l.b16 %v3684
      %v3800 = vunpack.c.l.b16 %v3698
      %v3801 = vunpack.c.l.b16 %v3708
      %v3802 = vunpack.c.l.b16 %v3722
      %v3803 = vunpack.c.l.b16 %v3732
      %v3804 = vunpack.c.l.b16 %v3746
      %v3805 = vunpack.c.l.b16 %v3756
      %v3806 = vpack.c.b16 %v3775, %v3774
      %v3807 = vpack.c.b16 %v3777, %v3776
      %v3808 = vpack.c.b16 %v3779, %v3778
      %v3809 = vpack.c.b16 %v3781, %v3780
      %v3810 = vpack.c.b16 %v3783, %v3782
      %v3811 = vpack.c.b16 %v3785, %v3784
      %v3812 = vpack.c.b16 %v3787, %v3786
      %v3813 = vpack.c.b16 %v3789, %v3788
      %v3814 = vpack.c.b16 %v3791, %v3790
      %v3815 = vpack.c.b16 %v3793, %v3792
      %v3816 = vpack.c.b16 %v3795, %v3794
      %v3817 = vpack.c.b16 %v3797, %v3796
      %v3818 = vpack.c.b16 %v3799, %v3798
      %v3819 = vpack.c.b16 %v3801, %v3800
      %v3820 = vpack.c.b16 %v3803, %v3802
      %v3821 = vpack.c.b16 %v3805, %v3804
      %v3854 = vunpack.c.l.b16 %v3758
      %v3855 = vunpack.c.l.b16 %v3759
      %v3856 = vunpack.c.l.b16 %v3760
      %v3857 = vunpack.c.l.b16 %v3761
      %v3858 = vunpack.c.l.b16 %v3762
      %v3859 = vunpack.c.l.b16 %v3763
      %v3860 = vunpack.c.l.b16 %v3764
      %v3861 = vunpack.c.l.b16 %v3765
      %v3862 = vunpack.c.l.b16 %v3766
      %v3863 = vunpack.c.l.b16 %v3767
      %v3864 = vunpack.c.l.b16 %v3768
      %v3865 = vunpack.c.l.b16 %v3769
      %v3866 = vunpack.c.l.b16 %v3770
      %v3867 = vunpack.c.l.b16 %v3771
      %v3868 = vunpack.c.l.b16 %v3772
      %v3869 = vunpack.c.l.b16 %v3773
      %v3870 = vpack.c.b16 %v3855, %v3854
      %v3871 = vpack.c.b16 %v3857, %v3856
      %v3872 = vpack.c.b16 %v3859, %v3858
      %v3873 = vpack.c.b16 %v3861, %v3860
      %v3874 = vpack.c.b16 %v3863, %v3862
      %v3875 = vpack.c.b16 %v3865, %v3864
      %v3876 = vpack.c.b16 %v3867, %v3866
      %v3877 = vpack.c.b16 %v3869, %v3868
      %3886 = vmatpush.bf16.msra.mxu0 %v3877
      %3887 = vmatpush.bf16.msra.mxu0 %v3876
      %3888 = vmatpush.bf16.msra.mxu0 %v3875
      %3889 = vmatpush.bf16.msra.mxu0 %v3874
      %3890 = vmatpush.bf16.msra.mxu0 %v3873
      %3891 = vmatpush.bf16.msra.mxu0 %v3872
      %3892 = vmatpush.bf16.msra.mxu0 %v3871
      %3893 = vmatpush.bf16.msra.mxu0 %v3870
      %3894 = vmatmul.bf16.gmra.mxu0 %v3806
      %v3895 = vpop.f32.mrf.mxu0
      %v3896 = vadd.f32 0.0, %v3895
      %v3897 = vpop.f32.mrf.mxu0
      %v3898 = vadd.f32 0.0, %v3897
      %3899 = vmatmul.bf16.gmra.mxu0 %v3807
      %v3900 = vpop.f32.mrf.mxu0
      %v3901 = vadd.f32 0.0, %v3900
      %v3902 = vpop.f32.mrf.mxu0
      %v3903 = vadd.f32 0.0, %v3902
      %3904 = vmatmul.bf16.gmra.mxu0 %v3808
      %v3905 = vpop.f32.mrf.mxu0
      %v3906 = vadd.f32 0.0, %v3905
      %v3907 = vpop.f32.mrf.mxu0
      %v3908 = vadd.f32 0.0, %v3907
      %3909 = vmatmul.bf16.gmra.mxu0 %v3809
      %v3910 = vpop.f32.mrf.mxu0
      %v3911 = vadd.f32 0.0, %v3910
      %v3912 = vpop.f32.mrf.mxu0
      %v3913 = vadd.f32 0.0, %v3912
      %3914 = vmatmul.bf16.gmra.mxu0 %v3810
      %v3915 = vpop.f32.mrf.mxu0
      %v3916 = vadd.f32 0.0, %v3915
      %v3917 = vpop.f32.mrf.mxu0
      %v3918 = vadd.f32 0.0, %v3917
      %3919 = vmatmul.bf16.gmra.mxu0 %v3811
      %v3920 = vpop.f32.mrf.mxu0
      %v3921 = vadd.f32 0.0, %v3920
      %v3922 = vpop.f32.mrf.mxu0
      %v3923 = vadd.f32 0.0, %v3922
      %3924 = vmatmul.bf16.gmra.mxu0 %v3812
      %v3925 = vpop.f32.mrf.mxu0
      %v3926 = vadd.f32 0.0, %v3925
      %v3927 = vpop.f32.mrf.mxu0
      %v3928 = vadd.f32 0.0, %v3927
      %3929 = vmatmul.bf16.gmra.mxu0 %v3813
      %v3930 = vpop.f32.mrf.mxu0
      %v3931 = vadd.f32 0.0, %v3930
      %v3932 = vpop.f32.mrf.mxu0
      %v3933 = vadd.f32 0.0, %v3932
      %3934 = vmatmul.bf16.gmra.mxu0 %v3814
      %v3935 = vpop.f32.mrf.mxu0
      %v3936 = vadd.f32 0.0, %v3935
      %v3937 = vpop.f32.mrf.mxu0
      %v3938 = vadd.f32 0.0, %v3937
      %3939 = vmatmul.bf16.gmra.mxu0 %v3815
      %v3940 = vpop.f32.mrf.mxu0
      %v3941 = vadd.f32 0.0, %v3940
      %v3942 = vpop.f32.mrf.mxu0
      %v3943 = vadd.f32 0.0, %v3942
      %3944 = vmatmul.bf16.gmra.mxu0 %v3816
      %v3945 = vpop.f32.mrf.mxu0
      %v3946 = vadd.f32 0.0, %v3945
      %v3947 = vpop.f32.mrf.mxu0
      %v3948 = vadd.f32 0.0, %v3947
      %3949 = vmatmul.bf16.gmra.mxu0 %v3817
      %v3950 = vpop.f32.mrf.mxu0
      %v3951 = vadd.f32 0.0, %v3950
      %v3952 = vpop.f32.mrf.mxu0
      %v3953 = vadd.f32 0.0, %v3952
      %3954 = vmatmul.bf16.gmra.mxu0 %v3818
      %v3955 = vpop.f32.mrf.mxu0
      %v3956 = vadd.f32 0.0, %v3955
      %v3957 = vpop.f32.mrf.mxu0
      %v3958 = vadd.f32 0.0, %v3957
      %3959 = vmatmul.bf16.gmra.mxu0 %v3819
      %v3960 = vpop.f32.mrf.mxu0
      %v3961 = vadd.f32 0.0, %v3960
      %v3962 = vpop.f32.mrf.mxu0
      %v3963 = vadd.f32 0.0, %v3962
      %3964 = vmatmul.bf16.gmra.mxu0 %v3820
      %v3965 = vpop.f32.mrf.mxu0
      %v3966 = vadd.f32 0.0, %v3965
      %v3967 = vpop.f32.mrf.mxu0
      %v3968 = vadd.f32 0.0, %v3967
      %3969 = vmatmul.bf16.gmra.mxu0 %v3821
      %v3970 = vpop.f32.mrf.mxu0
      %v3971 = vadd.f32 0.0, %v3970
      %v3972 = vpop.f32.mrf.mxu0
      %v3973 = vadd.f32 0.0, %v3972
      %3974 = vdwg.mxu0
      %v3975 = vadd.f32 %v3293, %v3896
      %v3976 = vadd.f32 %v3294, %v3898
      %v3977 = vadd.f32 %v3295, %v3901
      %v3978 = vadd.f32 %v3296, %v3903
      %v3979 = vadd.f32 %v3297, %v3906
      %v3980 = vadd.f32 %v3298, %v3908
      %v3981 = vadd.f32 %v3299, %v3911
      %v3982 = vadd.f32 %v3300, %v3913
      %v3983 = vadd.f32 %v3301, %v3916
      %v3984 = vadd.f32 %v3302, %v3918
      %v3985 = vadd.f32 %v3303, %v3921
      %v3986 = vadd.f32 %v3304, %v3923
      %v3987 = vadd.f32 %v3305, %v3926
      %v3988 = vadd.f32 %v3306, %v3928
      %v3989 = vadd.f32 %v3307, %v3931
      %v3990 = vadd.f32 %v3308, %v3933
      %v3991 = vadd.f32 %v3309, %v3936
      %v3992 = vadd.f32 %v3310, %v3938
      %v3993 = vadd.f32 %v3311, %v3941
      %v3994 = vadd.f32 %v3312, %v3943
      %v3995 = vadd.f32 %v3313, %v3946
      %v3996 = vadd.f32 %v3314, %v3948
      %v3997 = vadd.f32 %v3315, %v3951
      %v3998 = vadd.f32 %v3316, %v3953
      %v3999 = vadd.f32 %v3317, %v3956
      %v4000 = vadd.f32 %v3318, %v3958
      %v4001 = vadd.f32 %v3319, %v3961
      %v4002 = vadd.f32 %v3320, %v3963
      %v4003 = vadd.f32 %v3321, %v3966
      %v4004 = vadd.f32 %v3322, %v3968
      %v4005 = vadd.f32 %v3323, %v3971
      %v4006 = vadd.f32 %v3324, %v3973
      %v4007 = vld [vmem:[%s3010] sm:$0xe]
      %v4008 = vld [vmem:[%s3010 + $0xc] sm:$0xe]
      %v4009 = vld [vmem:[%s3010 + $0x18] sm:$0xe]
      %v4010 = vld [vmem:[%s3010 + $0x24] sm:$0xe]
      %v4011 = vld [vmem:[%s3010 + $0x30] sm:$0xe]
      %v4012 = vld [vmem:[%s3010 + $0x3c] sm:$0xe]
      %v4013 = vld [vmem:[%s3010 + $0x48] sm:$0xe]
      %v4014 = vld [vmem:[%s3010 + $0x54] sm:$0xe]
      %v4015 = vld [vmem:[%s3010 + $0x60] sm:$0xe]
      %v4016 = vld [vmem:[%s3010 + $0x6c] sm:$0xe]
      %v4017 = vld [vmem:[%s3010 + $0x78] sm:$0xe]
      %v4018 = vld [vmem:[%s3010 + $0x84] sm:$0xe]
      %v4019 = vld [vmem:[%s3010 + $0x90] sm:$0xe]
      %v4020 = vld [vmem:[%s3010 + $0x9c] sm:$0xe]
      %v4021 = vld [vmem:[%s3010 + $0xa8] sm:$0xe]
      %v4022 = vld [vmem:[%s3010 + $0xb4] sm:$0xe]
      %v4071 = vrot.slane %v4007, 5
      %v4072 = vrot.slane %v4071, 4
      %v4073 = vrot.slane %v3326, 5
      %v4074 = vsel %vm1218, %v4072, %v4073
      %v4075 = vrot.slane %v4073, 4
      %v4076 = vrot.slane %v3327, 5
      %v4077 = vsel %vm1218, %v4075, %v4076
      %v4078 = vrot.slane %v4008, 5
      %v4079 = vrot.slane %v4078, 4
      %v4080 = vrot.slane %v3329, 5
      %v4081 = vsel %vm1218, %v4079, %v4080
      %v4082 = vrot.slane %v4080, 4
      %v4083 = vrot.slane %v3330, 5
      %v4084 = vsel %vm1218, %v4082, %v4083
      %v4085 = vrot.slane %v4009, 5
      %v4086 = vrot.slane %v4085, 4
      %v4087 = vrot.slane %v3332, 5
      %v4088 = vsel %vm1218, %v4086, %v4087
      %v4089 = vrot.slane %v4087, 4
      %v4090 = vrot.slane %v3333, 5
      %v4091 = vsel %vm1218, %v4089, %v4090
      %v4092 = vrot.slane %v4010, 5
      %v4093 = vrot.slane %v4092, 4
      %v4094 = vrot.slane %v3335, 5
      %v4095 = vsel %vm1218, %v4093, %v4094
      %v4096 = vrot.slane %v4094, 4
      %v4097 = vrot.slane %v3336, 5
      %v4098 = vsel %vm1218, %v4096, %v4097
      %v4099 = vrot.slane %v4011, 5
      %v4100 = vrot.slane %v4099, 4
      %v4101 = vrot.slane %v3338, 5
      %v4102 = vsel %vm1218, %v4100, %v4101
      %v4103 = vrot.slane %v4101, 4
      %v4104 = vrot.slane %v3339, 5
      %v4105 = vsel %vm1218, %v4103, %v4104
      %v4106 = vrot.slane %v4012, 5
      %v4107 = vrot.slane %v4106, 4
      %v4108 = vrot.slane %v3341, 5
      %v4109 = vsel %vm1218, %v4107, %v4108
      %v4110 = vrot.slane %v4108, 4
      %v4111 = vrot.slane %v3342, 5
      %v4112 = vsel %vm1218, %v4110, %v4111
      %v4113 = vrot.slane %v4013, 5
      %v4114 = vrot.slane %v4113, 4
      %v4115 = vrot.slane %v3344, 5
      %v4116 = vsel %vm1218, %v4114, %v4115
      %v4117 = vrot.slane %v4115, 4
      %v4118 = vrot.slane %v3345, 5
      %v4119 = vsel %vm1218, %v4117, %v4118
      %v4120 = vrot.slane %v4014, 5
      %v4121 = vrot.slane %v4120, 4
      %v4122 = vrot.slane %v3347, 5
      %v4123 = vsel %vm1218, %v4121, %v4122
      %v4124 = vrot.slane %v4122, 4
      %v4125 = vrot.slane %v3348, 5
      %v4126 = vsel %vm1218, %v4124, %v4125
      %v4127 = vrot.slane %v4015, 5
      %v4128 = vrot.slane %v4127, 4
      %v4129 = vrot.slane %v3350, 5
      %v4130 = vsel %vm1218, %v4128, %v4129
      %v4131 = vrot.slane %v4129, 4
      %v4132 = vrot.slane %v3351, 5
      %v4133 = vsel %vm1218, %v4131, %v4132
      %v4134 = vrot.slane %v4016, 5
      %v4135 = vrot.slane %v4134, 4
      %v4136 = vrot.slane %v3353, 5
      %v4137 = vsel %vm1218, %v4135, %v4136
      %v4138 = vrot.slane %v4136, 4
      %v4139 = vrot.slane %v3354, 5
      %v4140 = vsel %vm1218, %v4138, %v4139
      %v4141 = vrot.slane %v4017, 5
      %v4142 = vrot.slane %v4141, 4
      %v4143 = vrot.slane %v3356, 5
      %v4144 = vsel %vm1218, %v4142, %v4143
      %v4145 = vrot.slane %v4143, 4
      %v4146 = vrot.slane %v3357, 5
      %v4147 = vsel %vm1218, %v4145, %v4146
      %v4148 = vrot.slane %v4018, 5
      %v4149 = vrot.slane %v4148, 4
      %v4150 = vrot.slane %v3359, 5
      %v4151 = vsel %vm1218, %v4149, %v4150
      %v4152 = vrot.slane %v4150, 4
      %v4153 = vrot.slane %v3360, 5
      %v4154 = vsel %vm1218, %v4152, %v4153
      %v4155 = vrot.slane %v4019, 5
      %v4156 = vrot.slane %v4155, 4
      %v4157 = vrot.slane %v3362, 5
      %v4158 = vsel %vm1218, %v4156, %v4157
      %v4159 = vrot.slane %v4157, 4
      %v4160 = vrot.slane %v3363, 5
      %v4161 = vsel %vm1218, %v4159, %v4160
      %v4162 = vrot.slane %v4020, 5
      %v4163 = vrot.slane %v4162, 4
      %v4164 = vrot.slane %v3365, 5
      %v4165 = vsel %vm1218, %v4163, %v4164
      %v4166 = vrot.slane %v4164, 4
      %v4167 = vrot.slane %v3366, 5
      %v4168 = vsel %vm1218, %v4166, %v4167
      %v4169 = vrot.slane %v4021, 5
      %v4170 = vrot.slane %v4169, 4
      %v4171 = vrot.slane %v3368, 5
      %v4172 = vsel %vm1218, %v4170, %v4171
      %v4173 = vrot.slane %v4171, 4
      %v4174 = vrot.slane %v3369, 5
      %v4175 = vsel %vm1218, %v4173, %v4174
      %v4176 = vrot.slane %v4022, 5
      %v4177 = vrot.slane %v4176, 4
      %v4178 = vrot.slane %v3371, 5
      %v4179 = vsel %vm1218, %v4177, %v4178
      %v4180 = vrot.slane %v4178, 4
      %v4181 = vrot.slane %v3372, 5
      %v4182 = vsel %vm1218, %v4180, %v4181
      %s4183 = scalar_lea.vmem %s1, 512
      %v4184 = vld [vmem:[%s4183] sm:$0xf]
      %v4185 = vld [vmem:[%s4183 + $0x4] sm:$0xf]
      %v4186 = vld [vmem:[%s4183 + $0x8] sm:$0xf]
      %v4187 = vld [vmem:[%s4183 + $0xc] sm:$0xf]
      %v4188 = vld [vmem:[%s4183 + $0x10] sm:$0xf]
      %v4189 = vld [vmem:[%s4183 + $0x14] sm:$0xf]
      %v4190 = vld [vmem:[%s4183 + $0x18] sm:$0xf]
      %v4191 = vld [vmem:[%s4183 + $0x1c] sm:$0xf]
      %v4192 = vld [vmem:[%s4183 + $0x20] sm:$0xf]
      %v4193 = vld [vmem:[%s4183 + $0x24] sm:$0xf]
      %v4194 = vld [vmem:[%s4183 + $0x28] sm:$0xf]
      %v4195 = vld [vmem:[%s4183 + $0x2c] sm:$0xf]
      %v4196 = vld [vmem:[%s4183 + $0x30] sm:$0xf]
      %v4197 = vld [vmem:[%s4183 + $0x34] sm:$0xf]
      %v4198 = vld [vmem:[%s4183 + $0x38] sm:$0xf]
      %v4199 = vld [vmem:[%s4183 + $0x3c] sm:$0xf]
      %v4200 = vunpack.c.l.b16 %v4074
      %v4201 = vunpack.c.l.b16 %v4077
      %v4202 = vunpack.c.l.b16 %v4081
      %v4203 = vunpack.c.l.b16 %v4084
      %v4204 = vunpack.c.l.b16 %v4088
      %v4205 = vunpack.c.l.b16 %v4091
      %v4206 = vunpack.c.l.b16 %v4095
      %v4207 = vunpack.c.l.b16 %v4098
      %v4208 = vunpack.c.l.b16 %v4102
      %v4209 = vunpack.c.l.b16 %v4105
      %v4210 = vunpack.c.l.b16 %v4109
      %v4211 = vunpack.c.l.b16 %v4112
      %v4212 = vunpack.c.l.b16 %v4116
      %v4213 = vunpack.c.l.b16 %v4119
      %v4214 = vunpack.c.l.b16 %v4123
      %v4215 = vunpack.c.l.b16 %v4126
      %v4216 = vunpack.c.l.b16 %v4130
      %v4217 = vunpack.c.l.b16 %v4133
      %v4218 = vunpack.c.l.b16 %v4137
      %v4219 = vunpack.c.l.b16 %v4140
      %v4220 = vunpack.c.l.b16 %v4144
      %v4221 = vunpack.c.l.b16 %v4147
      %v4222 = vunpack.c.l.b16 %v4151
      %v4223 = vunpack.c.l.b16 %v4154
      %v4224 = vunpack.c.l.b16 %v4158
      %v4225 = vunpack.c.l.b16 %v4161
      %v4226 = vunpack.c.l.b16 %v4165
      %v4227 = vunpack.c.l.b16 %v4168
      %v4228 = vunpack.c.l.b16 %v4172
      %v4229 = vunpack.c.l.b16 %v4175
      %v4230 = vunpack.c.l.b16 %v4179
      %v4231 = vunpack.c.l.b16 %v4182
      %v4232 = vpack.c.b16 %v4201, %v4200
      %v4233 = vpack.c.b16 %v4203, %v4202
      %v4234 = vpack.c.b16 %v4205, %v4204
      %v4235 = vpack.c.b16 %v4207, %v4206
      %v4236 = vpack.c.b16 %v4209, %v4208
      %v4237 = vpack.c.b16 %v4211, %v4210
      %v4238 = vpack.c.b16 %v4213, %v4212
      %v4239 = vpack.c.b16 %v4215, %v4214
      %v4240 = vpack.c.b16 %v4217, %v4216
      %v4241 = vpack.c.b16 %v4219, %v4218
      %v4242 = vpack.c.b16 %v4221, %v4220
      %v4243 = vpack.c.b16 %v4223, %v4222
      %v4244 = vpack.c.b16 %v4225, %v4224
      %v4245 = vpack.c.b16 %v4227, %v4226
      %v4246 = vpack.c.b16 %v4229, %v4228
      %v4247 = vpack.c.b16 %v4231, %v4230
      %v4280 = vunpack.c.l.b16 %v4184
      %v4281 = vunpack.c.l.b16 %v4185
      %v4282 = vunpack.c.l.b16 %v4186
      %v4283 = vunpack.c.l.b16 %v4187
      %v4284 = vunpack.c.l.b16 %v4188
      %v4285 = vunpack.c.l.b16 %v4189
      %v4286 = vunpack.c.l.b16 %v4190
      %v4287 = vunpack.c.l.b16 %v4191
      %v4288 = vunpack.c.l.b16 %v4192
      %v4289 = vunpack.c.l.b16 %v4193
      %v4290 = vunpack.c.l.b16 %v4194
      %v4291 = vunpack.c.l.b16 %v4195
      %v4292 = vunpack.c.l.b16 %v4196
      %v4293 = vunpack.c.l.b16 %v4197
      %v4294 = vunpack.c.l.b16 %v4198
      %v4295 = vunpack.c.l.b16 %v4199
      %v4296 = vpack.c.b16 %v4281, %v4280
      %v4297 = vpack.c.b16 %v4283, %v4282
      %v4298 = vpack.c.b16 %v4285, %v4284
      %v4299 = vpack.c.b16 %v4287, %v4286
      %v4300 = vpack.c.b16 %v4289, %v4288
      %v4301 = vpack.c.b16 %v4291, %v4290
      %v4302 = vpack.c.b16 %v4293, %v4292
      %v4303 = vpack.c.b16 %v4295, %v4294
      %4312 = vmatpush.bf16.msra.mxu0 %v4303
      %4313 = vmatpush.bf16.msra.mxu0 %v4302
      %4314 = vmatpush.bf16.msra.mxu0 %v4301
      %4315 = vmatpush.bf16.msra.mxu0 %v4300
      %4316 = vmatpush.bf16.msra.mxu0 %v4299
      %4317 = vmatpush.bf16.msra.mxu0 %v4298
      %4318 = vmatpush.bf16.msra.mxu0 %v4297
      %4319 = vmatpush.bf16.msra.mxu0 %v4296
      %4320 = vmatmul.bf16.gmra.mxu0 %v4232
      %v4321 = vpop.f32.mrf.mxu0
      %v4322 = vadd.f32 0.0, %v4321
      %v4323 = vpop.f32.mrf.mxu0
      %v4324 = vadd.f32 0.0, %v4323
      %4325 = vmatmul.bf16.gmra.mxu0 %v4233
      %v4326 = vpop.f32.mrf.mxu0
      %v4327 = vadd.f32 0.0, %v4326
      %v4328 = vpop.f32.mrf.mxu0
      %v4329 = vadd.f32 0.0, %v4328
      %4330 = vmatmul.bf16.gmra.mxu0 %v4234
      %v4331 = vpop.f32.mrf.mxu0
      %v4332 = vadd.f32 0.0, %v4331
      %v4333 = vpop.f32.mrf.mxu0
      %v4334 = vadd.f32 0.0, %v4333
      %4335 = vmatmul.bf16.gmra.mxu0 %v4235
      %v4336 = vpop.f32.mrf.mxu0
      %v4337 = vadd.f32 0.0, %v4336
      %v4338 = vpop.f32.mrf.mxu0
      %v4339 = vadd.f32 0.0, %v4338
      %4340 = vmatmul.bf16.gmra.mxu0 %v4236
      %v4341 = vpop.f32.mrf.mxu0
      %v4342 = vadd.f32 0.0, %v4341
      %v4343 = vpop.f32.mrf.mxu0
      %v4344 = vadd.f32 0.0, %v4343
      %4345 = vmatmul.bf16.gmra.mxu0 %v4237
      %v4346 = vpop.f32.mrf.mxu0
      %v4347 = vadd.f32 0.0, %v4346
      %v4348 = vpop.f32.mrf.mxu0
      %v4349 = vadd.f32 0.0, %v4348
      %4350 = vmatmul.bf16.gmra.mxu0 %v4238
      %v4351 = vpop.f32.mrf.mxu0
      %v4352 = vadd.f32 0.0, %v4351
      %v4353 = vpop.f32.mrf.mxu0
      %v4354 = vadd.f32 0.0, %v4353
      %4355 = vmatmul.bf16.gmra.mxu0 %v4239
      %v4356 = vpop.f32.mrf.mxu0
      %v4357 = vadd.f32 0.0, %v4356
      %v4358 = vpop.f32.mrf.mxu0
      %v4359 = vadd.f32 0.0, %v4358
      %4360 = vmatmul.bf16.gmra.mxu0 %v4240
      %v4361 = vpop.f32.mrf.mxu0
      %v4362 = vadd.f32 0.0, %v4361
      %v4363 = vpop.f32.mrf.mxu0
      %v4364 = vadd.f32 0.0, %v4363
      %4365 = vmatmul.bf16.gmra.mxu0 %v4241
      %v4366 = vpop.f32.mrf.mxu0
      %v4367 = vadd.f32 0.0, %v4366
      %v4368 = vpop.f32.mrf.mxu0
      %v4369 = vadd.f32 0.0, %v4368
      %4370 = vmatmul.bf16.gmra.mxu0 %v4242
      %v4371 = vpop.f32.mrf.mxu0
      %v4372 = vadd.f32 0.0, %v4371
      %v4373 = vpop.f32.mrf.mxu0
      %v4374 = vadd.f32 0.0, %v4373
      %4375 = vmatmul.bf16.gmra.mxu0 %v4243
      %v4376 = vpop.f32.mrf.mxu0
      %v4377 = vadd.f32 0.0, %v4376
      %v4378 = vpop.f32.mrf.mxu0
      %v4379 = vadd.f32 0.0, %v4378
      %4380 = vmatmul.bf16.gmra.mxu0 %v4244
      %v4381 = vpop.f32.mrf.mxu0
      %v4382 = vadd.f32 0.0, %v4381
      %v4383 = vpop.f32.mrf.mxu0
      %v4384 = vadd.f32 0.0, %v4383
      %4385 = vmatmul.bf16.gmra.mxu0 %v4245
      %v4386 = vpop.f32.mrf.mxu0
      %v4387 = vadd.f32 0.0, %v4386
      %v4388 = vpop.f32.mrf.mxu0
      %v4389 = vadd.f32 0.0, %v4388
      %4390 = vmatmul.bf16.gmra.mxu0 %v4246
      %v4391 = vpop.f32.mrf.mxu0
      %v4392 = vadd.f32 0.0, %v4391
      %v4393 = vpop.f32.mrf.mxu0
      %v4394 = vadd.f32 0.0, %v4393
      %4395 = vmatmul.bf16.gmra.mxu0 %v4247
      %v4396 = vpop.f32.mrf.mxu0
      %v4397 = vadd.f32 0.0, %v4396
      %v4398 = vpop.f32.mrf.mxu0
      %v4399 = vadd.f32 0.0, %v4398
      %4400 = vdwg.mxu0
      %v4401 = vadd.f32 %v3975, %v4322
      %v4402 = vadd.f32 %v3976, %v4324
      %v4403 = vadd.f32 %v3977, %v4327
      %v4404 = vadd.f32 %v3978, %v4329
      %v4405 = vadd.f32 %v3979, %v4332
      %v4406 = vadd.f32 %v3980, %v4334
      %v4407 = vadd.f32 %v3981, %v4337
      %v4408 = vadd.f32 %v3982, %v4339
      %v4409 = vadd.f32 %v3983, %v4342
      %v4410 = vadd.f32 %v3984, %v4344
      %v4411 = vadd.f32 %v3985, %v4347
      %v4412 = vadd.f32 %v3986, %v4349
      %v4413 = vadd.f32 %v3987, %v4352
      %v4414 = vadd.f32 %v3988, %v4354
      %v4415 = vadd.f32 %v3989, %v4357
      %v4416 = vadd.f32 %v3990, %v4359
      %v4417 = vadd.f32 %v3991, %v4362
      %v4418 = vadd.f32 %v3992, %v4364
      %v4419 = vadd.f32 %v3993, %v4367
      %v4420 = vadd.f32 %v3994, %v4369
      %v4421 = vadd.f32 %v3995, %v4372
      %v4422 = vadd.f32 %v3996, %v4374
      %v4423 = vadd.f32 %v3997, %v4377
      %v4424 = vadd.f32 %v3998, %v4379
      %v4425 = vadd.f32 %v3999, %v4382
      %v4426 = vadd.f32 %v4000, %v4384
      %v4427 = vadd.f32 %v4001, %v4387
      %v4428 = vadd.f32 %v4002, %v4389
      %v4429 = vadd.f32 %v4003, %v4392
      %v4430 = vadd.f32 %v4004, %v4394
      %v4431 = vadd.f32 %v4005, %v4397
      %v4432 = vadd.f32 %v4006, %v4399
      %v4433 = vld [vmem:[%s2] sm:$0x1]
      %v4435 = vperm.slane %v4433, 0
      %v4437 = vadd.f32 %v4401, %v4435
      %v4438 = vadd.f32 %v4402, %v4435
      %v4439 = vadd.f32 %v4403, %v4435
      %v4440 = vadd.f32 %v4404, %v4435
      %v4441 = vadd.f32 %v4405, %v4435
      %v4442 = vadd.f32 %v4406, %v4435
      %v4443 = vadd.f32 %v4407, %v4435
      %v4444 = vadd.f32 %v4408, %v4435
      %v4445 = vadd.f32 %v4409, %v4435
      %v4446 = vadd.f32 %v4410, %v4435
      %v4447 = vadd.f32 %v4411, %v4435
      %v4448 = vadd.f32 %v4412, %v4435
      %v4449 = vadd.f32 %v4413, %v4435
      %v4450 = vadd.f32 %v4414, %v4435
      %v4451 = vadd.f32 %v4415, %v4435
      %v4452 = vadd.f32 %v4416, %v4435
      %v4453 = vadd.f32 %v4417, %v4435
      %v4454 = vadd.f32 %v4418, %v4435
      %v4455 = vadd.f32 %v4419, %v4435
      %v4456 = vadd.f32 %v4420, %v4435
      %v4457 = vadd.f32 %v4421, %v4435
      %v4458 = vadd.f32 %v4422, %v4435
      %v4459 = vadd.f32 %v4423, %v4435
      %v4460 = vadd.f32 %v4424, %v4435
      %v4461 = vadd.f32 %v4425, %v4435
      %v4462 = vadd.f32 %v4426, %v4435
      %v4463 = vadd.f32 %v4427, %v4435
      %v4464 = vadd.f32 %v4428, %v4435
      %v4465 = vadd.f32 %v4429, %v4435
      %v4466 = vadd.f32 %v4430, %v4435
      %v4467 = vadd.f32 %v4431, %v4435
      %v4468 = vadd.f32 %v4432, %v4435
      %v4469 = vld [vmem:[%s249] sm:$0xf]
      %v4470 = vld [vmem:[%s249 + $0x4] sm:$0xf]
      %v4471 = vld [vmem:[%s249 + $0x8] sm:$0xf]
      %v4472 = vld [vmem:[%s249 + $0xc] sm:$0xf]
      %v4473 = vld [vmem:[%s249 + $0x10] sm:$0xf]
      %v4474 = vld [vmem:[%s249 + $0x14] sm:$0xf]
      %v4475 = vld [vmem:[%s249 + $0x18] sm:$0xf]
      %v4476 = vld [vmem:[%s249 + $0x1c] sm:$0xf]
      %v4477 = vld [vmem:[%s249 + $0x20] sm:$0xf]
      %v4478 = vld [vmem:[%s249 + $0x24] sm:$0xf]
      %v4479 = vld [vmem:[%s249 + $0x28] sm:$0xf]
      %v4480 = vld [vmem:[%s249 + $0x2c] sm:$0xf]
      %v4481 = vld [vmem:[%s249 + $0x30] sm:$0xf]
      %v4482 = vld [vmem:[%s249 + $0x34] sm:$0xf]
      %v4483 = vld [vmem:[%s249 + $0x38] sm:$0xf]
      %v4484 = vld [vmem:[%s249 + $0x3c] sm:$0xf]
      %v4485 = vld [vmem:[%s249 + $0x40] sm:$0xf]
      %v4486 = vld [vmem:[%s249 + $0x44] sm:$0xf]
      %v4487 = vld [vmem:[%s249 + $0x48] sm:$0xf]
      %v4488 = vld [vmem:[%s249 + $0x4c] sm:$0xf]
      %v4489 = vld [vmem:[%s249 + $0x50] sm:$0xf]
      %v4490 = vld [vmem:[%s249 + $0x54] sm:$0xf]
      %v4491 = vld [vmem:[%s249 + $0x58] sm:$0xf]
      %v4492 = vld [vmem:[%s249 + $0x5c] sm:$0xf]
      %v4493 = vld [vmem:[%s249 + $0x60] sm:$0xf]
      %v4494 = vld [vmem:[%s249 + $0x64] sm:$0xf]
      %v4495 = vld [vmem:[%s249 + $0x68] sm:$0xf]
      %v4496 = vld [vmem:[%s249 + $0x6c] sm:$0xf]
      %v4497 = vld [vmem:[%s249 + $0x70] sm:$0xf]
      %v4498 = vld [vmem:[%s249 + $0x74] sm:$0xf]
      %v4499 = vld [vmem:[%s249 + $0x78] sm:$0xf]
      %v4500 = vld [vmem:[%s249 + $0x7c] sm:$0xf]
      %v4501 = vunpack.c.l.bf16 %v4469
      %v4502 = vunpack.c.l.bf16 %v4470
      %v4503 = vunpack.c.l.bf16 %v4471
      %v4504 = vunpack.c.l.bf16 %v4472
      %v4505 = vunpack.c.l.bf16 %v4473
      %v4506 = vunpack.c.l.bf16 %v4474
      %v4507 = vunpack.c.l.bf16 %v4475
      %v4508 = vunpack.c.l.bf16 %v4476
      %v4509 = vunpack.c.l.bf16 %v4477
      %v4510 = vunpack.c.l.bf16 %v4478
      %v4511 = vunpack.c.l.bf16 %v4479
      %v4512 = vunpack.c.l.bf16 %v4480
      %v4513 = vunpack.c.l.bf16 %v4481
      %v4514 = vunpack.c.l.bf16 %v4482
      %v4515 = vunpack.c.l.bf16 %v4483
      %v4516 = vunpack.c.l.bf16 %v4484
      %v4517 = vunpack.c.l.bf16 %v4485
      %v4518 = vunpack.c.l.bf16 %v4486
      %v4519 = vunpack.c.l.bf16 %v4487
      %v4520 = vunpack.c.l.bf16 %v4488
      %v4521 = vunpack.c.l.bf16 %v4489
      %v4522 = vunpack.c.l.bf16 %v4490
      %v4523 = vunpack.c.l.bf16 %v4491
      %v4524 = vunpack.c.l.bf16 %v4492
      %v4525 = vunpack.c.l.bf16 %v4493
      %v4526 = vunpack.c.l.bf16 %v4494
      %v4527 = vunpack.c.l.bf16 %v4495
      %v4528 = vunpack.c.l.bf16 %v4496
      %v4529 = vunpack.c.l.bf16 %v4497
      %v4530 = vunpack.c.l.bf16 %v4498
      %v4531 = vunpack.c.l.bf16 %v4499
      %v4532 = vunpack.c.l.bf16 %v4500
      %v4533 = vadd.f32 %v4437, %v4501
      %v4534 = vadd.f32 %v4438, %v4502
      %v4535 = vadd.f32 %v4439, %v4503
      %v4536 = vadd.f32 %v4440, %v4504
      %v4537 = vadd.f32 %v4441, %v4505
      %v4538 = vadd.f32 %v4442, %v4506
      %v4539 = vadd.f32 %v4443, %v4507
      %v4540 = vadd.f32 %v4444, %v4508
      %v4541 = vadd.f32 %v4445, %v4509
      %v4542 = vadd.f32 %v4446, %v4510
      %v4543 = vadd.f32 %v4447, %v4511
      %v4544 = vadd.f32 %v4448, %v4512
      %v4545 = vadd.f32 %v4449, %v4513
      %v4546 = vadd.f32 %v4450, %v4514
      %v4547 = vadd.f32 %v4451, %v4515
      %v4548 = vadd.f32 %v4452, %v4516
      %v4549 = vadd.f32 %v4453, %v4517
      %v4550 = vadd.f32 %v4454, %v4518
      %v4551 = vadd.f32 %v4455, %v4519
      %v4552 = vadd.f32 %v4456, %v4520
      %v4553 = vadd.f32 %v4457, %v4521
      %v4554 = vadd.f32 %v4458, %v4522
      %v4555 = vadd.f32 %v4459, %v4523
      %v4556 = vadd.f32 %v4460, %v4524
      %v4557 = vadd.f32 %v4461, %v4525
      %v4558 = vadd.f32 %v4462, %v4526
      %v4559 = vadd.f32 %v4463, %v4527
      %v4560 = vadd.f32 %v4464, %v4528
      %v4561 = vadd.f32 %v4465, %v4529
      %v4562 = vadd.f32 %v4466, %v4530
      %v4563 = vadd.f32 %v4467, %v4531
      %v4564 = vadd.f32 %v4468, %v4532
      %v4565 = vpack.c.bf16 %v4533, %v4533
      %v4566 = vpack.c.bf16 %v4534, %v4534
      %v4567 = vpack.c.bf16 %v4535, %v4535
      %v4568 = vpack.c.bf16 %v4536, %v4536
      %v4569 = vpack.c.bf16 %v4537, %v4537
      %v4570 = vpack.c.bf16 %v4538, %v4538
      %v4571 = vpack.c.bf16 %v4539, %v4539
      %v4572 = vpack.c.bf16 %v4540, %v4540
      %v4573 = vpack.c.bf16 %v4541, %v4541
      %v4574 = vpack.c.bf16 %v4542, %v4542
      %v4575 = vpack.c.bf16 %v4543, %v4543
      %v4576 = vpack.c.bf16 %v4544, %v4544
      %v4577 = vpack.c.bf16 %v4545, %v4545
      %v4578 = vpack.c.bf16 %v4546, %v4546
      %v4579 = vpack.c.bf16 %v4547, %v4547
      %v4580 = vpack.c.bf16 %v4548, %v4548
      %v4581 = vpack.c.bf16 %v4549, %v4549
      %v4582 = vpack.c.bf16 %v4550, %v4550
      %v4583 = vpack.c.bf16 %v4551, %v4551
      %v4584 = vpack.c.bf16 %v4552, %v4552
      %v4585 = vpack.c.bf16 %v4553, %v4553
      %v4586 = vpack.c.bf16 %v4554, %v4554
      %v4587 = vpack.c.bf16 %v4555, %v4555
      %v4588 = vpack.c.bf16 %v4556, %v4556
      %v4589 = vpack.c.bf16 %v4557, %v4557
      %v4590 = vpack.c.bf16 %v4558, %v4558
      %v4591 = vpack.c.bf16 %v4559, %v4559
      %v4592 = vpack.c.bf16 %v4560, %v4560
      %v4593 = vpack.c.bf16 %v4561, %v4561
      %v4594 = vpack.c.bf16 %v4562, %v4562
      %v4595 = vpack.c.bf16 %v4563, %v4563
      %v4596 = vpack.c.bf16 %v4564, %v4564
      %4597 = vst [vmem:[%s260] sm:$0xf] %v4565
      %4598 = vst [vmem:[%s260 + $0x4] sm:$0xf] %v4566
      %4599 = vst [vmem:[%s260 + $0x8] sm:$0xf] %v4567
      %4600 = vst [vmem:[%s260 + $0xc] sm:$0xf] %v4568
      %4601 = vst [vmem:[%s260 + $0x10] sm:$0xf] %v4569
      %4602 = vst [vmem:[%s260 + $0x14] sm:$0xf] %v4570
      %4603 = vst [vmem:[%s260 + $0x18] sm:$0xf] %v4571
      %4604 = vst [vmem:[%s260 + $0x1c] sm:$0xf] %v4572
      %4605 = vst [vmem:[%s260 + $0x20] sm:$0xf] %v4573
      %4606 = vst [vmem:[%s260 + $0x24] sm:$0xf] %v4574
      %4607 = vst [vmem:[%s260 + $0x28] sm:$0xf] %v4575
      %4608 = vst [vmem:[%s260 + $0x2c] sm:$0xf] %v4576
      %4609 = vst [vmem:[%s260 + $0x30] sm:$0xf] %v4577
      %4610 = vst [vmem:[%s260 + $0x34] sm:$0xf] %v4578
      %4611 = vst [vmem:[%s260 + $0x38] sm:$0xf] %v4579
      %4612 = vst [vmem:[%s260 + $0x3c] sm:$0xf] %v4580
      %4613 = vst [vmem:[%s260 + $0x40] sm:$0xf] %v4581
      %4614 = vst [vmem:[%s260 + $0x44] sm:$0xf] %v4582
      %4615 = vst [vmem:[%s260 + $0x48] sm:$0xf] %v4583
      %4616 = vst [vmem:[%s260 + $0x4c] sm:$0xf] %v4584
      %4617 = vst [vmem:[%s260 + $0x50] sm:$0xf] %v4585
      %4618 = vst [vmem:[%s260 + $0x54] sm:$0xf] %v4586
      %4619 = vst [vmem:[%s260 + $0x58] sm:$0xf] %v4587
      %4620 = vst [vmem:[%s260 + $0x5c] sm:$0xf] %v4588
      %4621 = vst [vmem:[%s260 + $0x60] sm:$0xf] %v4589
      %4622 = vst [vmem:[%s260 + $0x64] sm:$0xf] %v4590
      %4623 = vst [vmem:[%s260 + $0x68] sm:$0xf] %v4591
      %4624 = vst [vmem:[%s260 + $0x6c] sm:$0xf] %v4592
      %4625 = vst [vmem:[%s260 + $0x70] sm:$0xf] %v4593
      %4626 = vst [vmem:[%s260 + $0x74] sm:$0xf] %v4594
      %4627 = vst [vmem:[%s260 + $0x78] sm:$0xf] %v4595
      %4628 = vst [vmem:[%s260 + $0x7c] sm:$0xf] %v4596
      %s4629 = smul.u32 16, %s20
      %p4630 = scmp.lt.s32.totalorder %s19, 1
      %s4631 = scalar_select %p4630, %s19, 1
      %p4632 = scmp.lt.s32.totalorder %s4629, 15
      %s4633 = scalar_select %p4632, %s4629, 15
      %s4634 = smul.addr %s4633, 2
      %s4635 = smul.addr %s4631, 32
      %s4636 = sadd.s32 %s4634, %s4635
      %s4637 = smul.addr %s4636, 4
      %s4638 = scalar_lea.vmem %s4, %s4637
      // Predicated region
      $region37: #{basic_block_ir_forward.3} parent=35 // pred_check
        %p4639 = pneg %p143
      $region38: #{basic_block_ir_forward.3} parent=35 // pred_check_branch
        %4641 = sbr.rel (%p4639) target = $region40
      $region39: #{basic_block_ir_forward.3} parent=35 // pred_region
        %s4642 = smul.u32 16, %s20
      $region40: #{basic_block_ir_forward.3} parent=35 // pred_fallthru
        _
    $region36: #{basic_block_ir_forward.3} parent=5 // pred_fallthru
      _
    %p4643 = scmp.le.s32.totalorder 2, %s10
    // Predicated region
    $region41: #{basic_block_ir_forward.3} parent=5 // pred_check
      %p4644 = pneg %p4643
    $region42: #{basic_block_ir_forward.3} parent=5 // pred_check_branch
      %4646 = sbr.rel (%p4644) target = $region44
    $region43: #{basic_block_ir_forward.3} parent=5 // pred_region
      %s4647 = ssub.s32 %s10, 2
      // Predicated region
      $region45: #{basic_block_ir_forward.3} parent=43 // pred_check
        %p4648 = pneg %p149
      $region46: #{basic_block_ir_forward.3} parent=43 // pred_check_branch
        %4650 = sbr.rel (%p4648) target = $region48
      $region47: #{basic_block_ir_forward.3} parent=43 // pred_region
        %s4651 = smul.u32 16, %s22
        %p4652 = scmp.lt.s32.totalorder %s21, 1
        %s4653 = scalar_select %p4652, %s21, 1
        %p4654 = scmp.lt.s32.totalorder %s4651, 15
        %s4655 = scalar_select %p4654, %s4651, 15
        %s4656 = smul.addr %s4655, 2
        %s4657 = smul.addr %s4653, 32
        %s4658 = sadd.s32 %s4656, %s4657
        %s4659 = smul.addr %s4658, 4
        %s4660 = scalar_lea.vmem %s4, %s4659
      $region48: #{basic_block_ir_forward.3} parent=43 // pred_fallthru
        _
    $region44: #{basic_block_ir_forward.3} parent=5 // pred_fallthru
      _
  $region6: #{basic_block_ir_forward.3} parent=0 // loop_footer
    %s14 = sadd.s32 1, %s10
  $region7: #{basic_block_ir_forward.3} parent=0 // loop_footer_branch
    %9 = sbr.rel target = $region3
  $region8: #{basic_block_ir_forward.3} parent=0 // loop_exit
    _

</llo_original>
